<compile_context>
chip_gen: v7x
topology: tpu7x:2x2x1
jax: 0.10.0
libtpu: 0.0.40
codegen_flags: <defaults>
</compile_context>

<pallas_src>
import functools

import jax
import jax.numpy as jnp
from jax.experimental import pallas as pl
from jax.experimental.pallas import tpu as pltpu

_EPS = 1e-5  # nn.BatchNorm2d default eps


def _round_up(x, m):
    return (x + m - 1) // m * m


def _double_conv_kernel(patch1_ref, w1_ref, g1_ref, b1_ref, w2_ref, g2_ref, b2_ref,
                        out_ref, mid_ref, *, N, H, W, Wpp, Cp):
    R = H * Wpp          # "wide" output rows per image (full padded width)
    M = N * R            # matmul rows
    NHW = N * H * W      # number of valid pixels per channel (BN denominator)
    inv_nhw = 1.0 / NHW

    # Valid-column mask for the wide-row layout: flattened row q -> column q % Wpp,
    # valid output columns are 1..W (column 0 and >W are padding / discarded).
    q = jax.lax.broadcasted_iota(jnp.int32, (M, 1), 0)
    col = q % Wpp
    mask = jnp.logical_and(col >= 1, col <= W).astype(jnp.float32)   # (M, 1)

    def bn_relu(acc, g_ref, b_ref):
        # Train-mode BatchNorm (biased variance over the valid pixels) folded into
        # one per-channel scale/bias, fused with ReLU.  All math in f32.
        am = acc * mask
        s = jnp.sum(am, axis=0, keepdims=True)                        # (1, Cp)
        ss = jnp.sum(am * am, axis=0, keepdims=True)                  # (1, Cp)
        mean = s * inv_nhw
        var = jnp.maximum(ss * inv_nhw - mean * mean, 0.0)
        scale = g_ref[...] * jax.lax.rsqrt(var + _EPS)
        bias = b_ref[...] - mean * scale
        return jnp.maximum(acc * scale + bias, 0.0) * mask

    # ---- conv1: one deep-K matmul on the wrapper-built im2col patch (bf16 -> f32).
    acc1 = jnp.dot(patch1_ref[...], w1_ref[...],
                   preferred_element_type=jnp.float32)                # (M, Cp)
    h1 = bn_relu(acc1, g1_ref, b1_ref)

    # ---- re-embed the intermediate into a zero-padded flat frame in VMEM.
    # Only the 2-row top/bottom borders are zeroed; the interior is one contiguous,
    # lane-dense, sublane-aligned store (2*Wpp and H*Wpp are multiples of 16).
    mid_ref[:, pl.ds(0, 2 * Wpp), :] = jnp.zeros((N, 2 * Wpp, Cp), mid_ref.dtype)
    mid_ref[:, pl.ds((H + 2) * Wpp, 2 * Wpp), :] = jnp.zeros(
        (N, 2 * Wpp, Cp), mid_ref.dtype)
    mid_ref[:, pl.ds(2 * Wpp, R), :] = h1.astype(mid_ref.dtype).reshape(N, R, Cp)

    # ---- conv2: build the (M, 9*Cp) im2col patch from 9 contiguous slices of the
    # flattened frame (lane blocks 128-aligned), then one deep-K matmul.
    taps = []
    for dy in range(3):
        for dx in range(3):
            start = (1 + dy) * Wpp + dx - 1
            taps.append(mid_ref[:, pl.ds(start, R), :])               # (N, R, Cp)
    patch2 = jnp.concatenate(taps, axis=-1).reshape(M, 9 * Cp)        # bf16
    acc2 = jnp.dot(patch2, w2_ref[...], preferred_element_type=jnp.float32)
    h2 = bn_relu(acc2, g2_ref, b2_ref)

    out_ref[...] = h2.astype(out_ref.dtype)                           # lane-dense store


def double_conv(x_nchw, w1_hwio, g1, b1, w2_hwio, g2, b2):
    """DoubleConv forward.  x_nchw: (N, Cin, H, W) -> (N, Cout, H, W), f32."""
    N, Cin, H, W = x_nchw.shape
    Cout = w1_hwio.shape[-1]

    Cinp = _round_up(Cin, 8)          # modest K padding for conv1
    Cp = _round_up(Cout, 128)         # lane-dense channel padding
    Wpp = _round_up(W + 2, 8)         # padded width, multiple of 8 (>= W + 2)
    Hpp = H + 4                       # 2 pad rows top/bottom keeps all slices in-bounds
    R = H * Wpp
    M = N * R

    # NCHW -> NHWC, bf16 for the MXU; zero-pad spatially and on channels.
    x = jnp.transpose(x_nchw, (0, 2, 3, 1)).astype(jnp.bfloat16)
    xp = jnp.pad(x, ((0, 0), (2, 2), (1, Wpp - W - 1), (0, Cinp - Cin)))
    xflat = xp.reshape(N, Hpp * Wpp, Cinp)

    # conv1 im2col (done in XLA on the small input tensor): 9 contiguous flat slices,
    # wide-row layout (output width = Wpp; columns 0 and > W are masked/discarded).
    taps = []
    for dy in range(3):
        for dx in range(3):
            start = (1 + dy) * Wpp + dx - 1
            taps.append(xflat[:, start:start + R, :])
    patch1 = jnp.concatenate(taps, axis=-1).reshape(M, 9 * Cinp)      # bf16

    # Weights: HWIO (3,3,Ci,Co) zero-padded on channels, reshaped to matmul form
    # (tap-major rows: (dy*3+dx)*C + c), bf16.
    w1m = jnp.pad(w1_hwio.astype(jnp.float32),
                  ((0, 0), (0, 0), (0, Cinp - Cin), (0, Cp - Cout)))
    w1m = w1m.reshape(9 * Cinp, Cp).astype(jnp.bfloat16)
    w2m = jnp.pad(w2_hwio.astype(jnp.float32),
                  ((0, 0), (0, 0), (0, Cp - Cout), (0, Cp - Cout)))
    w2m = w2m.reshape(9 * Cp, Cp).astype(jnp.bfloat16)

    # BN affine params, zero-padded so padded channels stay identically zero.
    g1p = jnp.pad(g1.astype(jnp.float32), (0, Cp - Cout)).reshape(1, Cp)
    b1p = jnp.pad(b1.astype(jnp.float32), (0, Cp - Cout)).reshape(1, Cp)
    g2p = jnp.pad(g2.astype(jnp.float32), (0, Cp - Cout)).reshape(1, Cp)
    b2p = jnp.pad(b2.astype(jnp.float32), (0, Cp - Cout)).reshape(1, Cp)

    kernel = functools.partial(_double_conv_kernel, N=N, H=H, W=W, Wpp=Wpp, Cp=Cp)
    out_wide = pl.pallas_call(
        kernel,
        out_shape=jax.ShapeDtypeStruct((M, Cp), jnp.float32),
        scratch_shapes=[pltpu.VMEM((N, Hpp * Wpp, Cp), jnp.bfloat16)],
        compiler_params=pltpu.CompilerParams(vmem_limit_bytes=32 * 1024 * 1024),
    )(patch1, w1m, g1p, b1p, w2m, g2p, b2p)

    # Drop the padded width columns / padded channels and go back to NCHW.
    out = out_wide.reshape(N, H, Wpp, Cp)[:, :, 1:1 + W, :Cout]
    return jnp.transpose(out, (0, 3, 1, 2))


if __name__ == "__main__":
    N, Cin, Cout, H, W = 2, 4, 8, 16, 16
    key = jax.random.PRNGKey(0)
    kx, k1, k2 = jax.random.split(key, 3)

    x = jax.random.normal(kx, (N, Cin, H, W), dtype=jnp.float32)
    # Conv weights in HWIO layout, no bias (matches bias=False).
    w1 = jax.random.normal(k1, (3, 3, Cin, Cout), dtype=jnp.float32) * 0.1
    w2 = jax.random.normal(k2, (3, 3, Cout, Cout), dtype=jnp.float32) * 0.1
    # BatchNorm affine params: PyTorch default init (weight=1, bias=0).
    g1 = jnp.ones((Cout,), jnp.float32)
    b1 = jnp.zeros((Cout,), jnp.float32)
    g2 = jnp.ones((Cout,), jnp.float32)
    b2 = jnp.zeros((Cout,), jnp.float32)

    y = jax.jit(double_conv)(x, w1, g1, b1, w2, g2, b2)
    jax.block_until_ready(y)
    assert y.shape == (N, Cout, H, W) and y.dtype == jnp.float32
    assert bool(jnp.all(jnp.isfinite(y)))
    print("KERNEL_OK")
</pallas_src>

<mosaic_0001>
module attributes {stable_mosaic.version = 11 : i64} {
  func.func @_double_conv_kernel(%arg0: memref<768x72xbf16, #tpu.memory_space<vmem>>, %arg1: memref<72x128xbf16, #tpu.memory_space<vmem>>, %arg2: memref<1x128xf32, #tpu.memory_space<vmem>>, %arg3: memref<1x128xf32, #tpu.memory_space<vmem>>, %arg4: memref<1152x128xbf16, #tpu.memory_space<vmem>>, %arg5: memref<1x128xf32, #tpu.memory_space<vmem>>, %arg6: memref<1x128xf32, #tpu.memory_space<vmem>>, %arg7: memref<768x128xf32, #tpu.memory_space<vmem>>, %arg8: memref<2x480x128xbf16, #tpu.memory_space<vmem>>) attributes {dimension_semantics = [], scalar_prefetch = 0 : i64, scratch_operands = 1 : i64, tpu.core_type = #tpu.core_type<tc>} {
    %0 = tpu.iota {dimensions = array<i32: 0>} : vector<768x1xi32>
    %c24_i32 = arith.constant 24 : i32
    %c0_i32 = arith.constant 0 : i32
    %1 = arith.cmpi eq, %c24_i32, %c0_i32 : i32
    %c1_i32 = arith.constant 1 : i32
    %2 = arith.select %1, %c1_i32, %c24_i32 : i32
    %3 = vector.broadcast %2 : i32 to vector<768x1xi32>
    %4 = arith.remsi %0, %3 : vector<768x1xi32>
    %c0_i32_0 = arith.constant 0 : i32
    %5 = vector.broadcast %c0_i32_0 : i32 to vector<768x1xi32>
    %6 = arith.cmpi ne, %4, %5 : vector<768x1xi32>
    %c0_i32_1 = arith.constant 0 : i32
    %7 = vector.broadcast %c0_i32_1 : i32 to vector<768x1xi32>
    %8 = arith.cmpi slt, %4, %7 : vector<768x1xi32>
    %c0_i32_2 = arith.constant 0 : i32
    %9 = arith.cmpi slt, %2, %c0_i32_2 : i32
    %10 = vector.broadcast %9 : i1 to vector<768x1xi1>
    %11 = vector.broadcast %10 : vector<768x1xi1> to vector<768x1xi1>
    %12 = arith.xori %8, %11 : vector<768x1xi1>
    %13 = arith.andi %12, %6 : vector<768x1xi1>
    %14 = vector.broadcast %2 : i32 to vector<768x1xi32>
    %15 = arith.addi %4, %14 : vector<768x1xi32>
    %16 = arith.select %13, %15, %4 : vector<768x1xi1>, vector<768x1xi32>
    %c1_i32_3 = arith.constant 1 : i32
    %17 = vector.broadcast %c1_i32_3 : i32 to vector<768x1xi32>
    %18 = arith.cmpi sge, %16, %17 : vector<768x1xi32>
    %c16_i32 = arith.constant 16 : i32
    %19 = vector.broadcast %c16_i32 : i32 to vector<768x1xi32>
    %20 = arith.cmpi sle, %16, %19 : vector<768x1xi32>
    %21 = arith.andi %18, %20 : vector<768x1xi1>
    %22 = arith.extui %21 : vector<768x1xi1> to vector<768x1xi32>
    %23 = arith.sitofp %22 : vector<768x1xi32> to vector<768x1xf32>
    %c0 = arith.constant 0 : index
    %c0_4 = arith.constant 0 : index
    %24 = vector.load %arg0[%c0, %c0_4] : memref<768x72xbf16, #tpu.memory_space<vmem>>, vector<768x72xbf16>
    %c0_5 = arith.constant 0 : index
    %c0_6 = arith.constant 0 : index
    %25 = vector.load %arg1[%c0_5, %c0_6] : memref<72x128xbf16, #tpu.memory_space<vmem>>, vector<72x128xbf16>
    %cst = arith.constant dense<0.000000e+00> : vector<768x128xf32>
    %26 = tpu.matmul %24, %25, %cst {dimension_numbers = #tpu.dot_dimension_numbers<[1], [0], [0], [1], [0, 0, 1, 1], [], []>} : vector<768x72xbf16>, vector<72x128xbf16>, vector<768x128xf32> -> vector<768x128xf32>
    %27 = vector.broadcast %23 : vector<768x1xf32> to vector<768x128xf32>
    %28 = arith.mulf %26, %27 : vector<768x128xf32>
    %cst_7 = arith.constant dense<0.000000e+00> : vector<128xf32>
    %29 = vector.multi_reduction <add>, %28, %cst_7 [0] : vector<768x128xf32> to vector<128xf32>
    %30 = vector.shape_cast %29 : vector<128xf32> to vector<1x128xf32>
    %31 = arith.mulf %28, %28 : vector<768x128xf32>
    %cst_8 = arith.constant dense<0.000000e+00> : vector<128xf32>
    %32 = vector.multi_reduction <add>, %31, %cst_8 [0] : vector<768x128xf32> to vector<128xf32>
    %33 = vector.shape_cast %32 : vector<128xf32> to vector<1x128xf32>
    %cst_9 = arith.constant 0.001953125 : f32
    %34 = vector.broadcast %cst_9 : f32 to vector<1x128xf32>
    %35 = arith.mulf %30, %34 : vector<1x128xf32>
    %cst_10 = arith.constant 0.001953125 : f32
    %36 = vector.broadcast %cst_10 : f32 to vector<1x128xf32>
    %37 = arith.mulf %33, %36 : vector<1x128xf32>
    %38 = arith.mulf %35, %35 : vector<1x128xf32>
    %39 = arith.subf %37, %38 : vector<1x128xf32>
    %cst_11 = arith.constant 0.000000e+00 : f32
    %40 = vector.broadcast %cst_11 : f32 to vector<1x128xf32>
    %41 = arith.maximumf %39, %40 : vector<1x128xf32>
    %c0_12 = arith.constant 0 : index
    %c0_13 = arith.constant 0 : index
    %42 = vector.load %arg2[%c0_12, %c0_13] : memref<1x128xf32, #tpu.memory_space<vmem>>, vector<1x128xf32>
    %cst_14 = arith.constant 9.99999974E-6 : f32
    %43 = vector.broadcast %cst_14 : f32 to vector<1x128xf32>
    %44 = arith.addf %41, %43 : vector<1x128xf32>
    %45 = math.rsqrt %44 : vector<1x128xf32>
    %46 = arith.mulf %42, %45 : vector<1x128xf32>
    %c0_15 = arith.constant 0 : index
    %c0_16 = arith.constant 0 : index
    %47 = vector.load %arg3[%c0_15, %c0_16] : memref<1x128xf32, #tpu.memory_space<vmem>>, vector<1x128xf32>
    %48 = arith.mulf %35, %46 : vector<1x128xf32>
    %49 = arith.subf %47, %48 : vector<1x128xf32>
    %50 = vector.broadcast %46 : vector<1x128xf32> to vector<768x128xf32>
    %51 = arith.mulf %26, %50 : vector<768x128xf32>
    %52 = vector.broadcast %49 : vector<1x128xf32> to vector<768x128xf32>
    %53 = arith.addf %51, %52 : vector<768x128xf32>
    %cst_17 = arith.constant 0.000000e+00 : f32
    %54 = vector.broadcast %cst_17 : f32 to vector<768x128xf32>
    %55 = arith.maximumf %53, %54 : vector<768x128xf32>
    %56 = vector.broadcast %23 : vector<768x1xf32> to vector<768x128xf32>
    %57 = arith.mulf %55, %56 : vector<768x128xf32>
    %cst_18 = arith.constant 0.000000e+00 : bf16
    %58 = vector.broadcast %cst_18 : bf16 to vector<2x48x128xbf16>
    %c0_19 = arith.constant 0 : index
    %c0_20 = arith.constant 0 : index
    %c0_21 = arith.constant 0 : index
    %59 = vector.load %arg8[%c0_19, %c0_20, %c0_21] : memref<2x480x128xbf16, #tpu.memory_space<vmem>>, vector<2x48x128xbf16>
    tpu.vector_store %arg8[%c0_19, %c0_20, %c0_21], %58 {strides = array<i32>} : memref<2x480x128xbf16, #tpu.memory_space<vmem>>, vector<2x48x128xbf16>,
    %cst_22 = arith.constant 0.000000e+00 : bf16
    %60 = vector.broadcast %cst_22 : bf16 to vector<2x48x128xbf16>
    %c0_23 = arith.constant 0 : index
    %c432 = arith.constant 432 : index
    %c0_24 = arith.constant 0 : index
    %61 = vector.load %arg8[%c0_23, %c432, %c0_24] : memref<2x480x128xbf16, #tpu.memory_space<vmem>>, vector<2x48x128xbf16>
    tpu.vector_store %arg8[%c0_23, %c432, %c0_24], %60 {strides = array<i32>} : memref<2x480x128xbf16, #tpu.memory_space<vmem>>, vector<2x48x128xbf16>,
    %62 = arith.truncf %57 : vector<768x128xf32> to vector<768x128xbf16>
    %63 = vector.shape_cast %62 : vector<768x128xbf16> to vector<2x384x128xbf16>
    %c0_25 = arith.constant 0 : index
    %c48 = arith.constant 48 : index
    %c0_26 = arith.constant 0 : index
    %64 = vector.load %arg8[%c0_25, %c48, %c0_26] : memref<2x480x128xbf16, #tpu.memory_space<vmem>>, vector<2x384x128xbf16>
    tpu.vector_store %arg8[%c0_25, %c48, %c0_26], %63 {strides = array<i32>} : memref<2x480x128xbf16, #tpu.memory_space<vmem>>, vector<2x384x128xbf16>,
    %c0_27 = arith.constant 0 : index
    %c23 = arith.constant 23 : index
    %c0_28 = arith.constant 0 : index
    %65 = vector.load %arg8[%c0_27, %c23, %c0_28] : memref<2x480x128xbf16, #tpu.memory_space<vmem>>, vector<2x384x128xbf16>
    %c0_29 = arith.constant 0 : index
    %c24 = arith.constant 24 : index
    %c0_30 = arith.constant 0 : index
    %66 = vector.load %arg8[%c0_29, %c24, %c0_30] : memref<2x480x128xbf16, #tpu.memory_space<vmem>>, vector<2x384x128xbf16>
    %c0_31 = arith.constant 0 : index
    %c25 = arith.constant 25 : index
    %c0_32 = arith.constant 0 : index
    %67 = vector.load %arg8[%c0_31, %c25, %c0_32] : memref<2x480x128xbf16, #tpu.memory_space<vmem>>, vector<2x384x128xbf16>
    %c0_33 = arith.constant 0 : index
    %c47 = arith.constant 47 : index
    %c0_34 = arith.constant 0 : index
    %68 = vector.load %arg8[%c0_33, %c47, %c0_34] : memref<2x480x128xbf16, #tpu.memory_space<vmem>>, vector<2x384x128xbf16>
    %c0_35 = arith.constant 0 : index
    %c48_36 = arith.constant 48 : index
    %c0_37 = arith.constant 0 : index
    %69 = vector.load %arg8[%c0_35, %c48_36, %c0_37] : memref<2x480x128xbf16, #tpu.memory_space<vmem>>, vector<2x384x128xbf16>
    %c0_38 = arith.constant 0 : index
    %c49 = arith.constant 49 : index
    %c0_39 = arith.constant 0 : index
    %70 = vector.load %arg8[%c0_38, %c49, %c0_39] : memref<2x480x128xbf16, #tpu.memory_space<vmem>>, vector<2x384x128xbf16>
    %c0_40 = arith.constant 0 : index
    %c71 = arith.constant 71 : index
    %c0_41 = arith.constant 0 : index
    %71 = vector.load %arg8[%c0_40, %c71, %c0_41] : memref<2x480x128xbf16, #tpu.memory_space<vmem>>, vector<2x384x128xbf16>
    %c0_42 = arith.constant 0 : index
    %c72 = arith.constant 72 : index
    %c0_43 = arith.constant 0 : index
    %72 = vector.load %arg8[%c0_42, %c72, %c0_43] : memref<2x480x128xbf16, #tpu.memory_space<vmem>>, vector<2x384x128xbf16>
    %c0_44 = arith.constant 0 : index
    %c73 = arith.constant 73 : index
    %c0_45 = arith.constant 0 : index
    %73 = vector.load %arg8[%c0_44, %c73, %c0_45] : memref<2x480x128xbf16, #tpu.memory_space<vmem>>, vector<2x384x128xbf16>
    %74 = tpu.concatenate %65, %66, %67, %68, %69, %70, %71, %72, %73 in 2 : vector<2x384x128xbf16>, vector<2x384x128xbf16>, vector<2x384x128xbf16>, vector<2x384x128xbf16>, vector<2x384x128xbf16>, vector<2x384x128xbf16>, vector<2x384x128xbf16>, vector<2x384x128xbf16>, vector<2x384x128xbf16> -> vector<2x384x1152xbf16>
    %75 = vector.shape_cast %74 : vector<2x384x1152xbf16> to vector<768x1152xbf16>
    %c0_46 = arith.constant 0 : index
    %c0_47 = arith.constant 0 : index
    %76 = vector.load %arg4[%c0_46, %c0_47] : memref<1152x128xbf16, #tpu.memory_space<vmem>>, vector<1152x128xbf16>
    %cst_48 = arith.constant dense<0.000000e+00> : vector<768x128xf32>
    %77 = tpu.matmul %75, %76, %cst_48 {dimension_numbers = #tpu.dot_dimension_numbers<[1], [0], [0], [1], [0, 0, 1, 1], [], []>} : vector<768x1152xbf16>, vector<1152x128xbf16>, vector<768x128xf32> -> vector<768x128xf32>
    %78 = vector.broadcast %23 : vector<768x1xf32> to vector<768x128xf32>
    %79 = arith.mulf %77, %78 : vector<768x128xf32>
    %cst_49 = arith.constant dense<0.000000e+00> : vector<128xf32>
    %80 = vector.multi_reduction <add>, %79, %cst_49 [0] : vector<768x128xf32> to vector<128xf32>
    %81 = vector.shape_cast %80 : vector<128xf32> to vector<1x128xf32>
    %82 = arith.mulf %79, %79 : vector<768x128xf32>
    %cst_50 = arith.constant dense<0.000000e+00> : vector<128xf32>
    %83 = vector.multi_reduction <add>, %82, %cst_50 [0] : vector<768x128xf32> to vector<128xf32>
    %84 = vector.shape_cast %83 : vector<128xf32> to vector<1x128xf32>
    %cst_51 = arith.constant 0.001953125 : f32
    %85 = vector.broadcast %cst_51 : f32 to vector<1x128xf32>
    %86 = arith.mulf %81, %85 : vector<1x128xf32>
    %cst_52 = arith.constant 0.001953125 : f32
    %87 = vector.broadcast %cst_52 : f32 to vector<1x128xf32>
    %88 = arith.mulf %84, %87 : vector<1x128xf32>
    %89 = arith.mulf %86, %86 : vector<1x128xf32>
    %90 = arith.subf %88, %89 : vector<1x128xf32>
    %cst_53 = arith.constant 0.000000e+00 : f32
    %91 = vector.broadcast %cst_53 : f32 to vector<1x128xf32>
    %92 = arith.maximumf %90, %91 : vector<1x128xf32>
    %c0_54 = arith.constant 0 : index
    %c0_55 = arith.constant 0 : index
    %93 = vector.load %arg5[%c0_54, %c0_55] : memref<1x128xf32, #tpu.memory_space<vmem>>, vector<1x128xf32>
    %cst_56 = arith.constant 9.99999974E-6 : f32
    %94 = vector.broadcast %cst_56 : f32 to vector<1x128xf32>
    %95 = arith.addf %92, %94 : vector<1x128xf32>
    %96 = math.rsqrt %95 : vector<1x128xf32>
    %97 = arith.mulf %93, %96 : vector<1x128xf32>
    %c0_57 = arith.constant 0 : index
    %c0_58 = arith.constant 0 : index
    %98 = vector.load %arg6[%c0_57, %c0_58] : memref<1x128xf32, #tpu.memory_space<vmem>>, vector<1x128xf32>
    %99 = arith.mulf %86, %97 : vector<1x128xf32>
    %100 = arith.subf %98, %99 : vector<1x128xf32>
    %101 = vector.broadcast %97 : vector<1x128xf32> to vector<768x128xf32>
    %102 = arith.mulf %77, %101 : vector<768x128xf32>
    %103 = vector.broadcast %100 : vector<1x128xf32> to vector<768x128xf32>
    %104 = arith.addf %102, %103 : vector<768x128xf32>
    %cst_59 = arith.constant 0.000000e+00 : f32
    %105 = vector.broadcast %cst_59 : f32 to vector<768x128xf32>
    %106 = arith.maximumf %104, %105 : vector<768x128xf32>
    %107 = vector.broadcast %23 : vector<768x1xf32> to vector<768x128xf32>
    %108 = arith.mulf %106, %107 : vector<768x128xf32>
    %c0_60 = arith.constant 0 : index
    %c0_61 = arith.constant 0 : index
    %109 = vector.load %arg7[%c0_60, %c0_61] : memref<768x128xf32, #tpu.memory_space<vmem>>, vector<768x128xf32>
    tpu.vector_store %arg7[%c0_60, %c0_61], %108 {strides = array<i32>} : memref<768x128xf32, #tpu.memory_space<vmem>>, vector<768x128xf32>,
    return
  }
}

</mosaic_0001>

<llo_original>
// kernel: double_conv.1
$region0: #{double_conv.1}
  #allocation0 [shape = 'u32[]', space=smem, size = 0x4, offset = 0x4, fixed_abs, tag = 'smem constant byte address 0x4 - core index']
  #allocation1 [shape = 'u32[144,128]{1,0:T(1,128)}', space=vmem, size = 0x12000, scoped, tag = 'internal scratch']
  #allocation2 [shape = 'bf16[2,480,128]{2,1,0:T(16,128)(2,1)}', space=vmem, size = 0x3c000, scoped, tag = 'scratch operand']
  %s0 = inlined_call_operand.vmem [shape: bf16[768,72], index: 0, kind: input, shape index: {}]
  %s1 = inlined_call_operand.vmem [shape: bf16[72,128], index: 1, kind: input, shape index: {}]
  %s2 = inlined_call_operand.vmem [shape: f32[1,128], index: 2, kind: input, shape index: {}]
  %s3 = inlined_call_operand.vmem [shape: f32[1,128], index: 3, kind: input, shape index: {}]
  %s4 = inlined_call_operand.vmem [shape: bf16[1152,128], index: 4, kind: input, shape index: {}]
  %s5 = inlined_call_operand.vmem [shape: f32[1,128], index: 5, kind: input, shape index: {}]
  %s6 = inlined_call_operand.vmem [shape: f32[1,128], index: 6, kind: input, shape index: {}]
  %s7 = inlined_call_operand.vmem [shape: f32[768,128], index: 7, kind: output, shape index: {}]
  %s8 = sld [smem:[#allocation0]]
  $region38: #{double_conv.1} parent=0
    _
  %s10 = ssub.s32 1, %s8
  %s11 = scalar_select 0, %s10, %s8
  // Predicated region
  $region2: #{double_conv.1} parent=0 // pred_check
    _
  $region3: #{double_conv.1} parent=0 // pred_check_branch
    %13 = sbr.rel (0) target = $region5
  $region4: #{double_conv.1} parent=0 // pred_region
    _
  $region5: #{double_conv.1} parent=0 // pred_fallthru
    _
  // Predicated region
  $region6: #{double_conv.1} parent=0 // pred_check
    _
  $region7: #{double_conv.1} parent=0 // pred_check_branch
    %15 = sbr.rel (0) target = $region9
  $region8: #{double_conv.1} parent=0 // pred_region
    _
  $region9: #{double_conv.1} parent=0 // pred_fallthru
    _
  // Predicated region
  $region10: #{double_conv.1} parent=0 // pred_check
    _
  $region11: #{double_conv.1} parent=0 // pred_check_branch
    %17 = sbr.rel (0) target = $region13
  $region12: #{double_conv.1} parent=0 // pred_region
    _
  $region13: #{double_conv.1} parent=0 // pred_fallthru
    _
  // Predicated region
  $region14: #{double_conv.1} parent=0 // pred_check
    _
  $region15: #{double_conv.1} parent=0 // pred_check_branch
    %19 = sbr.rel (0) target = $region17
  $region16: #{double_conv.1} parent=0 // pred_region
    _
  $region17: #{double_conv.1} parent=0 // pred_fallthru
    _
  // Predicated region
  $region18: #{double_conv.1} parent=0 // pred_check
    _
  $region19: #{double_conv.1} parent=0 // pred_check_branch
    %21 = sbr.rel (0) target = $region21
  $region20: #{double_conv.1} parent=0 // pred_region
    _
  $region21: #{double_conv.1} parent=0 // pred_fallthru
    _
  // Predicated region
  $region22: #{double_conv.1} parent=0 // pred_check
    _
  $region23: #{double_conv.1} parent=0 // pred_check_branch
    %23 = sbr.rel (0) target = $region25
  $region24: #{double_conv.1} parent=0 // pred_region
    _
  $region25: #{double_conv.1} parent=0 // pred_fallthru
    _
  // Predicated region
  $region26: #{double_conv.1} parent=0 // pred_check
    _
  $region27: #{double_conv.1} parent=0 // pred_check_branch
    %25 = sbr.rel (0) target = $region29
  $region28: #{double_conv.1} parent=0 // pred_region
    _
  $region29: #{double_conv.1} parent=0 // pred_fallthru
    _
  %v27 = vlaneseq
  %v28 = vshrl.u32 %v27, 7
  %v29 = vadd.s32 %v28, 8
  %v30 = vadd.s32 %v28, 16
  %v31 = vadd.s32 %v28, 24
  %v32 = vadd.s32 %v28, 32
  %v33 = vadd.s32 %v28, 40
  %v34 = vadd.s32 %v28, 48
  %v35 = vadd.s32 %v28, 56
  %v36 = vadd.s32 %v28, 64
  %v37 = vadd.s32 %v28, 72
  %v38 = vadd.s32 %v28, 80
  %v39 = vadd.s32 %v28, 88
  %v40 = vadd.s32 %v28, 96
  %v41 = vadd.s32 %v28, 104
  %v42 = vadd.s32 %v28, 112
  %v43 = vadd.s32 %v28, 120
  %v44 = vadd.s32 %v28, 128
  %v45 = vadd.s32 %v28, 136
  %v46 = vadd.s32 %v28, 144
  %v47 = vadd.s32 %v28, 152
  %v48 = vadd.s32 %v28, 160
  %v49 = vadd.s32 %v28, 168
  %v50 = vadd.s32 %v28, 176
  %v51 = vadd.s32 %v28, 184
  %v52 = vadd.s32 %v28, 192
  %v53 = vadd.s32 %v28, 200
  %v54 = vadd.s32 %v28, 208
  %v55 = vadd.s32 %v28, 216
  %v56 = vadd.s32 %v28, 224
  %v57 = vadd.s32 %v28, 232
  %v58 = vadd.s32 %v28, 240
  %v59 = vadd.s32 %v28, 248
  %v60 = vadd.s32 %v28, 256
  %v61 = vadd.s32 %v28, 264
  %v62 = vadd.s32 %v28, 272
  %v63 = vadd.s32 %v28, 280
  %v64 = vadd.s32 %v28, 288
  %v65 = vadd.s32 %v28, 296
  %v66 = vadd.s32 %v28, 304
  %v67 = vadd.s32 %v28, 312
  %v68 = vadd.s32 %v28, 320
  %v69 = vadd.s32 %v28, 328
  %v70 = vadd.s32 %v28, 336
  %v71 = vadd.s32 %v28, 344
  %v72 = vadd.s32 %v28, 352
  %v73 = vadd.s32 %v28, 360
  %v74 = vadd.s32 %v28, 368
  %v75 = vadd.s32 %v28, 376
  %v76 = vadd.s32 %v28, 384
  %v77 = vadd.s32 %v28, 392
  %v78 = vadd.s32 %v28, 400
  %v79 = vadd.s32 %v28, 408
  %v80 = vadd.s32 %v28, 416
  %v81 = vadd.s32 %v28, 424
  %v82 = vadd.s32 %v28, 432
  %v83 = vadd.s32 %v28, 440
  %v84 = vadd.s32 %v28, 448
  %v85 = vadd.s32 %v28, 456
  %v86 = vadd.s32 %v28, 464
  %v87 = vadd.s32 %v28, 472
  %v88 = vadd.s32 %v28, 480
  %v89 = vadd.s32 %v28, 488
  %v90 = vadd.s32 %v28, 496
  %v91 = vadd.s32 %v28, 504
  %v92 = vadd.s32 %v28, 512
  %v93 = vadd.s32 %v28, 520
  %v94 = vadd.s32 %v28, 528
  %v95 = vadd.s32 %v28, 536
  %v96 = vadd.s32 %v28, 544
  %v97 = vadd.s32 %v28, 552
  %v98 = vadd.s32 %v28, 560
  %v99 = vadd.s32 %v28, 568
  %v100 = vadd.s32 %v28, 576
  %v101 = vadd.s32 %v28, 584
  %v102 = vadd.s32 %v28, 592
  %v103 = vadd.s32 %v28, 600
  %v104 = vadd.s32 %v28, 608
  %v105 = vadd.s32 %v28, 616
  %v106 = vadd.s32 %v28, 624
  %v107 = vadd.s32 %v28, 632
  %v108 = vadd.s32 %v28, 640
  %v109 = vadd.s32 %v28, 648
  %v110 = vadd.s32 %v28, 656
  %v111 = vadd.s32 %v28, 664
  %v112 = vadd.s32 %v28, 672
  %v113 = vadd.s32 %v28, 680
  %v114 = vadd.s32 %v28, 688
  %v115 = vadd.s32 %v28, 696
  %v116 = vadd.s32 %v28, 704
  %v117 = vadd.s32 %v28, 712
  %v118 = vadd.s32 %v28, 720
  %v119 = vadd.s32 %v28, 728
  %v120 = vadd.s32 %v28, 736
  %v121 = vadd.s32 %v28, 744
  %v122 = vadd.s32 %v28, 752
  %v123 = vadd.s32 %v28, 760
  %vm124 = vcmp.lt.s32.totalorder %v28, 0
  %v125 = vsub.s32 0, %v28
  %v126 = vsel %vm124, %v125, %v28
  %v127 = vmul.u32.u64.compose %v126, 2863311531
  %v128 = vextract.low.u32 %v127
  %v129 = vextract.high.u32 %v127
  %v130 = vshrl.u32 %v129, 4
  %v131 = vmul.u32 %v130, 24
  %v132 = vsub.s32 %v126, %v131
  %v133 = vsub.s32 0, %v132
  %v134 = vsel %vm124, %v133, %v132
  %vm135 = vcmp.lt.s32.totalorder %v29, 0
  %v136 = vsub.s32 0, %v29
  %v137 = vsel %vm135, %v136, %v29
  %v138 = vmul.u32.u64.compose %v137, 2863311531
  %v139 = vextract.low.u32 %v138
  %v140 = vextract.high.u32 %v138
  %v141 = vshrl.u32 %v140, 4
  %v142 = vmul.u32 %v141, 24
  %v143 = vsub.s32 %v137, %v142
  %v144 = vsub.s32 0, %v143
  %v145 = vsel %vm135, %v144, %v143
  %vm146 = vcmp.lt.s32.totalorder %v30, 0
  %v147 = vsub.s32 0, %v30
  %v148 = vsel %vm146, %v147, %v30
  %v149 = vmul.u32.u64.compose %v148, 2863311531
  %v150 = vextract.low.u32 %v149
  %v151 = vextract.high.u32 %v149
  %v152 = vshrl.u32 %v151, 4
  %v153 = vmul.u32 %v152, 24
  %v154 = vsub.s32 %v148, %v153
  %v155 = vsub.s32 0, %v154
  %v156 = vsel %vm146, %v155, %v154
  %vm157 = vcmp.lt.s32.totalorder %v31, 0
  %v158 = vsub.s32 0, %v31
  %v159 = vsel %vm157, %v158, %v31
  %v160 = vmul.u32.u64.compose %v159, 2863311531
  %v161 = vextract.low.u32 %v160
  %v162 = vextract.high.u32 %v160
  %v163 = vshrl.u32 %v162, 4
  %v164 = vmul.u32 %v163, 24
  %v165 = vsub.s32 %v159, %v164
  %v166 = vsub.s32 0, %v165
  %v167 = vsel %vm157, %v166, %v165
  %vm168 = vcmp.lt.s32.totalorder %v32, 0
  %v169 = vsub.s32 0, %v32
  %v170 = vsel %vm168, %v169, %v32
  %v171 = vmul.u32.u64.compose %v170, 2863311531
  %v172 = vextract.low.u32 %v171
  %v173 = vextract.high.u32 %v171
  %v174 = vshrl.u32 %v173, 4
  %v175 = vmul.u32 %v174, 24
  %v176 = vsub.s32 %v170, %v175
  %v177 = vsub.s32 0, %v176
  %v178 = vsel %vm168, %v177, %v176
  %vm179 = vcmp.lt.s32.totalorder %v33, 0
  %v180 = vsub.s32 0, %v33
  %v181 = vsel %vm179, %v180, %v33
  %v182 = vmul.u32.u64.compose %v181, 2863311531
  %v183 = vextract.low.u32 %v182
  %v184 = vextract.high.u32 %v182
  %v185 = vshrl.u32 %v184, 4
  %v186 = vmul.u32 %v185, 24
  %v187 = vsub.s32 %v181, %v186
  %v188 = vsub.s32 0, %v187
  %v189 = vsel %vm179, %v188, %v187
  %vm190 = vcmp.lt.s32.totalorder %v34, 0
  %v191 = vsub.s32 0, %v34
  %v192 = vsel %vm190, %v191, %v34
  %v193 = vmul.u32.u64.compose %v192, 2863311531
  %v194 = vextract.low.u32 %v193
  %v195 = vextract.high.u32 %v193
  %v196 = vshrl.u32 %v195, 4
  %v197 = vmul.u32 %v196, 24
  %v198 = vsub.s32 %v192, %v197
  %v199 = vsub.s32 0, %v198
  %v200 = vsel %vm190, %v199, %v198
  %vm201 = vcmp.lt.s32.totalorder %v35, 0
  %v202 = vsub.s32 0, %v35
  %v203 = vsel %vm201, %v202, %v35
  %v204 = vmul.u32.u64.compose %v203, 2863311531
  %v205 = vextract.low.u32 %v204
  %v206 = vextract.high.u32 %v204
  %v207 = vshrl.u32 %v206, 4
  %v208 = vmul.u32 %v207, 24
  %v209 = vsub.s32 %v203, %v208
  %v210 = vsub.s32 0, %v209
  %v211 = vsel %vm201, %v210, %v209
  %vm212 = vcmp.lt.s32.totalorder %v36, 0
  %v213 = vsub.s32 0, %v36
  %v214 = vsel %vm212, %v213, %v36
  %v215 = vmul.u32.u64.compose %v214, 2863311531
  %v216 = vextract.low.u32 %v215
  %v217 = vextract.high.u32 %v215
  %v218 = vshrl.u32 %v217, 4
  %v219 = vmul.u32 %v218, 24
  %v220 = vsub.s32 %v214, %v219
  %v221 = vsub.s32 0, %v220
  %v222 = vsel %vm212, %v221, %v220
  %vm223 = vcmp.lt.s32.totalorder %v37, 0
  %v224 = vsub.s32 0, %v37
  %v225 = vsel %vm223, %v224, %v37
  %v226 = vmul.u32.u64.compose %v225, 2863311531
  %v227 = vextract.low.u32 %v226
  %v228 = vextract.high.u32 %v226
  %v229 = vshrl.u32 %v228, 4
  %v230 = vmul.u32 %v229, 24
  %v231 = vsub.s32 %v225, %v230
  %v232 = vsub.s32 0, %v231
  %v233 = vsel %vm223, %v232, %v231
  %vm234 = vcmp.lt.s32.totalorder %v38, 0
  %v235 = vsub.s32 0, %v38
  %v236 = vsel %vm234, %v235, %v38
  %v237 = vmul.u32.u64.compose %v236, 2863311531
  %v238 = vextract.low.u32 %v237
  %v239 = vextract.high.u32 %v237
  %v240 = vshrl.u32 %v239, 4
  %v241 = vmul.u32 %v240, 24
  %v242 = vsub.s32 %v236, %v241
  %v243 = vsub.s32 0, %v242
  %v244 = vsel %vm234, %v243, %v242
  %vm245 = vcmp.lt.s32.totalorder %v39, 0
  %v246 = vsub.s32 0, %v39
  %v247 = vsel %vm245, %v246, %v39
  %v248 = vmul.u32.u64.compose %v247, 2863311531
  %v249 = vextract.low.u32 %v248
  %v250 = vextract.high.u32 %v248
  %v251 = vshrl.u32 %v250, 4
  %v252 = vmul.u32 %v251, 24
  %v253 = vsub.s32 %v247, %v252
  %v254 = vsub.s32 0, %v253
  %v255 = vsel %vm245, %v254, %v253
  %vm256 = vcmp.lt.s32.totalorder %v40, 0
  %v257 = vsub.s32 0, %v40
  %v258 = vsel %vm256, %v257, %v40
  %v259 = vmul.u32.u64.compose %v258, 2863311531
  %v260 = vextract.low.u32 %v259
  %v261 = vextract.high.u32 %v259
  %v262 = vshrl.u32 %v261, 4
  %v263 = vmul.u32 %v262, 24
  %v264 = vsub.s32 %v258, %v263
  %v265 = vsub.s32 0, %v264
  %v266 = vsel %vm256, %v265, %v264
  %vm267 = vcmp.lt.s32.totalorder %v41, 0
  %v268 = vsub.s32 0, %v41
  %v269 = vsel %vm267, %v268, %v41
  %v270 = vmul.u32.u64.compose %v269, 2863311531
  %v271 = vextract.low.u32 %v270
  %v272 = vextract.high.u32 %v270
  %v273 = vshrl.u32 %v272, 4
  %v274 = vmul.u32 %v273, 24
  %v275 = vsub.s32 %v269, %v274
  %v276 = vsub.s32 0, %v275
  %v277 = vsel %vm267, %v276, %v275
  %vm278 = vcmp.lt.s32.totalorder %v42, 0
  %v279 = vsub.s32 0, %v42
  %v280 = vsel %vm278, %v279, %v42
  %v281 = vmul.u32.u64.compose %v280, 2863311531
  %v282 = vextract.low.u32 %v281
  %v283 = vextract.high.u32 %v281
  %v284 = vshrl.u32 %v283, 4
  %v285 = vmul.u32 %v284, 24
  %v286 = vsub.s32 %v280, %v285
  %v287 = vsub.s32 0, %v286
  %v288 = vsel %vm278, %v287, %v286
  %vm289 = vcmp.lt.s32.totalorder %v43, 0
  %v290 = vsub.s32 0, %v43
  %v291 = vsel %vm289, %v290, %v43
  %v292 = vmul.u32.u64.compose %v291, 2863311531
  %v293 = vextract.low.u32 %v292
  %v294 = vextract.high.u32 %v292
  %v295 = vshrl.u32 %v294, 4
  %v296 = vmul.u32 %v295, 24
  %v297 = vsub.s32 %v291, %v296
  %v298 = vsub.s32 0, %v297
  %v299 = vsel %vm289, %v298, %v297
  %vm300 = vcmp.lt.s32.totalorder %v44, 0
  %v301 = vsub.s32 0, %v44
  %v302 = vsel %vm300, %v301, %v44
  %v303 = vmul.u32.u64.compose %v302, 2863311531
  %v304 = vextract.low.u32 %v303
  %v305 = vextract.high.u32 %v303
  %v306 = vshrl.u32 %v305, 4
  %v307 = vmul.u32 %v306, 24
  %v308 = vsub.s32 %v302, %v307
  %v309 = vsub.s32 0, %v308
  %v310 = vsel %vm300, %v309, %v308
  %vm311 = vcmp.lt.s32.totalorder %v45, 0
  %v312 = vsub.s32 0, %v45
  %v313 = vsel %vm311, %v312, %v45
  %v314 = vmul.u32.u64.compose %v313, 2863311531
  %v315 = vextract.low.u32 %v314
  %v316 = vextract.high.u32 %v314
  %v317 = vshrl.u32 %v316, 4
  %v318 = vmul.u32 %v317, 24
  %v319 = vsub.s32 %v313, %v318
  %v320 = vsub.s32 0, %v319
  %v321 = vsel %vm311, %v320, %v319
  %vm322 = vcmp.lt.s32.totalorder %v46, 0
  %v323 = vsub.s32 0, %v46
  %v324 = vsel %vm322, %v323, %v46
  %v325 = vmul.u32.u64.compose %v324, 2863311531
  %v326 = vextract.low.u32 %v325
  %v327 = vextract.high.u32 %v325
  %v328 = vshrl.u32 %v327, 4
  %v329 = vmul.u32 %v328, 24
  %v330 = vsub.s32 %v324, %v329
  %v331 = vsub.s32 0, %v330
  %v332 = vsel %vm322, %v331, %v330
  %vm333 = vcmp.lt.s32.totalorder %v47, 0
  %v334 = vsub.s32 0, %v47
  %v335 = vsel %vm333, %v334, %v47
  %v336 = vmul.u32.u64.compose %v335, 2863311531
  %v337 = vextract.low.u32 %v336
  %v338 = vextract.high.u32 %v336
  %v339 = vshrl.u32 %v338, 4
  %v340 = vmul.u32 %v339, 24
  %v341 = vsub.s32 %v335, %v340
  %v342 = vsub.s32 0, %v341
  %v343 = vsel %vm333, %v342, %v341
  %vm344 = vcmp.lt.s32.totalorder %v48, 0
  %v345 = vsub.s32 0, %v48
  %v346 = vsel %vm344, %v345, %v48
  %v347 = vmul.u32.u64.compose %v346, 2863311531
  %v348 = vextract.low.u32 %v347
  %v349 = vextract.high.u32 %v347
  %v350 = vshrl.u32 %v349, 4
  %v351 = vmul.u32 %v350, 24
  %v352 = vsub.s32 %v346, %v351
  %v353 = vsub.s32 0, %v352
  %v354 = vsel %vm344, %v353, %v352
  %vm355 = vcmp.lt.s32.totalorder %v49, 0
  %v356 = vsub.s32 0, %v49
  %v357 = vsel %vm355, %v356, %v49
  %v358 = vmul.u32.u64.compose %v357, 2863311531
  %v359 = vextract.low.u32 %v358
  %v360 = vextract.high.u32 %v358
  %v361 = vshrl.u32 %v360, 4
  %v362 = vmul.u32 %v361, 24
  %v363 = vsub.s32 %v357, %v362
  %v364 = vsub.s32 0, %v363
  %v365 = vsel %vm355, %v364, %v363
  %vm366 = vcmp.lt.s32.totalorder %v50, 0
  %v367 = vsub.s32 0, %v50
  %v368 = vsel %vm366, %v367, %v50
  %v369 = vmul.u32.u64.compose %v368, 2863311531
  %v370 = vextract.low.u32 %v369
  %v371 = vextract.high.u32 %v369
  %v372 = vshrl.u32 %v371, 4
  %v373 = vmul.u32 %v372, 24
  %v374 = vsub.s32 %v368, %v373
  %v375 = vsub.s32 0, %v374
  %v376 = vsel %vm366, %v375, %v374
  %vm377 = vcmp.lt.s32.totalorder %v51, 0
  %v378 = vsub.s32 0, %v51
  %v379 = vsel %vm377, %v378, %v51
  %v380 = vmul.u32.u64.compose %v379, 2863311531
  %v381 = vextract.low.u32 %v380
  %v382 = vextract.high.u32 %v380
  %v383 = vshrl.u32 %v382, 4
  %v384 = vmul.u32 %v383, 24
  %v385 = vsub.s32 %v379, %v384
  %v386 = vsub.s32 0, %v385
  %v387 = vsel %vm377, %v386, %v385
  %vm388 = vcmp.lt.s32.totalorder %v52, 0
  %v389 = vsub.s32 0, %v52
  %v390 = vsel %vm388, %v389, %v52
  %v391 = vmul.u32.u64.compose %v390, 2863311531
  %v392 = vextract.low.u32 %v391
  %v393 = vextract.high.u32 %v391
  %v394 = vshrl.u32 %v393, 4
  %v395 = vmul.u32 %v394, 24
  %v396 = vsub.s32 %v390, %v395
  %v397 = vsub.s32 0, %v396
  %v398 = vsel %vm388, %v397, %v396
  %vm399 = vcmp.lt.s32.totalorder %v53, 0
  %v400 = vsub.s32 0, %v53
  %v401 = vsel %vm399, %v400, %v53
  %v402 = vmul.u32.u64.compose %v401, 2863311531
  %v403 = vextract.low.u32 %v402
  %v404 = vextract.high.u32 %v402
  %v405 = vshrl.u32 %v404, 4
  %v406 = vmul.u32 %v405, 24
  %v407 = vsub.s32 %v401, %v406
  %v408 = vsub.s32 0, %v407
  %v409 = vsel %vm399, %v408, %v407
  %vm410 = vcmp.lt.s32.totalorder %v54, 0
  %v411 = vsub.s32 0, %v54
  %v412 = vsel %vm410, %v411, %v54
  %v413 = vmul.u32.u64.compose %v412, 2863311531
  %v414 = vextract.low.u32 %v413
  %v415 = vextract.high.u32 %v413
  %v416 = vshrl.u32 %v415, 4
  %v417 = vmul.u32 %v416, 24
  %v418 = vsub.s32 %v412, %v417
  %v419 = vsub.s32 0, %v418
  %v420 = vsel %vm410, %v419, %v418
  %vm421 = vcmp.lt.s32.totalorder %v55, 0
  %v422 = vsub.s32 0, %v55
  %v423 = vsel %vm421, %v422, %v55
  %v424 = vmul.u32.u64.compose %v423, 2863311531
  %v425 = vextract.low.u32 %v424
  %v426 = vextract.high.u32 %v424
  %v427 = vshrl.u32 %v426, 4
  %v428 = vmul.u32 %v427, 24
  %v429 = vsub.s32 %v423, %v428
  %v430 = vsub.s32 0, %v429
  %v431 = vsel %vm421, %v430, %v429
  %vm432 = vcmp.lt.s32.totalorder %v56, 0
  %v433 = vsub.s32 0, %v56
  %v434 = vsel %vm432, %v433, %v56
  %v435 = vmul.u32.u64.compose %v434, 2863311531
  %v436 = vextract.low.u32 %v435
  %v437 = vextract.high.u32 %v435
  %v438 = vshrl.u32 %v437, 4
  %v439 = vmul.u32 %v438, 24
  %v440 = vsub.s32 %v434, %v439
  %v441 = vsub.s32 0, %v440
  %v442 = vsel %vm432, %v441, %v440
  %vm443 = vcmp.lt.s32.totalorder %v57, 0
  %v444 = vsub.s32 0, %v57
  %v445 = vsel %vm443, %v444, %v57
  %v446 = vmul.u32.u64.compose %v445, 2863311531
  %v447 = vextract.low.u32 %v446
  %v448 = vextract.high.u32 %v446
  %v449 = vshrl.u32 %v448, 4
  %v450 = vmul.u32 %v449, 24
  %v451 = vsub.s32 %v445, %v450
  %v452 = vsub.s32 0, %v451
  %v453 = vsel %vm443, %v452, %v451
  %vm454 = vcmp.lt.s32.totalorder %v58, 0
  %v455 = vsub.s32 0, %v58
  %v456 = vsel %vm454, %v455, %v58
  %v457 = vmul.u32.u64.compose %v456, 2863311531
  %v458 = vextract.low.u32 %v457
  %v459 = vextract.high.u32 %v457
  %v460 = vshrl.u32 %v459, 4
  %v461 = vmul.u32 %v460, 24
  %v462 = vsub.s32 %v456, %v461
  %v463 = vsub.s32 0, %v462
  %v464 = vsel %vm454, %v463, %v462
  %vm465 = vcmp.lt.s32.totalorder %v59, 0
  %v466 = vsub.s32 0, %v59
  %v467 = vsel %vm465, %v466, %v59
  %v468 = vmul.u32.u64.compose %v467, 2863311531
  %v469 = vextract.low.u32 %v468
  %v470 = vextract.high.u32 %v468
  %v471 = vshrl.u32 %v470, 4
  %v472 = vmul.u32 %v471, 24
  %v473 = vsub.s32 %v467, %v472
  %v474 = vsub.s32 0, %v473
  %v475 = vsel %vm465, %v474, %v473
  %vm476 = vcmp.lt.s32.totalorder %v60, 0
  %v477 = vsub.s32 0, %v60
  %v478 = vsel %vm476, %v477, %v60
  %v479 = vmul.u32.u64.compose %v478, 2863311531
  %v480 = vextract.low.u32 %v479
  %v481 = vextract.high.u32 %v479
  %v482 = vshrl.u32 %v481, 4
  %v483 = vmul.u32 %v482, 24
  %v484 = vsub.s32 %v478, %v483
  %v485 = vsub.s32 0, %v484
  %v486 = vsel %vm476, %v485, %v484
  %vm487 = vcmp.lt.s32.totalorder %v61, 0
  %v488 = vsub.s32 0, %v61
  %v489 = vsel %vm487, %v488, %v61
  %v490 = vmul.u32.u64.compose %v489, 2863311531
  %v491 = vextract.low.u32 %v490
  %v492 = vextract.high.u32 %v490
  %v493 = vshrl.u32 %v492, 4
  %v494 = vmul.u32 %v493, 24
  %v495 = vsub.s32 %v489, %v494
  %v496 = vsub.s32 0, %v495
  %v497 = vsel %vm487, %v496, %v495
  %vm498 = vcmp.lt.s32.totalorder %v62, 0
  %v499 = vsub.s32 0, %v62
  %v500 = vsel %vm498, %v499, %v62
  %v501 = vmul.u32.u64.compose %v500, 2863311531
  %v502 = vextract.low.u32 %v501
  %v503 = vextract.high.u32 %v501
  %v504 = vshrl.u32 %v503, 4
  %v505 = vmul.u32 %v504, 24
  %v506 = vsub.s32 %v500, %v505
  %v507 = vsub.s32 0, %v506
  %v508 = vsel %vm498, %v507, %v506
  %vm509 = vcmp.lt.s32.totalorder %v63, 0
  %v510 = vsub.s32 0, %v63
  %v511 = vsel %vm509, %v510, %v63
  %v512 = vmul.u32.u64.compose %v511, 2863311531
  %v513 = vextract.low.u32 %v512
  %v514 = vextract.high.u32 %v512
  %v515 = vshrl.u32 %v514, 4
  %v516 = vmul.u32 %v515, 24
  %v517 = vsub.s32 %v511, %v516
  %v518 = vsub.s32 0, %v517
  %v519 = vsel %vm509, %v518, %v517
  %vm520 = vcmp.lt.s32.totalorder %v64, 0
  %v521 = vsub.s32 0, %v64
  %v522 = vsel %vm520, %v521, %v64
  %v523 = vmul.u32.u64.compose %v522, 2863311531
  %v524 = vextract.low.u32 %v523
  %v525 = vextract.high.u32 %v523
  %v526 = vshrl.u32 %v525, 4
  %v527 = vmul.u32 %v526, 24
  %v528 = vsub.s32 %v522, %v527
  %v529 = vsub.s32 0, %v528
  %v530 = vsel %vm520, %v529, %v528
  %vm531 = vcmp.lt.s32.totalorder %v65, 0
  %v532 = vsub.s32 0, %v65
  %v533 = vsel %vm531, %v532, %v65
  %v534 = vmul.u32.u64.compose %v533, 2863311531
  %v535 = vextract.low.u32 %v534
  %v536 = vextract.high.u32 %v534
  %v537 = vshrl.u32 %v536, 4
  %v538 = vmul.u32 %v537, 24
  %v539 = vsub.s32 %v533, %v538
  %v540 = vsub.s32 0, %v539
  %v541 = vsel %vm531, %v540, %v539
  %vm542 = vcmp.lt.s32.totalorder %v66, 0
  %v543 = vsub.s32 0, %v66
  %v544 = vsel %vm542, %v543, %v66
  %v545 = vmul.u32.u64.compose %v544, 2863311531
  %v546 = vextract.low.u32 %v545
  %v547 = vextract.high.u32 %v545
  %v548 = vshrl.u32 %v547, 4
  %v549 = vmul.u32 %v548, 24
  %v550 = vsub.s32 %v544, %v549
  %v551 = vsub.s32 0, %v550
  %v552 = vsel %vm542, %v551, %v550
  %vm553 = vcmp.lt.s32.totalorder %v67, 0
  %v554 = vsub.s32 0, %v67
  %v555 = vsel %vm553, %v554, %v67
  %v556 = vmul.u32.u64.compose %v555, 2863311531
  %v557 = vextract.low.u32 %v556
  %v558 = vextract.high.u32 %v556
  %v559 = vshrl.u32 %v558, 4
  %v560 = vmul.u32 %v559, 24
  %v561 = vsub.s32 %v555, %v560
  %v562 = vsub.s32 0, %v561
  %v563 = vsel %vm553, %v562, %v561
  %vm564 = vcmp.lt.s32.totalorder %v68, 0
  %v565 = vsub.s32 0, %v68
  %v566 = vsel %vm564, %v565, %v68
  %v567 = vmul.u32.u64.compose %v566, 2863311531
  %v568 = vextract.low.u32 %v567
  %v569 = vextract.high.u32 %v567
  %v570 = vshrl.u32 %v569, 4
  %v571 = vmul.u32 %v570, 24
  %v572 = vsub.s32 %v566, %v571
  %v573 = vsub.s32 0, %v572
  %v574 = vsel %vm564, %v573, %v572
  %vm575 = vcmp.lt.s32.totalorder %v69, 0
  %v576 = vsub.s32 0, %v69
  %v577 = vsel %vm575, %v576, %v69
  %v578 = vmul.u32.u64.compose %v577, 2863311531
  %v579 = vextract.low.u32 %v578
  %v580 = vextract.high.u32 %v578
  %v581 = vshrl.u32 %v580, 4
  %v582 = vmul.u32 %v581, 24
  %v583 = vsub.s32 %v577, %v582
  %v584 = vsub.s32 0, %v583
  %v585 = vsel %vm575, %v584, %v583
  %vm586 = vcmp.lt.s32.totalorder %v70, 0
  %v587 = vsub.s32 0, %v70
  %v588 = vsel %vm586, %v587, %v70
  %v589 = vmul.u32.u64.compose %v588, 2863311531
  %v590 = vextract.low.u32 %v589
  %v591 = vextract.high.u32 %v589
  %v592 = vshrl.u32 %v591, 4
  %v593 = vmul.u32 %v592, 24
  %v594 = vsub.s32 %v588, %v593
  %v595 = vsub.s32 0, %v594
  %v596 = vsel %vm586, %v595, %v594
  %vm597 = vcmp.lt.s32.totalorder %v71, 0
  %v598 = vsub.s32 0, %v71
  %v599 = vsel %vm597, %v598, %v71
  %v600 = vmul.u32.u64.compose %v599, 2863311531
  %v601 = vextract.low.u32 %v600
  %v602 = vextract.high.u32 %v600
  %v603 = vshrl.u32 %v602, 4
  %v604 = vmul.u32 %v603, 24
  %v605 = vsub.s32 %v599, %v604
  %v606 = vsub.s32 0, %v605
  %v607 = vsel %vm597, %v606, %v605
  %vm608 = vcmp.lt.s32.totalorder %v72, 0
  %v609 = vsub.s32 0, %v72
  %v610 = vsel %vm608, %v609, %v72
  %v611 = vmul.u32.u64.compose %v610, 2863311531
  %v612 = vextract.low.u32 %v611
  %v613 = vextract.high.u32 %v611
  %v614 = vshrl.u32 %v613, 4
  %v615 = vmul.u32 %v614, 24
  %v616 = vsub.s32 %v610, %v615
  %v617 = vsub.s32 0, %v616
  %v618 = vsel %vm608, %v617, %v616
  %vm619 = vcmp.lt.s32.totalorder %v73, 0
  %v620 = vsub.s32 0, %v73
  %v621 = vsel %vm619, %v620, %v73
  %v622 = vmul.u32.u64.compose %v621, 2863311531
  %v623 = vextract.low.u32 %v622
  %v624 = vextract.high.u32 %v622
  %v625 = vshrl.u32 %v624, 4
  %v626 = vmul.u32 %v625, 24
  %v627 = vsub.s32 %v621, %v626
  %v628 = vsub.s32 0, %v627
  %v629 = vsel %vm619, %v628, %v627
  %vm630 = vcmp.lt.s32.totalorder %v74, 0
  %v631 = vsub.s32 0, %v74
  %v632 = vsel %vm630, %v631, %v74
  %v633 = vmul.u32.u64.compose %v632, 2863311531
  %v634 = vextract.low.u32 %v633
  %v635 = vextract.high.u32 %v633
  %v636 = vshrl.u32 %v635, 4
  %v637 = vmul.u32 %v636, 24
  %v638 = vsub.s32 %v632, %v637
  %v639 = vsub.s32 0, %v638
  %v640 = vsel %vm630, %v639, %v638
  %vm641 = vcmp.lt.s32.totalorder %v75, 0
  %v642 = vsub.s32 0, %v75
  %v643 = vsel %vm641, %v642, %v75
  %v644 = vmul.u32.u64.compose %v643, 2863311531
  %v645 = vextract.low.u32 %v644
  %v646 = vextract.high.u32 %v644
  %v647 = vshrl.u32 %v646, 4
  %v648 = vmul.u32 %v647, 24
  %v649 = vsub.s32 %v643, %v648
  %v650 = vsub.s32 0, %v649
  %v651 = vsel %vm641, %v650, %v649
  %vm652 = vcmp.lt.s32.totalorder %v76, 0
  %v653 = vsub.s32 0, %v76
  %v654 = vsel %vm652, %v653, %v76
  %v655 = vmul.u32.u64.compose %v654, 2863311531
  %v656 = vextract.low.u32 %v655
  %v657 = vextract.high.u32 %v655
  %v658 = vshrl.u32 %v657, 4
  %v659 = vmul.u32 %v658, 24
  %v660 = vsub.s32 %v654, %v659
  %v661 = vsub.s32 0, %v660
  %v662 = vsel %vm652, %v661, %v660
  %vm663 = vcmp.lt.s32.totalorder %v77, 0
  %v664 = vsub.s32 0, %v77
  %v665 = vsel %vm663, %v664, %v77
  %v666 = vmul.u32.u64.compose %v665, 2863311531
  %v667 = vextract.low.u32 %v666
  %v668 = vextract.high.u32 %v666
  %v669 = vshrl.u32 %v668, 4
  %v670 = vmul.u32 %v669, 24
  %v671 = vsub.s32 %v665, %v670
  %v672 = vsub.s32 0, %v671
  %v673 = vsel %vm663, %v672, %v671
  %vm674 = vcmp.lt.s32.totalorder %v78, 0
  %v675 = vsub.s32 0, %v78
  %v676 = vsel %vm674, %v675, %v78
  %v677 = vmul.u32.u64.compose %v676, 2863311531
  %v678 = vextract.low.u32 %v677
  %v679 = vextract.high.u32 %v677
  %v680 = vshrl.u32 %v679, 4
  %v681 = vmul.u32 %v680, 24
  %v682 = vsub.s32 %v676, %v681
  %v683 = vsub.s32 0, %v682
  %v684 = vsel %vm674, %v683, %v682
  %vm685 = vcmp.lt.s32.totalorder %v79, 0
  %v686 = vsub.s32 0, %v79
  %v687 = vsel %vm685, %v686, %v79
  %v688 = vmul.u32.u64.compose %v687, 2863311531
  %v689 = vextract.low.u32 %v688
  %v690 = vextract.high.u32 %v688
  %v691 = vshrl.u32 %v690, 4
  %v692 = vmul.u32 %v691, 24
  %v693 = vsub.s32 %v687, %v692
  %v694 = vsub.s32 0, %v693
  %v695 = vsel %vm685, %v694, %v693
  %vm696 = vcmp.lt.s32.totalorder %v80, 0
  %v697 = vsub.s32 0, %v80
  %v698 = vsel %vm696, %v697, %v80
  %v699 = vmul.u32.u64.compose %v698, 2863311531
  %v700 = vextract.low.u32 %v699
  %v701 = vextract.high.u32 %v699
  %v702 = vshrl.u32 %v701, 4
  %v703 = vmul.u32 %v702, 24
  %v704 = vsub.s32 %v698, %v703
  %v705 = vsub.s32 0, %v704
  %v706 = vsel %vm696, %v705, %v704
  %vm707 = vcmp.lt.s32.totalorder %v81, 0
  %v708 = vsub.s32 0, %v81
  %v709 = vsel %vm707, %v708, %v81
  %v710 = vmul.u32.u64.compose %v709, 2863311531
  %v711 = vextract.low.u32 %v710
  %v712 = vextract.high.u32 %v710
  %v713 = vshrl.u32 %v712, 4
  %v714 = vmul.u32 %v713, 24
  %v715 = vsub.s32 %v709, %v714
  %v716 = vsub.s32 0, %v715
  %v717 = vsel %vm707, %v716, %v715
  %vm718 = vcmp.lt.s32.totalorder %v82, 0
  %v719 = vsub.s32 0, %v82
  %v720 = vsel %vm718, %v719, %v82
  %v721 = vmul.u32.u64.compose %v720, 2863311531
  %v722 = vextract.low.u32 %v721
  %v723 = vextract.high.u32 %v721
  %v724 = vshrl.u32 %v723, 4
  %v725 = vmul.u32 %v724, 24
  %v726 = vsub.s32 %v720, %v725
  %v727 = vsub.s32 0, %v726
  %v728 = vsel %vm718, %v727, %v726
  %vm729 = vcmp.lt.s32.totalorder %v83, 0
  %v730 = vsub.s32 0, %v83
  %v731 = vsel %vm729, %v730, %v83
  %v732 = vmul.u32.u64.compose %v731, 2863311531
  %v733 = vextract.low.u32 %v732
  %v734 = vextract.high.u32 %v732
  %v735 = vshrl.u32 %v734, 4
  %v736 = vmul.u32 %v735, 24
  %v737 = vsub.s32 %v731, %v736
  %v738 = vsub.s32 0, %v737
  %v739 = vsel %vm729, %v738, %v737
  %vm740 = vcmp.lt.s32.totalorder %v84, 0
  %v741 = vsub.s32 0, %v84
  %v742 = vsel %vm740, %v741, %v84
  %v743 = vmul.u32.u64.compose %v742, 2863311531
  %v744 = vextract.low.u32 %v743
  %v745 = vextract.high.u32 %v743
  %v746 = vshrl.u32 %v745, 4
  %v747 = vmul.u32 %v746, 24
  %v748 = vsub.s32 %v742, %v747
  %v749 = vsub.s32 0, %v748
  %v750 = vsel %vm740, %v749, %v748
  %vm751 = vcmp.lt.s32.totalorder %v85, 0
  %v752 = vsub.s32 0, %v85
  %v753 = vsel %vm751, %v752, %v85
  %v754 = vmul.u32.u64.compose %v753, 2863311531
  %v755 = vextract.low.u32 %v754
  %v756 = vextract.high.u32 %v754
  %v757 = vshrl.u32 %v756, 4
  %v758 = vmul.u32 %v757, 24
  %v759 = vsub.s32 %v753, %v758
  %v760 = vsub.s32 0, %v759
  %v761 = vsel %vm751, %v760, %v759
  %vm762 = vcmp.lt.s32.totalorder %v86, 0
  %v763 = vsub.s32 0, %v86
  %v764 = vsel %vm762, %v763, %v86
  %v765 = vmul.u32.u64.compose %v764, 2863311531
  %v766 = vextract.low.u32 %v765
  %v767 = vextract.high.u32 %v765
  %v768 = vshrl.u32 %v767, 4
  %v769 = vmul.u32 %v768, 24
  %v770 = vsub.s32 %v764, %v769
  %v771 = vsub.s32 0, %v770
  %v772 = vsel %vm762, %v771, %v770
  %vm773 = vcmp.lt.s32.totalorder %v87, 0
  %v774 = vsub.s32 0, %v87
  %v775 = vsel %vm773, %v774, %v87
  %v776 = vmul.u32.u64.compose %v775, 2863311531
  %v777 = vextract.low.u32 %v776
  %v778 = vextract.high.u32 %v776
  %v779 = vshrl.u32 %v778, 4
  %v780 = vmul.u32 %v779, 24
  %v781 = vsub.s32 %v775, %v780
  %v782 = vsub.s32 0, %v781
  %v783 = vsel %vm773, %v782, %v781
  %vm784 = vcmp.lt.s32.totalorder %v88, 0
  %v785 = vsub.s32 0, %v88
  %v786 = vsel %vm784, %v785, %v88
  %v787 = vmul.u32.u64.compose %v786, 2863311531
  %v788 = vextract.low.u32 %v787
  %v789 = vextract.high.u32 %v787
  %v790 = vshrl.u32 %v789, 4
  %v791 = vmul.u32 %v790, 24
  %v792 = vsub.s32 %v786, %v791
  %v793 = vsub.s32 0, %v792
  %v794 = vsel %vm784, %v793, %v792
  %vm795 = vcmp.lt.s32.totalorder %v89, 0
  %v796 = vsub.s32 0, %v89
  %v797 = vsel %vm795, %v796, %v89
  %v798 = vmul.u32.u64.compose %v797, 2863311531
  %v799 = vextract.low.u32 %v798
  %v800 = vextract.high.u32 %v798
  %v801 = vshrl.u32 %v800, 4
  %v802 = vmul.u32 %v801, 24
  %v803 = vsub.s32 %v797, %v802
  %v804 = vsub.s32 0, %v803
  %v805 = vsel %vm795, %v804, %v803
  %vm806 = vcmp.lt.s32.totalorder %v90, 0
  %v807 = vsub.s32 0, %v90
  %v808 = vsel %vm806, %v807, %v90
  %v809 = vmul.u32.u64.compose %v808, 2863311531
  %v810 = vextract.low.u32 %v809
  %v811 = vextract.high.u32 %v809
  %v812 = vshrl.u32 %v811, 4
  %v813 = vmul.u32 %v812, 24
  %v814 = vsub.s32 %v808, %v813
  %v815 = vsub.s32 0, %v814
  %v816 = vsel %vm806, %v815, %v814
  %vm817 = vcmp.lt.s32.totalorder %v91, 0
  %v818 = vsub.s32 0, %v91
  %v819 = vsel %vm817, %v818, %v91
  %v820 = vmul.u32.u64.compose %v819, 2863311531
  %v821 = vextract.low.u32 %v820
  %v822 = vextract.high.u32 %v820
  %v823 = vshrl.u32 %v822, 4
  %v824 = vmul.u32 %v823, 24
  %v825 = vsub.s32 %v819, %v824
  %v826 = vsub.s32 0, %v825
  %v827 = vsel %vm817, %v826, %v825
  %vm828 = vcmp.lt.s32.totalorder %v92, 0
  %v829 = vsub.s32 0, %v92
  %v830 = vsel %vm828, %v829, %v92
  %v831 = vmul.u32.u64.compose %v830, 2863311531
  %v832 = vextract.low.u32 %v831
  %v833 = vextract.high.u32 %v831
  %v834 = vshrl.u32 %v833, 4
  %v835 = vmul.u32 %v834, 24
  %v836 = vsub.s32 %v830, %v835
  %v837 = vsub.s32 0, %v836
  %v838 = vsel %vm828, %v837, %v836
  %vm839 = vcmp.lt.s32.totalorder %v93, 0
  %v840 = vsub.s32 0, %v93
  %v841 = vsel %vm839, %v840, %v93
  %v842 = vmul.u32.u64.compose %v841, 2863311531
  %v843 = vextract.low.u32 %v842
  %v844 = vextract.high.u32 %v842
  %v845 = vshrl.u32 %v844, 4
  %v846 = vmul.u32 %v845, 24
  %v847 = vsub.s32 %v841, %v846
  %v848 = vsub.s32 0, %v847
  %v849 = vsel %vm839, %v848, %v847
  %vm850 = vcmp.lt.s32.totalorder %v94, 0
  %v851 = vsub.s32 0, %v94
  %v852 = vsel %vm850, %v851, %v94
  %v853 = vmul.u32.u64.compose %v852, 2863311531
  %v854 = vextract.low.u32 %v853
  %v855 = vextract.high.u32 %v853
  %v856 = vshrl.u32 %v855, 4
  %v857 = vmul.u32 %v856, 24
  %v858 = vsub.s32 %v852, %v857
  %v859 = vsub.s32 0, %v858
  %v860 = vsel %vm850, %v859, %v858
  %vm861 = vcmp.lt.s32.totalorder %v95, 0
  %v862 = vsub.s32 0, %v95
  %v863 = vsel %vm861, %v862, %v95
  %v864 = vmul.u32.u64.compose %v863, 2863311531
  %v865 = vextract.low.u32 %v864
  %v866 = vextract.high.u32 %v864
  %v867 = vshrl.u32 %v866, 4
  %v868 = vmul.u32 %v867, 24
  %v869 = vsub.s32 %v863, %v868
  %v870 = vsub.s32 0, %v869
  %v871 = vsel %vm861, %v870, %v869
  %vm872 = vcmp.lt.s32.totalorder %v96, 0
  %v873 = vsub.s32 0, %v96
  %v874 = vsel %vm872, %v873, %v96
  %v875 = vmul.u32.u64.compose %v874, 2863311531
  %v876 = vextract.low.u32 %v875
  %v877 = vextract.high.u32 %v875
  %v878 = vshrl.u32 %v877, 4
  %v879 = vmul.u32 %v878, 24
  %v880 = vsub.s32 %v874, %v879
  %v881 = vsub.s32 0, %v880
  %v882 = vsel %vm872, %v881, %v880
  %vm883 = vcmp.lt.s32.totalorder %v97, 0
  %v884 = vsub.s32 0, %v97
  %v885 = vsel %vm883, %v884, %v97
  %v886 = vmul.u32.u64.compose %v885, 2863311531
  %v887 = vextract.low.u32 %v886
  %v888 = vextract.high.u32 %v886
  %v889 = vshrl.u32 %v888, 4
  %v890 = vmul.u32 %v889, 24
  %v891 = vsub.s32 %v885, %v890
  %v892 = vsub.s32 0, %v891
  %v893 = vsel %vm883, %v892, %v891
  %vm894 = vcmp.lt.s32.totalorder %v98, 0
  %v895 = vsub.s32 0, %v98
  %v896 = vsel %vm894, %v895, %v98
  %v897 = vmul.u32.u64.compose %v896, 2863311531
  %v898 = vextract.low.u32 %v897
  %v899 = vextract.high.u32 %v897
  %v900 = vshrl.u32 %v899, 4
  %v901 = vmul.u32 %v900, 24
  %v902 = vsub.s32 %v896, %v901
  %v903 = vsub.s32 0, %v902
  %v904 = vsel %vm894, %v903, %v902
  %vm905 = vcmp.lt.s32.totalorder %v99, 0
  %v906 = vsub.s32 0, %v99
  %v907 = vsel %vm905, %v906, %v99
  %v908 = vmul.u32.u64.compose %v907, 2863311531
  %v909 = vextract.low.u32 %v908
  %v910 = vextract.high.u32 %v908
  %v911 = vshrl.u32 %v910, 4
  %v912 = vmul.u32 %v911, 24
  %v913 = vsub.s32 %v907, %v912
  %v914 = vsub.s32 0, %v913
  %v915 = vsel %vm905, %v914, %v913
  %vm916 = vcmp.lt.s32.totalorder %v100, 0
  %v917 = vsub.s32 0, %v100
  %v918 = vsel %vm916, %v917, %v100
  %v919 = vmul.u32.u64.compose %v918, 2863311531
  %v920 = vextract.low.u32 %v919
  %v921 = vextract.high.u32 %v919
  %v922 = vshrl.u32 %v921, 4
  %v923 = vmul.u32 %v922, 24
  %v924 = vsub.s32 %v918, %v923
  %v925 = vsub.s32 0, %v924
  %v926 = vsel %vm916, %v925, %v924
  %vm927 = vcmp.lt.s32.totalorder %v101, 0
  %v928 = vsub.s32 0, %v101
  %v929 = vsel %vm927, %v928, %v101
  %v930 = vmul.u32.u64.compose %v929, 2863311531
  %v931 = vextract.low.u32 %v930
  %v932 = vextract.high.u32 %v930
  %v933 = vshrl.u32 %v932, 4
  %v934 = vmul.u32 %v933, 24
  %v935 = vsub.s32 %v929, %v934
  %v936 = vsub.s32 0, %v935
  %v937 = vsel %vm927, %v936, %v935
  %vm938 = vcmp.lt.s32.totalorder %v102, 0
  %v939 = vsub.s32 0, %v102
  %v940 = vsel %vm938, %v939, %v102
  %v941 = vmul.u32.u64.compose %v940, 2863311531
  %v942 = vextract.low.u32 %v941
  %v943 = vextract.high.u32 %v941
  %v944 = vshrl.u32 %v943, 4
  %v945 = vmul.u32 %v944, 24
  %v946 = vsub.s32 %v940, %v945
  %v947 = vsub.s32 0, %v946
  %v948 = vsel %vm938, %v947, %v946
  %vm949 = vcmp.lt.s32.totalorder %v103, 0
  %v950 = vsub.s32 0, %v103
  %v951 = vsel %vm949, %v950, %v103
  %v952 = vmul.u32.u64.compose %v951, 2863311531
  %v953 = vextract.low.u32 %v952
  %v954 = vextract.high.u32 %v952
  %v955 = vshrl.u32 %v954, 4
  %v956 = vmul.u32 %v955, 24
  %v957 = vsub.s32 %v951, %v956
  %v958 = vsub.s32 0, %v957
  %v959 = vsel %vm949, %v958, %v957
  %vm960 = vcmp.lt.s32.totalorder %v104, 0
  %v961 = vsub.s32 0, %v104
  %v962 = vsel %vm960, %v961, %v104
  %v963 = vmul.u32.u64.compose %v962, 2863311531
  %v964 = vextract.low.u32 %v963
  %v965 = vextract.high.u32 %v963
  %v966 = vshrl.u32 %v965, 4
  %v967 = vmul.u32 %v966, 24
  %v968 = vsub.s32 %v962, %v967
  %v969 = vsub.s32 0, %v968
  %v970 = vsel %vm960, %v969, %v968
  %vm971 = vcmp.lt.s32.totalorder %v105, 0
  %v972 = vsub.s32 0, %v105
  %v973 = vsel %vm971, %v972, %v105
  %v974 = vmul.u32.u64.compose %v973, 2863311531
  %v975 = vextract.low.u32 %v974
  %v976 = vextract.high.u32 %v974
  %v977 = vshrl.u32 %v976, 4
  %v978 = vmul.u32 %v977, 24
  %v979 = vsub.s32 %v973, %v978
  %v980 = vsub.s32 0, %v979
  %v981 = vsel %vm971, %v980, %v979
  %vm982 = vcmp.lt.s32.totalorder %v106, 0
  %v983 = vsub.s32 0, %v106
  %v984 = vsel %vm982, %v983, %v106
  %v985 = vmul.u32.u64.compose %v984, 2863311531
  %v986 = vextract.low.u32 %v985
  %v987 = vextract.high.u32 %v985
  %v988 = vshrl.u32 %v987, 4
  %v989 = vmul.u32 %v988, 24
  %v990 = vsub.s32 %v984, %v989
  %v991 = vsub.s32 0, %v990
  %v992 = vsel %vm982, %v991, %v990
  %vm993 = vcmp.lt.s32.totalorder %v107, 0
  %v994 = vsub.s32 0, %v107
  %v995 = vsel %vm993, %v994, %v107
  %v996 = vmul.u32.u64.compose %v995, 2863311531
  %v997 = vextract.low.u32 %v996
  %v998 = vextract.high.u32 %v996
  %v999 = vshrl.u32 %v998, 4
  %v1000 = vmul.u32 %v999, 24
  %v1001 = vsub.s32 %v995, %v1000
  %v1002 = vsub.s32 0, %v1001
  %v1003 = vsel %vm993, %v1002, %v1001
  %vm1004 = vcmp.lt.s32.totalorder %v108, 0
  %v1005 = vsub.s32 0, %v108
  %v1006 = vsel %vm1004, %v1005, %v108
  %v1007 = vmul.u32.u64.compose %v1006, 2863311531
  %v1008 = vextract.low.u32 %v1007
  %v1009 = vextract.high.u32 %v1007
  %v1010 = vshrl.u32 %v1009, 4
  %v1011 = vmul.u32 %v1010, 24
  %v1012 = vsub.s32 %v1006, %v1011
  %v1013 = vsub.s32 0, %v1012
  %v1014 = vsel %vm1004, %v1013, %v1012
  %vm1015 = vcmp.lt.s32.totalorder %v109, 0
  %v1016 = vsub.s32 0, %v109
  %v1017 = vsel %vm1015, %v1016, %v109
  %v1018 = vmul.u32.u64.compose %v1017, 2863311531
  %v1019 = vextract.low.u32 %v1018
  %v1020 = vextract.high.u32 %v1018
  %v1021 = vshrl.u32 %v1020, 4
  %v1022 = vmul.u32 %v1021, 24
  %v1023 = vsub.s32 %v1017, %v1022
  %v1024 = vsub.s32 0, %v1023
  %v1025 = vsel %vm1015, %v1024, %v1023
  %vm1026 = vcmp.lt.s32.totalorder %v110, 0
  %v1027 = vsub.s32 0, %v110
  %v1028 = vsel %vm1026, %v1027, %v110
  %v1029 = vmul.u32.u64.compose %v1028, 2863311531
  %v1030 = vextract.low.u32 %v1029
  %v1031 = vextract.high.u32 %v1029
  %v1032 = vshrl.u32 %v1031, 4
  %v1033 = vmul.u32 %v1032, 24
  %v1034 = vsub.s32 %v1028, %v1033
  %v1035 = vsub.s32 0, %v1034
  %v1036 = vsel %vm1026, %v1035, %v1034
  %vm1037 = vcmp.lt.s32.totalorder %v111, 0
  %v1038 = vsub.s32 0, %v111
  %v1039 = vsel %vm1037, %v1038, %v111
  %v1040 = vmul.u32.u64.compose %v1039, 2863311531
  %v1041 = vextract.low.u32 %v1040
  %v1042 = vextract.high.u32 %v1040
  %v1043 = vshrl.u32 %v1042, 4
  %v1044 = vmul.u32 %v1043, 24
  %v1045 = vsub.s32 %v1039, %v1044
  %v1046 = vsub.s32 0, %v1045
  %v1047 = vsel %vm1037, %v1046, %v1045
  %vm1048 = vcmp.lt.s32.totalorder %v112, 0
  %v1049 = vsub.s32 0, %v112
  %v1050 = vsel %vm1048, %v1049, %v112
  %v1051 = vmul.u32.u64.compose %v1050, 2863311531
  %v1052 = vextract.low.u32 %v1051
  %v1053 = vextract.high.u32 %v1051
  %v1054 = vshrl.u32 %v1053, 4
  %v1055 = vmul.u32 %v1054, 24
  %v1056 = vsub.s32 %v1050, %v1055
  %v1057 = vsub.s32 0, %v1056
  %v1058 = vsel %vm1048, %v1057, %v1056
  %vm1059 = vcmp.lt.s32.totalorder %v113, 0
  %v1060 = vsub.s32 0, %v113
  %v1061 = vsel %vm1059, %v1060, %v113
  %v1062 = vmul.u32.u64.compose %v1061, 2863311531
  %v1063 = vextract.low.u32 %v1062
  %v1064 = vextract.high.u32 %v1062
  %v1065 = vshrl.u32 %v1064, 4
  %v1066 = vmul.u32 %v1065, 24
  %v1067 = vsub.s32 %v1061, %v1066
  %v1068 = vsub.s32 0, %v1067
  %v1069 = vsel %vm1059, %v1068, %v1067
  %vm1070 = vcmp.lt.s32.totalorder %v114, 0
  %v1071 = vsub.s32 0, %v114
  %v1072 = vsel %vm1070, %v1071, %v114
  %v1073 = vmul.u32.u64.compose %v1072, 2863311531
  %v1074 = vextract.low.u32 %v1073
  %v1075 = vextract.high.u32 %v1073
  %v1076 = vshrl.u32 %v1075, 4
  %v1077 = vmul.u32 %v1076, 24
  %v1078 = vsub.s32 %v1072, %v1077
  %v1079 = vsub.s32 0, %v1078
  %v1080 = vsel %vm1070, %v1079, %v1078
  %vm1081 = vcmp.lt.s32.totalorder %v115, 0
  %v1082 = vsub.s32 0, %v115
  %v1083 = vsel %vm1081, %v1082, %v115
  %v1084 = vmul.u32.u64.compose %v1083, 2863311531
  %v1085 = vextract.low.u32 %v1084
  %v1086 = vextract.high.u32 %v1084
  %v1087 = vshrl.u32 %v1086, 4
  %v1088 = vmul.u32 %v1087, 24
  %v1089 = vsub.s32 %v1083, %v1088
  %v1090 = vsub.s32 0, %v1089
  %v1091 = vsel %vm1081, %v1090, %v1089
  %vm1092 = vcmp.lt.s32.totalorder %v116, 0
  %v1093 = vsub.s32 0, %v116
  %v1094 = vsel %vm1092, %v1093, %v116
  %v1095 = vmul.u32.u64.compose %v1094, 2863311531
  %v1096 = vextract.low.u32 %v1095
  %v1097 = vextract.high.u32 %v1095
  %v1098 = vshrl.u32 %v1097, 4
  %v1099 = vmul.u32 %v1098, 24
  %v1100 = vsub.s32 %v1094, %v1099
  %v1101 = vsub.s32 0, %v1100
  %v1102 = vsel %vm1092, %v1101, %v1100
  %vm1103 = vcmp.lt.s32.totalorder %v117, 0
  %v1104 = vsub.s32 0, %v117
  %v1105 = vsel %vm1103, %v1104, %v117
  %v1106 = vmul.u32.u64.compose %v1105, 2863311531
  %v1107 = vextract.low.u32 %v1106
  %v1108 = vextract.high.u32 %v1106
  %v1109 = vshrl.u32 %v1108, 4
  %v1110 = vmul.u32 %v1109, 24
  %v1111 = vsub.s32 %v1105, %v1110
  %v1112 = vsub.s32 0, %v1111
  %v1113 = vsel %vm1103, %v1112, %v1111
  %vm1114 = vcmp.lt.s32.totalorder %v118, 0
  %v1115 = vsub.s32 0, %v118
  %v1116 = vsel %vm1114, %v1115, %v118
  %v1117 = vmul.u32.u64.compose %v1116, 2863311531
  %v1118 = vextract.low.u32 %v1117
  %v1119 = vextract.high.u32 %v1117
  %v1120 = vshrl.u32 %v1119, 4
  %v1121 = vmul.u32 %v1120, 24
  %v1122 = vsub.s32 %v1116, %v1121
  %v1123 = vsub.s32 0, %v1122
  %v1124 = vsel %vm1114, %v1123, %v1122
  %vm1125 = vcmp.lt.s32.totalorder %v119, 0
  %v1126 = vsub.s32 0, %v119
  %v1127 = vsel %vm1125, %v1126, %v119
  %v1128 = vmul.u32.u64.compose %v1127, 2863311531
  %v1129 = vextract.low.u32 %v1128
  %v1130 = vextract.high.u32 %v1128
  %v1131 = vshrl.u32 %v1130, 4
  %v1132 = vmul.u32 %v1131, 24
  %v1133 = vsub.s32 %v1127, %v1132
  %v1134 = vsub.s32 0, %v1133
  %v1135 = vsel %vm1125, %v1134, %v1133
  %vm1136 = vcmp.lt.s32.totalorder %v120, 0
  %v1137 = vsub.s32 0, %v120
  %v1138 = vsel %vm1136, %v1137, %v120
  %v1139 = vmul.u32.u64.compose %v1138, 2863311531
  %v1140 = vextract.low.u32 %v1139
  %v1141 = vextract.high.u32 %v1139
  %v1142 = vshrl.u32 %v1141, 4
  %v1143 = vmul.u32 %v1142, 24
  %v1144 = vsub.s32 %v1138, %v1143
  %v1145 = vsub.s32 0, %v1144
  %v1146 = vsel %vm1136, %v1145, %v1144
  %vm1147 = vcmp.lt.s32.totalorder %v121, 0
  %v1148 = vsub.s32 0, %v121
  %v1149 = vsel %vm1147, %v1148, %v121
  %v1150 = vmul.u32.u64.compose %v1149, 2863311531
  %v1151 = vextract.low.u32 %v1150
  %v1152 = vextract.high.u32 %v1150
  %v1153 = vshrl.u32 %v1152, 4
  %v1154 = vmul.u32 %v1153, 24
  %v1155 = vsub.s32 %v1149, %v1154
  %v1156 = vsub.s32 0, %v1155
  %v1157 = vsel %vm1147, %v1156, %v1155
  %vm1158 = vcmp.lt.s32.totalorder %v122, 0
  %v1159 = vsub.s32 0, %v122
  %v1160 = vsel %vm1158, %v1159, %v122
  %v1161 = vmul.u32.u64.compose %v1160, 2863311531
  %v1162 = vextract.low.u32 %v1161
  %v1163 = vextract.high.u32 %v1161
  %v1164 = vshrl.u32 %v1163, 4
  %v1165 = vmul.u32 %v1164, 24
  %v1166 = vsub.s32 %v1160, %v1165
  %v1167 = vsub.s32 0, %v1166
  %v1168 = vsel %vm1158, %v1167, %v1166
  %vm1169 = vcmp.lt.s32.totalorder %v123, 0
  %v1170 = vsub.s32 0, %v123
  %v1171 = vsel %vm1169, %v1170, %v123
  %v1172 = vmul.u32.u64.compose %v1171, 2863311531
  %v1173 = vextract.low.u32 %v1172
  %v1174 = vextract.high.u32 %v1172
  %v1175 = vshrl.u32 %v1174, 4
  %v1176 = vmul.u32 %v1175, 24
  %v1177 = vsub.s32 %v1171, %v1176
  %v1178 = vsub.s32 0, %v1177
  %v1179 = vsel %vm1169, %v1178, %v1177
  %vm1180 = vcmp.ne.s32.totalorder %v134, 0
  %vm1181 = vcmp.ne.s32.totalorder %v145, 0
  %vm1182 = vcmp.ne.s32.totalorder %v156, 0
  %vm1183 = vcmp.ne.s32.totalorder %v167, 0
  %vm1184 = vcmp.ne.s32.totalorder %v178, 0
  %vm1185 = vcmp.ne.s32.totalorder %v189, 0
  %vm1186 = vcmp.ne.s32.totalorder %v200, 0
  %vm1187 = vcmp.ne.s32.totalorder %v211, 0
  %vm1188 = vcmp.ne.s32.totalorder %v222, 0
  %vm1189 = vcmp.ne.s32.totalorder %v233, 0
  %vm1190 = vcmp.ne.s32.totalorder %v244, 0
  %vm1191 = vcmp.ne.s32.totalorder %v255, 0
  %vm1192 = vcmp.ne.s32.totalorder %v266, 0
  %vm1193 = vcmp.ne.s32.totalorder %v277, 0
  %vm1194 = vcmp.ne.s32.totalorder %v288, 0
  %vm1195 = vcmp.ne.s32.totalorder %v299, 0
  %vm1196 = vcmp.ne.s32.totalorder %v310, 0
  %vm1197 = vcmp.ne.s32.totalorder %v321, 0
  %vm1198 = vcmp.ne.s32.totalorder %v332, 0
  %vm1199 = vcmp.ne.s32.totalorder %v343, 0
  %vm1200 = vcmp.ne.s32.totalorder %v354, 0
  %vm1201 = vcmp.ne.s32.totalorder %v365, 0
  %vm1202 = vcmp.ne.s32.totalorder %v376, 0
  %vm1203 = vcmp.ne.s32.totalorder %v387, 0
  %vm1204 = vcmp.ne.s32.totalorder %v398, 0
  %vm1205 = vcmp.ne.s32.totalorder %v409, 0
  %vm1206 = vcmp.ne.s32.totalorder %v420, 0
  %vm1207 = vcmp.ne.s32.totalorder %v431, 0
  %vm1208 = vcmp.ne.s32.totalorder %v442, 0
  %vm1209 = vcmp.ne.s32.totalorder %v453, 0
  %vm1210 = vcmp.ne.s32.totalorder %v464, 0
  %vm1211 = vcmp.ne.s32.totalorder %v475, 0
  %vm1212 = vcmp.ne.s32.totalorder %v486, 0
  %vm1213 = vcmp.ne.s32.totalorder %v497, 0
  %vm1214 = vcmp.ne.s32.totalorder %v508, 0
  %vm1215 = vcmp.ne.s32.totalorder %v519, 0
  %vm1216 = vcmp.ne.s32.totalorder %v530, 0
  %vm1217 = vcmp.ne.s32.totalorder %v541, 0
  %vm1218 = vcmp.ne.s32.totalorder %v552, 0
  %vm1219 = vcmp.ne.s32.totalorder %v563, 0
  %vm1220 = vcmp.ne.s32.totalorder %v574, 0
  %vm1221 = vcmp.ne.s32.totalorder %v585, 0
  %vm1222 = vcmp.ne.s32.totalorder %v596, 0
  %vm1223 = vcmp.ne.s32.totalorder %v607, 0
  %vm1224 = vcmp.ne.s32.totalorder %v618, 0
  %vm1225 = vcmp.ne.s32.totalorder %v629, 0
  %vm1226 = vcmp.ne.s32.totalorder %v640, 0
  %vm1227 = vcmp.ne.s32.totalorder %v651, 0
  %vm1228 = vcmp.ne.s32.totalorder %v662, 0
  %vm1229 = vcmp.ne.s32.totalorder %v673, 0
  %vm1230 = vcmp.ne.s32.totalorder %v684, 0
  %vm1231 = vcmp.ne.s32.totalorder %v695, 0
  %vm1232 = vcmp.ne.s32.totalorder %v706, 0
  %vm1233 = vcmp.ne.s32.totalorder %v717, 0
  %vm1234 = vcmp.ne.s32.totalorder %v728, 0
  %vm1235 = vcmp.ne.s32.totalorder %v739, 0
  %vm1236 = vcmp.ne.s32.totalorder %v750, 0
  %vm1237 = vcmp.ne.s32.totalorder %v761, 0
  %vm1238 = vcmp.ne.s32.totalorder %v772, 0
  %vm1239 = vcmp.ne.s32.totalorder %v783, 0
  %vm1240 = vcmp.ne.s32.totalorder %v794, 0
  %vm1241 = vcmp.ne.s32.totalorder %v805, 0
  %vm1242 = vcmp.ne.s32.totalorder %v816, 0
  %vm1243 = vcmp.ne.s32.totalorder %v827, 0
  %vm1244 = vcmp.ne.s32.totalorder %v838, 0
  %vm1245 = vcmp.ne.s32.totalorder %v849, 0
  %vm1246 = vcmp.ne.s32.totalorder %v860, 0
  %vm1247 = vcmp.ne.s32.totalorder %v871, 0
  %vm1248 = vcmp.ne.s32.totalorder %v882, 0
  %vm1249 = vcmp.ne.s32.totalorder %v893, 0
  %vm1250 = vcmp.ne.s32.totalorder %v904, 0
  %vm1251 = vcmp.ne.s32.totalorder %v915, 0
  %vm1252 = vcmp.ne.s32.totalorder %v926, 0
  %vm1253 = vcmp.ne.s32.totalorder %v937, 0
  %vm1254 = vcmp.ne.s32.totalorder %v948, 0
  %vm1255 = vcmp.ne.s32.totalorder %v959, 0
  %vm1256 = vcmp.ne.s32.totalorder %v970, 0
  %vm1257 = vcmp.ne.s32.totalorder %v981, 0
  %vm1258 = vcmp.ne.s32.totalorder %v992, 0
  %vm1259 = vcmp.ne.s32.totalorder %v1003, 0
  %vm1260 = vcmp.ne.s32.totalorder %v1014, 0
  %vm1261 = vcmp.ne.s32.totalorder %v1025, 0
  %vm1262 = vcmp.ne.s32.totalorder %v1036, 0
  %vm1263 = vcmp.ne.s32.totalorder %v1047, 0
  %vm1264 = vcmp.ne.s32.totalorder %v1058, 0
  %vm1265 = vcmp.ne.s32.totalorder %v1069, 0
  %vm1266 = vcmp.ne.s32.totalorder %v1080, 0
  %vm1267 = vcmp.ne.s32.totalorder %v1091, 0
  %vm1268 = vcmp.ne.s32.totalorder %v1102, 0
  %vm1269 = vcmp.ne.s32.totalorder %v1113, 0
  %vm1270 = vcmp.ne.s32.totalorder %v1124, 0
  %vm1271 = vcmp.ne.s32.totalorder %v1135, 0
  %vm1272 = vcmp.ne.s32.totalorder %v1146, 0
  %vm1273 = vcmp.ne.s32.totalorder %v1157, 0
  %vm1274 = vcmp.ne.s32.totalorder %v1168, 0
  %vm1275 = vcmp.ne.s32.totalorder %v1179, 0
  %vm1276 = vcmp.lt.s32.totalorder %v134, 0
  %vm1277 = vcmp.lt.s32.totalorder %v145, 0
  %vm1278 = vcmp.lt.s32.totalorder %v156, 0
  %vm1279 = vcmp.lt.s32.totalorder %v167, 0
  %vm1280 = vcmp.lt.s32.totalorder %v178, 0
  %vm1281 = vcmp.lt.s32.totalorder %v189, 0
  %vm1282 = vcmp.lt.s32.totalorder %v200, 0
  %vm1283 = vcmp.lt.s32.totalorder %v211, 0
  %vm1284 = vcmp.lt.s32.totalorder %v222, 0
  %vm1285 = vcmp.lt.s32.totalorder %v233, 0
  %vm1286 = vcmp.lt.s32.totalorder %v244, 0
  %vm1287 = vcmp.lt.s32.totalorder %v255, 0
  %vm1288 = vcmp.lt.s32.totalorder %v266, 0
  %vm1289 = vcmp.lt.s32.totalorder %v277, 0
  %vm1290 = vcmp.lt.s32.totalorder %v288, 0
  %vm1291 = vcmp.lt.s32.totalorder %v299, 0
  %vm1292 = vcmp.lt.s32.totalorder %v310, 0
  %vm1293 = vcmp.lt.s32.totalorder %v321, 0
  %vm1294 = vcmp.lt.s32.totalorder %v332, 0
  %vm1295 = vcmp.lt.s32.totalorder %v343, 0
  %vm1296 = vcmp.lt.s32.totalorder %v354, 0
  %vm1297 = vcmp.lt.s32.totalorder %v365, 0
  %vm1298 = vcmp.lt.s32.totalorder %v376, 0
  %vm1299 = vcmp.lt.s32.totalorder %v387, 0
  %vm1300 = vcmp.lt.s32.totalorder %v398, 0
  %vm1301 = vcmp.lt.s32.totalorder %v409, 0
  %vm1302 = vcmp.lt.s32.totalorder %v420, 0
  %vm1303 = vcmp.lt.s32.totalorder %v431, 0
  %vm1304 = vcmp.lt.s32.totalorder %v442, 0
  %vm1305 = vcmp.lt.s32.totalorder %v453, 0
  %vm1306 = vcmp.lt.s32.totalorder %v464, 0
  %vm1307 = vcmp.lt.s32.totalorder %v475, 0
  %vm1308 = vcmp.lt.s32.totalorder %v486, 0
  %vm1309 = vcmp.lt.s32.totalorder %v497, 0
  %vm1310 = vcmp.lt.s32.totalorder %v508, 0
  %vm1311 = vcmp.lt.s32.totalorder %v519, 0
  %vm1312 = vcmp.lt.s32.totalorder %v530, 0
  %vm1313 = vcmp.lt.s32.totalorder %v541, 0
  %vm1314 = vcmp.lt.s32.totalorder %v552, 0
  %vm1315 = vcmp.lt.s32.totalorder %v563, 0
  %vm1316 = vcmp.lt.s32.totalorder %v574, 0
  %vm1317 = vcmp.lt.s32.totalorder %v585, 0
  %vm1318 = vcmp.lt.s32.totalorder %v596, 0
  %vm1319 = vcmp.lt.s32.totalorder %v607, 0
  %vm1320 = vcmp.lt.s32.totalorder %v618, 0
  %vm1321 = vcmp.lt.s32.totalorder %v629, 0
  %vm1322 = vcmp.lt.s32.totalorder %v640, 0
  %vm1323 = vcmp.lt.s32.totalorder %v651, 0
  %vm1324 = vcmp.lt.s32.totalorder %v662, 0
  %vm1325 = vcmp.lt.s32.totalorder %v673, 0
  %vm1326 = vcmp.lt.s32.totalorder %v684, 0
  %vm1327 = vcmp.lt.s32.totalorder %v695, 0
  %vm1328 = vcmp.lt.s32.totalorder %v706, 0
  %vm1329 = vcmp.lt.s32.totalorder %v717, 0
  %vm1330 = vcmp.lt.s32.totalorder %v728, 0
  %vm1331 = vcmp.lt.s32.totalorder %v739, 0
  %vm1332 = vcmp.lt.s32.totalorder %v750, 0
  %vm1333 = vcmp.lt.s32.totalorder %v761, 0
  %vm1334 = vcmp.lt.s32.totalorder %v772, 0
  %vm1335 = vcmp.lt.s32.totalorder %v783, 0
  %vm1336 = vcmp.lt.s32.totalorder %v794, 0
  %vm1337 = vcmp.lt.s32.totalorder %v805, 0
  %vm1338 = vcmp.lt.s32.totalorder %v816, 0
  %vm1339 = vcmp.lt.s32.totalorder %v827, 0
  %vm1340 = vcmp.lt.s32.totalorder %v838, 0
  %vm1341 = vcmp.lt.s32.totalorder %v849, 0
  %vm1342 = vcmp.lt.s32.totalorder %v860, 0
  %vm1343 = vcmp.lt.s32.totalorder %v871, 0
  %vm1344 = vcmp.lt.s32.totalorder %v882, 0
  %vm1345 = vcmp.lt.s32.totalorder %v893, 0
  %vm1346 = vcmp.lt.s32.totalorder %v904, 0
  %vm1347 = vcmp.lt.s32.totalorder %v915, 0
  %vm1348 = vcmp.lt.s32.totalorder %v926, 0
  %vm1349 = vcmp.lt.s32.totalorder %v937, 0
  %vm1350 = vcmp.lt.s32.totalorder %v948, 0
  %vm1351 = vcmp.lt.s32.totalorder %v959, 0
  %vm1352 = vcmp.lt.s32.totalorder %v970, 0
  %vm1353 = vcmp.lt.s32.totalorder %v981, 0
  %vm1354 = vcmp.lt.s32.totalorder %v992, 0
  %vm1355 = vcmp.lt.s32.totalorder %v1003, 0
  %vm1356 = vcmp.lt.s32.totalorder %v1014, 0
  %vm1357 = vcmp.lt.s32.totalorder %v1025, 0
  %vm1358 = vcmp.lt.s32.totalorder %v1036, 0
  %vm1359 = vcmp.lt.s32.totalorder %v1047, 0
  %vm1360 = vcmp.lt.s32.totalorder %v1058, 0
  %vm1361 = vcmp.lt.s32.totalorder %v1069, 0
  %vm1362 = vcmp.lt.s32.totalorder %v1080, 0
  %vm1363 = vcmp.lt.s32.totalorder %v1091, 0
  %vm1364 = vcmp.lt.s32.totalorder %v1102, 0
  %vm1365 = vcmp.lt.s32.totalorder %v1113, 0
  %vm1366 = vcmp.lt.s32.totalorder %v1124, 0
  %vm1367 = vcmp.lt.s32.totalorder %v1135, 0
  %vm1368 = vcmp.lt.s32.totalorder %v1146, 0
  %vm1369 = vcmp.lt.s32.totalorder %v1157, 0
  %vm1370 = vcmp.lt.s32.totalorder %v1168, 0
  %vm1371 = vcmp.lt.s32.totalorder %v1179, 0
  %vm1372 = vmand %vm1276, %vm1180
  %vm1373 = vmand %vm1277, %vm1181
  %vm1374 = vmand %vm1278, %vm1182
  %vm1375 = vmand %vm1279, %vm1183
  %vm1376 = vmand %vm1280, %vm1184
  %vm1377 = vmand %vm1281, %vm1185
  %vm1378 = vmand %vm1282, %vm1186
  %vm1379 = vmand %vm1283, %vm1187
  %vm1380 = vmand %vm1284, %vm1188
  %vm1381 = vmand %vm1285, %vm1189
  %vm1382 = vmand %vm1286, %vm1190
  %vm1383 = vmand %vm1287, %vm1191
  %vm1384 = vmand %vm1288, %vm1192
  %vm1385 = vmand %vm1289, %vm1193
  %vm1386 = vmand %vm1290, %vm1194
  %vm1387 = vmand %vm1291, %vm1195
  %vm1388 = vmand %vm1292, %vm1196
  %vm1389 = vmand %vm1293, %vm1197
  %vm1390 = vmand %vm1294, %vm1198
  %vm1391 = vmand %vm1295, %vm1199
  %vm1392 = vmand %vm1296, %vm1200
  %vm1393 = vmand %vm1297, %vm1201
  %vm1394 = vmand %vm1298, %vm1202
  %vm1395 = vmand %vm1299, %vm1203
  %vm1396 = vmand %vm1300, %vm1204
  %vm1397 = vmand %vm1301, %vm1205
  %vm1398 = vmand %vm1302, %vm1206
  %vm1399 = vmand %vm1303, %vm1207
  %vm1400 = vmand %vm1304, %vm1208
  %vm1401 = vmand %vm1305, %vm1209
  %vm1402 = vmand %vm1306, %vm1210
  %vm1403 = vmand %vm1307, %vm1211
  %vm1404 = vmand %vm1308, %vm1212
  %vm1405 = vmand %vm1309, %vm1213
  %vm1406 = vmand %vm1310, %vm1214
  %vm1407 = vmand %vm1311, %vm1215
  %vm1408 = vmand %vm1312, %vm1216
  %vm1409 = vmand %vm1313, %vm1217
  %vm1410 = vmand %vm1314, %vm1218
  %vm1411 = vmand %vm1315, %vm1219
  %vm1412 = vmand %vm1316, %vm1220
  %vm1413 = vmand %vm1317, %vm1221
  %vm1414 = vmand %vm1318, %vm1222
  %vm1415 = vmand %vm1319, %vm1223
  %vm1416 = vmand %vm1320, %vm1224
  %vm1417 = vmand %vm1321, %vm1225
  %vm1418 = vmand %vm1322, %vm1226
  %vm1419 = vmand %vm1323, %vm1227
  %vm1420 = vmand %vm1324, %vm1228
  %vm1421 = vmand %vm1325, %vm1229
  %vm1422 = vmand %vm1326, %vm1230
  %vm1423 = vmand %vm1327, %vm1231
  %vm1424 = vmand %vm1328, %vm1232
  %vm1425 = vmand %vm1329, %vm1233
  %vm1426 = vmand %vm1330, %vm1234
  %vm1427 = vmand %vm1331, %vm1235
  %vm1428 = vmand %vm1332, %vm1236
  %vm1429 = vmand %vm1333, %vm1237
  %vm1430 = vmand %vm1334, %vm1238
  %vm1431 = vmand %vm1335, %vm1239
  %vm1432 = vmand %vm1336, %vm1240
  %vm1433 = vmand %vm1337, %vm1241
  %vm1434 = vmand %vm1338, %vm1242
  %vm1435 = vmand %vm1339, %vm1243
  %vm1436 = vmand %vm1340, %vm1244
  %vm1437 = vmand %vm1341, %vm1245
  %vm1438 = vmand %vm1342, %vm1246
  %vm1439 = vmand %vm1343, %vm1247
  %vm1440 = vmand %vm1344, %vm1248
  %vm1441 = vmand %vm1345, %vm1249
  %vm1442 = vmand %vm1346, %vm1250
  %vm1443 = vmand %vm1347, %vm1251
  %vm1444 = vmand %vm1348, %vm1252
  %vm1445 = vmand %vm1349, %vm1253
  %vm1446 = vmand %vm1350, %vm1254
  %vm1447 = vmand %vm1351, %vm1255
  %vm1448 = vmand %vm1352, %vm1256
  %vm1449 = vmand %vm1353, %vm1257
  %vm1450 = vmand %vm1354, %vm1258
  %vm1451 = vmand %vm1355, %vm1259
  %vm1452 = vmand %vm1356, %vm1260
  %vm1453 = vmand %vm1357, %vm1261
  %vm1454 = vmand %vm1358, %vm1262
  %vm1455 = vmand %vm1359, %vm1263
  %vm1456 = vmand %vm1360, %vm1264
  %vm1457 = vmand %vm1361, %vm1265
  %vm1458 = vmand %vm1362, %vm1266
  %vm1459 = vmand %vm1363, %vm1267
  %vm1460 = vmand %vm1364, %vm1268
  %vm1461 = vmand %vm1365, %vm1269
  %vm1462 = vmand %vm1366, %vm1270
  %vm1463 = vmand %vm1367, %vm1271
  %vm1464 = vmand %vm1368, %vm1272
  %vm1465 = vmand %vm1369, %vm1273
  %vm1466 = vmand %vm1370, %vm1274
  %vm1467 = vmand %vm1371, %vm1275
  %v1468 = vadd.s32 %v134, 24
  %v1469 = vadd.s32 %v145, 24
  %v1470 = vadd.s32 %v156, 24
  %v1471 = vadd.s32 %v167, 24
  %v1472 = vadd.s32 %v178, 24
  %v1473 = vadd.s32 %v189, 24
  %v1474 = vadd.s32 %v200, 24
  %v1475 = vadd.s32 %v211, 24
  %v1476 = vadd.s32 %v222, 24
  %v1477 = vadd.s32 %v233, 24
  %v1478 = vadd.s32 %v244, 24
  %v1479 = vadd.s32 %v255, 24
  %v1480 = vadd.s32 %v266, 24
  %v1481 = vadd.s32 %v277, 24
  %v1482 = vadd.s32 %v288, 24
  %v1483 = vadd.s32 %v299, 24
  %v1484 = vadd.s32 %v310, 24
  %v1485 = vadd.s32 %v321, 24
  %v1486 = vadd.s32 %v332, 24
  %v1487 = vadd.s32 %v343, 24
  %v1488 = vadd.s32 %v354, 24
  %v1489 = vadd.s32 %v365, 24
  %v1490 = vadd.s32 %v376, 24
  %v1491 = vadd.s32 %v387, 24
  %v1492 = vadd.s32 %v398, 24
  %v1493 = vadd.s32 %v409, 24
  %v1494 = vadd.s32 %v420, 24
  %v1495 = vadd.s32 %v431, 24
  %v1496 = vadd.s32 %v442, 24
  %v1497 = vadd.s32 %v453, 24
  %v1498 = vadd.s32 %v464, 24
  %v1499 = vadd.s32 %v475, 24
  %v1500 = vadd.s32 %v486, 24
  %v1501 = vadd.s32 %v497, 24
  %v1502 = vadd.s32 %v508, 24
  %v1503 = vadd.s32 %v519, 24
  %v1504 = vadd.s32 %v530, 24
  %v1505 = vadd.s32 %v541, 24
  %v1506 = vadd.s32 %v552, 24
  %v1507 = vadd.s32 %v563, 24
  %v1508 = vadd.s32 %v574, 24
  %v1509 = vadd.s32 %v585, 24
  %v1510 = vadd.s32 %v596, 24
  %v1511 = vadd.s32 %v607, 24
  %v1512 = vadd.s32 %v618, 24
  %v1513 = vadd.s32 %v629, 24
  %v1514 = vadd.s32 %v640, 24
  %v1515 = vadd.s32 %v651, 24
  %v1516 = vadd.s32 %v662, 24
  %v1517 = vadd.s32 %v673, 24
  %v1518 = vadd.s32 %v684, 24
  %v1519 = vadd.s32 %v695, 24
  %v1520 = vadd.s32 %v706, 24
  %v1521 = vadd.s32 %v717, 24
  %v1522 = vadd.s32 %v728, 24
  %v1523 = vadd.s32 %v739, 24
  %v1524 = vadd.s32 %v750, 24
  %v1525 = vadd.s32 %v761, 24
  %v1526 = vadd.s32 %v772, 24
  %v1527 = vadd.s32 %v783, 24
  %v1528 = vadd.s32 %v794, 24
  %v1529 = vadd.s32 %v805, 24
  %v1530 = vadd.s32 %v816, 24
  %v1531 = vadd.s32 %v827, 24
  %v1532 = vadd.s32 %v838, 24
  %v1533 = vadd.s32 %v849, 24
  %v1534 = vadd.s32 %v860, 24
  %v1535 = vadd.s32 %v871, 24
  %v1536 = vadd.s32 %v882, 24
  %v1537 = vadd.s32 %v893, 24
  %v1538 = vadd.s32 %v904, 24
  %v1539 = vadd.s32 %v915, 24
  %v1540 = vadd.s32 %v926, 24
  %v1541 = vadd.s32 %v937, 24
  %v1542 = vadd.s32 %v948, 24
  %v1543 = vadd.s32 %v959, 24
  %v1544 = vadd.s32 %v970, 24
  %v1545 = vadd.s32 %v981, 24
  %v1546 = vadd.s32 %v992, 24
  %v1547 = vadd.s32 %v1003, 24
  %v1548 = vadd.s32 %v1014, 24
  %v1549 = vadd.s32 %v1025, 24
  %v1550 = vadd.s32 %v1036, 24
  %v1551 = vadd.s32 %v1047, 24
  %v1552 = vadd.s32 %v1058, 24
  %v1553 = vadd.s32 %v1069, 24
  %v1554 = vadd.s32 %v1080, 24
  %v1555 = vadd.s32 %v1091, 24
  %v1556 = vadd.s32 %v1102, 24
  %v1557 = vadd.s32 %v1113, 24
  %v1558 = vadd.s32 %v1124, 24
  %v1559 = vadd.s32 %v1135, 24
  %v1560 = vadd.s32 %v1146, 24
  %v1561 = vadd.s32 %v1157, 24
  %v1562 = vadd.s32 %v1168, 24
  %v1563 = vadd.s32 %v1179, 24
  %v1564 = vsel %vm1372, %v1468, %v134
  %v1565 = vsel %vm1373, %v1469, %v145
  %v1566 = vsel %vm1374, %v1470, %v156
  %v1567 = vsel %vm1375, %v1471, %v167
  %v1568 = vsel %vm1376, %v1472, %v178
  %v1569 = vsel %vm1377, %v1473, %v189
  %v1570 = vsel %vm1378, %v1474, %v200
  %v1571 = vsel %vm1379, %v1475, %v211
  %v1572 = vsel %vm1380, %v1476, %v222
  %v1573 = vsel %vm1381, %v1477, %v233
  %v1574 = vsel %vm1382, %v1478, %v244
  %v1575 = vsel %vm1383, %v1479, %v255
  %v1576 = vsel %vm1384, %v1480, %v266
  %v1577 = vsel %vm1385, %v1481, %v277
  %v1578 = vsel %vm1386, %v1482, %v288
  %v1579 = vsel %vm1387, %v1483, %v299
  %v1580 = vsel %vm1388, %v1484, %v310
  %v1581 = vsel %vm1389, %v1485, %v321
  %v1582 = vsel %vm1390, %v1486, %v332
  %v1583 = vsel %vm1391, %v1487, %v343
  %v1584 = vsel %vm1392, %v1488, %v354
  %v1585 = vsel %vm1393, %v1489, %v365
  %v1586 = vsel %vm1394, %v1490, %v376
  %v1587 = vsel %vm1395, %v1491, %v387
  %v1588 = vsel %vm1396, %v1492, %v398
  %v1589 = vsel %vm1397, %v1493, %v409
  %v1590 = vsel %vm1398, %v1494, %v420
  %v1591 = vsel %vm1399, %v1495, %v431
  %v1592 = vsel %vm1400, %v1496, %v442
  %v1593 = vsel %vm1401, %v1497, %v453
  %v1594 = vsel %vm1402, %v1498, %v464
  %v1595 = vsel %vm1403, %v1499, %v475
  %v1596 = vsel %vm1404, %v1500, %v486
  %v1597 = vsel %vm1405, %v1501, %v497
  %v1598 = vsel %vm1406, %v1502, %v508
  %v1599 = vsel %vm1407, %v1503, %v519
  %v1600 = vsel %vm1408, %v1504, %v530
  %v1601 = vsel %vm1409, %v1505, %v541
  %v1602 = vsel %vm1410, %v1506, %v552
  %v1603 = vsel %vm1411, %v1507, %v563
  %v1604 = vsel %vm1412, %v1508, %v574
  %v1605 = vsel %vm1413, %v1509, %v585
  %v1606 = vsel %vm1414, %v1510, %v596
  %v1607 = vsel %vm1415, %v1511, %v607
  %v1608 = vsel %vm1416, %v1512, %v618
  %v1609 = vsel %vm1417, %v1513, %v629
  %v1610 = vsel %vm1418, %v1514, %v640
  %v1611 = vsel %vm1419, %v1515, %v651
  %v1612 = vsel %vm1420, %v1516, %v662
  %v1613 = vsel %vm1421, %v1517, %v673
  %v1614 = vsel %vm1422, %v1518, %v684
  %v1615 = vsel %vm1423, %v1519, %v695
  %v1616 = vsel %vm1424, %v1520, %v706
  %v1617 = vsel %vm1425, %v1521, %v717
  %v1618 = vsel %vm1426, %v1522, %v728
  %v1619 = vsel %vm1427, %v1523, %v739
  %v1620 = vsel %vm1428, %v1524, %v750
  %v1621 = vsel %vm1429, %v1525, %v761
  %v1622 = vsel %vm1430, %v1526, %v772
  %v1623 = vsel %vm1431, %v1527, %v783
  %v1624 = vsel %vm1432, %v1528, %v794
  %v1625 = vsel %vm1433, %v1529, %v805
  %v1626 = vsel %vm1434, %v1530, %v816
  %v1627 = vsel %vm1435, %v1531, %v827
  %v1628 = vsel %vm1436, %v1532, %v838
  %v1629 = vsel %vm1437, %v1533, %v849
  %v1630 = vsel %vm1438, %v1534, %v860
  %v1631 = vsel %vm1439, %v1535, %v871
  %v1632 = vsel %vm1440, %v1536, %v882
  %v1633 = vsel %vm1441, %v1537, %v893
  %v1634 = vsel %vm1442, %v1538, %v904
  %v1635 = vsel %vm1443, %v1539, %v915
  %v1636 = vsel %vm1444, %v1540, %v926
  %v1637 = vsel %vm1445, %v1541, %v937
  %v1638 = vsel %vm1446, %v1542, %v948
  %v1639 = vsel %vm1447, %v1543, %v959
  %v1640 = vsel %vm1448, %v1544, %v970
  %v1641 = vsel %vm1449, %v1545, %v981
  %v1642 = vsel %vm1450, %v1546, %v992
  %v1643 = vsel %vm1451, %v1547, %v1003
  %v1644 = vsel %vm1452, %v1548, %v1014
  %v1645 = vsel %vm1453, %v1549, %v1025
  %v1646 = vsel %vm1454, %v1550, %v1036
  %v1647 = vsel %vm1455, %v1551, %v1047
  %v1648 = vsel %vm1456, %v1552, %v1058
  %v1649 = vsel %vm1457, %v1553, %v1069
  %v1650 = vsel %vm1458, %v1554, %v1080
  %v1651 = vsel %vm1459, %v1555, %v1091
  %v1652 = vsel %vm1460, %v1556, %v1102
  %v1653 = vsel %vm1461, %v1557, %v1113
  %v1654 = vsel %vm1462, %v1558, %v1124
  %v1655 = vsel %vm1463, %v1559, %v1135
  %v1656 = vsel %vm1464, %v1560, %v1146
  %v1657 = vsel %vm1465, %v1561, %v1157
  %v1658 = vsel %vm1466, %v1562, %v1168
  %v1659 = vsel %vm1467, %v1563, %v1179
  %vm1660 = vcmp.ge.s32.totalorder %v1564, 1
  %vm1661 = vcmp.ge.s32.totalorder %v1565, 1
  %vm1662 = vcmp.ge.s32.totalorder %v1566, 1
  %vm1663 = vcmp.ge.s32.totalorder %v1567, 1
  %vm1664 = vcmp.ge.s32.totalorder %v1568, 1
  %vm1665 = vcmp.ge.s32.totalorder %v1569, 1
  %vm1666 = vcmp.ge.s32.totalorder %v1570, 1
  %vm1667 = vcmp.ge.s32.totalorder %v1571, 1
  %vm1668 = vcmp.ge.s32.totalorder %v1572, 1
  %vm1669 = vcmp.ge.s32.totalorder %v1573, 1
  %vm1670 = vcmp.ge.s32.totalorder %v1574, 1
  %vm1671 = vcmp.ge.s32.totalorder %v1575, 1
  %vm1672 = vcmp.ge.s32.totalorder %v1576, 1
  %vm1673 = vcmp.ge.s32.totalorder %v1577, 1
  %vm1674 = vcmp.ge.s32.totalorder %v1578, 1
  %vm1675 = vcmp.ge.s32.totalorder %v1579, 1
  %vm1676 = vcmp.ge.s32.totalorder %v1580, 1
  %vm1677 = vcmp.ge.s32.totalorder %v1581, 1
  %vm1678 = vcmp.ge.s32.totalorder %v1582, 1
  %vm1679 = vcmp.ge.s32.totalorder %v1583, 1
  %vm1680 = vcmp.ge.s32.totalorder %v1584, 1
  %vm1681 = vcmp.ge.s32.totalorder %v1585, 1
  %vm1682 = vcmp.ge.s32.totalorder %v1586, 1
  %vm1683 = vcmp.ge.s32.totalorder %v1587, 1
  %vm1684 = vcmp.ge.s32.totalorder %v1588, 1
  %vm1685 = vcmp.ge.s32.totalorder %v1589, 1
  %vm1686 = vcmp.ge.s32.totalorder %v1590, 1
  %vm1687 = vcmp.ge.s32.totalorder %v1591, 1
  %vm1688 = vcmp.ge.s32.totalorder %v1592, 1
  %vm1689 = vcmp.ge.s32.totalorder %v1593, 1
  %vm1690 = vcmp.ge.s32.totalorder %v1594, 1
  %vm1691 = vcmp.ge.s32.totalorder %v1595, 1
  %vm1692 = vcmp.ge.s32.totalorder %v1596, 1
  %vm1693 = vcmp.ge.s32.totalorder %v1597, 1
  %vm1694 = vcmp.ge.s32.totalorder %v1598, 1
  %vm1695 = vcmp.ge.s32.totalorder %v1599, 1
  %vm1696 = vcmp.ge.s32.totalorder %v1600, 1
  %vm1697 = vcmp.ge.s32.totalorder %v1601, 1
  %vm1698 = vcmp.ge.s32.totalorder %v1602, 1
  %vm1699 = vcmp.ge.s32.totalorder %v1603, 1
  %vm1700 = vcmp.ge.s32.totalorder %v1604, 1
  %vm1701 = vcmp.ge.s32.totalorder %v1605, 1
  %vm1702 = vcmp.ge.s32.totalorder %v1606, 1
  %vm1703 = vcmp.ge.s32.totalorder %v1607, 1
  %vm1704 = vcmp.ge.s32.totalorder %v1608, 1
  %vm1705 = vcmp.ge.s32.totalorder %v1609, 1
  %vm1706 = vcmp.ge.s32.totalorder %v1610, 1
  %vm1707 = vcmp.ge.s32.totalorder %v1611, 1
  %vm1708 = vcmp.ge.s32.totalorder %v1612, 1
  %vm1709 = vcmp.ge.s32.totalorder %v1613, 1
  %vm1710 = vcmp.ge.s32.totalorder %v1614, 1
  %vm1711 = vcmp.ge.s32.totalorder %v1615, 1
  %vm1712 = vcmp.ge.s32.totalorder %v1616, 1
  %vm1713 = vcmp.ge.s32.totalorder %v1617, 1
  %vm1714 = vcmp.ge.s32.totalorder %v1618, 1
  %vm1715 = vcmp.ge.s32.totalorder %v1619, 1
  %vm1716 = vcmp.ge.s32.totalorder %v1620, 1
  %vm1717 = vcmp.ge.s32.totalorder %v1621, 1
  %vm1718 = vcmp.ge.s32.totalorder %v1622, 1
  %vm1719 = vcmp.ge.s32.totalorder %v1623, 1
  %vm1720 = vcmp.ge.s32.totalorder %v1624, 1
  %vm1721 = vcmp.ge.s32.totalorder %v1625, 1
  %vm1722 = vcmp.ge.s32.totalorder %v1626, 1
  %vm1723 = vcmp.ge.s32.totalorder %v1627, 1
  %vm1724 = vcmp.ge.s32.totalorder %v1628, 1
  %vm1725 = vcmp.ge.s32.totalorder %v1629, 1
  %vm1726 = vcmp.ge.s32.totalorder %v1630, 1
  %vm1727 = vcmp.ge.s32.totalorder %v1631, 1
  %vm1728 = vcmp.ge.s32.totalorder %v1632, 1
  %vm1729 = vcmp.ge.s32.totalorder %v1633, 1
  %vm1730 = vcmp.ge.s32.totalorder %v1634, 1
  %vm1731 = vcmp.ge.s32.totalorder %v1635, 1
  %vm1732 = vcmp.ge.s32.totalorder %v1636, 1
  %vm1733 = vcmp.ge.s32.totalorder %v1637, 1
  %vm1734 = vcmp.ge.s32.totalorder %v1638, 1
  %vm1735 = vcmp.ge.s32.totalorder %v1639, 1
  %vm1736 = vcmp.ge.s32.totalorder %v1640, 1
  %vm1737 = vcmp.ge.s32.totalorder %v1641, 1
  %vm1738 = vcmp.ge.s32.totalorder %v1642, 1
  %vm1739 = vcmp.ge.s32.totalorder %v1643, 1
  %vm1740 = vcmp.ge.s32.totalorder %v1644, 1
  %vm1741 = vcmp.ge.s32.totalorder %v1645, 1
  %vm1742 = vcmp.ge.s32.totalorder %v1646, 1
  %vm1743 = vcmp.ge.s32.totalorder %v1647, 1
  %vm1744 = vcmp.ge.s32.totalorder %v1648, 1
  %vm1745 = vcmp.ge.s32.totalorder %v1649, 1
  %vm1746 = vcmp.ge.s32.totalorder %v1650, 1
  %vm1747 = vcmp.ge.s32.totalorder %v1651, 1
  %vm1748 = vcmp.ge.s32.totalorder %v1652, 1
  %vm1749 = vcmp.ge.s32.totalorder %v1653, 1
  %vm1750 = vcmp.ge.s32.totalorder %v1654, 1
  %vm1751 = vcmp.ge.s32.totalorder %v1655, 1
  %vm1752 = vcmp.ge.s32.totalorder %v1656, 1
  %vm1753 = vcmp.ge.s32.totalorder %v1657, 1
  %vm1754 = vcmp.ge.s32.totalorder %v1658, 1
  %vm1755 = vcmp.ge.s32.totalorder %v1659, 1
  %vm1756 = vcmp.le.s32.totalorder %v1564, 16
  %vm1757 = vcmp.le.s32.totalorder %v1565, 16
  %vm1758 = vcmp.le.s32.totalorder %v1566, 16
  %vm1759 = vcmp.le.s32.totalorder %v1567, 16
  %vm1760 = vcmp.le.s32.totalorder %v1568, 16
  %vm1761 = vcmp.le.s32.totalorder %v1569, 16
  %vm1762 = vcmp.le.s32.totalorder %v1570, 16
  %vm1763 = vcmp.le.s32.totalorder %v1571, 16
  %vm1764 = vcmp.le.s32.totalorder %v1572, 16
  %vm1765 = vcmp.le.s32.totalorder %v1573, 16
  %vm1766 = vcmp.le.s32.totalorder %v1574, 16
  %vm1767 = vcmp.le.s32.totalorder %v1575, 16
  %vm1768 = vcmp.le.s32.totalorder %v1576, 16
  %vm1769 = vcmp.le.s32.totalorder %v1577, 16
  %vm1770 = vcmp.le.s32.totalorder %v1578, 16
  %vm1771 = vcmp.le.s32.totalorder %v1579, 16
  %vm1772 = vcmp.le.s32.totalorder %v1580, 16
  %vm1773 = vcmp.le.s32.totalorder %v1581, 16
  %vm1774 = vcmp.le.s32.totalorder %v1582, 16
  %vm1775 = vcmp.le.s32.totalorder %v1583, 16
  %vm1776 = vcmp.le.s32.totalorder %v1584, 16
  %vm1777 = vcmp.le.s32.totalorder %v1585, 16
  %vm1778 = vcmp.le.s32.totalorder %v1586, 16
  %vm1779 = vcmp.le.s32.totalorder %v1587, 16
  %vm1780 = vcmp.le.s32.totalorder %v1588, 16
  %vm1781 = vcmp.le.s32.totalorder %v1589, 16
  %vm1782 = vcmp.le.s32.totalorder %v1590, 16
  %vm1783 = vcmp.le.s32.totalorder %v1591, 16
  %vm1784 = vcmp.le.s32.totalorder %v1592, 16
  %vm1785 = vcmp.le.s32.totalorder %v1593, 16
  %vm1786 = vcmp.le.s32.totalorder %v1594, 16
  %vm1787 = vcmp.le.s32.totalorder %v1595, 16
  %vm1788 = vcmp.le.s32.totalorder %v1596, 16
  %vm1789 = vcmp.le.s32.totalorder %v1597, 16
  %vm1790 = vcmp.le.s32.totalorder %v1598, 16
  %vm1791 = vcmp.le.s32.totalorder %v1599, 16
  %vm1792 = vcmp.le.s32.totalorder %v1600, 16
  %vm1793 = vcmp.le.s32.totalorder %v1601, 16
  %vm1794 = vcmp.le.s32.totalorder %v1602, 16
  %vm1795 = vcmp.le.s32.totalorder %v1603, 16
  %vm1796 = vcmp.le.s32.totalorder %v1604, 16
  %vm1797 = vcmp.le.s32.totalorder %v1605, 16
  %vm1798 = vcmp.le.s32.totalorder %v1606, 16
  %vm1799 = vcmp.le.s32.totalorder %v1607, 16
  %vm1800 = vcmp.le.s32.totalorder %v1608, 16
  %vm1801 = vcmp.le.s32.totalorder %v1609, 16
  %vm1802 = vcmp.le.s32.totalorder %v1610, 16
  %vm1803 = vcmp.le.s32.totalorder %v1611, 16
  %vm1804 = vcmp.le.s32.totalorder %v1612, 16
  %vm1805 = vcmp.le.s32.totalorder %v1613, 16
  %vm1806 = vcmp.le.s32.totalorder %v1614, 16
  %vm1807 = vcmp.le.s32.totalorder %v1615, 16
  %vm1808 = vcmp.le.s32.totalorder %v1616, 16
  %vm1809 = vcmp.le.s32.totalorder %v1617, 16
  %vm1810 = vcmp.le.s32.totalorder %v1618, 16
  %vm1811 = vcmp.le.s32.totalorder %v1619, 16
  %vm1812 = vcmp.le.s32.totalorder %v1620, 16
  %vm1813 = vcmp.le.s32.totalorder %v1621, 16
  %vm1814 = vcmp.le.s32.totalorder %v1622, 16
  %vm1815 = vcmp.le.s32.totalorder %v1623, 16
  %vm1816 = vcmp.le.s32.totalorder %v1624, 16
  %vm1817 = vcmp.le.s32.totalorder %v1625, 16
  %vm1818 = vcmp.le.s32.totalorder %v1626, 16
  %vm1819 = vcmp.le.s32.totalorder %v1627, 16
  %vm1820 = vcmp.le.s32.totalorder %v1628, 16
  %vm1821 = vcmp.le.s32.totalorder %v1629, 16
  %vm1822 = vcmp.le.s32.totalorder %v1630, 16
  %vm1823 = vcmp.le.s32.totalorder %v1631, 16
  %vm1824 = vcmp.le.s32.totalorder %v1632, 16
  %vm1825 = vcmp.le.s32.totalorder %v1633, 16
  %vm1826 = vcmp.le.s32.totalorder %v1634, 16
  %vm1827 = vcmp.le.s32.totalorder %v1635, 16
  %vm1828 = vcmp.le.s32.totalorder %v1636, 16
  %vm1829 = vcmp.le.s32.totalorder %v1637, 16
  %vm1830 = vcmp.le.s32.totalorder %v1638, 16
  %vm1831 = vcmp.le.s32.totalorder %v1639, 16
  %vm1832 = vcmp.le.s32.totalorder %v1640, 16
  %vm1833 = vcmp.le.s32.totalorder %v1641, 16
  %vm1834 = vcmp.le.s32.totalorder %v1642, 16
  %vm1835 = vcmp.le.s32.totalorder %v1643, 16
  %vm1836 = vcmp.le.s32.totalorder %v1644, 16
  %vm1837 = vcmp.le.s32.totalorder %v1645, 16
  %vm1838 = vcmp.le.s32.totalorder %v1646, 16
  %vm1839 = vcmp.le.s32.totalorder %v1647, 16
  %vm1840 = vcmp.le.s32.totalorder %v1648, 16
  %vm1841 = vcmp.le.s32.totalorder %v1649, 16
  %vm1842 = vcmp.le.s32.totalorder %v1650, 16
  %vm1843 = vcmp.le.s32.totalorder %v1651, 16
  %vm1844 = vcmp.le.s32.totalorder %v1652, 16
  %vm1845 = vcmp.le.s32.totalorder %v1653, 16
  %vm1846 = vcmp.le.s32.totalorder %v1654, 16
  %vm1847 = vcmp.le.s32.totalorder %v1655, 16
  %vm1848 = vcmp.le.s32.totalorder %v1656, 16
  %vm1849 = vcmp.le.s32.totalorder %v1657, 16
  %vm1850 = vcmp.le.s32.totalorder %v1658, 16
  %vm1851 = vcmp.le.s32.totalorder %v1659, 16
  %vm1852 = vmand %vm1660, %vm1756
  %vm1853 = vmand %vm1661, %vm1757
  %vm1854 = vmand %vm1662, %vm1758
  %vm1855 = vmand %vm1663, %vm1759
  %vm1856 = vmand %vm1664, %vm1760
  %vm1857 = vmand %vm1665, %vm1761
  %vm1858 = vmand %vm1666, %vm1762
  %vm1859 = vmand %vm1667, %vm1763
  %vm1860 = vmand %vm1668, %vm1764
  %vm1861 = vmand %vm1669, %vm1765
  %vm1862 = vmand %vm1670, %vm1766
  %vm1863 = vmand %vm1671, %vm1767
  %vm1864 = vmand %vm1672, %vm1768
  %vm1865 = vmand %vm1673, %vm1769
  %vm1866 = vmand %vm1674, %vm1770
  %vm1867 = vmand %vm1675, %vm1771
  %vm1868 = vmand %vm1676, %vm1772
  %vm1869 = vmand %vm1677, %vm1773
  %vm1870 = vmand %vm1678, %vm1774
  %vm1871 = vmand %vm1679, %vm1775
  %vm1872 = vmand %vm1680, %vm1776
  %vm1873 = vmand %vm1681, %vm1777
  %vm1874 = vmand %vm1682, %vm1778
  %vm1875 = vmand %vm1683, %vm1779
  %vm1876 = vmand %vm1684, %vm1780
  %vm1877 = vmand %vm1685, %vm1781
  %vm1878 = vmand %vm1686, %vm1782
  %vm1879 = vmand %vm1687, %vm1783
  %vm1880 = vmand %vm1688, %vm1784
  %vm1881 = vmand %vm1689, %vm1785
  %vm1882 = vmand %vm1690, %vm1786
  %vm1883 = vmand %vm1691, %vm1787
  %vm1884 = vmand %vm1692, %vm1788
  %vm1885 = vmand %vm1693, %vm1789
  %vm1886 = vmand %vm1694, %vm1790
  %vm1887 = vmand %vm1695, %vm1791
  %vm1888 = vmand %vm1696, %vm1792
  %vm1889 = vmand %vm1697, %vm1793
  %vm1890 = vmand %vm1698, %vm1794
  %vm1891 = vmand %vm1699, %vm1795
  %vm1892 = vmand %vm1700, %vm1796
  %vm1893 = vmand %vm1701, %vm1797
  %vm1894 = vmand %vm1702, %vm1798
  %vm1895 = vmand %vm1703, %vm1799
  %vm1896 = vmand %vm1704, %vm1800
  %vm1897 = vmand %vm1705, %vm1801
  %vm1898 = vmand %vm1706, %vm1802
  %vm1899 = vmand %vm1707, %vm1803
  %vm1900 = vmand %vm1708, %vm1804
  %vm1901 = vmand %vm1709, %vm1805
  %vm1902 = vmand %vm1710, %vm1806
  %vm1903 = vmand %vm1711, %vm1807
  %vm1904 = vmand %vm1712, %vm1808
  %vm1905 = vmand %vm1713, %vm1809
  %vm1906 = vmand %vm1714, %vm1810
  %vm1907 = vmand %vm1715, %vm1811
  %vm1908 = vmand %vm1716, %vm1812
  %vm1909 = vmand %vm1717, %vm1813
  %vm1910 = vmand %vm1718, %vm1814
  %vm1911 = vmand %vm1719, %vm1815
  %vm1912 = vmand %vm1720, %vm1816
  %vm1913 = vmand %vm1721, %vm1817
  %vm1914 = vmand %vm1722, %vm1818
  %vm1915 = vmand %vm1723, %vm1819
  %vm1916 = vmand %vm1724, %vm1820
  %vm1917 = vmand %vm1725, %vm1821
  %vm1918 = vmand %vm1726, %vm1822
  %vm1919 = vmand %vm1727, %vm1823
  %vm1920 = vmand %vm1728, %vm1824
  %vm1921 = vmand %vm1729, %vm1825
  %vm1922 = vmand %vm1730, %vm1826
  %vm1923 = vmand %vm1731, %vm1827
  %vm1924 = vmand %vm1732, %vm1828
  %vm1925 = vmand %vm1733, %vm1829
  %vm1926 = vmand %vm1734, %vm1830
  %vm1927 = vmand %vm1735, %vm1831
  %vm1928 = vmand %vm1736, %vm1832
  %vm1929 = vmand %vm1737, %vm1833
  %vm1930 = vmand %vm1738, %vm1834
  %vm1931 = vmand %vm1739, %vm1835
  %vm1932 = vmand %vm1740, %vm1836
  %vm1933 = vmand %vm1741, %vm1837
  %vm1934 = vmand %vm1742, %vm1838
  %vm1935 = vmand %vm1743, %vm1839
  %vm1936 = vmand %vm1744, %vm1840
  %vm1937 = vmand %vm1745, %vm1841
  %vm1938 = vmand %vm1746, %vm1842
  %vm1939 = vmand %vm1747, %vm1843
  %vm1940 = vmand %vm1748, %vm1844
  %vm1941 = vmand %vm1749, %vm1845
  %vm1942 = vmand %vm1750, %vm1846
  %vm1943 = vmand %vm1751, %vm1847
  %vm1944 = vmand %vm1752, %vm1848
  %vm1945 = vmand %vm1753, %vm1849
  %vm1946 = vmand %vm1754, %vm1850
  %vm1947 = vmand %vm1755, %vm1851
  %v1948 = vsel %vm1852, 1, 0
  %v1949 = vsel %vm1853, 1, 0
  %v1950 = vsel %vm1854, 1, 0
  %v1951 = vsel %vm1855, 1, 0
  %v1952 = vsel %vm1856, 1, 0
  %v1953 = vsel %vm1857, 1, 0
  %v1954 = vsel %vm1858, 1, 0
  %v1955 = vsel %vm1859, 1, 0
  %v1956 = vsel %vm1860, 1, 0
  %v1957 = vsel %vm1861, 1, 0
  %v1958 = vsel %vm1862, 1, 0
  %v1959 = vsel %vm1863, 1, 0
  %v1960 = vsel %vm1864, 1, 0
  %v1961 = vsel %vm1865, 1, 0
  %v1962 = vsel %vm1866, 1, 0
  %v1963 = vsel %vm1867, 1, 0
  %v1964 = vsel %vm1868, 1, 0
  %v1965 = vsel %vm1869, 1, 0
  %v1966 = vsel %vm1870, 1, 0
  %v1967 = vsel %vm1871, 1, 0
  %v1968 = vsel %vm1872, 1, 0
  %v1969 = vsel %vm1873, 1, 0
  %v1970 = vsel %vm1874, 1, 0
  %v1971 = vsel %vm1875, 1, 0
  %v1972 = vsel %vm1876, 1, 0
  %v1973 = vsel %vm1877, 1, 0
  %v1974 = vsel %vm1878, 1, 0
  %v1975 = vsel %vm1879, 1, 0
  %v1976 = vsel %vm1880, 1, 0
  %v1977 = vsel %vm1881, 1, 0
  %v1978 = vsel %vm1882, 1, 0
  %v1979 = vsel %vm1883, 1, 0
  %v1980 = vsel %vm1884, 1, 0
  %v1981 = vsel %vm1885, 1, 0
  %v1982 = vsel %vm1886, 1, 0
  %v1983 = vsel %vm1887, 1, 0
  %v1984 = vsel %vm1888, 1, 0
  %v1985 = vsel %vm1889, 1, 0
  %v1986 = vsel %vm1890, 1, 0
  %v1987 = vsel %vm1891, 1, 0
  %v1988 = vsel %vm1892, 1, 0
  %v1989 = vsel %vm1893, 1, 0
  %v1990 = vsel %vm1894, 1, 0
  %v1991 = vsel %vm1895, 1, 0
  %v1992 = vsel %vm1896, 1, 0
  %v1993 = vsel %vm1897, 1, 0
  %v1994 = vsel %vm1898, 1, 0
  %v1995 = vsel %vm1899, 1, 0
  %v1996 = vsel %vm1900, 1, 0
  %v1997 = vsel %vm1901, 1, 0
  %v1998 = vsel %vm1902, 1, 0
  %v1999 = vsel %vm1903, 1, 0
  %v2000 = vsel %vm1904, 1, 0
  %v2001 = vsel %vm1905, 1, 0
  %v2002 = vsel %vm1906, 1, 0
  %v2003 = vsel %vm1907, 1, 0
  %v2004 = vsel %vm1908, 1, 0
  %v2005 = vsel %vm1909, 1, 0
  %v2006 = vsel %vm1910, 1, 0
  %v2007 = vsel %vm1911, 1, 0
  %v2008 = vsel %vm1912, 1, 0
  %v2009 = vsel %vm1913, 1, 0
  %v2010 = vsel %vm1914, 1, 0
  %v2011 = vsel %vm1915, 1, 0
  %v2012 = vsel %vm1916, 1, 0
  %v2013 = vsel %vm1917, 1, 0
  %v2014 = vsel %vm1918, 1, 0
  %v2015 = vsel %vm1919, 1, 0
  %v2016 = vsel %vm1920, 1, 0
  %v2017 = vsel %vm1921, 1, 0
  %v2018 = vsel %vm1922, 1, 0
  %v2019 = vsel %vm1923, 1, 0
  %v2020 = vsel %vm1924, 1, 0
  %v2021 = vsel %vm1925, 1, 0
  %v2022 = vsel %vm1926, 1, 0
  %v2023 = vsel %vm1927, 1, 0
  %v2024 = vsel %vm1928, 1, 0
  %v2025 = vsel %vm1929, 1, 0
  %v2026 = vsel %vm1930, 1, 0
  %v2027 = vsel %vm1931, 1, 0
  %v2028 = vsel %vm1932, 1, 0
  %v2029 = vsel %vm1933, 1, 0
  %v2030 = vsel %vm1934, 1, 0
  %v2031 = vsel %vm1935, 1, 0
  %v2032 = vsel %vm1936, 1, 0
  %v2033 = vsel %vm1937, 1, 0
  %v2034 = vsel %vm1938, 1, 0
  %v2035 = vsel %vm1939, 1, 0
  %v2036 = vsel %vm1940, 1, 0
  %v2037 = vsel %vm1941, 1, 0
  %v2038 = vsel %vm1942, 1, 0
  %v2039 = vsel %vm1943, 1, 0
  %v2040 = vsel %vm1944, 1, 0
  %v2041 = vsel %vm1945, 1, 0
  %v2042 = vsel %vm1946, 1, 0
  %v2043 = vsel %vm1947, 1, 0
  %v2044 = vcvt.s32.f32 %v1948
  %v2045 = vcvt.s32.f32 %v1949
  %v2046 = vcvt.s32.f32 %v1950
  %v2047 = vcvt.s32.f32 %v1951
  %v2048 = vcvt.s32.f32 %v1952
  %v2049 = vcvt.s32.f32 %v1953
  %v2050 = vcvt.s32.f32 %v1954
  %v2051 = vcvt.s32.f32 %v1955
  %v2052 = vcvt.s32.f32 %v1956
  %v2053 = vcvt.s32.f32 %v1957
  %v2054 = vcvt.s32.f32 %v1958
  %v2055 = vcvt.s32.f32 %v1959
  %v2056 = vcvt.s32.f32 %v1960
  %v2057 = vcvt.s32.f32 %v1961
  %v2058 = vcvt.s32.f32 %v1962
  %v2059 = vcvt.s32.f32 %v1963
  %v2060 = vcvt.s32.f32 %v1964
  %v2061 = vcvt.s32.f32 %v1965
  %v2062 = vcvt.s32.f32 %v1966
  %v2063 = vcvt.s32.f32 %v1967
  %v2064 = vcvt.s32.f32 %v1968
  %v2065 = vcvt.s32.f32 %v1969
  %v2066 = vcvt.s32.f32 %v1970
  %v2067 = vcvt.s32.f32 %v1971
  %v2068 = vcvt.s32.f32 %v1972
  %v2069 = vcvt.s32.f32 %v1973
  %v2070 = vcvt.s32.f32 %v1974
  %v2071 = vcvt.s32.f32 %v1975
  %v2072 = vcvt.s32.f32 %v1976
  %v2073 = vcvt.s32.f32 %v1977
  %v2074 = vcvt.s32.f32 %v1978
  %v2075 = vcvt.s32.f32 %v1979
  %v2076 = vcvt.s32.f32 %v1980
  %v2077 = vcvt.s32.f32 %v1981
  %v2078 = vcvt.s32.f32 %v1982
  %v2079 = vcvt.s32.f32 %v1983
  %v2080 = vcvt.s32.f32 %v1984
  %v2081 = vcvt.s32.f32 %v1985
  %v2082 = vcvt.s32.f32 %v1986
  %v2083 = vcvt.s32.f32 %v1987
  %v2084 = vcvt.s32.f32 %v1988
  %v2085 = vcvt.s32.f32 %v1989
  %v2086 = vcvt.s32.f32 %v1990
  %v2087 = vcvt.s32.f32 %v1991
  %v2088 = vcvt.s32.f32 %v1992
  %v2089 = vcvt.s32.f32 %v1993
  %v2090 = vcvt.s32.f32 %v1994
  %v2091 = vcvt.s32.f32 %v1995
  %v2092 = vcvt.s32.f32 %v1996
  %v2093 = vcvt.s32.f32 %v1997
  %v2094 = vcvt.s32.f32 %v1998
  %v2095 = vcvt.s32.f32 %v1999
  %v2096 = vcvt.s32.f32 %v2000
  %v2097 = vcvt.s32.f32 %v2001
  %v2098 = vcvt.s32.f32 %v2002
  %v2099 = vcvt.s32.f32 %v2003
  %v2100 = vcvt.s32.f32 %v2004
  %v2101 = vcvt.s32.f32 %v2005
  %v2102 = vcvt.s32.f32 %v2006
  %v2103 = vcvt.s32.f32 %v2007
  %v2104 = vcvt.s32.f32 %v2008
  %v2105 = vcvt.s32.f32 %v2009
  %v2106 = vcvt.s32.f32 %v2010
  %v2107 = vcvt.s32.f32 %v2011
  %v2108 = vcvt.s32.f32 %v2012
  %v2109 = vcvt.s32.f32 %v2013
  %v2110 = vcvt.s32.f32 %v2014
  %v2111 = vcvt.s32.f32 %v2015
  %v2112 = vcvt.s32.f32 %v2016
  %v2113 = vcvt.s32.f32 %v2017
  %v2114 = vcvt.s32.f32 %v2018
  %v2115 = vcvt.s32.f32 %v2019
  %v2116 = vcvt.s32.f32 %v2020
  %v2117 = vcvt.s32.f32 %v2021
  %v2118 = vcvt.s32.f32 %v2022
  %v2119 = vcvt.s32.f32 %v2023
  %v2120 = vcvt.s32.f32 %v2024
  %v2121 = vcvt.s32.f32 %v2025
  %v2122 = vcvt.s32.f32 %v2026
  %v2123 = vcvt.s32.f32 %v2027
  %v2124 = vcvt.s32.f32 %v2028
  %v2125 = vcvt.s32.f32 %v2029
  %v2126 = vcvt.s32.f32 %v2030
  %v2127 = vcvt.s32.f32 %v2031
  %v2128 = vcvt.s32.f32 %v2032
  %v2129 = vcvt.s32.f32 %v2033
  %v2130 = vcvt.s32.f32 %v2034
  %v2131 = vcvt.s32.f32 %v2035
  %v2132 = vcvt.s32.f32 %v2036
  %v2133 = vcvt.s32.f32 %v2037
  %v2134 = vcvt.s32.f32 %v2038
  %v2135 = vcvt.s32.f32 %v2039
  %v2136 = vcvt.s32.f32 %v2040
  %v2137 = vcvt.s32.f32 %v2041
  %v2138 = vcvt.s32.f32 %v2042
  %v2139 = vcvt.s32.f32 %v2043
  %v2140 = vld [vmem:[%s0] sm:$0xf]
  %v2141 = vld [vmem:[%s0 + $0x4] sm:$0xf]
  %v2142 = vld [vmem:[%s0 + $0x8] sm:$0xf]
  %v2143 = vld [vmem:[%s0 + $0xc] sm:$0xf]
  %v2144 = vld [vmem:[%s0 + $0x10] sm:$0xf]
  %v2145 = vld [vmem:[%s0 + $0x14] sm:$0xf]
  %v2146 = vld [vmem:[%s0 + $0x18] sm:$0xf]
  %v2147 = vld [vmem:[%s0 + $0x1c] sm:$0xf]
  %v2148 = vld [vmem:[%s0 + $0x20] sm:$0xf]
  %v2149 = vld [vmem:[%s0 + $0x24] sm:$0xf]
  %v2150 = vld [vmem:[%s0 + $0x28] sm:$0xf]
  %v2151 = vld [vmem:[%s0 + $0x2c] sm:$0xf]
  %v2152 = vld [vmem:[%s0 + $0x30] sm:$0xf]
  %v2153 = vld [vmem:[%s0 + $0x34] sm:$0xf]
  %v2154 = vld [vmem:[%s0 + $0x38] sm:$0xf]
  %v2155 = vld [vmem:[%s0 + $0x3c] sm:$0xf]
  %v2156 = vld [vmem:[%s0 + $0x40] sm:$0xf]
  %v2157 = vld [vmem:[%s0 + $0x44] sm:$0xf]
  %v2158 = vld [vmem:[%s0 + $0x48] sm:$0xf]
  %v2159 = vld [vmem:[%s0 + $0x4c] sm:$0xf]
  %v2160 = vld [vmem:[%s0 + $0x50] sm:$0xf]
  %v2161 = vld [vmem:[%s0 + $0x54] sm:$0xf]
  %v2162 = vld [vmem:[%s0 + $0x58] sm:$0xf]
  %v2163 = vld [vmem:[%s0 + $0x5c] sm:$0xf]
  %v2164 = vld [vmem:[%s0 + $0x60] sm:$0xf]
  %v2165 = vld [vmem:[%s0 + $0x64] sm:$0xf]
  %v2166 = vld [vmem:[%s0 + $0x68] sm:$0xf]
  %v2167 = vld [vmem:[%s0 + $0x6c] sm:$0xf]
  %v2168 = vld [vmem:[%s0 + $0x70] sm:$0xf]
  %v2169 = vld [vmem:[%s0 + $0x74] sm:$0xf]
  %v2170 = vld [vmem:[%s0 + $0x78] sm:$0xf]
  %v2171 = vld [vmem:[%s0 + $0x7c] sm:$0xf]
  %v2172 = vld [vmem:[%s0 + $0x80] sm:$0xf]
  %v2173 = vld [vmem:[%s0 + $0x84] sm:$0xf]
  %v2174 = vld [vmem:[%s0 + $0x88] sm:$0xf]
  %v2175 = vld [vmem:[%s0 + $0x8c] sm:$0xf]
  %v2176 = vld [vmem:[%s0 + $0x90] sm:$0xf]
  %v2177 = vld [vmem:[%s0 + $0x94] sm:$0xf]
  %v2178 = vld [vmem:[%s0 + $0x98] sm:$0xf]
  %v2179 = vld [vmem:[%s0 + $0x9c] sm:$0xf]
  %v2180 = vld [vmem:[%s0 + $0xa0] sm:$0xf]
  %v2181 = vld [vmem:[%s0 + $0xa4] sm:$0xf]
  %v2182 = vld [vmem:[%s0 + $0xa8] sm:$0xf]
  %v2183 = vld [vmem:[%s0 + $0xac] sm:$0xf]
  %v2184 = vld [vmem:[%s0 + $0xb0] sm:$0xf]
  %v2185 = vld [vmem:[%s0 + $0xb4] sm:$0xf]
  %v2186 = vld [vmem:[%s0 + $0xb8] sm:$0xf]
  %v2187 = vld [vmem:[%s0 + $0xbc] sm:$0xf]
  %v2188 = vld [vmem:[%s0 + $0xc0] sm:$0xf]
  %v2189 = vld [vmem:[%s0 + $0xc4] sm:$0xf]
  %v2190 = vld [vmem:[%s0 + $0xc8] sm:$0xf]
  %v2191 = vld [vmem:[%s0 + $0xcc] sm:$0xf]
  %v2192 = vld [vmem:[%s0 + $0xd0] sm:$0xf]
  %v2193 = vld [vmem:[%s0 + $0xd4] sm:$0xf]
  %v2194 = vld [vmem:[%s0 + $0xd8] sm:$0xf]
  %v2195 = vld [vmem:[%s0 + $0xdc] sm:$0xf]
  %v2196 = vld [vmem:[%s0 + $0xe0] sm:$0xf]
  %v2197 = vld [vmem:[%s0 + $0xe4] sm:$0xf]
  %v2198 = vld [vmem:[%s0 + $0xe8] sm:$0xf]
  %v2199 = vld [vmem:[%s0 + $0xec] sm:$0xf]
  %v2200 = vld [vmem:[%s0 + $0xf0] sm:$0xf]
  %v2201 = vld [vmem:[%s0 + $0xf4] sm:$0xf]
  %v2202 = vld [vmem:[%s0 + $0xf8] sm:$0xf]
  %v2203 = vld [vmem:[%s0 + $0xfc] sm:$0xf]
  %v2204 = vld [vmem:[%s0 + $0x100] sm:$0xf]
  %v2205 = vld [vmem:[%s0 + $0x104] sm:$0xf]
  %v2206 = vld [vmem:[%s0 + $0x108] sm:$0xf]
  %v2207 = vld [vmem:[%s0 + $0x10c] sm:$0xf]
  %v2208 = vld [vmem:[%s0 + $0x110] sm:$0xf]
  %v2209 = vld [vmem:[%s0 + $0x114] sm:$0xf]
  %v2210 = vld [vmem:[%s0 + $0x118] sm:$0xf]
  %v2211 = vld [vmem:[%s0 + $0x11c] sm:$0xf]
  %v2212 = vld [vmem:[%s0 + $0x120] sm:$0xf]
  %v2213 = vld [vmem:[%s0 + $0x124] sm:$0xf]
  %v2214 = vld [vmem:[%s0 + $0x128] sm:$0xf]
  %v2215 = vld [vmem:[%s0 + $0x12c] sm:$0xf]
  %v2216 = vld [vmem:[%s0 + $0x130] sm:$0xf]
  %v2217 = vld [vmem:[%s0 + $0x134] sm:$0xf]
  %v2218 = vld [vmem:[%s0 + $0x138] sm:$0xf]
  %v2219 = vld [vmem:[%s0 + $0x13c] sm:$0xf]
  %v2220 = vld [vmem:[%s0 + $0x140] sm:$0xf]
  %v2221 = vld [vmem:[%s0 + $0x144] sm:$0xf]
  %v2222 = vld [vmem:[%s0 + $0x148] sm:$0xf]
  %v2223 = vld [vmem:[%s0 + $0x14c] sm:$0xf]
  %v2224 = vld [vmem:[%s0 + $0x150] sm:$0xf]
  %v2225 = vld [vmem:[%s0 + $0x154] sm:$0xf]
  %v2226 = vld [vmem:[%s0 + $0x158] sm:$0xf]
  %v2227 = vld [vmem:[%s0 + $0x15c] sm:$0xf]
  %v2228 = vld [vmem:[%s0 + $0x160] sm:$0xf]
  %v2229 = vld [vmem:[%s0 + $0x164] sm:$0xf]
  %v2230 = vld [vmem:[%s0 + $0x168] sm:$0xf]
  %v2231 = vld [vmem:[%s0 + $0x16c] sm:$0xf]
  %v2232 = vld [vmem:[%s0 + $0x170] sm:$0xf]
  %v2233 = vld [vmem:[%s0 + $0x174] sm:$0xf]
  %v2234 = vld [vmem:[%s0 + $0x178] sm:$0xf]
  %v2235 = vld [vmem:[%s0 + $0x17c] sm:$0xf]
  %v2236 = vld [vmem:[%s1] sm:$0xf]
  %v2237 = vld [vmem:[%s1 + $0x4] sm:$0xf]
  %v2238 = vld [vmem:[%s1 + $0x8] sm:$0xf]
  %v2239 = vld [vmem:[%s1 + $0xc] sm:$0xf]
  %v2240 = vld [vmem:[%s1 + $0x10] sm:$0xf]
  %v2241 = vld [vmem:[%s1 + $0x14] sm:$0xf]
  %v2242 = vld [vmem:[%s1 + $0x18] sm:$0xf]
  %v2243 = vld [vmem:[%s1 + $0x1c] sm:$0xf]
  %v2244 = vld [vmem:[%s1 + $0x20] sm:$0xf]
  %v2341 = vunpack.c.l.b16 %v2140
  %v2342 = vunpack.c.l.b16 %v2141
  %v2343 = vunpack.c.l.b16 %v2142
  %v2344 = vunpack.c.l.b16 %v2143
  %v2345 = vunpack.c.l.b16 %v2144
  %v2346 = vunpack.c.l.b16 %v2145
  %v2347 = vunpack.c.l.b16 %v2146
  %v2348 = vunpack.c.l.b16 %v2147
  %v2349 = vunpack.c.l.b16 %v2148
  %v2350 = vunpack.c.l.b16 %v2149
  %v2351 = vunpack.c.l.b16 %v2150
  %v2352 = vunpack.c.l.b16 %v2151
  %v2353 = vunpack.c.l.b16 %v2152
  %v2354 = vunpack.c.l.b16 %v2153
  %v2355 = vunpack.c.l.b16 %v2154
  %v2356 = vunpack.c.l.b16 %v2155
  %v2357 = vunpack.c.l.b16 %v2156
  %v2358 = vunpack.c.l.b16 %v2157
  %v2359 = vunpack.c.l.b16 %v2158
  %v2360 = vunpack.c.l.b16 %v2159
  %v2361 = vunpack.c.l.b16 %v2160
  %v2362 = vunpack.c.l.b16 %v2161
  %v2363 = vunpack.c.l.b16 %v2162
  %v2364 = vunpack.c.l.b16 %v2163
  %v2365 = vunpack.c.l.b16 %v2164
  %v2366 = vunpack.c.l.b16 %v2165
  %v2367 = vunpack.c.l.b16 %v2166
  %v2368 = vunpack.c.l.b16 %v2167
  %v2369 = vunpack.c.l.b16 %v2168
  %v2370 = vunpack.c.l.b16 %v2169
  %v2371 = vunpack.c.l.b16 %v2170
  %v2372 = vunpack.c.l.b16 %v2171
  %v2373 = vunpack.c.l.b16 %v2172
  %v2374 = vunpack.c.l.b16 %v2173
  %v2375 = vunpack.c.l.b16 %v2174
  %v2376 = vunpack.c.l.b16 %v2175
  %v2377 = vunpack.c.l.b16 %v2176
  %v2378 = vunpack.c.l.b16 %v2177
  %v2379 = vunpack.c.l.b16 %v2178
  %v2380 = vunpack.c.l.b16 %v2179
  %v2381 = vunpack.c.l.b16 %v2180
  %v2382 = vunpack.c.l.b16 %v2181
  %v2383 = vunpack.c.l.b16 %v2182
  %v2384 = vunpack.c.l.b16 %v2183
  %v2385 = vunpack.c.l.b16 %v2184
  %v2386 = vunpack.c.l.b16 %v2185
  %v2387 = vunpack.c.l.b16 %v2186
  %v2388 = vunpack.c.l.b16 %v2187
  %v2389 = vunpack.c.l.b16 %v2188
  %v2390 = vunpack.c.l.b16 %v2189
  %v2391 = vunpack.c.l.b16 %v2190
  %v2392 = vunpack.c.l.b16 %v2191
  %v2393 = vunpack.c.l.b16 %v2192
  %v2394 = vunpack.c.l.b16 %v2193
  %v2395 = vunpack.c.l.b16 %v2194
  %v2396 = vunpack.c.l.b16 %v2195
  %v2397 = vunpack.c.l.b16 %v2196
  %v2398 = vunpack.c.l.b16 %v2197
  %v2399 = vunpack.c.l.b16 %v2198
  %v2400 = vunpack.c.l.b16 %v2199
  %v2401 = vunpack.c.l.b16 %v2200
  %v2402 = vunpack.c.l.b16 %v2201
  %v2403 = vunpack.c.l.b16 %v2202
  %v2404 = vunpack.c.l.b16 %v2203
  %v2405 = vunpack.c.l.b16 %v2204
  %v2406 = vunpack.c.l.b16 %v2205
  %v2407 = vunpack.c.l.b16 %v2206
  %v2408 = vunpack.c.l.b16 %v2207
  %v2409 = vunpack.c.l.b16 %v2208
  %v2410 = vunpack.c.l.b16 %v2209
  %v2411 = vunpack.c.l.b16 %v2210
  %v2412 = vunpack.c.l.b16 %v2211
  %v2413 = vunpack.c.l.b16 %v2212
  %v2414 = vunpack.c.l.b16 %v2213
  %v2415 = vunpack.c.l.b16 %v2214
  %v2416 = vunpack.c.l.b16 %v2215
  %v2417 = vunpack.c.l.b16 %v2216
  %v2418 = vunpack.c.l.b16 %v2217
  %v2419 = vunpack.c.l.b16 %v2218
  %v2420 = vunpack.c.l.b16 %v2219
  %v2421 = vunpack.c.l.b16 %v2220
  %v2422 = vunpack.c.l.b16 %v2221
  %v2423 = vunpack.c.l.b16 %v2222
  %v2424 = vunpack.c.l.b16 %v2223
  %v2425 = vunpack.c.l.b16 %v2224
  %v2426 = vunpack.c.l.b16 %v2225
  %v2427 = vunpack.c.l.b16 %v2226
  %v2428 = vunpack.c.l.b16 %v2227
  %v2429 = vunpack.c.l.b16 %v2228
  %v2430 = vunpack.c.l.b16 %v2229
  %v2431 = vunpack.c.l.b16 %v2230
  %v2432 = vunpack.c.l.b16 %v2231
  %v2433 = vunpack.c.l.b16 %v2232
  %v2434 = vunpack.c.l.b16 %v2233
  %v2435 = vunpack.c.l.b16 %v2234
  %v2436 = vunpack.c.l.b16 %v2235
  %v2437 = vpack.c.b16 %v2342, %v2341
  %v2438 = vpack.c.b16 %v2344, %v2343
  %v2439 = vpack.c.b16 %v2346, %v2345
  %v2440 = vpack.c.b16 %v2348, %v2347
  %v2441 = vpack.c.b16 %v2350, %v2349
  %v2442 = vpack.c.b16 %v2352, %v2351
  %v2443 = vpack.c.b16 %v2354, %v2353
  %v2444 = vpack.c.b16 %v2356, %v2355
  %v2445 = vpack.c.b16 %v2358, %v2357
  %v2446 = vpack.c.b16 %v2360, %v2359
  %v2447 = vpack.c.b16 %v2362, %v2361
  %v2448 = vpack.c.b16 %v2364, %v2363
  %v2449 = vpack.c.b16 %v2366, %v2365
  %v2450 = vpack.c.b16 %v2368, %v2367
  %v2451 = vpack.c.b16 %v2370, %v2369
  %v2452 = vpack.c.b16 %v2372, %v2371
  %v2453 = vpack.c.b16 %v2374, %v2373
  %v2454 = vpack.c.b16 %v2376, %v2375
  %v2455 = vpack.c.b16 %v2378, %v2377
  %v2456 = vpack.c.b16 %v2380, %v2379
  %v2457 = vpack.c.b16 %v2382, %v2381
  %v2458 = vpack.c.b16 %v2384, %v2383
  %v2459 = vpack.c.b16 %v2386, %v2385
  %v2460 = vpack.c.b16 %v2388, %v2387
  %v2461 = vpack.c.b16 %v2390, %v2389
  %v2462 = vpack.c.b16 %v2392, %v2391
  %v2463 = vpack.c.b16 %v2394, %v2393
  %v2464 = vpack.c.b16 %v2396, %v2395
  %v2465 = vpack.c.b16 %v2398, %v2397
  %v2466 = vpack.c.b16 %v2400, %v2399
  %v2467 = vpack.c.b16 %v2402, %v2401
  %v2468 = vpack.c.b16 %v2404, %v2403
  %v2469 = vpack.c.b16 %v2406, %v2405
  %v2470 = vpack.c.b16 %v2408, %v2407
  %v2471 = vpack.c.b16 %v2410, %v2409
  %v2472 = vpack.c.b16 %v2412, %v2411
  %v2473 = vpack.c.b16 %v2414, %v2413
  %v2474 = vpack.c.b16 %v2416, %v2415
  %v2475 = vpack.c.b16 %v2418, %v2417
  %v2476 = vpack.c.b16 %v2420, %v2419
  %v2477 = vpack.c.b16 %v2422, %v2421
  %v2478 = vpack.c.b16 %v2424, %v2423
  %v2479 = vpack.c.b16 %v2426, %v2425
  %v2480 = vpack.c.b16 %v2428, %v2427
  %v2481 = vpack.c.b16 %v2430, %v2429
  %v2482 = vpack.c.b16 %v2432, %v2431
  %v2483 = vpack.c.b16 %v2434, %v2433
  %v2484 = vpack.c.b16 %v2436, %v2435
  %v2494 = vunpack.c.l.b16 %v2236
  %v2495 = vunpack.c.l.b16 %v2237
  %v2496 = vunpack.c.l.b16 %v2238
  %v2497 = vunpack.c.l.b16 %v2239
  %v2498 = vunpack.c.l.b16 %v2240
  %v2499 = vunpack.c.l.b16 %v2241
  %v2500 = vunpack.c.l.b16 %v2242
  %v2501 = vunpack.c.l.b16 %v2243
  %v2502 = vunpack.c.l.b16 %v2244
  %v2503 = vpack.c.b16 %v2495, %v2494
  %v2504 = vpack.c.b16 %v2497, %v2496
  %v2505 = vpack.c.b16 %v2499, %v2498
  %v2506 = vpack.c.b16 %v2501, %v2500
  %v2507 = vpack.c.b16 %v2502, %v2502
  %vm2512 = vcmask 588800
  %v2514 = vsel %vm2512, %v2437, 0
  %v2517 = vsel %vm2512, %v2438, 0
  %v2520 = vsel %vm2512, %v2439, 0
  %v2523 = vsel %vm2512, %v2440, 0
  %v2526 = vsel %vm2512, %v2441, 0
  %v2529 = vsel %vm2512, %v2442, 0
  %v2532 = vsel %vm2512, %v2443, 0
  %v2535 = vsel %vm2512, %v2444, 0
  %v2538 = vsel %vm2512, %v2445, 0
  %v2541 = vsel %vm2512, %v2446, 0
  %v2544 = vsel %vm2512, %v2447, 0
  %v2547 = vsel %vm2512, %v2448, 0
  %v2550 = vsel %vm2512, %v2449, 0
  %v2553 = vsel %vm2512, %v2450, 0
  %v2556 = vsel %vm2512, %v2451, 0
  %v2559 = vsel %vm2512, %v2452, 0
  %v2562 = vsel %vm2512, %v2453, 0
  %v2565 = vsel %vm2512, %v2454, 0
  %v2568 = vsel %vm2512, %v2455, 0
  %v2571 = vsel %vm2512, %v2456, 0
  %v2574 = vsel %vm2512, %v2457, 0
  %v2577 = vsel %vm2512, %v2458, 0
  %v2580 = vsel %vm2512, %v2459, 0
  %v2583 = vsel %vm2512, %v2460, 0
  %v2586 = vsel %vm2512, %v2461, 0
  %v2589 = vsel %vm2512, %v2462, 0
  %v2592 = vsel %vm2512, %v2463, 0
  %v2595 = vsel %vm2512, %v2464, 0
  %v2598 = vsel %vm2512, %v2465, 0
  %v2601 = vsel %vm2512, %v2466, 0
  %v2604 = vsel %vm2512, %v2467, 0
  %v2607 = vsel %vm2512, %v2468, 0
  %v2610 = vsel %vm2512, %v2469, 0
  %v2613 = vsel %vm2512, %v2470, 0
  %v2616 = vsel %vm2512, %v2471, 0
  %v2619 = vsel %vm2512, %v2472, 0
  %v2622 = vsel %vm2512, %v2473, 0
  %v2625 = vsel %vm2512, %v2474, 0
  %v2628 = vsel %vm2512, %v2475, 0
  %v2631 = vsel %vm2512, %v2476, 0
  %v2634 = vsel %vm2512, %v2477, 0
  %v2637 = vsel %vm2512, %v2478, 0
  %v2640 = vsel %vm2512, %v2479, 0
  %v2643 = vsel %vm2512, %v2480, 0
  %v2646 = vsel %vm2512, %v2481, 0
  %v2649 = vsel %vm2512, %v2482, 0
  %v2652 = vsel %vm2512, %v2483, 0
  %v2655 = vsel %vm2512, %v2484, 0
  %vm2657 = vcmask 1043456
  %v2659 = vsel %vm2657, %v2507, 0
  %2661 = vmatprep.subr.bf16.mxu0 0
  %2662 = vmatpush1.bf16.msra.mxu0 %v2503
  %2663 = vmatprep.subr.bf16.mxu0 0
  %2664 = vmatpush1.bf16.msra.mxu0 %v2504
  %2665 = vmatprep.subr.bf16.mxu0 0
  %2666 = vmatpush1.bf16.msra.mxu0 %v2505
  %2667 = vmatprep.subr.bf16.mxu0 0
  %2668 = vmatpush1.bf16.msra.mxu0 %v2506
  %2669 = vmatprep.subr.bf16.mxu0 0
  %2670 = vmatpush1.bf16.msra.mxu0 %v2659
  %2671 = vmatprep.subr.bf16.mxu0 0
  %2672 = vmatpush1.bf16.msra.mxu0 0
  %2673 = vmatprep.subr.bf16.mxu0 0
  %2674 = vmatpush1.bf16.msra.mxu0 0
  %2675 = vmatprep.subr.bf16.mxu0 0
  %2676 = vmatpush1.bf16.msra.mxu0 0
  %2677 = vmatprep.subr.bf16.mxu0 0
  %2678 = vmatpush1.bf16.msra.mxu0 0
  %2679 = vmatprep.subr.bf16.mxu0 0
  %2680 = vmatpush1.bf16.msra.mxu0 0
  %2681 = vmatprep.subr.bf16.mxu0 0
  %2682 = vmatpush1.bf16.msra.mxu0 0
  %2683 = vmatprep.subr.bf16.mxu0 0
  %2684 = vmatpush1.bf16.msra.mxu0 0
  %2685 = vmatprep.subr.bf16.mxu0 0
  %2686 = vmatpush1.bf16.msra.mxu0 0
  %2687 = vmatprep.subr.bf16.mxu0 0
  %2688 = vmatpush1.bf16.msra.mxu0 0
  %2689 = vmatprep.subr.bf16.mxu0 0
  %2690 = vmatpush1.bf16.msra.mxu0 0
  %2691 = vmatprep.subr.bf16.mxu0 0
  %2692 = vmatpush1.bf16.msra.mxu0 0
  %2693 = vmatprep.mubr.bf16.mxu0 0
  %2694 = vmatmul.mubr.bf16.gmra.mrb[0].mxu0 %v2514
  %v2695 = vpop.f32.mrb[0].mxu0
  %v2696 = vadd.f32 0.0, %v2695
  %v2697 = vpop.f32.mrb[0].mxu0
  %v2698 = vpop.f32.mrb[0].mxu0
  %v2699 = vadd.f32 0.0, %v2698
  %v2700 = vpop.f32.mrb[0].mxu0
  %2701 = vmatprep.mubr.bf16.mxu0 0
  %2702 = vmatmul.mubr.bf16.gmra.mrb[0].mxu0 %v2517
  %v2703 = vpop.f32.mrb[0].mxu0
  %v2704 = vadd.f32 0.0, %v2703
  %v2705 = vpop.f32.mrb[0].mxu0
  %v2706 = vpop.f32.mrb[0].mxu0
  %v2707 = vadd.f32 0.0, %v2706
  %v2708 = vpop.f32.mrb[0].mxu0
  %2709 = vmatprep.mubr.bf16.mxu0 0
  %2710 = vmatmul.mubr.bf16.gmra.mrb[0].mxu0 %v2520
  %v2711 = vpop.f32.mrb[0].mxu0
  %v2712 = vadd.f32 0.0, %v2711
  %v2713 = vpop.f32.mrb[0].mxu0
  %v2714 = vpop.f32.mrb[0].mxu0
  %v2715 = vadd.f32 0.0, %v2714
  %v2716 = vpop.f32.mrb[0].mxu0
  %2717 = vmatprep.mubr.bf16.mxu0 0
  %2718 = vmatmul.mubr.bf16.gmra.mrb[0].mxu0 %v2523
  %v2719 = vpop.f32.mrb[0].mxu0
  %v2720 = vadd.f32 0.0, %v2719
  %v2721 = vpop.f32.mrb[0].mxu0
  %v2722 = vpop.f32.mrb[0].mxu0
  %v2723 = vadd.f32 0.0, %v2722
  %v2724 = vpop.f32.mrb[0].mxu0
  %2725 = vmatprep.mubr.bf16.mxu0 0
  %2726 = vmatmul.mubr.bf16.gmra.mrb[0].mxu0 %v2526
  %v2727 = vpop.f32.mrb[0].mxu0
  %v2728 = vadd.f32 0.0, %v2727
  %v2729 = vpop.f32.mrb[0].mxu0
  %v2730 = vpop.f32.mrb[0].mxu0
  %v2731 = vadd.f32 0.0, %v2730
  %v2732 = vpop.f32.mrb[0].mxu0
  %2733 = vmatprep.mubr.bf16.mxu0 0
  %2734 = vmatmul.mubr.bf16.gmra.mrb[0].mxu0 %v2529
  %v2735 = vpop.f32.mrb[0].mxu0
  %v2736 = vadd.f32 0.0, %v2735
  %v2737 = vpop.f32.mrb[0].mxu0
  %v2738 = vpop.f32.mrb[0].mxu0
  %v2739 = vadd.f32 0.0, %v2738
  %v2740 = vpop.f32.mrb[0].mxu0
  %2741 = vmatprep.mubr.bf16.mxu0 0
  %2742 = vmatmul.mubr.bf16.gmra.mrb[0].mxu0 %v2532
  %v2743 = vpop.f32.mrb[0].mxu0
  %v2744 = vadd.f32 0.0, %v2743
  %v2745 = vpop.f32.mrb[0].mxu0
  %v2746 = vpop.f32.mrb[0].mxu0
  %v2747 = vadd.f32 0.0, %v2746
  %v2748 = vpop.f32.mrb[0].mxu0
  %2749 = vmatprep.mubr.bf16.mxu0 0
  %2750 = vmatmul.mubr.bf16.gmra.mrb[0].mxu0 %v2535
  %v2751 = vpop.f32.mrb[0].mxu0
  %v2752 = vadd.f32 0.0, %v2751
  %v2753 = vpop.f32.mrb[0].mxu0
  %v2754 = vpop.f32.mrb[0].mxu0
  %v2755 = vadd.f32 0.0, %v2754
  %v2756 = vpop.f32.mrb[0].mxu0
  %2757 = vmatprep.mubr.bf16.mxu0 0
  %2758 = vmatmul.mubr.bf16.gmra.mrb[0].mxu0 %v2538
  %v2759 = vpop.f32.mrb[0].mxu0
  %v2760 = vadd.f32 0.0, %v2759
  %v2761 = vpop.f32.mrb[0].mxu0
  %v2762 = vpop.f32.mrb[0].mxu0
  %v2763 = vadd.f32 0.0, %v2762
  %v2764 = vpop.f32.mrb[0].mxu0
  %2765 = vmatprep.mubr.bf16.mxu0 0
  %2766 = vmatmul.mubr.bf16.gmra.mrb[0].mxu0 %v2541
  %v2767 = vpop.f32.mrb[0].mxu0
  %v2768 = vadd.f32 0.0, %v2767
  %v2769 = vpop.f32.mrb[0].mxu0
  %v2770 = vpop.f32.mrb[0].mxu0
  %v2771 = vadd.f32 0.0, %v2770
  %v2772 = vpop.f32.mrb[0].mxu0
  %2773 = vmatprep.mubr.bf16.mxu0 0
  %2774 = vmatmul.mubr.bf16.gmra.mrb[0].mxu0 %v2544
  %v2775 = vpop.f32.mrb[0].mxu0
  %v2776 = vadd.f32 0.0, %v2775
  %v2777 = vpop.f32.mrb[0].mxu0
  %v2778 = vpop.f32.mrb[0].mxu0
  %v2779 = vadd.f32 0.0, %v2778
  %v2780 = vpop.f32.mrb[0].mxu0
  %2781 = vmatprep.mubr.bf16.mxu0 0
  %2782 = vmatmul.mubr.bf16.gmra.mrb[0].mxu0 %v2547
  %v2783 = vpop.f32.mrb[0].mxu0
  %v2784 = vadd.f32 0.0, %v2783
  %v2785 = vpop.f32.mrb[0].mxu0
  %v2786 = vpop.f32.mrb[0].mxu0
  %v2787 = vadd.f32 0.0, %v2786
  %v2788 = vpop.f32.mrb[0].mxu0
  %2789 = vmatprep.mubr.bf16.mxu0 0
  %2790 = vmatmul.mubr.bf16.gmra.mrb[0].mxu0 %v2550
  %v2791 = vpop.f32.mrb[0].mxu0
  %v2792 = vadd.f32 0.0, %v2791
  %v2793 = vpop.f32.mrb[0].mxu0
  %v2794 = vpop.f32.mrb[0].mxu0
  %v2795 = vadd.f32 0.0, %v2794
  %v2796 = vpop.f32.mrb[0].mxu0
  %2797 = vmatprep.mubr.bf16.mxu0 0
  %2798 = vmatmul.mubr.bf16.gmra.mrb[0].mxu0 %v2553
  %v2799 = vpop.f32.mrb[0].mxu0
  %v2800 = vadd.f32 0.0, %v2799
  %v2801 = vpop.f32.mrb[0].mxu0
  %v2802 = vpop.f32.mrb[0].mxu0
  %v2803 = vadd.f32 0.0, %v2802
  %v2804 = vpop.f32.mrb[0].mxu0
  %2805 = vmatprep.mubr.bf16.mxu0 0
  %2806 = vmatmul.mubr.bf16.gmra.mrb[0].mxu0 %v2556
  %v2807 = vpop.f32.mrb[0].mxu0
  %v2808 = vadd.f32 0.0, %v2807
  %v2809 = vpop.f32.mrb[0].mxu0
  %v2810 = vpop.f32.mrb[0].mxu0
  %v2811 = vadd.f32 0.0, %v2810
  %v2812 = vpop.f32.mrb[0].mxu0
  %2813 = vmatprep.mubr.bf16.mxu0 0
  %2814 = vmatmul.mubr.bf16.gmra.mrb[0].mxu0 %v2559
  %v2815 = vpop.f32.mrb[0].mxu0
  %v2816 = vadd.f32 0.0, %v2815
  %v2817 = vpop.f32.mrb[0].mxu0
  %v2818 = vpop.f32.mrb[0].mxu0
  %v2819 = vadd.f32 0.0, %v2818
  %v2820 = vpop.f32.mrb[0].mxu0
  %2821 = vmatprep.mubr.bf16.mxu0 0
  %2822 = vmatmul.mubr.bf16.gmra.mrb[0].mxu0 %v2562
  %v2823 = vpop.f32.mrb[0].mxu0
  %v2824 = vadd.f32 0.0, %v2823
  %v2825 = vpop.f32.mrb[0].mxu0
  %v2826 = vpop.f32.mrb[0].mxu0
  %v2827 = vadd.f32 0.0, %v2826
  %v2828 = vpop.f32.mrb[0].mxu0
  %2829 = vmatprep.mubr.bf16.mxu0 0
  %2830 = vmatmul.mubr.bf16.gmra.mrb[0].mxu0 %v2565
  %v2831 = vpop.f32.mrb[0].mxu0
  %v2832 = vadd.f32 0.0, %v2831
  %v2833 = vpop.f32.mrb[0].mxu0
  %v2834 = vpop.f32.mrb[0].mxu0
  %v2835 = vadd.f32 0.0, %v2834
  %v2836 = vpop.f32.mrb[0].mxu0
  %2837 = vmatprep.mubr.bf16.mxu0 0
  %2838 = vmatmul.mubr.bf16.gmra.mrb[0].mxu0 %v2568
  %v2839 = vpop.f32.mrb[0].mxu0
  %v2840 = vadd.f32 0.0, %v2839
  %v2841 = vpop.f32.mrb[0].mxu0
  %v2842 = vpop.f32.mrb[0].mxu0
  %v2843 = vadd.f32 0.0, %v2842
  %v2844 = vpop.f32.mrb[0].mxu0
  %2845 = vmatprep.mubr.bf16.mxu0 0
  %2846 = vmatmul.mubr.bf16.gmra.mrb[0].mxu0 %v2571
  %v2847 = vpop.f32.mrb[0].mxu0
  %v2848 = vadd.f32 0.0, %v2847
  %v2849 = vpop.f32.mrb[0].mxu0
  %v2850 = vpop.f32.mrb[0].mxu0
  %v2851 = vadd.f32 0.0, %v2850
  %v2852 = vpop.f32.mrb[0].mxu0
  %2853 = vmatprep.mubr.bf16.mxu0 0
  %2854 = vmatmul.mubr.bf16.gmra.mrb[0].mxu0 %v2574
  %v2855 = vpop.f32.mrb[0].mxu0
  %v2856 = vadd.f32 0.0, %v2855
  %v2857 = vpop.f32.mrb[0].mxu0
  %v2858 = vpop.f32.mrb[0].mxu0
  %v2859 = vadd.f32 0.0, %v2858
  %v2860 = vpop.f32.mrb[0].mxu0
  %2861 = vmatprep.mubr.bf16.mxu0 0
  %2862 = vmatmul.mubr.bf16.gmra.mrb[0].mxu0 %v2577
  %v2863 = vpop.f32.mrb[0].mxu0
  %v2864 = vadd.f32 0.0, %v2863
  %v2865 = vpop.f32.mrb[0].mxu0
  %v2866 = vpop.f32.mrb[0].mxu0
  %v2867 = vadd.f32 0.0, %v2866
  %v2868 = vpop.f32.mrb[0].mxu0
  %2869 = vmatprep.mubr.bf16.mxu0 0
  %2870 = vmatmul.mubr.bf16.gmra.mrb[0].mxu0 %v2580
  %v2871 = vpop.f32.mrb[0].mxu0
  %v2872 = vadd.f32 0.0, %v2871
  %v2873 = vpop.f32.mrb[0].mxu0
  %v2874 = vpop.f32.mrb[0].mxu0
  %v2875 = vadd.f32 0.0, %v2874
  %v2876 = vpop.f32.mrb[0].mxu0
  %2877 = vmatprep.mubr.bf16.mxu0 0
  %2878 = vmatmul.mubr.bf16.gmra.mrb[0].mxu0 %v2583
  %v2879 = vpop.f32.mrb[0].mxu0
  %v2880 = vadd.f32 0.0, %v2879
  %v2881 = vpop.f32.mrb[0].mxu0
  %v2882 = vpop.f32.mrb[0].mxu0
  %v2883 = vadd.f32 0.0, %v2882
  %v2884 = vpop.f32.mrb[0].mxu0
  %2885 = vmatprep.mubr.bf16.mxu0 0
  %2886 = vmatmul.mubr.bf16.gmra.mrb[0].mxu0 %v2586
  %v2887 = vpop.f32.mrb[0].mxu0
  %v2888 = vadd.f32 0.0, %v2887
  %v2889 = vpop.f32.mrb[0].mxu0
  %v2890 = vpop.f32.mrb[0].mxu0
  %v2891 = vadd.f32 0.0, %v2890
  %v2892 = vpop.f32.mrb[0].mxu0
  %2893 = vmatprep.mubr.bf16.mxu0 0
  %2894 = vmatmul.mubr.bf16.gmra.mrb[0].mxu0 %v2589
  %v2895 = vpop.f32.mrb[0].mxu0
  %v2896 = vadd.f32 0.0, %v2895
  %v2897 = vpop.f32.mrb[0].mxu0
  %v2898 = vpop.f32.mrb[0].mxu0
  %v2899 = vadd.f32 0.0, %v2898
  %v2900 = vpop.f32.mrb[0].mxu0
  %2901 = vmatprep.mubr.bf16.mxu0 0
  %2902 = vmatmul.mubr.bf16.gmra.mrb[0].mxu0 %v2592
  %v2903 = vpop.f32.mrb[0].mxu0
  %v2904 = vadd.f32 0.0, %v2903
  %v2905 = vpop.f32.mrb[0].mxu0
  %v2906 = vpop.f32.mrb[0].mxu0
  %v2907 = vadd.f32 0.0, %v2906
  %v2908 = vpop.f32.mrb[0].mxu0
  %2909 = vmatprep.mubr.bf16.mxu0 0
  %2910 = vmatmul.mubr.bf16.gmra.mrb[0].mxu0 %v2595
  %v2911 = vpop.f32.mrb[0].mxu0
  %v2912 = vadd.f32 0.0, %v2911
  %v2913 = vpop.f32.mrb[0].mxu0
  %v2914 = vpop.f32.mrb[0].mxu0
  %v2915 = vadd.f32 0.0, %v2914
  %v2916 = vpop.f32.mrb[0].mxu0
  %2917 = vmatprep.mubr.bf16.mxu0 0
  %2918 = vmatmul.mubr.bf16.gmra.mrb[0].mxu0 %v2598
  %v2919 = vpop.f32.mrb[0].mxu0
  %v2920 = vadd.f32 0.0, %v2919
  %v2921 = vpop.f32.mrb[0].mxu0
  %v2922 = vpop.f32.mrb[0].mxu0
  %v2923 = vadd.f32 0.0, %v2922
  %v2924 = vpop.f32.mrb[0].mxu0
  %2925 = vmatprep.mubr.bf16.mxu0 0
  %2926 = vmatmul.mubr.bf16.gmra.mrb[0].mxu0 %v2601
  %v2927 = vpop.f32.mrb[0].mxu0
  %v2928 = vadd.f32 0.0, %v2927
  %v2929 = vpop.f32.mrb[0].mxu0
  %v2930 = vpop.f32.mrb[0].mxu0
  %v2931 = vadd.f32 0.0, %v2930
  %v2932 = vpop.f32.mrb[0].mxu0
  %2933 = vmatprep.mubr.bf16.mxu0 0
  %2934 = vmatmul.mubr.bf16.gmra.mrb[0].mxu0 %v2604
  %v2935 = vpop.f32.mrb[0].mxu0
  %v2936 = vadd.f32 0.0, %v2935
  %v2937 = vpop.f32.mrb[0].mxu0
  %v2938 = vpop.f32.mrb[0].mxu0
  %v2939 = vadd.f32 0.0, %v2938
  %v2940 = vpop.f32.mrb[0].mxu0
  %2941 = vmatprep.mubr.bf16.mxu0 0
  %2942 = vmatmul.mubr.bf16.gmra.mrb[0].mxu0 %v2607
  %v2943 = vpop.f32.mrb[0].mxu0
  %v2944 = vadd.f32 0.0, %v2943
  %v2945 = vpop.f32.mrb[0].mxu0
  %v2946 = vpop.f32.mrb[0].mxu0
  %v2947 = vadd.f32 0.0, %v2946
  %v2948 = vpop.f32.mrb[0].mxu0
  %2949 = vmatprep.mubr.bf16.mxu0 0
  %2950 = vmatmul.mubr.bf16.gmra.mrb[0].mxu0 %v2610
  %v2951 = vpop.f32.mrb[0].mxu0
  %v2952 = vadd.f32 0.0, %v2951
  %v2953 = vpop.f32.mrb[0].mxu0
  %v2954 = vpop.f32.mrb[0].mxu0
  %v2955 = vadd.f32 0.0, %v2954
  %v2956 = vpop.f32.mrb[0].mxu0
  %2957 = vmatprep.mubr.bf16.mxu0 0
  %2958 = vmatmul.mubr.bf16.gmra.mrb[0].mxu0 %v2613
  %v2959 = vpop.f32.mrb[0].mxu0
  %v2960 = vadd.f32 0.0, %v2959
  %v2961 = vpop.f32.mrb[0].mxu0
  %v2962 = vpop.f32.mrb[0].mxu0
  %v2963 = vadd.f32 0.0, %v2962
  %v2964 = vpop.f32.mrb[0].mxu0
  %2965 = vmatprep.mubr.bf16.mxu0 0
  %2966 = vmatmul.mubr.bf16.gmra.mrb[0].mxu0 %v2616
  %v2967 = vpop.f32.mrb[0].mxu0
  %v2968 = vadd.f32 0.0, %v2967
  %v2969 = vpop.f32.mrb[0].mxu0
  %v2970 = vpop.f32.mrb[0].mxu0
  %v2971 = vadd.f32 0.0, %v2970
  %v2972 = vpop.f32.mrb[0].mxu0
  %2973 = vmatprep.mubr.bf16.mxu0 0
  %2974 = vmatmul.mubr.bf16.gmra.mrb[0].mxu0 %v2619
  %v2975 = vpop.f32.mrb[0].mxu0
  %v2976 = vadd.f32 0.0, %v2975
  %v2977 = vpop.f32.mrb[0].mxu0
  %v2978 = vpop.f32.mrb[0].mxu0
  %v2979 = vadd.f32 0.0, %v2978
  %v2980 = vpop.f32.mrb[0].mxu0
  %2981 = vmatprep.mubr.bf16.mxu0 0
  %2982 = vmatmul.mubr.bf16.gmra.mrb[0].mxu0 %v2622
  %v2983 = vpop.f32.mrb[0].mxu0
  %v2984 = vadd.f32 0.0, %v2983
  %v2985 = vpop.f32.mrb[0].mxu0
  %v2986 = vpop.f32.mrb[0].mxu0
  %v2987 = vadd.f32 0.0, %v2986
  %v2988 = vpop.f32.mrb[0].mxu0
  %2989 = vmatprep.mubr.bf16.mxu0 0
  %2990 = vmatmul.mubr.bf16.gmra.mrb[0].mxu0 %v2625
  %v2991 = vpop.f32.mrb[0].mxu0
  %v2992 = vadd.f32 0.0, %v2991
  %v2993 = vpop.f32.mrb[0].mxu0
  %v2994 = vpop.f32.mrb[0].mxu0
  %v2995 = vadd.f32 0.0, %v2994
  %v2996 = vpop.f32.mrb[0].mxu0
  %2997 = vmatprep.mubr.bf16.mxu0 0
  %2998 = vmatmul.mubr.bf16.gmra.mrb[0].mxu0 %v2628
  %v2999 = vpop.f32.mrb[0].mxu0
  %v3000 = vadd.f32 0.0, %v2999
  %v3001 = vpop.f32.mrb[0].mxu0
  %v3002 = vpop.f32.mrb[0].mxu0
  %v3003 = vadd.f32 0.0, %v3002
  %v3004 = vpop.f32.mrb[0].mxu0
  %3005 = vmatprep.mubr.bf16.mxu0 0
  %3006 = vmatmul.mubr.bf16.gmra.mrb[0].mxu0 %v2631
  %v3007 = vpop.f32.mrb[0].mxu0
  %v3008 = vadd.f32 0.0, %v3007
  %v3009 = vpop.f32.mrb[0].mxu0
  %v3010 = vpop.f32.mrb[0].mxu0
  %v3011 = vadd.f32 0.0, %v3010
  %v3012 = vpop.f32.mrb[0].mxu0
  %3013 = vmatprep.mubr.bf16.mxu0 0
  %3014 = vmatmul.mubr.bf16.gmra.mrb[0].mxu0 %v2634
  %v3015 = vpop.f32.mrb[0].mxu0
  %v3016 = vadd.f32 0.0, %v3015
  %v3017 = vpop.f32.mrb[0].mxu0
  %v3018 = vpop.f32.mrb[0].mxu0
  %v3019 = vadd.f32 0.0, %v3018
  %v3020 = vpop.f32.mrb[0].mxu0
  %3021 = vmatprep.mubr.bf16.mxu0 0
  %3022 = vmatmul.mubr.bf16.gmra.mrb[0].mxu0 %v2637
  %v3023 = vpop.f32.mrb[0].mxu0
  %v3024 = vadd.f32 0.0, %v3023
  %v3025 = vpop.f32.mrb[0].mxu0
  %v3026 = vpop.f32.mrb[0].mxu0
  %v3027 = vadd.f32 0.0, %v3026
  %v3028 = vpop.f32.mrb[0].mxu0
  %3029 = vmatprep.mubr.bf16.mxu0 0
  %3030 = vmatmul.mubr.bf16.gmra.mrb[0].mxu0 %v2640
  %v3031 = vpop.f32.mrb[0].mxu0
  %v3032 = vadd.f32 0.0, %v3031
  %v3033 = vpop.f32.mrb[0].mxu0
  %v3034 = vpop.f32.mrb[0].mxu0
  %v3035 = vadd.f32 0.0, %v3034
  %v3036 = vpop.f32.mrb[0].mxu0
  %3037 = vmatprep.mubr.bf16.mxu0 0
  %3038 = vmatmul.mubr.bf16.gmra.mrb[0].mxu0 %v2643
  %v3039 = vpop.f32.mrb[0].mxu0
  %v3040 = vadd.f32 0.0, %v3039
  %v3041 = vpop.f32.mrb[0].mxu0
  %v3042 = vpop.f32.mrb[0].mxu0
  %v3043 = vadd.f32 0.0, %v3042
  %v3044 = vpop.f32.mrb[0].mxu0
  %3045 = vmatprep.mubr.bf16.mxu0 0
  %3046 = vmatmul.mubr.bf16.gmra.mrb[0].mxu0 %v2646
  %v3047 = vpop.f32.mrb[0].mxu0
  %v3048 = vadd.f32 0.0, %v3047
  %v3049 = vpop.f32.mrb[0].mxu0
  %v3050 = vpop.f32.mrb[0].mxu0
  %v3051 = vadd.f32 0.0, %v3050
  %v3052 = vpop.f32.mrb[0].mxu0
  %3053 = vmatprep.mubr.bf16.mxu0 0
  %3054 = vmatmul.mubr.bf16.gmra.mrb[0].mxu0 %v2649
  %v3055 = vpop.f32.mrb[0].mxu0
  %v3056 = vadd.f32 0.0, %v3055
  %v3057 = vpop.f32.mrb[0].mxu0
  %v3058 = vpop.f32.mrb[0].mxu0
  %v3059 = vadd.f32 0.0, %v3058
  %v3060 = vpop.f32.mrb[0].mxu0
  %3061 = vmatprep.mubr.bf16.mxu0 0
  %3062 = vmatmul.mubr.bf16.gmra.mrb[0].mxu0 %v2652
  %v3063 = vpop.f32.mrb[0].mxu0
  %v3064 = vadd.f32 0.0, %v3063
  %v3065 = vpop.f32.mrb[0].mxu0
  %v3066 = vpop.f32.mrb[0].mxu0
  %v3067 = vadd.f32 0.0, %v3066
  %v3068 = vpop.f32.mrb[0].mxu0
  %3069 = vmatprep.mubr.bf16.mxu0 0
  %3070 = vmatmul.mubr.bf16.gmra.mrb[0].mxu0 %v2655
  %v3071 = vpop.f32.mrb[0].mxu0
  %v3072 = vadd.f32 0.0, %v3071
  %v3073 = vpop.f32.mrb[0].mxu0
  %v3074 = vpop.f32.mrb[0].mxu0
  %v3075 = vadd.f32 0.0, %v3074
  %v3076 = vpop.f32.mrb[0].mxu0
  %3077 = vdwg.mxu0
  %v3078 = vmul.f32 %v2696, %v2044
  %v3079 = vmul.f32 %v2699, %v2045
  %v3080 = vmul.f32 %v2704, %v2046
  %v3081 = vmul.f32 %v2707, %v2047
  %v3082 = vmul.f32 %v2712, %v2048
  %v3083 = vmul.f32 %v2715, %v2049
  %v3084 = vmul.f32 %v2720, %v2050
  %v3085 = vmul.f32 %v2723, %v2051
  %v3086 = vmul.f32 %v2728, %v2052
  %v3087 = vmul.f32 %v2731, %v2053
  %v3088 = vmul.f32 %v2736, %v2054
  %v3089 = vmul.f32 %v2739, %v2055
  %v3090 = vmul.f32 %v2744, %v2056
  %v3091 = vmul.f32 %v2747, %v2057
  %v3092 = vmul.f32 %v2752, %v2058
  %v3093 = vmul.f32 %v2755, %v2059
  %v3094 = vmul.f32 %v2760, %v2060
  %v3095 = vmul.f32 %v2763, %v2061
  %v3096 = vmul.f32 %v2768, %v2062
  %v3097 = vmul.f32 %v2771, %v2063
  %v3098 = vmul.f32 %v2776, %v2064
  %v3099 = vmul.f32 %v2779, %v2065
  %v3100 = vmul.f32 %v2784, %v2066
  %v3101 = vmul.f32 %v2787, %v2067
  %v3102 = vmul.f32 %v2792, %v2068
  %v3103 = vmul.f32 %v2795, %v2069
  %v3104 = vmul.f32 %v2800, %v2070
  %v3105 = vmul.f32 %v2803, %v2071
  %v3106 = vmul.f32 %v2808, %v2072
  %v3107 = vmul.f32 %v2811, %v2073
  %v3108 = vmul.f32 %v2816, %v2074
  %v3109 = vmul.f32 %v2819, %v2075
  %v3110 = vmul.f32 %v2824, %v2076
  %v3111 = vmul.f32 %v2827, %v2077
  %v3112 = vmul.f32 %v2832, %v2078
  %v3113 = vmul.f32 %v2835, %v2079
  %v3114 = vmul.f32 %v2840, %v2080
  %v3115 = vmul.f32 %v2843, %v2081
  %v3116 = vmul.f32 %v2848, %v2082
  %v3117 = vmul.f32 %v2851, %v2083
  %v3118 = vmul.f32 %v2856, %v2084
  %v3119 = vmul.f32 %v2859, %v2085
  %v3120 = vmul.f32 %v2864, %v2086
  %v3121 = vmul.f32 %v2867, %v2087
  %v3122 = vmul.f32 %v2872, %v2088
  %v3123 = vmul.f32 %v2875, %v2089
  %v3124 = vmul.f32 %v2880, %v2090
  %v3125 = vmul.f32 %v2883, %v2091
  %v3126 = vmul.f32 %v2888, %v2092
  %v3127 = vmul.f32 %v2891, %v2093
  %v3128 = vmul.f32 %v2896, %v2094
  %v3129 = vmul.f32 %v2899, %v2095
  %v3130 = vmul.f32 %v2904, %v2096
  %v3131 = vmul.f32 %v2907, %v2097
  %v3132 = vmul.f32 %v2912, %v2098
  %v3133 = vmul.f32 %v2915, %v2099
  %v3134 = vmul.f32 %v2920, %v2100
  %v3135 = vmul.f32 %v2923, %v2101
  %v3136 = vmul.f32 %v2928, %v2102
  %v3137 = vmul.f32 %v2931, %v2103
  %v3138 = vmul.f32 %v2936, %v2104
  %v3139 = vmul.f32 %v2939, %v2105
  %v3140 = vmul.f32 %v2944, %v2106
  %v3141 = vmul.f32 %v2947, %v2107
  %v3142 = vmul.f32 %v2952, %v2108
  %v3143 = vmul.f32 %v2955, %v2109
  %v3144 = vmul.f32 %v2960, %v2110
  %v3145 = vmul.f32 %v2963, %v2111
  %v3146 = vmul.f32 %v2968, %v2112
  %v3147 = vmul.f32 %v2971, %v2113
  %v3148 = vmul.f32 %v2976, %v2114
  %v3149 = vmul.f32 %v2979, %v2115
  %v3150 = vmul.f32 %v2984, %v2116
  %v3151 = vmul.f32 %v2987, %v2117
  %v3152 = vmul.f32 %v2992, %v2118
  %v3153 = vmul.f32 %v2995, %v2119
  %v3154 = vmul.f32 %v3000, %v2120
  %v3155 = vmul.f32 %v3003, %v2121
  %v3156 = vmul.f32 %v3008, %v2122
  %v3157 = vmul.f32 %v3011, %v2123
  %v3158 = vmul.f32 %v3016, %v2124
  %v3159 = vmul.f32 %v3019, %v2125
  %v3160 = vmul.f32 %v3024, %v2126
  %v3161 = vmul.f32 %v3027, %v2127
  %v3162 = vmul.f32 %v3032, %v2128
  %v3163 = vmul.f32 %v3035, %v2129
  %v3164 = vmul.f32 %v3040, %v2130
  %v3165 = vmul.f32 %v3043, %v2131
  %v3166 = vmul.f32 %v3048, %v2132
  %v3167 = vmul.f32 %v3051, %v2133
  %v3168 = vmul.f32 %v3056, %v2134
  %v3169 = vmul.f32 %v3059, %v2135
  %v3170 = vmul.f32 %v3064, %v2136
  %v3171 = vmul.f32 %v3067, %v2137
  %v3172 = vmul.f32 %v3072, %v2138
  %v3173 = vmul.f32 %v3075, %v2139
  %v3174 = vadd.f32 %v3078, %v3079
  %v3175 = vadd.f32 %v3174, %v3080
  %v3176 = vadd.f32 %v3175, %v3081
  %v3177 = vadd.f32 %v3176, %v3082
  %v3178 = vadd.f32 %v3177, %v3083
  %v3179 = vadd.f32 %v3178, %v3084
  %v3180 = vadd.f32 %v3179, %v3085
  %v3181 = vadd.f32 %v3180, %v3086
  %v3182 = vadd.f32 %v3181, %v3087
  %v3183 = vadd.f32 %v3182, %v3088
  %v3184 = vadd.f32 %v3183, %v3089
  %v3185 = vadd.f32 %v3184, %v3090
  %v3186 = vadd.f32 %v3185, %v3091
  %v3187 = vadd.f32 %v3186, %v3092
  %v3188 = vadd.f32 %v3187, %v3093
  %v3189 = vadd.f32 %v3188, %v3094
  %v3190 = vadd.f32 %v3189, %v3095
  %v3191 = vadd.f32 %v3190, %v3096
  %v3192 = vadd.f32 %v3191, %v3097
  %v3193 = vadd.f32 %v3192, %v3098
  %v3194 = vadd.f32 %v3193, %v3099
  %v3195 = vadd.f32 %v3194, %v3100
  %v3196 = vadd.f32 %v3195, %v3101
  %v3197 = vadd.f32 %v3196, %v3102
  %v3198 = vadd.f32 %v3197, %v3103
  %v3199 = vadd.f32 %v3198, %v3104
  %v3200 = vadd.f32 %v3199, %v3105
  %v3201 = vadd.f32 %v3200, %v3106
  %v3202 = vadd.f32 %v3201, %v3107
  %v3203 = vadd.f32 %v3202, %v3108
  %v3204 = vadd.f32 %v3203, %v3109
  %v3205 = vadd.f32 %v3204, %v3110
  %v3206 = vadd.f32 %v3205, %v3111
  %v3207 = vadd.f32 %v3206, %v3112
  %v3208 = vadd.f32 %v3207, %v3113
  %v3209 = vadd.f32 %v3208, %v3114
  %v3210 = vadd.f32 %v3209, %v3115
  %v3211 = vadd.f32 %v3210, %v3116
  %v3212 = vadd.f32 %v3211, %v3117
  %v3213 = vadd.f32 %v3212, %v3118
  %v3214 = vadd.f32 %v3213, %v3119
  %v3215 = vadd.f32 %v3214, %v3120
  %v3216 = vadd.f32 %v3215, %v3121
  %v3217 = vadd.f32 %v3216, %v3122
  %v3218 = vadd.f32 %v3217, %v3123
  %v3219 = vadd.f32 %v3218, %v3124
  %v3220 = vadd.f32 %v3219, %v3125
  %v3221 = vadd.f32 %v3220, %v3126
  %v3222 = vadd.f32 %v3221, %v3127
  %v3223 = vadd.f32 %v3222, %v3128
  %v3224 = vadd.f32 %v3223, %v3129
  %v3225 = vadd.f32 %v3224, %v3130
  %v3226 = vadd.f32 %v3225, %v3131
  %v3227 = vadd.f32 %v3226, %v3132
  %v3228 = vadd.f32 %v3227, %v3133
  %v3229 = vadd.f32 %v3228, %v3134
  %v3230 = vadd.f32 %v3229, %v3135
  %v3231 = vadd.f32 %v3230, %v3136
  %v3232 = vadd.f32 %v3231, %v3137
  %v3233 = vadd.f32 %v3232, %v3138
  %v3234 = vadd.f32 %v3233, %v3139
  %v3235 = vadd.f32 %v3234, %v3140
  %v3236 = vadd.f32 %v3235, %v3141
  %v3237 = vadd.f32 %v3236, %v3142
  %v3238 = vadd.f32 %v3237, %v3143
  %v3239 = vadd.f32 %v3238, %v3144
  %v3240 = vadd.f32 %v3239, %v3145
  %v3241 = vadd.f32 %v3240, %v3146
  %v3242 = vadd.f32 %v3241, %v3147
  %v3243 = vadd.f32 %v3242, %v3148
  %v3244 = vadd.f32 %v3243, %v3149
  %v3245 = vadd.f32 %v3244, %v3150
  %v3246 = vadd.f32 %v3245, %v3151
  %v3247 = vadd.f32 %v3246, %v3152
  %v3248 = vadd.f32 %v3247, %v3153
  %v3249 = vadd.f32 %v3248, %v3154
  %v3250 = vadd.f32 %v3249, %v3155
  %v3251 = vadd.f32 %v3250, %v3156
  %v3252 = vadd.f32 %v3251, %v3157
  %v3253 = vadd.f32 %v3252, %v3158
  %v3254 = vadd.f32 %v3253, %v3159
  %v3255 = vadd.f32 %v3254, %v3160
  %v3256 = vadd.f32 %v3255, %v3161
  %v3257 = vadd.f32 %v3256, %v3162
  %v3258 = vadd.f32 %v3257, %v3163
  %v3259 = vadd.f32 %v3258, %v3164
  %v3260 = vadd.f32 %v3259, %v3165
  %v3261 = vadd.f32 %v3260, %v3166
  %v3262 = vadd.f32 %v3261, %v3167
  %v3263 = vadd.f32 %v3262, %v3168
  %v3264 = vadd.f32 %v3263, %v3169
  %v3265 = vadd.f32 %v3264, %v3170
  %v3266 = vadd.f32 %v3265, %v3171
  %v3267 = vadd.f32 %v3266, %v3172
  %v3268 = vadd.f32 %v3267, %v3173
  %v3269 = vrot.slane %v3268, 4
  %v3270 = vadd.f32 %v3268, %v3269
  %v3271 = vrot.slane %v3270, 2
  %v3272 = vadd.f32 %v3270, %v3271
  %v3273 = vrot.slane %v3272, 1
  %v3274 = vadd.f32 %v3272, %v3273
  %v3275 = vmul.f32 %v3078, %v3078
  %v3276 = vmul.f32 %v3079, %v3079
  %v3277 = vmul.f32 %v3080, %v3080
  %v3278 = vmul.f32 %v3081, %v3081
  %v3279 = vmul.f32 %v3082, %v3082
  %v3280 = vmul.f32 %v3083, %v3083
  %v3281 = vmul.f32 %v3084, %v3084
  %v3282 = vmul.f32 %v3085, %v3085
  %v3283 = vmul.f32 %v3086, %v3086
  %v3284 = vmul.f32 %v3087, %v3087
  %v3285 = vmul.f32 %v3088, %v3088
  %v3286 = vmul.f32 %v3089, %v3089
  %v3287 = vmul.f32 %v3090, %v3090
  %v3288 = vmul.f32 %v3091, %v3091
  %v3289 = vmul.f32 %v3092, %v3092
  %v3290 = vmul.f32 %v3093, %v3093
  %v3291 = vmul.f32 %v3094, %v3094
  %v3292 = vmul.f32 %v3095, %v3095
  %v3293 = vmul.f32 %v3096, %v3096
  %v3294 = vmul.f32 %v3097, %v3097
  %v3295 = vmul.f32 %v3098, %v3098
  %v3296 = vmul.f32 %v3099, %v3099
  %v3297 = vmul.f32 %v3100, %v3100
  %v3298 = vmul.f32 %v3101, %v3101
  %v3299 = vmul.f32 %v3102, %v3102
  %v3300 = vmul.f32 %v3103, %v3103
  %v3301 = vmul.f32 %v3104, %v3104
  %v3302 = vmul.f32 %v3105, %v3105
  %v3303 = vmul.f32 %v3106, %v3106
  %v3304 = vmul.f32 %v3107, %v3107
  %v3305 = vmul.f32 %v3108, %v3108
  %v3306 = vmul.f32 %v3109, %v3109
  %v3307 = vmul.f32 %v3110, %v3110
  %v3308 = vmul.f32 %v3111, %v3111
  %v3309 = vmul.f32 %v3112, %v3112
  %v3310 = vmul.f32 %v3113, %v3113
  %v3311 = vmul.f32 %v3114, %v3114
  %v3312 = vmul.f32 %v3115, %v3115
  %v3313 = vmul.f32 %v3116, %v3116
  %v3314 = vmul.f32 %v3117, %v3117
  %v3315 = vmul.f32 %v3118, %v3118
  %v3316 = vmul.f32 %v3119, %v3119
  %v3317 = vmul.f32 %v3120, %v3120
  %v3318 = vmul.f32 %v3121, %v3121
  %v3319 = vmul.f32 %v3122, %v3122
  %v3320 = vmul.f32 %v3123, %v3123
  %v3321 = vmul.f32 %v3124, %v3124
  %v3322 = vmul.f32 %v3125, %v3125
  %v3323 = vmul.f32 %v3126, %v3126
  %v3324 = vmul.f32 %v3127, %v3127
  %v3325 = vmul.f32 %v3128, %v3128
  %v3326 = vmul.f32 %v3129, %v3129
  %v3327 = vmul.f32 %v3130, %v3130
  %v3328 = vmul.f32 %v3131, %v3131
  %v3329 = vmul.f32 %v3132, %v3132
  %v3330 = vmul.f32 %v3133, %v3133
  %v3331 = vmul.f32 %v3134, %v3134
  %v3332 = vmul.f32 %v3135, %v3135
  %v3333 = vmul.f32 %v3136, %v3136
  %v3334 = vmul.f32 %v3137, %v3137
  %v3335 = vmul.f32 %v3138, %v3138
  %v3336 = vmul.f32 %v3139, %v3139
  %v3337 = vmul.f32 %v3140, %v3140
  %v3338 = vmul.f32 %v3141, %v3141
  %v3339 = vmul.f32 %v3142, %v3142
  %v3340 = vmul.f32 %v3143, %v3143
  %v3341 = vmul.f32 %v3144, %v3144
  %v3342 = vmul.f32 %v3145, %v3145
  %v3343 = vmul.f32 %v3146, %v3146
  %v3344 = vmul.f32 %v3147, %v3147
  %v3345 = vmul.f32 %v3148, %v3148
  %v3346 = vmul.f32 %v3149, %v3149
  %v3347 = vmul.f32 %v3150, %v3150
  %v3348 = vmul.f32 %v3151, %v3151
  %v3349 = vmul.f32 %v3152, %v3152
  %v3350 = vmul.f32 %v3153, %v3153
  %v3351 = vmul.f32 %v3154, %v3154
  %v3352 = vmul.f32 %v3155, %v3155
  %v3353 = vmul.f32 %v3156, %v3156
  %v3354 = vmul.f32 %v3157, %v3157
  %v3355 = vmul.f32 %v3158, %v3158
  %v3356 = vmul.f32 %v3159, %v3159
  %v3357 = vmul.f32 %v3160, %v3160
  %v3358 = vmul.f32 %v3161, %v3161
  %v3359 = vmul.f32 %v3162, %v3162
  %v3360 = vmul.f32 %v3163, %v3163
  %v3361 = vmul.f32 %v3164, %v3164
  %v3362 = vmul.f32 %v3165, %v3165
  %v3363 = vmul.f32 %v3166, %v3166
  %v3364 = vmul.f32 %v3167, %v3167
  %v3365 = vmul.f32 %v3168, %v3168
  %v3366 = vmul.f32 %v3169, %v3169
  %v3367 = vmul.f32 %v3170, %v3170
  %v3368 = vmul.f32 %v3171, %v3171
  %v3369 = vmul.f32 %v3172, %v3172
  %v3370 = vmul.f32 %v3173, %v3173
  %v3371 = vadd.f32 %v3275, %v3276
  %v3372 = vadd.f32 %v3371, %v3277
  %v3373 = vadd.f32 %v3372, %v3278
  %v3374 = vadd.f32 %v3373, %v3279
  %v3375 = vadd.f32 %v3374, %v3280
  %v3376 = vadd.f32 %v3375, %v3281
  %v3377 = vadd.f32 %v3376, %v3282
  %v3378 = vadd.f32 %v3377, %v3283
  %v3379 = vadd.f32 %v3378, %v3284
  %v3380 = vadd.f32 %v3379, %v3285
  %v3381 = vadd.f32 %v3380, %v3286
  %v3382 = vadd.f32 %v3381, %v3287
  %v3383 = vadd.f32 %v3382, %v3288
  %v3384 = vadd.f32 %v3383, %v3289
  %v3385 = vadd.f32 %v3384, %v3290
  %v3386 = vadd.f32 %v3385, %v3291
  %v3387 = vadd.f32 %v3386, %v3292
  %v3388 = vadd.f32 %v3387, %v3293
  %v3389 = vadd.f32 %v3388, %v3294
  %v3390 = vadd.f32 %v3389, %v3295
  %v3391 = vadd.f32 %v3390, %v3296
  %v3392 = vadd.f32 %v3391, %v3297
  %v3393 = vadd.f32 %v3392, %v3298
  %v3394 = vadd.f32 %v3393, %v3299
  %v3395 = vadd.f32 %v3394, %v3300
  %v3396 = vadd.f32 %v3395, %v3301
  %v3397 = vadd.f32 %v3396, %v3302
  %v3398 = vadd.f32 %v3397, %v3303
  %v3399 = vadd.f32 %v3398, %v3304
  %v3400 = vadd.f32 %v3399, %v3305
  %v3401 = vadd.f32 %v3400, %v3306
  %v3402 = vadd.f32 %v3401, %v3307
  %v3403 = vadd.f32 %v3402, %v3308
  %v3404 = vadd.f32 %v3403, %v3309
  %v3405 = vadd.f32 %v3404, %v3310
  %v3406 = vadd.f32 %v3405, %v3311
  %v3407 = vadd.f32 %v3406, %v3312
  %v3408 = vadd.f32 %v3407, %v3313
  %v3409 = vadd.f32 %v3408, %v3314
  %v3410 = vadd.f32 %v3409, %v3315
  %v3411 = vadd.f32 %v3410, %v3316
  %v3412 = vadd.f32 %v3411, %v3317
  %v3413 = vadd.f32 %v3412, %v3318
  %v3414 = vadd.f32 %v3413, %v3319
  %v3415 = vadd.f32 %v3414, %v3320
  %v3416 = vadd.f32 %v3415, %v3321
  %v3417 = vadd.f32 %v3416, %v3322
  %v3418 = vadd.f32 %v3417, %v3323
  %v3419 = vadd.f32 %v3418, %v3324
  %v3420 = vadd.f32 %v3419, %v3325
  %v3421 = vadd.f32 %v3420, %v3326
  %v3422 = vadd.f32 %v3421, %v3327
  %v3423 = vadd.f32 %v3422, %v3328
  %v3424 = vadd.f32 %v3423, %v3329
  %v3425 = vadd.f32 %v3424, %v3330
  %v3426 = vadd.f32 %v3425, %v3331
  %v3427 = vadd.f32 %v3426, %v3332
  %v3428 = vadd.f32 %v3427, %v3333
  %v3429 = vadd.f32 %v3428, %v3334
  %v3430 = vadd.f32 %v3429, %v3335
  %v3431 = vadd.f32 %v3430, %v3336
  %v3432 = vadd.f32 %v3431, %v3337
  %v3433 = vadd.f32 %v3432, %v3338
  %v3434 = vadd.f32 %v3433, %v3339
  %v3435 = vadd.f32 %v3434, %v3340
  %v3436 = vadd.f32 %v3435, %v3341
  %v3437 = vadd.f32 %v3436, %v3342
  %v3438 = vadd.f32 %v3437, %v3343
  %v3439 = vadd.f32 %v3438, %v3344
  %v3440 = vadd.f32 %v3439, %v3345
  %v3441 = vadd.f32 %v3440, %v3346
  %v3442 = vadd.f32 %v3441, %v3347
  %v3443 = vadd.f32 %v3442, %v3348
  %v3444 = vadd.f32 %v3443, %v3349
  %v3445 = vadd.f32 %v3444, %v3350
  %v3446 = vadd.f32 %v3445, %v3351
  %v3447 = vadd.f32 %v3446, %v3352
  %v3448 = vadd.f32 %v3447, %v3353
  %v3449 = vadd.f32 %v3448, %v3354
  %v3450 = vadd.f32 %v3449, %v3355
  %v3451 = vadd.f32 %v3450, %v3356
  %v3452 = vadd.f32 %v3451, %v3357
  %v3453 = vadd.f32 %v3452, %v3358
  %v3454 = vadd.f32 %v3453, %v3359
  %v3455 = vadd.f32 %v3454, %v3360
  %v3456 = vadd.f32 %v3455, %v3361
  %v3457 = vadd.f32 %v3456, %v3362
  %v3458 = vadd.f32 %v3457, %v3363
  %v3459 = vadd.f32 %v3458, %v3364
  %v3460 = vadd.f32 %v3459, %v3365
  %v3461 = vadd.f32 %v3460, %v3366
  %v3462 = vadd.f32 %v3461, %v3367
  %v3463 = vadd.f32 %v3462, %v3368
  %v3464 = vadd.f32 %v3463, %v3369
  %v3465 = vadd.f32 %v3464, %v3370
  %v3466 = vrot.slane %v3465, 4
  %v3467 = vadd.f32 %v3465, %v3466
  %v3468 = vrot.slane %v3467, 2
  %v3469 = vadd.f32 %v3467, %v3468
  %v3470 = vrot.slane %v3469, 1
  %v3471 = vadd.f32 %v3469, %v3470
  %v3472 = vmul.f32 %v3274, 0.001953125
  %v3473 = vmul.f32 %v3471, 0.001953125
  %v3474 = vmul.f32 %v3472, %v3472
  %v3475 = vsub.f32 %v3473, %v3474
  %v3476 = vmax.f32 %v3475, 0.0
  %v3477 = vld [vmem:[%s2] sm:$0x1]
  %v3478 = vadd.f32 %v3476, 1e-05
  %v3479 = vrsqrt.pop %v3478
  %v3480 = vmul.f32 %v3477, %v3479
  %v3481 = vld [vmem:[%s3] sm:$0x1]
  %v3482 = vmul.f32 %v3472, %v3480
  %v3483 = vsub.f32 %v3481, %v3482
  %v3485 = vlaneseq
  %v3486 = vshrl.u32 %v3485, 7
  %v3487 = vsub.s32 0, %v3486
  %v3488 = vrot.slane %v3480, %v3487
  %v3490 = vmul.f32 %v2696, %v3488
  %v3491 = vmul.f32 %v2699, %v3488
  %v3492 = vmul.f32 %v2704, %v3488
  %v3493 = vmul.f32 %v2707, %v3488
  %v3494 = vmul.f32 %v2712, %v3488
  %v3495 = vmul.f32 %v2715, %v3488
  %v3496 = vmul.f32 %v2720, %v3488
  %v3497 = vmul.f32 %v2723, %v3488
  %v3498 = vmul.f32 %v2728, %v3488
  %v3499 = vmul.f32 %v2731, %v3488
  %v3500 = vmul.f32 %v2736, %v3488
  %v3501 = vmul.f32 %v2739, %v3488
  %v3502 = vmul.f32 %v2744, %v3488
  %v3503 = vmul.f32 %v2747, %v3488
  %v3504 = vmul.f32 %v2752, %v3488
  %v3505 = vmul.f32 %v2755, %v3488
  %v3506 = vmul.f32 %v2760, %v3488
  %v3507 = vmul.f32 %v2763, %v3488
  %v3508 = vmul.f32 %v2768, %v3488
  %v3509 = vmul.f32 %v2771, %v3488
  %v3510 = vmul.f32 %v2776, %v3488
  %v3511 = vmul.f32 %v2779, %v3488
  %v3512 = vmul.f32 %v2784, %v3488
  %v3513 = vmul.f32 %v2787, %v3488
  %v3514 = vmul.f32 %v2792, %v3488
  %v3515 = vmul.f32 %v2795, %v3488
  %v3516 = vmul.f32 %v2800, %v3488
  %v3517 = vmul.f32 %v2803, %v3488
  %v3518 = vmul.f32 %v2808, %v3488
  %v3519 = vmul.f32 %v2811, %v3488
  %v3520 = vmul.f32 %v2816, %v3488
  %v3521 = vmul.f32 %v2819, %v3488
  %v3522 = vmul.f32 %v2824, %v3488
  %v3523 = vmul.f32 %v2827, %v3488
  %v3524 = vmul.f32 %v2832, %v3488
  %v3525 = vmul.f32 %v2835, %v3488
  %v3526 = vmul.f32 %v2840, %v3488
  %v3527 = vmul.f32 %v2843, %v3488
  %v3528 = vmul.f32 %v2848, %v3488
  %v3529 = vmul.f32 %v2851, %v3488
  %v3530 = vmul.f32 %v2856, %v3488
  %v3531 = vmul.f32 %v2859, %v3488
  %v3532 = vmul.f32 %v2864, %v3488
  %v3533 = vmul.f32 %v2867, %v3488
  %v3534 = vmul.f32 %v2872, %v3488
  %v3535 = vmul.f32 %v2875, %v3488
  %v3536 = vmul.f32 %v2880, %v3488
  %v3537 = vmul.f32 %v2883, %v3488
  %v3538 = vmul.f32 %v2888, %v3488
  %v3539 = vmul.f32 %v2891, %v3488
  %v3540 = vmul.f32 %v2896, %v3488
  %v3541 = vmul.f32 %v2899, %v3488
  %v3542 = vmul.f32 %v2904, %v3488
  %v3543 = vmul.f32 %v2907, %v3488
  %v3544 = vmul.f32 %v2912, %v3488
  %v3545 = vmul.f32 %v2915, %v3488
  %v3546 = vmul.f32 %v2920, %v3488
  %v3547 = vmul.f32 %v2923, %v3488
  %v3548 = vmul.f32 %v2928, %v3488
  %v3549 = vmul.f32 %v2931, %v3488
  %v3550 = vmul.f32 %v2936, %v3488
  %v3551 = vmul.f32 %v2939, %v3488
  %v3552 = vmul.f32 %v2944, %v3488
  %v3553 = vmul.f32 %v2947, %v3488
  %v3554 = vmul.f32 %v2952, %v3488
  %v3555 = vmul.f32 %v2955, %v3488
  %v3556 = vmul.f32 %v2960, %v3488
  %v3557 = vmul.f32 %v2963, %v3488
  %v3558 = vmul.f32 %v2968, %v3488
  %v3559 = vmul.f32 %v2971, %v3488
  %v3560 = vmul.f32 %v2976, %v3488
  %v3561 = vmul.f32 %v2979, %v3488
  %v3562 = vmul.f32 %v2984, %v3488
  %v3563 = vmul.f32 %v2987, %v3488
  %v3564 = vmul.f32 %v2992, %v3488
  %v3565 = vmul.f32 %v2995, %v3488
  %v3566 = vmul.f32 %v3000, %v3488
  %v3567 = vmul.f32 %v3003, %v3488
  %v3568 = vmul.f32 %v3008, %v3488
  %v3569 = vmul.f32 %v3011, %v3488
  %v3570 = vmul.f32 %v3016, %v3488
  %v3571 = vmul.f32 %v3019, %v3488
  %v3572 = vmul.f32 %v3024, %v3488
  %v3573 = vmul.f32 %v3027, %v3488
  %v3574 = vmul.f32 %v3032, %v3488
  %v3575 = vmul.f32 %v3035, %v3488
  %v3576 = vmul.f32 %v3040, %v3488
  %v3577 = vmul.f32 %v3043, %v3488
  %v3578 = vmul.f32 %v3048, %v3488
  %v3579 = vmul.f32 %v3051, %v3488
  %v3580 = vmul.f32 %v3056, %v3488
  %v3581 = vmul.f32 %v3059, %v3488
  %v3582 = vmul.f32 %v3064, %v3488
  %v3583 = vmul.f32 %v3067, %v3488
  %v3584 = vmul.f32 %v3072, %v3488
  %v3585 = vmul.f32 %v3075, %v3488
  %v3587 = vlaneseq
  %v3588 = vshrl.u32 %v3587, 7
  %v3589 = vsub.s32 0, %v3588
  %v3590 = vrot.slane %v3483, %v3589
  %v3592 = vadd.f32 %v3490, %v3590
  %v3593 = vadd.f32 %v3491, %v3590
  %v3594 = vadd.f32 %v3492, %v3590
  %v3595 = vadd.f32 %v3493, %v3590
  %v3596 = vadd.f32 %v3494, %v3590
  %v3597 = vadd.f32 %v3495, %v3590
  %v3598 = vadd.f32 %v3496, %v3590
  %v3599 = vadd.f32 %v3497, %v3590
  %v3600 = vadd.f32 %v3498, %v3590
  %v3601 = vadd.f32 %v3499, %v3590
  %v3602 = vadd.f32 %v3500, %v3590
  %v3603 = vadd.f32 %v3501, %v3590
  %v3604 = vadd.f32 %v3502, %v3590
  %v3605 = vadd.f32 %v3503, %v3590
  %v3606 = vadd.f32 %v3504, %v3590
  %v3607 = vadd.f32 %v3505, %v3590
  %v3608 = vadd.f32 %v3506, %v3590
  %v3609 = vadd.f32 %v3507, %v3590
  %v3610 = vadd.f32 %v3508, %v3590
  %v3611 = vadd.f32 %v3509, %v3590
  %v3612 = vadd.f32 %v3510, %v3590
  %v3613 = vadd.f32 %v3511, %v3590
  %v3614 = vadd.f32 %v3512, %v3590
  %v3615 = vadd.f32 %v3513, %v3590
  %v3616 = vadd.f32 %v3514, %v3590
  %v3617 = vadd.f32 %v3515, %v3590
  %v3618 = vadd.f32 %v3516, %v3590
  %v3619 = vadd.f32 %v3517, %v3590
  %v3620 = vadd.f32 %v3518, %v3590
  %v3621 = vadd.f32 %v3519, %v3590
  %v3622 = vadd.f32 %v3520, %v3590
  %v3623 = vadd.f32 %v3521, %v3590
  %v3624 = vadd.f32 %v3522, %v3590
  %v3625 = vadd.f32 %v3523, %v3590
  %v3626 = vadd.f32 %v3524, %v3590
  %v3627 = vadd.f32 %v3525, %v3590
  %v3628 = vadd.f32 %v3526, %v3590
  %v3629 = vadd.f32 %v3527, %v3590
  %v3630 = vadd.f32 %v3528, %v3590
  %v3631 = vadd.f32 %v3529, %v3590
  %v3632 = vadd.f32 %v3530, %v3590
  %v3633 = vadd.f32 %v3531, %v3590
  %v3634 = vadd.f32 %v3532, %v3590
  %v3635 = vadd.f32 %v3533, %v3590
  %v3636 = vadd.f32 %v3534, %v3590
  %v3637 = vadd.f32 %v3535, %v3590
  %v3638 = vadd.f32 %v3536, %v3590
  %v3639 = vadd.f32 %v3537, %v3590
  %v3640 = vadd.f32 %v3538, %v3590
  %v3641 = vadd.f32 %v3539, %v3590
  %v3642 = vadd.f32 %v3540, %v3590
  %v3643 = vadd.f32 %v3541, %v3590
  %v3644 = vadd.f32 %v3542, %v3590
  %v3645 = vadd.f32 %v3543, %v3590
  %v3646 = vadd.f32 %v3544, %v3590
  %v3647 = vadd.f32 %v3545, %v3590
  %v3648 = vadd.f32 %v3546, %v3590
  %v3649 = vadd.f32 %v3547, %v3590
  %v3650 = vadd.f32 %v3548, %v3590
  %v3651 = vadd.f32 %v3549, %v3590
  %v3652 = vadd.f32 %v3550, %v3590
  %v3653 = vadd.f32 %v3551, %v3590
  %v3654 = vadd.f32 %v3552, %v3590
  %v3655 = vadd.f32 %v3553, %v3590
  %v3656 = vadd.f32 %v3554, %v3590
  %v3657 = vadd.f32 %v3555, %v3590
  %v3658 = vadd.f32 %v3556, %v3590
  %v3659 = vadd.f32 %v3557, %v3590
  %v3660 = vadd.f32 %v3558, %v3590
  %v3661 = vadd.f32 %v3559, %v3590
  %v3662 = vadd.f32 %v3560, %v3590
  %v3663 = vadd.f32 %v3561, %v3590
  %v3664 = vadd.f32 %v3562, %v3590
  %v3665 = vadd.f32 %v3563, %v3590
  %v3666 = vadd.f32 %v3564, %v3590
  %v3667 = vadd.f32 %v3565, %v3590
  %v3668 = vadd.f32 %v3566, %v3590
  %v3669 = vadd.f32 %v3567, %v3590
  %v3670 = vadd.f32 %v3568, %v3590
  %v3671 = vadd.f32 %v3569, %v3590
  %v3672 = vadd.f32 %v3570, %v3590
  %v3673 = vadd.f32 %v3571, %v3590
  %v3674 = vadd.f32 %v3572, %v3590
  %v3675 = vadd.f32 %v3573, %v3590
  %v3676 = vadd.f32 %v3574, %v3590
  %v3677 = vadd.f32 %v3575, %v3590
  %v3678 = vadd.f32 %v3576, %v3590
  %v3679 = vadd.f32 %v3577, %v3590
  %v3680 = vadd.f32 %v3578, %v3590
  %v3681 = vadd.f32 %v3579, %v3590
  %v3682 = vadd.f32 %v3580, %v3590
  %v3683 = vadd.f32 %v3581, %v3590
  %v3684 = vadd.f32 %v3582, %v3590
  %v3685 = vadd.f32 %v3583, %v3590
  %v3686 = vadd.f32 %v3584, %v3590
  %v3687 = vadd.f32 %v3585, %v3590
  %v3688 = vmax.f32 %v3592, 0.0
  %v3689 = vmax.f32 %v3593, 0.0
  %v3690 = vmax.f32 %v3594, 0.0
  %v3691 = vmax.f32 %v3595, 0.0
  %v3692 = vmax.f32 %v3596, 0.0
  %v3693 = vmax.f32 %v3597, 0.0
  %v3694 = vmax.f32 %v3598, 0.0
  %v3695 = vmax.f32 %v3599, 0.0
  %v3696 = vmax.f32 %v3600, 0.0
  %v3697 = vmax.f32 %v3601, 0.0
  %v3698 = vmax.f32 %v3602, 0.0
  %v3699 = vmax.f32 %v3603, 0.0
  %v3700 = vmax.f32 %v3604, 0.0
  %v3701 = vmax.f32 %v3605, 0.0
  %v3702 = vmax.f32 %v3606, 0.0
  %v3703 = vmax.f32 %v3607, 0.0
  %v3704 = vmax.f32 %v3608, 0.0
  %v3705 = vmax.f32 %v3609, 0.0
  %v3706 = vmax.f32 %v3610, 0.0
  %v3707 = vmax.f32 %v3611, 0.0
  %v3708 = vmax.f32 %v3612, 0.0
  %v3709 = vmax.f32 %v3613, 0.0
  %v3710 = vmax.f32 %v3614, 0.0
  %v3711 = vmax.f32 %v3615, 0.0
  %v3712 = vmax.f32 %v3616, 0.0
  %v3713 = vmax.f32 %v3617, 0.0
  %v3714 = vmax.f32 %v3618, 0.0
  %v3715 = vmax.f32 %v3619, 0.0
  %v3716 = vmax.f32 %v3620, 0.0
  %v3717 = vmax.f32 %v3621, 0.0
  %v3718 = vmax.f32 %v3622, 0.0
  %v3719 = vmax.f32 %v3623, 0.0
  %v3720 = vmax.f32 %v3624, 0.0
  %v3721 = vmax.f32 %v3625, 0.0
  %v3722 = vmax.f32 %v3626, 0.0
  %v3723 = vmax.f32 %v3627, 0.0
  %v3724 = vmax.f32 %v3628, 0.0
  %v3725 = vmax.f32 %v3629, 0.0
  %v3726 = vmax.f32 %v3630, 0.0
  %v3727 = vmax.f32 %v3631, 0.0
  %v3728 = vmax.f32 %v3632, 0.0
  %v3729 = vmax.f32 %v3633, 0.0
  %v3730 = vmax.f32 %v3634, 0.0
  %v3731 = vmax.f32 %v3635, 0.0
  %v3732 = vmax.f32 %v3636, 0.0
  %v3733 = vmax.f32 %v3637, 0.0
  %v3734 = vmax.f32 %v3638, 0.0
  %v3735 = vmax.f32 %v3639, 0.0
  %v3736 = vmax.f32 %v3640, 0.0
  %v3737 = vmax.f32 %v3641, 0.0
  %v3738 = vmax.f32 %v3642, 0.0
  %v3739 = vmax.f32 %v3643, 0.0
  %v3740 = vmax.f32 %v3644, 0.0
  %v3741 = vmax.f32 %v3645, 0.0
  %v3742 = vmax.f32 %v3646, 0.0
  %v3743 = vmax.f32 %v3647, 0.0
  %v3744 = vmax.f32 %v3648, 0.0
  %v3745 = vmax.f32 %v3649, 0.0
  %v3746 = vmax.f32 %v3650, 0.0
  %v3747 = vmax.f32 %v3651, 0.0
  %v3748 = vmax.f32 %v3652, 0.0
  %v3749 = vmax.f32 %v3653, 0.0
  %v3750 = vmax.f32 %v3654, 0.0
  %v3751 = vmax.f32 %v3655, 0.0
  %v3752 = vmax.f32 %v3656, 0.0
  %v3753 = vmax.f32 %v3657, 0.0
  %v3754 = vmax.f32 %v3658, 0.0
  %v3755 = vmax.f32 %v3659, 0.0
  %v3756 = vmax.f32 %v3660, 0.0
  %v3757 = vmax.f32 %v3661, 0.0
  %v3758 = vmax.f32 %v3662, 0.0
  %v3759 = vmax.f32 %v3663, 0.0
  %v3760 = vmax.f32 %v3664, 0.0
  %v3761 = vmax.f32 %v3665, 0.0
  %v3762 = vmax.f32 %v3666, 0.0
  %v3763 = vmax.f32 %v3667, 0.0
  %v3764 = vmax.f32 %v3668, 0.0
  %v3765 = vmax.f32 %v3669, 0.0
  %v3766 = vmax.f32 %v3670, 0.0
  %v3767 = vmax.f32 %v3671, 0.0
  %v3768 = vmax.f32 %v3672, 0.0
  %v3769 = vmax.f32 %v3673, 0.0
  %v3770 = vmax.f32 %v3674, 0.0
  %v3771 = vmax.f32 %v3675, 0.0
  %v3772 = vmax.f32 %v3676, 0.0
  %v3773 = vmax.f32 %v3677, 0.0
  %v3774 = vmax.f32 %v3678, 0.0
  %v3775 = vmax.f32 %v3679, 0.0
  %v3776 = vmax.f32 %v3680, 0.0
  %v3777 = vmax.f32 %v3681, 0.0
  %v3778 = vmax.f32 %v3682, 0.0
  %v3779 = vmax.f32 %v3683, 0.0
  %v3780 = vmax.f32 %v3684, 0.0
  %v3781 = vmax.f32 %v3685, 0.0
  %v3782 = vmax.f32 %v3686, 0.0
  %v3783 = vmax.f32 %v3687, 0.0
  %v3784 = vmul.f32 %v3688, %v2044
  %v3785 = vmul.f32 %v3689, %v2045
  %v3786 = vmul.f32 %v3690, %v2046
  %v3787 = vmul.f32 %v3691, %v2047
  %v3788 = vmul.f32 %v3692, %v2048
  %v3789 = vmul.f32 %v3693, %v2049
  %v3790 = vmul.f32 %v3694, %v2050
  %v3791 = vmul.f32 %v3695, %v2051
  %v3792 = vmul.f32 %v3696, %v2052
  %v3793 = vmul.f32 %v3697, %v2053
  %v3794 = vmul.f32 %v3698, %v2054
  %v3795 = vmul.f32 %v3699, %v2055
  %v3796 = vmul.f32 %v3700, %v2056
  %v3797 = vmul.f32 %v3701, %v2057
  %v3798 = vmul.f32 %v3702, %v2058
  %v3799 = vmul.f32 %v3703, %v2059
  %v3800 = vmul.f32 %v3704, %v2060
  %v3801 = vmul.f32 %v3705, %v2061
  %v3802 = vmul.f32 %v3706, %v2062
  %v3803 = vmul.f32 %v3707, %v2063
  %v3804 = vmul.f32 %v3708, %v2064
  %v3805 = vmul.f32 %v3709, %v2065
  %v3806 = vmul.f32 %v3710, %v2066
  %v3807 = vmul.f32 %v3711, %v2067
  %v3808 = vmul.f32 %v3712, %v2068
  %v3809 = vmul.f32 %v3713, %v2069
  %v3810 = vmul.f32 %v3714, %v2070
  %v3811 = vmul.f32 %v3715, %v2071
  %v3812 = vmul.f32 %v3716, %v2072
  %v3813 = vmul.f32 %v3717, %v2073
  %v3814 = vmul.f32 %v3718, %v2074
  %v3815 = vmul.f32 %v3719, %v2075
  %v3816 = vmul.f32 %v3720, %v2076
  %v3817 = vmul.f32 %v3721, %v2077
  %v3818 = vmul.f32 %v3722, %v2078
  %v3819 = vmul.f32 %v3723, %v2079
  %v3820 = vmul.f32 %v3724, %v2080
  %v3821 = vmul.f32 %v3725, %v2081
  %v3822 = vmul.f32 %v3726, %v2082
  %v3823 = vmul.f32 %v3727, %v2083
  %v3824 = vmul.f32 %v3728, %v2084
  %v3825 = vmul.f32 %v3729, %v2085
  %v3826 = vmul.f32 %v3730, %v2086
  %v3827 = vmul.f32 %v3731, %v2087
  %v3828 = vmul.f32 %v3732, %v2088
  %v3829 = vmul.f32 %v3733, %v2089
  %v3830 = vmul.f32 %v3734, %v2090
  %v3831 = vmul.f32 %v3735, %v2091
  %v3832 = vmul.f32 %v3736, %v2092
  %v3833 = vmul.f32 %v3737, %v2093
  %v3834 = vmul.f32 %v3738, %v2094
  %v3835 = vmul.f32 %v3739, %v2095
  %v3836 = vmul.f32 %v3740, %v2096
  %v3837 = vmul.f32 %v3741, %v2097
  %v3838 = vmul.f32 %v3742, %v2098
  %v3839 = vmul.f32 %v3743, %v2099
  %v3840 = vmul.f32 %v3744, %v2100
  %v3841 = vmul.f32 %v3745, %v2101
  %v3842 = vmul.f32 %v3746, %v2102
  %v3843 = vmul.f32 %v3747, %v2103
  %v3844 = vmul.f32 %v3748, %v2104
  %v3845 = vmul.f32 %v3749, %v2105
  %v3846 = vmul.f32 %v3750, %v2106
  %v3847 = vmul.f32 %v3751, %v2107
  %v3848 = vmul.f32 %v3752, %v2108
  %v3849 = vmul.f32 %v3753, %v2109
  %v3850 = vmul.f32 %v3754, %v2110
  %v3851 = vmul.f32 %v3755, %v2111
  %v3852 = vmul.f32 %v3756, %v2112
  %v3853 = vmul.f32 %v3757, %v2113
  %v3854 = vmul.f32 %v3758, %v2114
  %v3855 = vmul.f32 %v3759, %v2115
  %v3856 = vmul.f32 %v3760, %v2116
  %v3857 = vmul.f32 %v3761, %v2117
  %v3858 = vmul.f32 %v3762, %v2118
  %v3859 = vmul.f32 %v3763, %v2119
  %v3860 = vmul.f32 %v3764, %v2120
  %v3861 = vmul.f32 %v3765, %v2121
  %v3862 = vmul.f32 %v3766, %v2122
  %v3863 = vmul.f32 %v3767, %v2123
  %v3864 = vmul.f32 %v3768, %v2124
  %v3865 = vmul.f32 %v3769, %v2125
  %v3866 = vmul.f32 %v3770, %v2126
  %v3867 = vmul.f32 %v3771, %v2127
  %v3868 = vmul.f32 %v3772, %v2128
  %v3869 = vmul.f32 %v3773, %v2129
  %v3870 = vmul.f32 %v3774, %v2130
  %v3871 = vmul.f32 %v3775, %v2131
  %v3872 = vmul.f32 %v3776, %v2132
  %v3873 = vmul.f32 %v3777, %v2133
  %v3874 = vmul.f32 %v3778, %v2134
  %v3875 = vmul.f32 %v3779, %v2135
  %v3876 = vmul.f32 %v3780, %v2136
  %v3877 = vmul.f32 %v3781, %v2137
  %v3878 = vmul.f32 %v3782, %v2138
  %v3879 = vmul.f32 %v3783, %v2139
  %3880 = vst [vmem:[#allocation2] sm:$0xff] 0
  %3881 = vst [vmem:[#allocation2 + $0x8] sm:$0xff] 0
  %3882 = vst [vmem:[#allocation2 + $0x10] sm:$0xff] 0
  %3883 = vst [vmem:[#allocation2 + $0xf0] sm:$0xff] 0
  %3884 = vst [vmem:[#allocation2 + $0xf8] sm:$0xff] 0
  %3885 = vst [vmem:[#allocation2 + $0x100] sm:$0xff] 0
  %3886 = vst [vmem:[#allocation2 + $0xd8] sm:$0xff] 0
  %3887 = vst [vmem:[#allocation2 + $0xe0] sm:$0xff] 0
  %3888 = vst [vmem:[#allocation2 + $0xe8] sm:$0xff] 0
  %3889 = vst [vmem:[#allocation2 + $0x1c8] sm:$0xff] 0
  %3890 = vst [vmem:[#allocation2 + $0x1d0] sm:$0xff] 0
  %3891 = vst [vmem:[#allocation2 + $0x1d8] sm:$0xff] 0
  %v3892 = vpack.c.bf16 %v3785, %v3784
  %v3893 = vpack.c.bf16 %v3787, %v3786
  %v3894 = vpack.c.bf16 %v3789, %v3788
  %v3895 = vpack.c.bf16 %v3791, %v3790
  %v3896 = vpack.c.bf16 %v3793, %v3792
  %v3897 = vpack.c.bf16 %v3795, %v3794
  %v3898 = vpack.c.bf16 %v3797, %v3796
  %v3899 = vpack.c.bf16 %v3799, %v3798
  %v3900 = vpack.c.bf16 %v3801, %v3800
  %v3901 = vpack.c.bf16 %v3803, %v3802
  %v3902 = vpack.c.bf16 %v3805, %v3804
  %v3903 = vpack.c.bf16 %v3807, %v3806
  %v3904 = vpack.c.bf16 %v3809, %v3808
  %v3905 = vpack.c.bf16 %v3811, %v3810
  %v3906 = vpack.c.bf16 %v3813, %v3812
  %v3907 = vpack.c.bf16 %v3815, %v3814
  %v3908 = vpack.c.bf16 %v3817, %v3816
  %v3909 = vpack.c.bf16 %v3819, %v3818
  %v3910 = vpack.c.bf16 %v3821, %v3820
  %v3911 = vpack.c.bf16 %v3823, %v3822
  %v3912 = vpack.c.bf16 %v3825, %v3824
  %v3913 = vpack.c.bf16 %v3827, %v3826
  %v3914 = vpack.c.bf16 %v3829, %v3828
  %v3915 = vpack.c.bf16 %v3831, %v3830
  %v3916 = vpack.c.bf16 %v3833, %v3832
  %v3917 = vpack.c.bf16 %v3835, %v3834
  %v3918 = vpack.c.bf16 %v3837, %v3836
  %v3919 = vpack.c.bf16 %v3839, %v3838
  %v3920 = vpack.c.bf16 %v3841, %v3840
  %v3921 = vpack.c.bf16 %v3843, %v3842
  %v3922 = vpack.c.bf16 %v3845, %v3844
  %v3923 = vpack.c.bf16 %v3847, %v3846
  %v3924 = vpack.c.bf16 %v3849, %v3848
  %v3925 = vpack.c.bf16 %v3851, %v3850
  %v3926 = vpack.c.bf16 %v3853, %v3852
  %v3927 = vpack.c.bf16 %v3855, %v3854
  %v3928 = vpack.c.bf16 %v3857, %v3856
  %v3929 = vpack.c.bf16 %v3859, %v3858
  %v3930 = vpack.c.bf16 %v3861, %v3860
  %v3931 = vpack.c.bf16 %v3863, %v3862
  %v3932 = vpack.c.bf16 %v3865, %v3864
  %v3933 = vpack.c.bf16 %v3867, %v3866
  %v3934 = vpack.c.bf16 %v3869, %v3868
  %v3935 = vpack.c.bf16 %v3871, %v3870
  %v3936 = vpack.c.bf16 %v3873, %v3872
  %v3937 = vpack.c.bf16 %v3875, %v3874
  %v3938 = vpack.c.bf16 %v3877, %v3876
  %v3939 = vpack.c.bf16 %v3879, %v3878
  %3940 = vst [vmem:[#allocation2 + $0x18] sm:$0xff] %v3892
  %3941 = vst [vmem:[#allocation2 + $0x20] sm:$0xff] %v3893
  %3942 = vst [vmem:[#allocation2 + $0x28] sm:$0xff] %v3894
  %3943 = vst [vmem:[#allocation2 + $0x30] sm:$0xff] %v3895
  %3944 = vst [vmem:[#allocation2 + $0x38] sm:$0xff] %v3896
  %3945 = vst [vmem:[#allocation2 + $0x40] sm:$0xff] %v3897
  %3946 = vst [vmem:[#allocation2 + $0x48] sm:$0xff] %v3898
  %3947 = vst [vmem:[#allocation2 + $0x50] sm:$0xff] %v3899
  %3948 = vst [vmem:[#allocation2 + $0x58] sm:$0xff] %v3900
  %3949 = vst [vmem:[#allocation2 + $0x60] sm:$0xff] %v3901
  %3950 = vst [vmem:[#allocation2 + $0x68] sm:$0xff] %v3902
  %3951 = vst [vmem:[#allocation2 + $0x70] sm:$0xff] %v3903
  %3952 = vst [vmem:[#allocation2 + $0x78] sm:$0xff] %v3904
  %3953 = vst [vmem:[#allocation2 + $0x80] sm:$0xff] %v3905
  %3954 = vst [vmem:[#allocation2 + $0x88] sm:$0xff] %v3906
  %3955 = vst [vmem:[#allocation2 + $0x90] sm:$0xff] %v3907
  %3956 = vst [vmem:[#allocation2 + $0x98] sm:$0xff] %v3908
  %3957 = vst [vmem:[#allocation2 + $0xa0] sm:$0xff] %v3909
  %3958 = vst [vmem:[#allocation2 + $0xa8] sm:$0xff] %v3910
  %3959 = vst [vmem:[#allocation2 + $0xb0] sm:$0xff] %v3911
  %3960 = vst [vmem:[#allocation2 + $0xb8] sm:$0xff] %v3912
  %3961 = vst [vmem:[#allocation2 + $0xc0] sm:$0xff] %v3913
  %3962 = vst [vmem:[#allocation2 + $0xc8] sm:$0xff] %v3914
  %3963 = vst [vmem:[#allocation2 + $0xd0] sm:$0xff] %v3915
  %3964 = vst [vmem:[#allocation2 + $0x108] sm:$0xff] %v3916
  %3965 = vst [vmem:[#allocation2 + $0x110] sm:$0xff] %v3917
  %3966 = vst [vmem:[#allocation2 + $0x118] sm:$0xff] %v3918
  %3967 = vst [vmem:[#allocation2 + $0x120] sm:$0xff] %v3919
  %3968 = vst [vmem:[#allocation2 + $0x128] sm:$0xff] %v3920
  %3969 = vst [vmem:[#allocation2 + $0x130] sm:$0xff] %v3921
  %3970 = vst [vmem:[#allocation2 + $0x138] sm:$0xff] %v3922
  %3971 = vst [vmem:[#allocation2 + $0x140] sm:$0xff] %v3923
  %3972 = vst [vmem:[#allocation2 + $0x148] sm:$0xff] %v3924
  %3973 = vst [vmem:[#allocation2 + $0x150] sm:$0xff] %v3925
  %3974 = vst [vmem:[#allocation2 + $0x158] sm:$0xff] %v3926
  %3975 = vst [vmem:[#allocation2 + $0x160] sm:$0xff] %v3927
  %3976 = vst [vmem:[#allocation2 + $0x168] sm:$0xff] %v3928
  %3977 = vst [vmem:[#allocation2 + $0x170] sm:$0xff] %v3929
  %3978 = vst [vmem:[#allocation2 + $0x178] sm:$0xff] %v3930
  %3979 = vst [vmem:[#allocation2 + $0x180] sm:$0xff] %v3931
  %3980 = vst [vmem:[#allocation2 + $0x188] sm:$0xff] %v3932
  %3981 = vst [vmem:[#allocation2 + $0x190] sm:$0xff] %v3933
  %3982 = vst [vmem:[#allocation2 + $0x198] sm:$0xff] %v3934
  %3983 = vst [vmem:[#allocation2 + $0x1a0] sm:$0xff] %v3935
  %3984 = vst [vmem:[#allocation2 + $0x1a8] sm:$0xff] %v3936
  %3985 = vst [vmem:[#allocation2 + $0x1b0] sm:$0xff] %v3937
  %3986 = vst [vmem:[#allocation2 + $0x1b8] sm:$0xff] %v3938
  %3987 = vst [vmem:[#allocation2 + $0x1c0] sm:$0xff] %v3939
  %v3988 = vld [vmem:[#allocation2 + $0x8] sm:$0xf8]
  %v3989 = vld [vmem:[#allocation2 + $0x10] sm:$0xff]
  %v3990 = vld [vmem:[#allocation2 + $0x18] sm:$0xff]
  %v3991 = vld [vmem:[#allocation2 + $0x20] sm:$0xff]
  %v3992 = vld [vmem:[#allocation2 + $0x28] sm:$0xff]
  %v3993 = vld [vmem:[#allocation2 + $0x30] sm:$0xff]
  %v3994 = vld [vmem:[#allocation2 + $0x38] sm:$0xff]
  %v3995 = vld [vmem:[#allocation2 + $0x40] sm:$0xff]
  %v3996 = vld [vmem:[#allocation2 + $0x48] sm:$0xff]
  %v3997 = vld [vmem:[#allocation2 + $0x50] sm:$0xff]
  %v3998 = vld [vmem:[#allocation2 + $0x58] sm:$0xff]
  %v3999 = vld [vmem:[#allocation2 + $0x60] sm:$0xff]
  %v4000 = vld [vmem:[#allocation2 + $0x68] sm:$0xff]
  %v4001 = vld [vmem:[#allocation2 + $0x70] sm:$0xff]
  %v4002 = vld [vmem:[#allocation2 + $0x78] sm:$0xff]
  %v4003 = vld [vmem:[#allocation2 + $0x80] sm:$0xff]
  %v4004 = vld [vmem:[#allocation2 + $0x88] sm:$0xff]
  %v4005 = vld [vmem:[#allocation2 + $0x90] sm:$0xff]
  %v4006 = vld [vmem:[#allocation2 + $0x98] sm:$0xff]
  %v4007 = vld [vmem:[#allocation2 + $0xa0] sm:$0xff]
  %v4008 = vld [vmem:[#allocation2 + $0xa8] sm:$0xff]
  %v4009 = vld [vmem:[#allocation2 + $0xb0] sm:$0xff]
  %v4010 = vld [vmem:[#allocation2 + $0xb8] sm:$0xff]
  %v4011 = vld [vmem:[#allocation2 + $0xc0] sm:$0xff]
  %v4012 = vld [vmem:[#allocation2 + $0xc8] sm:$0xf]
  %v4013 = vld [vmem:[#allocation2 + $0xf8] sm:$0xf8]
  %v4014 = vld [vmem:[#allocation2 + $0x100] sm:$0xff]
  %v4015 = vld [vmem:[#allocation2 + $0x108] sm:$0xff]
  %v4016 = vld [vmem:[#allocation2 + $0x110] sm:$0xff]
  %v4017 = vld [vmem:[#allocation2 + $0x118] sm:$0xff]
  %v4018 = vld [vmem:[#allocation2 + $0x120] sm:$0xff]
  %v4019 = vld [vmem:[#allocation2 + $0x128] sm:$0xff]
  %v4020 = vld [vmem:[#allocation2 + $0x130] sm:$0xff]
  %v4021 = vld [vmem:[#allocation2 + $0x138] sm:$0xff]
  %v4022 = vld [vmem:[#allocation2 + $0x140] sm:$0xff]
  %v4023 = vld [vmem:[#allocation2 + $0x148] sm:$0xff]
  %v4024 = vld [vmem:[#allocation2 + $0x150] sm:$0xff]
  %v4025 = vld [vmem:[#allocation2 + $0x158] sm:$0xff]
  %v4026 = vld [vmem:[#allocation2 + $0x160] sm:$0xff]
  %v4027 = vld [vmem:[#allocation2 + $0x168] sm:$0xff]
  %v4028 = vld [vmem:[#allocation2 + $0x170] sm:$0xff]
  %v4029 = vld [vmem:[#allocation2 + $0x178] sm:$0xff]
  %v4030 = vld [vmem:[#allocation2 + $0x180] sm:$0xff]
  %v4031 = vld [vmem:[#allocation2 + $0x188] sm:$0xff]
  %v4032 = vld [vmem:[#allocation2 + $0x190] sm:$0xff]
  %v4033 = vld [vmem:[#allocation2 + $0x198] sm:$0xff]
  %v4034 = vld [vmem:[#allocation2 + $0x1a0] sm:$0xff]
  %v4035 = vld [vmem:[#allocation2 + $0x1a8] sm:$0xff]
  %v4036 = vld [vmem:[#allocation2 + $0x1b0] sm:$0xff]
  %v4037 = vld [vmem:[#allocation2 + $0x1b8] sm:$0xf]
  %v4038 = vld [vmem:[#allocation2 + $0x8] sm:$0xf0]
  %v4039 = vld [vmem:[#allocation2 + $0xf8] sm:$0xf0]
  %v4040 = vld [vmem:[#allocation2 + $0xc8] sm:$0x1f]
  %v4041 = vld [vmem:[#allocation2 + $0x1b8] sm:$0x1f]
  %v4042 = vld [vmem:[#allocation2 + $0x10] sm:$0x80]
  %v4043 = vld [vmem:[#allocation2 + $0xc8] sm:$0xff]
  %v4044 = vld [vmem:[#allocation2 + $0xd0] sm:$0xff]
  %v4045 = vld [vmem:[#allocation2 + $0x100] sm:$0x80]
  %v4046 = vld [vmem:[#allocation2 + $0x1b8] sm:$0xff]
  %v4047 = vld [vmem:[#allocation2 + $0x1c0] sm:$0xff]
  %v4048 = vld [vmem:[#allocation2 + $0xd8] sm:$0x1]
  %v4049 = vld [vmem:[#allocation2 + $0x1c8] sm:$0x1]
  %v4050 = vld [vmem:[#allocation2 + $0x20] sm:$0xf8]
  %v4051 = vld [vmem:[#allocation2 + $0xd8] sm:$0xff]
  %v4052 = vld [vmem:[#allocation2 + $0xe0] sm:$0xf]
  %v4053 = vld [vmem:[#allocation2 + $0x110] sm:$0xf8]
  %v4054 = vld [vmem:[#allocation2 + $0x1c8] sm:$0xff]
  %v4055 = vld [vmem:[#allocation2 + $0x1d0] sm:$0xf]
  %v4056 = vld [vmem:[#allocation2 + $0x20] sm:$0xf0]
  %v4057 = vld [vmem:[#allocation2 + $0x110] sm:$0xf0]
  %v4058 = vld [vmem:[#allocation2 + $0xe0] sm:$0x1f]
  %v4059 = vld [vmem:[#allocation2 + $0x1d0] sm:$0x1f]
  %vm4060 = vsmask.f32 7424
  %v4062 = vshrl.u32 %v4038, 16
  %v4064 = vshll.u32 %v4038, 16
  %v4066 = vrot.slane %v4064, 1
  %v4067 = vor.u32 %v4062, %v4066
  %v4069 = vshll.u32 %v3989, 16
  %v4071 = vrot.slane %v4069, 1
  %v4072 = vsel %vm4060, %v4067, %v4071
  %v4073 = vshrl.u32 %v3989, 16
  %v4075 = vor.u32 %v4073, %v4071
  %v4077 = vshll.u32 %v3990, 16
  %v4079 = vrot.slane %v4077, 1
  %v4080 = vsel %vm4060, %v4075, %v4079
  %v4081 = vshrl.u32 %v3990, 16
  %v4083 = vor.u32 %v4081, %v4079
  %v4085 = vshll.u32 %v3991, 16
  %v4087 = vrot.slane %v4085, 1
  %v4088 = vsel %vm4060, %v4083, %v4087
  %v4089 = vshrl.u32 %v3991, 16
  %v4091 = vor.u32 %v4089, %v4087
  %v4093 = vshll.u32 %v3992, 16
  %v4095 = vrot.slane %v4093, 1
  %v4096 = vsel %vm4060, %v4091, %v4095
  %v4097 = vshrl.u32 %v3992, 16
  %v4099 = vor.u32 %v4097, %v4095
  %v4101 = vshll.u32 %v3993, 16
  %v4103 = vrot.slane %v4101, 1
  %v4104 = vsel %vm4060, %v4099, %v4103
  %v4105 = vshrl.u32 %v3993, 16
  %v4107 = vor.u32 %v4105, %v4103
  %v4109 = vshll.u32 %v3994, 16
  %v4111 = vrot.slane %v4109, 1
  %v4112 = vsel %vm4060, %v4107, %v4111
  %v4113 = vshrl.u32 %v3994, 16
  %v4115 = vor.u32 %v4113, %v4111
  %v4117 = vshll.u32 %v3995, 16
  %v4119 = vrot.slane %v4117, 1
  %v4120 = vsel %vm4060, %v4115, %v4119
  %v4121 = vshrl.u32 %v3995, 16
  %v4123 = vor.u32 %v4121, %v4119
  %v4125 = vshll.u32 %v3996, 16
  %v4127 = vrot.slane %v4125, 1
  %v4128 = vsel %vm4060, %v4123, %v4127
  %v4129 = vshrl.u32 %v3996, 16
  %v4131 = vor.u32 %v4129, %v4127
  %v4133 = vshll.u32 %v3997, 16
  %v4135 = vrot.slane %v4133, 1
  %v4136 = vsel %vm4060, %v4131, %v4135
  %v4137 = vshrl.u32 %v3997, 16
  %v4139 = vor.u32 %v4137, %v4135
  %v4141 = vshll.u32 %v3998, 16
  %v4143 = vrot.slane %v4141, 1
  %v4144 = vsel %vm4060, %v4139, %v4143
  %v4145 = vshrl.u32 %v3998, 16
  %v4147 = vor.u32 %v4145, %v4143
  %v4149 = vshll.u32 %v3999, 16
  %v4151 = vrot.slane %v4149, 1
  %v4152 = vsel %vm4060, %v4147, %v4151
  %v4153 = vshrl.u32 %v3999, 16
  %v4155 = vor.u32 %v4153, %v4151
  %v4157 = vshll.u32 %v4000, 16
  %v4159 = vrot.slane %v4157, 1
  %v4160 = vsel %vm4060, %v4155, %v4159
  %v4161 = vshrl.u32 %v4000, 16
  %v4163 = vor.u32 %v4161, %v4159
  %v4165 = vshll.u32 %v4001, 16
  %v4167 = vrot.slane %v4165, 1
  %v4168 = vsel %vm4060, %v4163, %v4167
  %v4169 = vshrl.u32 %v4001, 16
  %v4171 = vor.u32 %v4169, %v4167
  %v4173 = vshll.u32 %v4002, 16
  %v4175 = vrot.slane %v4173, 1
  %v4176 = vsel %vm4060, %v4171, %v4175
  %v4177 = vshrl.u32 %v4002, 16
  %v4179 = vor.u32 %v4177, %v4175
  %v4181 = vshll.u32 %v4003, 16
  %v4183 = vrot.slane %v4181, 1
  %v4184 = vsel %vm4060, %v4179, %v4183
  %v4185 = vshrl.u32 %v4003, 16
  %v4187 = vor.u32 %v4185, %v4183
  %v4189 = vshll.u32 %v4004, 16
  %v4191 = vrot.slane %v4189, 1
  %v4192 = vsel %vm4060, %v4187, %v4191
  %v4193 = vshrl.u32 %v4004, 16
  %v4195 = vor.u32 %v4193, %v4191
  %v4197 = vshll.u32 %v4005, 16
  %v4199 = vrot.slane %v4197, 1
  %v4200 = vsel %vm4060, %v4195, %v4199
  %v4201 = vshrl.u32 %v4005, 16
  %v4203 = vor.u32 %v4201, %v4199
  %v4205 = vshll.u32 %v4006, 16
  %v4207 = vrot.slane %v4205, 1
  %v4208 = vsel %vm4060, %v4203, %v4207
  %v4209 = vshrl.u32 %v4006, 16
  %v4211 = vor.u32 %v4209, %v4207
  %v4213 = vshll.u32 %v4007, 16
  %v4215 = vrot.slane %v4213, 1
  %v4216 = vsel %vm4060, %v4211, %v4215
  %v4217 = vshrl.u32 %v4007, 16
  %v4219 = vor.u32 %v4217, %v4215
  %v4221 = vshll.u32 %v4008, 16
  %v4223 = vrot.slane %v4221, 1
  %v4224 = vsel %vm4060, %v4219, %v4223
  %v4225 = vshrl.u32 %v4008, 16
  %v4227 = vor.u32 %v4225, %v4223
  %v4229 = vshll.u32 %v4009, 16
  %v4231 = vrot.slane %v4229, 1
  %v4232 = vsel %vm4060, %v4227, %v4231
  %v4233 = vshrl.u32 %v4009, 16
  %v4235 = vor.u32 %v4233, %v4231
  %v4237 = vshll.u32 %v4010, 16
  %v4239 = vrot.slane %v4237, 1
  %v4240 = vsel %vm4060, %v4235, %v4239
  %v4241 = vshrl.u32 %v4010, 16
  %v4243 = vor.u32 %v4241, %v4239
  %v4245 = vshll.u32 %v4011, 16
  %v4247 = vrot.slane %v4245, 1
  %v4248 = vsel %vm4060, %v4243, %v4247
  %v4249 = vshrl.u32 %v4011, 16
  %v4251 = vor.u32 %v4249, %v4247
  %v4253 = vshll.u32 %v4012, 16
  %v4255 = vrot.slane %v4253, 1
  %v4256 = vsel %vm4060, %v4251, %v4255
  %v4257 = vshrl.u32 %v4012, 16
  %v4259 = vor.u32 %v4257, %v4255
  %v4261 = vshrl.u32 %v4039, 16
  %v4263 = vshll.u32 %v4039, 16
  %v4265 = vrot.slane %v4263, 1
  %v4266 = vor.u32 %v4261, %v4265
  %v4268 = vshll.u32 %v4014, 16
  %v4270 = vrot.slane %v4268, 1
  %v4271 = vsel %vm4060, %v4266, %v4270
  %v4272 = vshrl.u32 %v4014, 16
  %v4274 = vor.u32 %v4272, %v4270
  %v4276 = vshll.u32 %v4015, 16
  %v4278 = vrot.slane %v4276, 1
  %v4279 = vsel %vm4060, %v4274, %v4278
  %v4280 = vshrl.u32 %v4015, 16
  %v4282 = vor.u32 %v4280, %v4278
  %v4284 = vshll.u32 %v4016, 16
  %v4286 = vrot.slane %v4284, 1
  %v4287 = vsel %vm4060, %v4282, %v4286
  %v4288 = vshrl.u32 %v4016, 16
  %v4290 = vor.u32 %v4288, %v4286
  %v4292 = vshll.u32 %v4017, 16
  %v4294 = vrot.slane %v4292, 1
  %v4295 = vsel %vm4060, %v4290, %v4294
  %v4296 = vshrl.u32 %v4017, 16
  %v4298 = vor.u32 %v4296, %v4294
  %v4300 = vshll.u32 %v4018, 16
  %v4302 = vrot.slane %v4300, 1
  %v4303 = vsel %vm4060, %v4298, %v4302
  %v4304 = vshrl.u32 %v4018, 16
  %v4306 = vor.u32 %v4304, %v4302
  %v4308 = vshll.u32 %v4019, 16
  %v4310 = vrot.slane %v4308, 1
  %v4311 = vsel %vm4060, %v4306, %v4310
  %v4312 = vshrl.u32 %v4019, 16
  %v4314 = vor.u32 %v4312, %v4310
  %v4316 = vshll.u32 %v4020, 16
  %v4318 = vrot.slane %v4316, 1
  %v4319 = vsel %vm4060, %v4314, %v4318
  %v4320 = vshrl.u32 %v4020, 16
  %v4322 = vor.u32 %v4320, %v4318
  %v4324 = vshll.u32 %v4021, 16
  %v4326 = vrot.slane %v4324, 1
  %v4327 = vsel %vm4060, %v4322, %v4326
  %v4328 = vshrl.u32 %v4021, 16
  %v4330 = vor.u32 %v4328, %v4326
  %v4332 = vshll.u32 %v4022, 16
  %v4334 = vrot.slane %v4332, 1
  %v4335 = vsel %vm4060, %v4330, %v4334
  %v4336 = vshrl.u32 %v4022, 16
  %v4338 = vor.u32 %v4336, %v4334
  %v4340 = vshll.u32 %v4023, 16
  %v4342 = vrot.slane %v4340, 1
  %v4343 = vsel %vm4060, %v4338, %v4342
  %v4344 = vshrl.u32 %v4023, 16
  %v4346 = vor.u32 %v4344, %v4342
  %v4348 = vshll.u32 %v4024, 16
  %v4350 = vrot.slane %v4348, 1
  %v4351 = vsel %vm4060, %v4346, %v4350
  %v4352 = vshrl.u32 %v4024, 16
  %v4354 = vor.u32 %v4352, %v4350
  %v4356 = vshll.u32 %v4025, 16
  %v4358 = vrot.slane %v4356, 1
  %v4359 = vsel %vm4060, %v4354, %v4358
  %v4360 = vshrl.u32 %v4025, 16
  %v4362 = vor.u32 %v4360, %v4358
  %v4364 = vshll.u32 %v4026, 16
  %v4366 = vrot.slane %v4364, 1
  %v4367 = vsel %vm4060, %v4362, %v4366
  %v4368 = vshrl.u32 %v4026, 16
  %v4370 = vor.u32 %v4368, %v4366
  %v4372 = vshll.u32 %v4027, 16
  %v4374 = vrot.slane %v4372, 1
  %v4375 = vsel %vm4060, %v4370, %v4374
  %v4376 = vshrl.u32 %v4027, 16
  %v4378 = vor.u32 %v4376, %v4374
  %v4380 = vshll.u32 %v4028, 16
  %v4382 = vrot.slane %v4380, 1
  %v4383 = vsel %vm4060, %v4378, %v4382
  %v4384 = vshrl.u32 %v4028, 16
  %v4386 = vor.u32 %v4384, %v4382
  %v4388 = vshll.u32 %v4029, 16
  %v4390 = vrot.slane %v4388, 1
  %v4391 = vsel %vm4060, %v4386, %v4390
  %v4392 = vshrl.u32 %v4029, 16
  %v4394 = vor.u32 %v4392, %v4390
  %v4396 = vshll.u32 %v4030, 16
  %v4398 = vrot.slane %v4396, 1
  %v4399 = vsel %vm4060, %v4394, %v4398
  %v4400 = vshrl.u32 %v4030, 16
  %v4402 = vor.u32 %v4400, %v4398
  %v4404 = vshll.u32 %v4031, 16
  %v4406 = vrot.slane %v4404, 1
  %v4407 = vsel %vm4060, %v4402, %v4406
  %v4408 = vshrl.u32 %v4031, 16
  %v4410 = vor.u32 %v4408, %v4406
  %v4412 = vshll.u32 %v4032, 16
  %v4414 = vrot.slane %v4412, 1
  %v4415 = vsel %vm4060, %v4410, %v4414
  %v4416 = vshrl.u32 %v4032, 16
  %v4418 = vor.u32 %v4416, %v4414
  %v4420 = vshll.u32 %v4033, 16
  %v4422 = vrot.slane %v4420, 1
  %v4423 = vsel %vm4060, %v4418, %v4422
  %v4424 = vshrl.u32 %v4033, 16
  %v4426 = vor.u32 %v4424, %v4422
  %v4428 = vshll.u32 %v4034, 16
  %v4430 = vrot.slane %v4428, 1
  %v4431 = vsel %vm4060, %v4426, %v4430
  %v4432 = vshrl.u32 %v4034, 16
  %v4434 = vor.u32 %v4432, %v4430
  %v4436 = vshll.u32 %v4035, 16
  %v4438 = vrot.slane %v4436, 1
  %v4439 = vsel %vm4060, %v4434, %v4438
  %v4440 = vshrl.u32 %v4035, 16
  %v4442 = vor.u32 %v4440, %v4438
  %v4444 = vshll.u32 %v4036, 16
  %v4446 = vrot.slane %v4444, 1
  %v4447 = vsel %vm4060, %v4442, %v4446
  %v4448 = vshrl.u32 %v4036, 16
  %v4450 = vor.u32 %v4448, %v4446
  %v4452 = vshll.u32 %v4037, 16
  %v4454 = vrot.slane %v4452, 1
  %v4455 = vsel %vm4060, %v4450, %v4454
  %v4456 = vshrl.u32 %v4037, 16
  %v4458 = vor.u32 %v4456, %v4454
  %vm4509 = vcmask 1046528
  %v4510 = vrot.slane %v4038, 1
  %v4511 = vrot.slane %v3989, 1
  %v4512 = vsel %vm4509, %v4510, %v4511
  %v4513 = vrot.slane %v3990, 1
  %v4514 = vsel %vm4509, %v4511, %v4513
  %v4515 = vrot.slane %v3991, 1
  %v4516 = vsel %vm4509, %v4513, %v4515
  %v4517 = vrot.slane %v3992, 1
  %v4518 = vsel %vm4509, %v4515, %v4517
  %v4519 = vrot.slane %v3993, 1
  %v4520 = vsel %vm4509, %v4517, %v4519
  %v4521 = vrot.slane %v3994, 1
  %v4522 = vsel %vm4509, %v4519, %v4521
  %v4523 = vrot.slane %v3995, 1
  %v4524 = vsel %vm4509, %v4521, %v4523
  %v4525 = vrot.slane %v3996, 1
  %v4526 = vsel %vm4509, %v4523, %v4525
  %v4527 = vrot.slane %v3997, 1
  %v4528 = vsel %vm4509, %v4525, %v4527
  %v4529 = vrot.slane %v3998, 1
  %v4530 = vsel %vm4509, %v4527, %v4529
  %v4531 = vrot.slane %v3999, 1
  %v4532 = vsel %vm4509, %v4529, %v4531
  %v4533 = vrot.slane %v4000, 1
  %v4534 = vsel %vm4509, %v4531, %v4533
  %v4535 = vrot.slane %v4001, 1
  %v4536 = vsel %vm4509, %v4533, %v4535
  %v4537 = vrot.slane %v4002, 1
  %v4538 = vsel %vm4509, %v4535, %v4537
  %v4539 = vrot.slane %v4003, 1
  %v4540 = vsel %vm4509, %v4537, %v4539
  %v4541 = vrot.slane %v4004, 1
  %v4542 = vsel %vm4509, %v4539, %v4541
  %v4543 = vrot.slane %v4005, 1
  %v4544 = vsel %vm4509, %v4541, %v4543
  %v4545 = vrot.slane %v4006, 1
  %v4546 = vsel %vm4509, %v4543, %v4545
  %v4547 = vrot.slane %v4007, 1
  %v4548 = vsel %vm4509, %v4545, %v4547
  %v4549 = vrot.slane %v4008, 1
  %v4550 = vsel %vm4509, %v4547, %v4549
  %v4551 = vrot.slane %v4009, 1
  %v4552 = vsel %vm4509, %v4549, %v4551
  %v4553 = vrot.slane %v4010, 1
  %v4554 = vsel %vm4509, %v4551, %v4553
  %v4555 = vrot.slane %v4011, 1
  %v4556 = vsel %vm4509, %v4553, %v4555
  %v4557 = vrot.slane %v4040, 1
  %v4558 = vsel %vm4509, %v4555, %v4557
  %v4559 = vrot.slane %v4039, 1
  %v4560 = vrot.slane %v4014, 1
  %v4561 = vsel %vm4509, %v4559, %v4560
  %v4562 = vrot.slane %v4015, 1
  %v4563 = vsel %vm4509, %v4560, %v4562
  %v4564 = vrot.slane %v4016, 1
  %v4565 = vsel %vm4509, %v4562, %v4564
  %v4566 = vrot.slane %v4017, 1
  %v4567 = vsel %vm4509, %v4564, %v4566
  %v4568 = vrot.slane %v4018, 1
  %v4569 = vsel %vm4509, %v4566, %v4568
  %v4570 = vrot.slane %v4019, 1
  %v4571 = vsel %vm4509, %v4568, %v4570
  %v4572 = vrot.slane %v4020, 1
  %v4573 = vsel %vm4509, %v4570, %v4572
  %v4574 = vrot.slane %v4021, 1
  %v4575 = vsel %vm4509, %v4572, %v4574
  %v4576 = vrot.slane %v4022, 1
  %v4577 = vsel %vm4509, %v4574, %v4576
  %v4578 = vrot.slane %v4023, 1
  %v4579 = vsel %vm4509, %v4576, %v4578
  %v4580 = vrot.slane %v4024, 1
  %v4581 = vsel %vm4509, %v4578, %v4580
  %v4582 = vrot.slane %v4025, 1
  %v4583 = vsel %vm4509, %v4580, %v4582
  %v4584 = vrot.slane %v4026, 1
  %v4585 = vsel %vm4509, %v4582, %v4584
  %v4586 = vrot.slane %v4027, 1
  %v4587 = vsel %vm4509, %v4584, %v4586
  %v4588 = vrot.slane %v4028, 1
  %v4589 = vsel %vm4509, %v4586, %v4588
  %v4590 = vrot.slane %v4029, 1
  %v4591 = vsel %vm4509, %v4588, %v4590
  %v4592 = vrot.slane %v4030, 1
  %v4593 = vsel %vm4509, %v4590, %v4592
  %v4594 = vrot.slane %v4031, 1
  %v4595 = vsel %vm4509, %v4592, %v4594
  %v4596 = vrot.slane %v4032, 1
  %v4597 = vsel %vm4509, %v4594, %v4596
  %v4598 = vrot.slane %v4033, 1
  %v4599 = vsel %vm4509, %v4596, %v4598
  %v4600 = vrot.slane %v4034, 1
  %v4601 = vsel %vm4509, %v4598, %v4600
  %v4602 = vrot.slane %v4035, 1
  %v4603 = vsel %vm4509, %v4600, %v4602
  %v4604 = vrot.slane %v4036, 1
  %v4605 = vsel %vm4509, %v4602, %v4604
  %v4606 = vrot.slane %v4041, 1
  %v4607 = vsel %vm4509, %v4604, %v4606
  %vm4614 = vcmask 1043456
  %v4615 = vrot.slane %v4042, 4
  %v4616 = vrot.slane %v3990, 4
  %v4617 = vsel %vm4614, %v4615, %v4616
  %v4618 = vrot.slane %v3991, 4
  %v4619 = vsel %vm4614, %v4616, %v4618
  %v4620 = vrot.slane %v3992, 4
  %v4621 = vsel %vm4614, %v4618, %v4620
  %v4622 = vrot.slane %v3993, 4
  %v4623 = vsel %vm4614, %v4620, %v4622
  %v4624 = vrot.slane %v3994, 4
  %v4625 = vsel %vm4614, %v4622, %v4624
  %v4626 = vrot.slane %v3995, 4
  %v4627 = vsel %vm4614, %v4624, %v4626
  %v4628 = vrot.slane %v3996, 4
  %v4629 = vsel %vm4614, %v4626, %v4628
  %v4630 = vrot.slane %v3997, 4
  %v4631 = vsel %vm4614, %v4628, %v4630
  %v4632 = vrot.slane %v3998, 4
  %v4633 = vsel %vm4614, %v4630, %v4632
  %v4634 = vrot.slane %v3999, 4
  %v4635 = vsel %vm4614, %v4632, %v4634
  %v4636 = vrot.slane %v4000, 4
  %v4637 = vsel %vm4614, %v4634, %v4636
  %v4638 = vrot.slane %v4001, 4
  %v4639 = vsel %vm4614, %v4636, %v4638
  %v4640 = vrot.slane %v4002, 4
  %v4641 = vsel %vm4614, %v4638, %v4640
  %v4642 = vrot.slane %v4003, 4
  %v4643 = vsel %vm4614, %v4640, %v4642
  %v4644 = vrot.slane %v4004, 4
  %v4645 = vsel %vm4614, %v4642, %v4644
  %v4646 = vrot.slane %v4005, 4
  %v4647 = vsel %vm4614, %v4644, %v4646
  %v4648 = vrot.slane %v4006, 4
  %v4649 = vsel %vm4614, %v4646, %v4648
  %v4650 = vrot.slane %v4007, 4
  %v4651 = vsel %vm4614, %v4648, %v4650
  %v4652 = vrot.slane %v4008, 4
  %v4653 = vsel %vm4614, %v4650, %v4652
  %v4654 = vrot.slane %v4009, 4
  %v4655 = vsel %vm4614, %v4652, %v4654
  %v4656 = vrot.slane %v4010, 4
  %v4657 = vsel %vm4614, %v4654, %v4656
  %v4658 = vrot.slane %v4011, 4
  %v4659 = vsel %vm4614, %v4656, %v4658
  %v4660 = vrot.slane %v4043, 4
  %v4661 = vsel %vm4614, %v4658, %v4660
  %v4662 = vrot.slane %v4044, 4
  %v4663 = vsel %vm4614, %v4660, %v4662
  %v4664 = vrot.slane %v4045, 4
  %v4665 = vrot.slane %v4015, 4
  %v4666 = vsel %vm4614, %v4664, %v4665
  %v4667 = vrot.slane %v4016, 4
  %v4668 = vsel %vm4614, %v4665, %v4667
  %v4669 = vrot.slane %v4017, 4
  %v4670 = vsel %vm4614, %v4667, %v4669
  %v4671 = vrot.slane %v4018, 4
  %v4672 = vsel %vm4614, %v4669, %v4671
  %v4673 = vrot.slane %v4019, 4
  %v4674 = vsel %vm4614, %v4671, %v4673
  %v4675 = vrot.slane %v4020, 4
  %v4676 = vsel %vm4614, %v4673, %v4675
  %v4677 = vrot.slane %v4021, 4
  %v4678 = vsel %vm4614, %v4675, %v4677
  %v4679 = vrot.slane %v4022, 4
  %v4680 = vsel %vm4614, %v4677, %v4679
  %v4681 = vrot.slane %v4023, 4
  %v4682 = vsel %vm4614, %v4679, %v4681
  %v4683 = vrot.slane %v4024, 4
  %v4684 = vsel %vm4614, %v4681, %v4683
  %v4685 = vrot.slane %v4025, 4
  %v4686 = vsel %vm4614, %v4683, %v4685
  %v4687 = vrot.slane %v4026, 4
  %v4688 = vsel %vm4614, %v4685, %v4687
  %v4689 = vrot.slane %v4027, 4
  %v4690 = vsel %vm4614, %v4687, %v4689
  %v4691 = vrot.slane %v4028, 4
  %v4692 = vsel %vm4614, %v4689, %v4691
  %v4693 = vrot.slane %v4029, 4
  %v4694 = vsel %vm4614, %v4691, %v4693
  %v4695 = vrot.slane %v4030, 4
  %v4696 = vsel %vm4614, %v4693, %v4695
  %v4697 = vrot.slane %v4031, 4
  %v4698 = vsel %vm4614, %v4695, %v4697
  %v4699 = vrot.slane %v4032, 4
  %v4700 = vsel %vm4614, %v4697, %v4699
  %v4701 = vrot.slane %v4033, 4
  %v4702 = vsel %vm4614, %v4699, %v4701
  %v4703 = vrot.slane %v4034, 4
  %v4704 = vsel %vm4614, %v4701, %v4703
  %v4705 = vrot.slane %v4035, 4
  %v4706 = vsel %vm4614, %v4703, %v4705
  %v4707 = vrot.slane %v4036, 4
  %v4708 = vsel %vm4614, %v4705, %v4707
  %v4709 = vrot.slane %v4046, 4
  %v4710 = vsel %vm4614, %v4707, %v4709
  %v4711 = vrot.slane %v4047, 4
  %v4712 = vsel %vm4614, %v4709, %v4711
  %vm4713 = vsmask.f32 3328
  %v4714 = vrot.slane %v4081, 4
  %v4715 = vrot.slane %v4077, 5
  %v4716 = vor.u32 %v4714, %v4715
  %v4717 = vrot.slane %v4089, 4
  %v4718 = vrot.slane %v4085, 5
  %v4719 = vor.u32 %v4717, %v4718
  %v4720 = vsel %vm4713, %v4716, %v4719
  %v4721 = vrot.slane %v4097, 4
  %v4722 = vrot.slane %v4093, 5
  %v4723 = vor.u32 %v4721, %v4722
  %v4724 = vsel %vm4713, %v4719, %v4723
  %v4725 = vrot.slane %v4105, 4
  %v4726 = vrot.slane %v4101, 5
  %v4727 = vor.u32 %v4725, %v4726
  %v4728 = vsel %vm4713, %v4723, %v4727
  %v4729 = vrot.slane %v4113, 4
  %v4730 = vrot.slane %v4109, 5
  %v4731 = vor.u32 %v4729, %v4730
  %v4732 = vsel %vm4713, %v4727, %v4731
  %v4733 = vrot.slane %v4121, 4
  %v4734 = vrot.slane %v4117, 5
  %v4735 = vor.u32 %v4733, %v4734
  %v4736 = vsel %vm4713, %v4731, %v4735
  %v4737 = vrot.slane %v4129, 4
  %v4738 = vrot.slane %v4125, 5
  %v4739 = vor.u32 %v4737, %v4738
  %v4740 = vsel %vm4713, %v4735, %v4739
  %v4741 = vrot.slane %v4137, 4
  %v4742 = vrot.slane %v4133, 5
  %v4743 = vor.u32 %v4741, %v4742
  %v4744 = vsel %vm4713, %v4739, %v4743
  %v4745 = vrot.slane %v4145, 4
  %v4746 = vrot.slane %v4141, 5
  %v4747 = vor.u32 %v4745, %v4746
  %v4748 = vsel %vm4713, %v4743, %v4747
  %v4749 = vrot.slane %v4153, 4
  %v4750 = vrot.slane %v4149, 5
  %v4751 = vor.u32 %v4749, %v4750
  %v4752 = vsel %vm4713, %v4747, %v4751
  %v4753 = vrot.slane %v4161, 4
  %v4754 = vrot.slane %v4157, 5
  %v4755 = vor.u32 %v4753, %v4754
  %v4756 = vsel %vm4713, %v4751, %v4755
  %v4757 = vrot.slane %v4169, 4
  %v4758 = vrot.slane %v4165, 5
  %v4759 = vor.u32 %v4757, %v4758
  %v4760 = vsel %vm4713, %v4755, %v4759
  %v4761 = vrot.slane %v4177, 4
  %v4762 = vrot.slane %v4173, 5
  %v4763 = vor.u32 %v4761, %v4762
  %v4764 = vsel %vm4713, %v4759, %v4763
  %v4765 = vrot.slane %v4185, 4
  %v4766 = vrot.slane %v4181, 5
  %v4767 = vor.u32 %v4765, %v4766
  %v4768 = vsel %vm4713, %v4763, %v4767
  %v4769 = vrot.slane %v4193, 4
  %v4770 = vrot.slane %v4189, 5
  %v4771 = vor.u32 %v4769, %v4770
  %v4772 = vsel %vm4713, %v4767, %v4771
  %v4773 = vrot.slane %v4201, 4
  %v4774 = vrot.slane %v4197, 5
  %v4775 = vor.u32 %v4773, %v4774
  %v4776 = vsel %vm4713, %v4771, %v4775
  %v4777 = vrot.slane %v4209, 4
  %v4778 = vrot.slane %v4205, 5
  %v4779 = vor.u32 %v4777, %v4778
  %v4780 = vsel %vm4713, %v4775, %v4779
  %v4781 = vrot.slane %v4217, 4
  %v4782 = vrot.slane %v4213, 5
  %v4783 = vor.u32 %v4781, %v4782
  %v4784 = vsel %vm4713, %v4779, %v4783
  %v4785 = vrot.slane %v4225, 4
  %v4786 = vrot.slane %v4221, 5
  %v4787 = vor.u32 %v4785, %v4786
  %v4788 = vsel %vm4713, %v4783, %v4787
  %v4789 = vrot.slane %v4233, 4
  %v4790 = vrot.slane %v4229, 5
  %v4791 = vor.u32 %v4789, %v4790
  %v4792 = vsel %vm4713, %v4787, %v4791
  %v4793 = vrot.slane %v4241, 4
  %v4794 = vrot.slane %v4237, 5
  %v4795 = vor.u32 %v4793, %v4794
  %v4796 = vsel %vm4713, %v4791, %v4795
  %v4797 = vrot.slane %v4249, 4
  %v4798 = vrot.slane %v4245, 5
  %v4799 = vor.u32 %v4797, %v4798
  %v4800 = vsel %vm4713, %v4795, %v4799
  %v4802 = vshrl.u32 %v4043, 16
  %v4804 = vrot.slane %v4802, 4
  %v4805 = vshll.u32 %v4043, 16
  %v4807 = vrot.slane %v4805, 5
  %v4808 = vor.u32 %v4804, %v4807
  %v4809 = vsel %vm4713, %v4799, %v4808
  %v4811 = vshrl.u32 %v4044, 16
  %v4813 = vrot.slane %v4811, 4
  %v4814 = vshll.u32 %v4044, 16
  %v4816 = vrot.slane %v4814, 5
  %v4817 = vor.u32 %v4813, %v4816
  %v4818 = vsel %vm4713, %v4808, %v4817
  %v4819 = vrot.slane %v4280, 4
  %v4820 = vrot.slane %v4276, 5
  %v4821 = vor.u32 %v4819, %v4820
  %v4822 = vrot.slane %v4288, 4
  %v4823 = vrot.slane %v4284, 5
  %v4824 = vor.u32 %v4822, %v4823
  %v4825 = vsel %vm4713, %v4821, %v4824
  %v4826 = vrot.slane %v4296, 4
  %v4827 = vrot.slane %v4292, 5
  %v4828 = vor.u32 %v4826, %v4827
  %v4829 = vsel %vm4713, %v4824, %v4828
  %v4830 = vrot.slane %v4304, 4
  %v4831 = vrot.slane %v4300, 5
  %v4832 = vor.u32 %v4830, %v4831
  %v4833 = vsel %vm4713, %v4828, %v4832
  %v4834 = vrot.slane %v4312, 4
  %v4835 = vrot.slane %v4308, 5
  %v4836 = vor.u32 %v4834, %v4835
  %v4837 = vsel %vm4713, %v4832, %v4836
  %v4838 = vrot.slane %v4320, 4
  %v4839 = vrot.slane %v4316, 5
  %v4840 = vor.u32 %v4838, %v4839
  %v4841 = vsel %vm4713, %v4836, %v4840
  %v4842 = vrot.slane %v4328, 4
  %v4843 = vrot.slane %v4324, 5
  %v4844 = vor.u32 %v4842, %v4843
  %v4845 = vsel %vm4713, %v4840, %v4844
  %v4846 = vrot.slane %v4336, 4
  %v4847 = vrot.slane %v4332, 5
  %v4848 = vor.u32 %v4846, %v4847
  %v4849 = vsel %vm4713, %v4844, %v4848
  %v4850 = vrot.slane %v4344, 4
  %v4851 = vrot.slane %v4340, 5
  %v4852 = vor.u32 %v4850, %v4851
  %v4853 = vsel %vm4713, %v4848, %v4852
  %v4854 = vrot.slane %v4352, 4
  %v4855 = vrot.slane %v4348, 5
  %v4856 = vor.u32 %v4854, %v4855
  %v4857 = vsel %vm4713, %v4852, %v4856
  %v4858 = vrot.slane %v4360, 4
  %v4859 = vrot.slane %v4356, 5
  %v4860 = vor.u32 %v4858, %v4859
  %v4861 = vsel %vm4713, %v4856, %v4860
  %v4862 = vrot.slane %v4368, 4
  %v4863 = vrot.slane %v4364, 5
  %v4864 = vor.u32 %v4862, %v4863
  %v4865 = vsel %vm4713, %v4860, %v4864
  %v4866 = vrot.slane %v4376, 4
  %v4867 = vrot.slane %v4372, 5
  %v4868 = vor.u32 %v4866, %v4867
  %v4869 = vsel %vm4713, %v4864, %v4868
  %v4870 = vrot.slane %v4384, 4
  %v4871 = vrot.slane %v4380, 5
  %v4872 = vor.u32 %v4870, %v4871
  %v4873 = vsel %vm4713, %v4868, %v4872
  %v4874 = vrot.slane %v4392, 4
  %v4875 = vrot.slane %v4388, 5
  %v4876 = vor.u32 %v4874, %v4875
  %v4877 = vsel %vm4713, %v4872, %v4876
  %v4878 = vrot.slane %v4400, 4
  %v4879 = vrot.slane %v4396, 5
  %v4880 = vor.u32 %v4878, %v4879
  %v4881 = vsel %vm4713, %v4876, %v4880
  %v4882 = vrot.slane %v4408, 4
  %v4883 = vrot.slane %v4404, 5
  %v4884 = vor.u32 %v4882, %v4883
  %v4885 = vsel %vm4713, %v4880, %v4884
  %v4886 = vrot.slane %v4416, 4
  %v4887 = vrot.slane %v4412, 5
  %v4888 = vor.u32 %v4886, %v4887
  %v4889 = vsel %vm4713, %v4884, %v4888
  %v4890 = vrot.slane %v4424, 4
  %v4891 = vrot.slane %v4420, 5
  %v4892 = vor.u32 %v4890, %v4891
  %v4893 = vsel %vm4713, %v4888, %v4892
  %v4894 = vrot.slane %v4432, 4
  %v4895 = vrot.slane %v4428, 5
  %v4896 = vor.u32 %v4894, %v4895
  %v4897 = vsel %vm4713, %v4892, %v4896
  %v4898 = vrot.slane %v4440, 4
  %v4899 = vrot.slane %v4436, 5
  %v4900 = vor.u32 %v4898, %v4899
  %v4901 = vsel %vm4713, %v4896, %v4900
  %v4902 = vrot.slane %v4448, 4
  %v4903 = vrot.slane %v4444, 5
  %v4904 = vor.u32 %v4902, %v4903
  %v4905 = vsel %vm4713, %v4900, %v4904
  %v4907 = vshrl.u32 %v4046, 16
  %v4909 = vrot.slane %v4907, 4
  %v4910 = vshll.u32 %v4046, 16
  %v4912 = vrot.slane %v4910, 5
  %v4913 = vor.u32 %v4909, %v4912
  %v4914 = vsel %vm4713, %v4904, %v4913
  %v4916 = vshrl.u32 %v4047, 16
  %v4918 = vrot.slane %v4916, 4
  %v4919 = vshll.u32 %v4047, 16
  %v4921 = vrot.slane %v4919, 5
  %v4922 = vor.u32 %v4918, %v4921
  %v4923 = vsel %vm4713, %v4913, %v4922
  %vm4926 = vcmask 1042432
  %v4927 = vrot.slane %v3990, 5
  %v4928 = vrot.slane %v3991, 5
  %v4929 = vsel %vm4926, %v4927, %v4928
  %v4930 = vrot.slane %v3992, 5
  %v4931 = vsel %vm4926, %v4928, %v4930
  %v4932 = vrot.slane %v3993, 5
  %v4933 = vsel %vm4926, %v4930, %v4932
  %v4934 = vrot.slane %v3994, 5
  %v4935 = vsel %vm4926, %v4932, %v4934
  %v4936 = vrot.slane %v3995, 5
  %v4937 = vsel %vm4926, %v4934, %v4936
  %v4938 = vrot.slane %v3996, 5
  %v4939 = vsel %vm4926, %v4936, %v4938
  %v4940 = vrot.slane %v3997, 5
  %v4941 = vsel %vm4926, %v4938, %v4940
  %v4942 = vrot.slane %v3998, 5
  %v4943 = vsel %vm4926, %v4940, %v4942
  %v4944 = vrot.slane %v3999, 5
  %v4945 = vsel %vm4926, %v4942, %v4944
  %v4946 = vrot.slane %v4000, 5
  %v4947 = vsel %vm4926, %v4944, %v4946
  %v4948 = vrot.slane %v4001, 5
  %v4949 = vsel %vm4926, %v4946, %v4948
  %v4950 = vrot.slane %v4002, 5
  %v4951 = vsel %vm4926, %v4948, %v4950
  %v4952 = vrot.slane %v4003, 5
  %v4953 = vsel %vm4926, %v4950, %v4952
  %v4954 = vrot.slane %v4004, 5
  %v4955 = vsel %vm4926, %v4952, %v4954
  %v4956 = vrot.slane %v4005, 5
  %v4957 = vsel %vm4926, %v4954, %v4956
  %v4958 = vrot.slane %v4006, 5
  %v4959 = vsel %vm4926, %v4956, %v4958
  %v4960 = vrot.slane %v4007, 5
  %v4961 = vsel %vm4926, %v4958, %v4960
  %v4962 = vrot.slane %v4008, 5
  %v4963 = vsel %vm4926, %v4960, %v4962
  %v4964 = vrot.slane %v4009, 5
  %v4965 = vsel %vm4926, %v4962, %v4964
  %v4966 = vrot.slane %v4010, 5
  %v4967 = vsel %vm4926, %v4964, %v4966
  %v4968 = vrot.slane %v4011, 5
  %v4969 = vsel %vm4926, %v4966, %v4968
  %v4970 = vrot.slane %v4043, 5
  %v4971 = vsel %vm4926, %v4968, %v4970
  %v4972 = vrot.slane %v4044, 5
  %v4973 = vsel %vm4926, %v4970, %v4972
  %v4974 = vrot.slane %v4048, 5
  %v4975 = vsel %vm4926, %v4972, %v4974
  %v4976 = vrot.slane %v4015, 5
  %v4977 = vrot.slane %v4016, 5
  %v4978 = vsel %vm4926, %v4976, %v4977
  %v4979 = vrot.slane %v4017, 5
  %v4980 = vsel %vm4926, %v4977, %v4979
  %v4981 = vrot.slane %v4018, 5
  %v4982 = vsel %vm4926, %v4979, %v4981
  %v4983 = vrot.slane %v4019, 5
  %v4984 = vsel %vm4926, %v4981, %v4983
  %v4985 = vrot.slane %v4020, 5
  %v4986 = vsel %vm4926, %v4983, %v4985
  %v4987 = vrot.slane %v4021, 5
  %v4988 = vsel %vm4926, %v4985, %v4987
  %v4989 = vrot.slane %v4022, 5
  %v4990 = vsel %vm4926, %v4987, %v4989
  %v4991 = vrot.slane %v4023, 5
  %v4992 = vsel %vm4926, %v4989, %v4991
  %v4993 = vrot.slane %v4024, 5
  %v4994 = vsel %vm4926, %v4991, %v4993
  %v4995 = vrot.slane %v4025, 5
  %v4996 = vsel %vm4926, %v4993, %v4995
  %v4997 = vrot.slane %v4026, 5
  %v4998 = vsel %vm4926, %v4995, %v4997
  %v4999 = vrot.slane %v4027, 5
  %v5000 = vsel %vm4926, %v4997, %v4999
  %v5001 = vrot.slane %v4028, 5
  %v5002 = vsel %vm4926, %v4999, %v5001
  %v5003 = vrot.slane %v4029, 5
  %v5004 = vsel %vm4926, %v5001, %v5003
  %v5005 = vrot.slane %v4030, 5
  %v5006 = vsel %vm4926, %v5003, %v5005
  %v5007 = vrot.slane %v4031, 5
  %v5008 = vsel %vm4926, %v5005, %v5007
  %v5009 = vrot.slane %v4032, 5
  %v5010 = vsel %vm4926, %v5007, %v5009
  %v5011 = vrot.slane %v4033, 5
  %v5012 = vsel %vm4926, %v5009, %v5011
  %v5013 = vrot.slane %v4034, 5
  %v5014 = vsel %vm4926, %v5011, %v5013
  %v5015 = vrot.slane %v4035, 5
  %v5016 = vsel %vm4926, %v5013, %v5015
  %v5017 = vrot.slane %v4036, 5
  %v5018 = vsel %vm4926, %v5015, %v5017
  %v5019 = vrot.slane %v4046, 5
  %v5020 = vsel %vm4926, %v5017, %v5019
  %v5021 = vrot.slane %v4047, 5
  %v5022 = vsel %vm4926, %v5019, %v5021
  %v5023 = vrot.slane %v4049, 5
  %v5024 = vsel %vm4926, %v5021, %v5023
  %v5026 = vshrl.u32 %v4056, 16
  %v5028 = vshll.u32 %v4056, 16
  %v5030 = vrot.slane %v5028, 1
  %v5031 = vor.u32 %v5026, %v5030
  %v5032 = vsel %vm4060, %v5031, %v4095
  %v5033 = vrot.slane %v4805, 1
  %v5034 = vsel %vm4060, %v4251, %v5033
  %v5035 = vor.u32 %v4802, %v5033
  %v5036 = vrot.slane %v4814, 1
  %v5037 = vsel %vm4060, %v5035, %v5036
  %v5038 = vor.u32 %v4811, %v5036
  %v5040 = vshll.u32 %v4051, 16
  %v5042 = vrot.slane %v5040, 1
  %v5043 = vsel %vm4060, %v5038, %v5042
  %v5044 = vshrl.u32 %v4051, 16
  %v5046 = vor.u32 %v5044, %v5042
  %v5048 = vshll.u32 %v4052, 16
  %v5050 = vrot.slane %v5048, 1
  %v5051 = vsel %vm4060, %v5046, %v5050
  %v5052 = vshrl.u32 %v4052, 16
  %v5054 = vor.u32 %v5052, %v5050
  %v5056 = vshrl.u32 %v4057, 16
  %v5058 = vshll.u32 %v4057, 16
  %v5060 = vrot.slane %v5058, 1
  %v5061 = vor.u32 %v5056, %v5060
  %v5062 = vsel %vm4060, %v5061, %v4294
  %v5063 = vrot.slane %v4910, 1
  %v5064 = vsel %vm4060, %v4450, %v5063
  %v5065 = vor.u32 %v4907, %v5063
  %v5066 = vrot.slane %v4919, 1
  %v5067 = vsel %vm4060, %v5065, %v5066
  %v5068 = vor.u32 %v4916, %v5066
  %v5070 = vshll.u32 %v4054, 16
  %v5072 = vrot.slane %v5070, 1
  %v5073 = vsel %vm4060, %v5068, %v5072
  %v5074 = vshrl.u32 %v4054, 16
  %v5076 = vor.u32 %v5074, %v5072
  %v5078 = vshll.u32 %v4055, 16
  %v5080 = vrot.slane %v5078, 1
  %v5081 = vsel %vm4060, %v5076, %v5080
  %v5082 = vshrl.u32 %v4055, 16
  %v5084 = vor.u32 %v5082, %v5080
  %v5091 = vrot.slane %v4056, 1
  %v5092 = vsel %vm4509, %v5091, %v4517
  %v5093 = vrot.slane %v4043, 1
  %v5094 = vsel %vm4509, %v4555, %v5093
  %v5095 = vrot.slane %v4044, 1
  %v5096 = vsel %vm4509, %v5093, %v5095
  %v5097 = vrot.slane %v4051, 1
  %v5098 = vsel %vm4509, %v5095, %v5097
  %v5099 = vrot.slane %v4058, 1
  %v5100 = vsel %vm4509, %v5097, %v5099
  %v5101 = vrot.slane %v4057, 1
  %v5102 = vsel %vm4509, %v5101, %v4566
  %v5103 = vrot.slane %v4046, 1
  %v5104 = vsel %vm4509, %v4604, %v5103
  %v5105 = vrot.slane %v4047, 1
  %v5106 = vsel %vm4509, %v5103, %v5105
  %v5107 = vrot.slane %v4054, 1
  %v5108 = vsel %vm4509, %v5105, %v5107
  %v5109 = vrot.slane %v4059, 1
  %v5110 = vsel %vm4509, %v5107, %v5109
  %vm5111 = vsmask.f32 4352
  %v5113 = vshrl.u32 %v3988, 16
  %v5115 = vrot.slane %v5113, 3
  %v5116 = vshll.u32 %v3988, 16
  %v5118 = vrot.slane %v5116, 4
  %v5119 = vor.u32 %v5115, %v5118
  %v5120 = vrot.slane %v4073, 3
  %v5121 = vrot.slane %v4069, 4
  %v5122 = vor.u32 %v5120, %v5121
  %v5123 = vsel %vm5111, %v5119, %v5122
  %v5125 = vshrl.u32 %v4072, 16
  %v5127 = vrot.slane %v5125, 3
  %v5128 = vshll.u32 %v4072, 16
  %v5130 = vrot.slane %v5128, 4
  %v5131 = vor.u32 %v5127, %v5130
  %v5133 = vshrl.u32 %v4080, 16
  %v5135 = vrot.slane %v5133, 3
  %v5136 = vshll.u32 %v4080, 16
  %v5138 = vrot.slane %v5136, 4
  %v5139 = vor.u32 %v5135, %v5138
  %v5140 = vsel %vm5111, %v5131, %v5139
  %v5142 = vshrl.u32 %v4512, 16
  %v5144 = vrot.slane %v5142, 3
  %v5145 = vshll.u32 %v4512, 16
  %v5147 = vrot.slane %v5145, 4
  %v5148 = vor.u32 %v5144, %v5147
  %v5150 = vshrl.u32 %v4514, 16
  %v5152 = vrot.slane %v5150, 3
  %v5153 = vshll.u32 %v4514, 16
  %v5155 = vrot.slane %v5153, 4
  %v5156 = vor.u32 %v5152, %v5155
  %v5157 = vsel %vm5111, %v5148, %v5156
  %v5159 = vshrl.u32 %v4617, 16
  %v5161 = vrot.slane %v5159, 3
  %v5162 = vshll.u32 %v4617, 16
  %v5164 = vrot.slane %v5162, 4
  %v5165 = vor.u32 %v5161, %v5164
  %v5167 = vshrl.u32 %v4619, 16
  %v5169 = vrot.slane %v5167, 3
  %v5170 = vshll.u32 %v4619, 16
  %v5172 = vrot.slane %v5170, 4
  %v5173 = vor.u32 %v5169, %v5172
  %v5174 = vsel %vm5111, %v5165, %v5173
  %v5176 = vshrl.u32 %v4716, 16
  %v5178 = vrot.slane %v5176, 3
  %v5179 = vshll.u32 %v4716, 16
  %v5181 = vrot.slane %v5179, 4
  %v5182 = vor.u32 %v5178, %v5181
  %v5184 = vshrl.u32 %v4720, 16
  %v5186 = vrot.slane %v5184, 3
  %v5187 = vshll.u32 %v4720, 16
  %v5189 = vrot.slane %v5187, 4
  %v5190 = vor.u32 %v5186, %v5189
  %v5191 = vsel %vm5111, %v5182, %v5190
  %v5193 = vshrl.u32 %v4927, 16
  %v5195 = vrot.slane %v5193, 3
  %v5196 = vshll.u32 %v4927, 16
  %v5198 = vrot.slane %v5196, 4
  %v5199 = vor.u32 %v5195, %v5198
  %v5201 = vshrl.u32 %v4929, 16
  %v5203 = vrot.slane %v5201, 3
  %v5204 = vshll.u32 %v4929, 16
  %v5206 = vrot.slane %v5204, 4
  %v5207 = vor.u32 %v5203, %v5206
  %v5208 = vsel %vm5111, %v5199, %v5207
  %v5210 = vshrl.u32 %v4050, 16
  %v5212 = vrot.slane %v5210, 3
  %v5213 = vshll.u32 %v4050, 16
  %v5215 = vrot.slane %v5213, 4
  %v5216 = vor.u32 %v5212, %v5215
  %v5217 = vrot.slane %v4097, 3
  %v5218 = vrot.slane %v4093, 4
  %v5219 = vor.u32 %v5217, %v5218
  %v5220 = vsel %vm5111, %v5216, %v5219
  %v5222 = vshrl.u32 %v5032, 16
  %v5224 = vrot.slane %v5222, 3
  %v5225 = vshll.u32 %v5032, 16
  %v5227 = vrot.slane %v5225, 4
  %v5228 = vor.u32 %v5224, %v5227
  %v5230 = vshrl.u32 %v4104, 16
  %v5232 = vrot.slane %v5230, 3
  %v5233 = vshll.u32 %v4104, 16
  %v5235 = vrot.slane %v5233, 4
  %v5236 = vor.u32 %v5232, %v5235
  %v5237 = vsel %vm5111, %v5228, %v5236
  %v5239 = vshrl.u32 %v5092, 16
  %v5241 = vrot.slane %v5239, 3
  %v5242 = vshll.u32 %v5092, 16
  %v5244 = vrot.slane %v5242, 4
  %v5245 = vor.u32 %v5241, %v5244
  %v5247 = vshrl.u32 %v4520, 16
  %v5249 = vrot.slane %v5247, 3
  %v5250 = vshll.u32 %v4520, 16
  %v5252 = vrot.slane %v5250, 4
  %v5253 = vor.u32 %v5249, %v5252
  %v5254 = vsel %vm5111, %v5245, %v5253
  %v5255 = vrot.slane %v4081, 3
  %v5256 = vrot.slane %v4077, 4
  %v5257 = vor.u32 %v5255, %v5256
  %v5258 = vsel %vm5111, %v5122, %v5257
  %v5260 = vshrl.u32 %v4088, 16
  %v5262 = vrot.slane %v5260, 3
  %v5263 = vshll.u32 %v4088, 16
  %v5265 = vrot.slane %v5263, 4
  %v5266 = vor.u32 %v5262, %v5265
  %v5267 = vsel %vm5111, %v5139, %v5266
  %v5269 = vshrl.u32 %v4516, 16
  %v5271 = vrot.slane %v5269, 3
  %v5272 = vshll.u32 %v4516, 16
  %v5274 = vrot.slane %v5272, 4
  %v5275 = vor.u32 %v5271, %v5274
  %v5276 = vsel %vm5111, %v5156, %v5275
  %v5278 = vshrl.u32 %v4621, 16
  %v5280 = vrot.slane %v5278, 3
  %v5281 = vshll.u32 %v4621, 16
  %v5283 = vrot.slane %v5281, 4
  %v5284 = vor.u32 %v5280, %v5283
  %v5285 = vsel %vm5111, %v5173, %v5284
  %v5287 = vshrl.u32 %v4724, 16
  %v5289 = vrot.slane %v5287, 3
  %v5290 = vshll.u32 %v4724, 16
  %v5292 = vrot.slane %v5290, 4
  %v5293 = vor.u32 %v5289, %v5292
  %v5294 = vsel %vm5111, %v5190, %v5293
  %v5296 = vshrl.u32 %v4931, 16
  %v5298 = vrot.slane %v5296, 3
  %v5299 = vshll.u32 %v4931, 16
  %v5301 = vrot.slane %v5299, 4
  %v5302 = vor.u32 %v5298, %v5301
  %v5303 = vsel %vm5111, %v5207, %v5302
  %v5304 = vrot.slane %v4105, 3
  %v5305 = vrot.slane %v4101, 4
  %v5306 = vor.u32 %v5304, %v5305
  %v5307 = vsel %vm5111, %v5219, %v5306
  %v5309 = vshrl.u32 %v4112, 16
  %v5311 = vrot.slane %v5309, 3
  %v5312 = vshll.u32 %v4112, 16
  %v5314 = vrot.slane %v5312, 4
  %v5315 = vor.u32 %v5311, %v5314
  %v5316 = vsel %vm5111, %v5236, %v5315
  %v5318 = vshrl.u32 %v4522, 16
  %v5320 = vrot.slane %v5318, 3
  %v5321 = vshll.u32 %v4522, 16
  %v5323 = vrot.slane %v5321, 4
  %v5324 = vor.u32 %v5320, %v5323
  %v5325 = vsel %vm5111, %v5253, %v5324
  %v5326 = vrot.slane %v4089, 3
  %v5327 = vrot.slane %v4085, 4
  %v5328 = vor.u32 %v5326, %v5327
  %v5329 = vsel %vm5111, %v5257, %v5328
  %v5331 = vshrl.u32 %v4096, 16
  %v5333 = vrot.slane %v5331, 3
  %v5334 = vshll.u32 %v4096, 16
  %v5336 = vrot.slane %v5334, 4
  %v5337 = vor.u32 %v5333, %v5336
  %v5338 = vsel %vm5111, %v5266, %v5337
  %v5340 = vshrl.u32 %v4518, 16
  %v5342 = vrot.slane %v5340, 3
  %v5343 = vshll.u32 %v4518, 16
  %v5345 = vrot.slane %v5343, 4
  %v5346 = vor.u32 %v5342, %v5345
  %v5347 = vsel %vm5111, %v5275, %v5346
  %v5349 = vshrl.u32 %v4623, 16
  %v5351 = vrot.slane %v5349, 3
  %v5352 = vshll.u32 %v4623, 16
  %v5354 = vrot.slane %v5352, 4
  %v5355 = vor.u32 %v5351, %v5354
  %v5356 = vsel %vm5111, %v5284, %v5355
  %v5358 = vshrl.u32 %v4728, 16
  %v5360 = vrot.slane %v5358, 3
  %v5361 = vshll.u32 %v4728, 16
  %v5363 = vrot.slane %v5361, 4
  %v5364 = vor.u32 %v5360, %v5363
  %v5365 = vsel %vm5111, %v5293, %v5364
  %v5367 = vshrl.u32 %v4933, 16
  %v5369 = vrot.slane %v5367, 3
  %v5370 = vshll.u32 %v4933, 16
  %v5372 = vrot.slane %v5370, 4
  %v5373 = vor.u32 %v5369, %v5372
  %v5374 = vsel %vm5111, %v5302, %v5373
  %v5375 = vrot.slane %v4113, 3
  %v5376 = vrot.slane %v4109, 4
  %v5377 = vor.u32 %v5375, %v5376
  %v5378 = vsel %vm5111, %v5306, %v5377
  %v5380 = vshrl.u32 %v4120, 16
  %v5382 = vrot.slane %v5380, 3
  %v5383 = vshll.u32 %v4120, 16
  %v5385 = vrot.slane %v5383, 4
  %v5386 = vor.u32 %v5382, %v5385
  %v5387 = vsel %vm5111, %v5315, %v5386
  %v5389 = vshrl.u32 %v4524, 16
  %v5391 = vrot.slane %v5389, 3
  %v5392 = vshll.u32 %v4524, 16
  %v5394 = vrot.slane %v5392, 4
  %v5395 = vor.u32 %v5391, %v5394
  %v5396 = vsel %vm5111, %v5324, %v5395
  %v5397 = vsel %vm5111, %v5328, %v5219
  %v5398 = vsel %vm5111, %v5337, %v5236
  %v5399 = vsel %vm5111, %v5346, %v5253
  %v5401 = vshrl.u32 %v4625, 16
  %v5403 = vrot.slane %v5401, 3
  %v5404 = vshll.u32 %v4625, 16
  %v5406 = vrot.slane %v5404, 4
  %v5407 = vor.u32 %v5403, %v5406
  %v5408 = vsel %vm5111, %v5355, %v5407
  %v5410 = vshrl.u32 %v4732, 16
  %v5412 = vrot.slane %v5410, 3
  %v5413 = vshll.u32 %v4732, 16
  %v5415 = vrot.slane %v5413, 4
  %v5416 = vor.u32 %v5412, %v5415
  %v5417 = vsel %vm5111, %v5364, %v5416
  %v5419 = vshrl.u32 %v4935, 16
  %v5421 = vrot.slane %v5419, 3
  %v5422 = vshll.u32 %v4935, 16
  %v5424 = vrot.slane %v5422, 4
  %v5425 = vor.u32 %v5421, %v5424
  %v5426 = vsel %vm5111, %v5373, %v5425
  %v5427 = vrot.slane %v4121, 3
  %v5428 = vrot.slane %v4117, 4
  %v5429 = vor.u32 %v5427, %v5428
  %v5430 = vsel %vm5111, %v5377, %v5429
  %v5432 = vshrl.u32 %v4128, 16
  %v5434 = vrot.slane %v5432, 3
  %v5435 = vshll.u32 %v4128, 16
  %v5437 = vrot.slane %v5435, 4
  %v5438 = vor.u32 %v5434, %v5437
  %v5439 = vsel %vm5111, %v5386, %v5438
  %v5441 = vshrl.u32 %v4526, 16
  %v5443 = vrot.slane %v5441, 3
  %v5444 = vshll.u32 %v4526, 16
  %v5446 = vrot.slane %v5444, 4
  %v5447 = vor.u32 %v5443, %v5446
  %v5448 = vsel %vm5111, %v5395, %v5447
  %v5450 = vshrl.u32 %v4627, 16
  %v5452 = vrot.slane %v5450, 3
  %v5453 = vshll.u32 %v4627, 16
  %v5455 = vrot.slane %v5453, 4
  %v5456 = vor.u32 %v5452, %v5455
  %v5457 = vsel %vm5111, %v5407, %v5456
  %v5459 = vshrl.u32 %v4736, 16
  %v5461 = vrot.slane %v5459, 3
  %v5462 = vshll.u32 %v4736, 16
  %v5464 = vrot.slane %v5462, 4
  %v5465 = vor.u32 %v5461, %v5464
  %v5466 = vsel %vm5111, %v5416, %v5465
  %v5468 = vshrl.u32 %v4937, 16
  %v5470 = vrot.slane %v5468, 3
  %v5471 = vshll.u32 %v4937, 16
  %v5473 = vrot.slane %v5471, 4
  %v5474 = vor.u32 %v5470, %v5473
  %v5475 = vsel %vm5111, %v5425, %v5474
  %v5476 = vrot.slane %v4129, 3
  %v5477 = vrot.slane %v4125, 4
  %v5478 = vor.u32 %v5476, %v5477
  %v5479 = vsel %vm5111, %v5429, %v5478
  %v5481 = vshrl.u32 %v4136, 16
  %v5483 = vrot.slane %v5481, 3
  %v5484 = vshll.u32 %v4136, 16
  %v5486 = vrot.slane %v5484, 4
  %v5487 = vor.u32 %v5483, %v5486
  %v5488 = vsel %vm5111, %v5438, %v5487
  %v5490 = vshrl.u32 %v4528, 16
  %v5492 = vrot.slane %v5490, 3
  %v5493 = vshll.u32 %v4528, 16
  %v5495 = vrot.slane %v5493, 4
  %v5496 = vor.u32 %v5492, %v5495
  %v5497 = vsel %vm5111, %v5447, %v5496
  %v5499 = vshrl.u32 %v4629, 16
  %v5501 = vrot.slane %v5499, 3
  %v5502 = vshll.u32 %v4629, 16
  %v5504 = vrot.slane %v5502, 4
  %v5505 = vor.u32 %v5501, %v5504
  %v5506 = vsel %vm5111, %v5456, %v5505
  %v5508 = vshrl.u32 %v4740, 16
  %v5510 = vrot.slane %v5508, 3
  %v5511 = vshll.u32 %v4740, 16
  %v5513 = vrot.slane %v5511, 4
  %v5514 = vor.u32 %v5510, %v5513
  %v5515 = vsel %vm5111, %v5465, %v5514
  %v5517 = vshrl.u32 %v4939, 16
  %v5519 = vrot.slane %v5517, 3
  %v5520 = vshll.u32 %v4939, 16
  %v5522 = vrot.slane %v5520, 4
  %v5523 = vor.u32 %v5519, %v5522
  %v5524 = vsel %vm5111, %v5474, %v5523
  %v5525 = vrot.slane %v4137, 3
  %v5526 = vrot.slane %v4133, 4
  %v5527 = vor.u32 %v5525, %v5526
  %v5528 = vsel %vm5111, %v5478, %v5527
  %v5530 = vshrl.u32 %v4144, 16
  %v5532 = vrot.slane %v5530, 3
  %v5533 = vshll.u32 %v4144, 16
  %v5535 = vrot.slane %v5533, 4
  %v5536 = vor.u32 %v5532, %v5535
  %v5537 = vsel %vm5111, %v5487, %v5536
  %v5539 = vshrl.u32 %v4530, 16
  %v5541 = vrot.slane %v5539, 3
  %v5542 = vshll.u32 %v4530, 16
  %v5544 = vrot.slane %v5542, 4
  %v5545 = vor.u32 %v5541, %v5544
  %v5546 = vsel %vm5111, %v5496, %v5545
  %v5548 = vshrl.u32 %v4631, 16
  %v5550 = vrot.slane %v5548, 3
  %v5551 = vshll.u32 %v4631, 16
  %v5553 = vrot.slane %v5551, 4
  %v5554 = vor.u32 %v5550, %v5553
  %v5555 = vsel %vm5111, %v5505, %v5554
  %v5557 = vshrl.u32 %v4744, 16
  %v5559 = vrot.slane %v5557, 3
  %v5560 = vshll.u32 %v4744, 16
  %v5562 = vrot.slane %v5560, 4
  %v5563 = vor.u32 %v5559, %v5562
  %v5564 = vsel %vm5111, %v5514, %v5563
  %v5566 = vshrl.u32 %v4941, 16
  %v5568 = vrot.slane %v5566, 3
  %v5569 = vshll.u32 %v4941, 16
  %v5571 = vrot.slane %v5569, 4
  %v5572 = vor.u32 %v5568, %v5571
  %v5573 = vsel %vm5111, %v5523, %v5572
  %v5574 = vrot.slane %v4145, 3
  %v5575 = vrot.slane %v4141, 4
  %v5576 = vor.u32 %v5574, %v5575
  %v5577 = vsel %vm5111, %v5527, %v5576
  %v5579 = vshrl.u32 %v4152, 16
  %v5581 = vrot.slane %v5579, 3
  %v5582 = vshll.u32 %v4152, 16
  %v5584 = vrot.slane %v5582, 4
  %v5585 = vor.u32 %v5581, %v5584
  %v5586 = vsel %vm5111, %v5536, %v5585
  %v5588 = vshrl.u32 %v4532, 16
  %v5590 = vrot.slane %v5588, 3
  %v5591 = vshll.u32 %v4532, 16
  %v5593 = vrot.slane %v5591, 4
  %v5594 = vor.u32 %v5590, %v5593
  %v5595 = vsel %vm5111, %v5545, %v5594
  %v5597 = vshrl.u32 %v4633, 16
  %v5599 = vrot.slane %v5597, 3
  %v5600 = vshll.u32 %v4633, 16
  %v5602 = vrot.slane %v5600, 4
  %v5603 = vor.u32 %v5599, %v5602
  %v5604 = vsel %vm5111, %v5554, %v5603
  %v5606 = vshrl.u32 %v4748, 16
  %v5608 = vrot.slane %v5606, 3
  %v5609 = vshll.u32 %v4748, 16
  %v5611 = vrot.slane %v5609, 4
  %v5612 = vor.u32 %v5608, %v5611
  %v5613 = vsel %vm5111, %v5563, %v5612
  %v5615 = vshrl.u32 %v4943, 16
  %v5617 = vrot.slane %v5615, 3
  %v5618 = vshll.u32 %v4943, 16
  %v5620 = vrot.slane %v5618, 4
  %v5621 = vor.u32 %v5617, %v5620
  %v5622 = vsel %vm5111, %v5572, %v5621
  %v5623 = vrot.slane %v4153, 3
  %v5624 = vrot.slane %v4149, 4
  %v5625 = vor.u32 %v5623, %v5624
  %v5626 = vsel %vm5111, %v5576, %v5625
  %v5628 = vshrl.u32 %v4160, 16
  %v5630 = vrot.slane %v5628, 3
  %v5631 = vshll.u32 %v4160, 16
  %v5633 = vrot.slane %v5631, 4
  %v5634 = vor.u32 %v5630, %v5633
  %v5635 = vsel %vm5111, %v5585, %v5634
  %v5637 = vshrl.u32 %v4534, 16
  %v5639 = vrot.slane %v5637, 3
  %v5640 = vshll.u32 %v4534, 16
  %v5642 = vrot.slane %v5640, 4
  %v5643 = vor.u32 %v5639, %v5642
  %v5644 = vsel %vm5111, %v5594, %v5643
  %v5646 = vshrl.u32 %v4635, 16
  %v5648 = vrot.slane %v5646, 3
  %v5649 = vshll.u32 %v4635, 16
  %v5651 = vrot.slane %v5649, 4
  %v5652 = vor.u32 %v5648, %v5651
  %v5653 = vsel %vm5111, %v5603, %v5652
  %v5655 = vshrl.u32 %v4752, 16
  %v5657 = vrot.slane %v5655, 3
  %v5658 = vshll.u32 %v4752, 16
  %v5660 = vrot.slane %v5658, 4
  %v5661 = vor.u32 %v5657, %v5660
  %v5662 = vsel %vm5111, %v5612, %v5661
  %v5664 = vshrl.u32 %v4945, 16
  %v5666 = vrot.slane %v5664, 3
  %v5667 = vshll.u32 %v4945, 16
  %v5669 = vrot.slane %v5667, 4
  %v5670 = vor.u32 %v5666, %v5669
  %v5671 = vsel %vm5111, %v5621, %v5670
  %v5672 = vrot.slane %v4161, 3
  %v5673 = vrot.slane %v4157, 4
  %v5674 = vor.u32 %v5672, %v5673
  %v5675 = vsel %vm5111, %v5625, %v5674
  %v5677 = vshrl.u32 %v4168, 16
  %v5679 = vrot.slane %v5677, 3
  %v5680 = vshll.u32 %v4168, 16
  %v5682 = vrot.slane %v5680, 4
  %v5683 = vor.u32 %v5679, %v5682
  %v5684 = vsel %vm5111, %v5634, %v5683
  %v5686 = vshrl.u32 %v4536, 16
  %v5688 = vrot.slane %v5686, 3
  %v5689 = vshll.u32 %v4536, 16
  %v5691 = vrot.slane %v5689, 4
  %v5692 = vor.u32 %v5688, %v5691
  %v5693 = vsel %vm5111, %v5643, %v5692
  %v5695 = vshrl.u32 %v4637, 16
  %v5697 = vrot.slane %v5695, 3
  %v5698 = vshll.u32 %v4637, 16
  %v5700 = vrot.slane %v5698, 4
  %v5701 = vor.u32 %v5697, %v5700
  %v5702 = vsel %vm5111, %v5652, %v5701
  %v5704 = vshrl.u32 %v4756, 16
  %v5706 = vrot.slane %v5704, 3
  %v5707 = vshll.u32 %v4756, 16
  %v5709 = vrot.slane %v5707, 4
  %v5710 = vor.u32 %v5706, %v5709
  %v5711 = vsel %vm5111, %v5661, %v5710
  %v5713 = vshrl.u32 %v4947, 16
  %v5715 = vrot.slane %v5713, 3
  %v5716 = vshll.u32 %v4947, 16
  %v5718 = vrot.slane %v5716, 4
  %v5719 = vor.u32 %v5715, %v5718
  %v5720 = vsel %vm5111, %v5670, %v5719
  %v5721 = vrot.slane %v4169, 3
  %v5722 = vrot.slane %v4165, 4
  %v5723 = vor.u32 %v5721, %v5722
  %v5724 = vsel %vm5111, %v5674, %v5723
  %v5726 = vshrl.u32 %v4176, 16
  %v5728 = vrot.slane %v5726, 3
  %v5729 = vshll.u32 %v4176, 16
  %v5731 = vrot.slane %v5729, 4
  %v5732 = vor.u32 %v5728, %v5731
  %v5733 = vsel %vm5111, %v5683, %v5732
  %v5735 = vshrl.u32 %v4538, 16
  %v5737 = vrot.slane %v5735, 3
  %v5738 = vshll.u32 %v4538, 16
  %v5740 = vrot.slane %v5738, 4
  %v5741 = vor.u32 %v5737, %v5740
  %v5742 = vsel %vm5111, %v5692, %v5741
  %v5744 = vshrl.u32 %v4639, 16
  %v5746 = vrot.slane %v5744, 3
  %v5747 = vshll.u32 %v4639, 16
  %v5749 = vrot.slane %v5747, 4
  %v5750 = vor.u32 %v5746, %v5749
  %v5751 = vsel %vm5111, %v5701, %v5750
  %v5753 = vshrl.u32 %v4760, 16
  %v5755 = vrot.slane %v5753, 3
  %v5756 = vshll.u32 %v4760, 16
  %v5758 = vrot.slane %v5756, 4
  %v5759 = vor.u32 %v5755, %v5758
  %v5760 = vsel %vm5111, %v5710, %v5759
  %v5762 = vshrl.u32 %v4949, 16
  %v5764 = vrot.slane %v5762, 3
  %v5765 = vshll.u32 %v4949, 16
  %v5767 = vrot.slane %v5765, 4
  %v5768 = vor.u32 %v5764, %v5767
  %v5769 = vsel %vm5111, %v5719, %v5768
  %v5770 = vrot.slane %v4177, 3
  %v5771 = vrot.slane %v4173, 4
  %v5772 = vor.u32 %v5770, %v5771
  %v5773 = vsel %vm5111, %v5723, %v5772
  %v5775 = vshrl.u32 %v4184, 16
  %v5777 = vrot.slane %v5775, 3
  %v5778 = vshll.u32 %v4184, 16
  %v5780 = vrot.slane %v5778, 4
  %v5781 = vor.u32 %v5777, %v5780
  %v5782 = vsel %vm5111, %v5732, %v5781
  %v5784 = vshrl.u32 %v4540, 16
  %v5786 = vrot.slane %v5784, 3
  %v5787 = vshll.u32 %v4540, 16
  %v5789 = vrot.slane %v5787, 4
  %v5790 = vor.u32 %v5786, %v5789
  %v5791 = vsel %vm5111, %v5741, %v5790
  %v5793 = vshrl.u32 %v4641, 16
  %v5795 = vrot.slane %v5793, 3
  %v5796 = vshll.u32 %v4641, 16
  %v5798 = vrot.slane %v5796, 4
  %v5799 = vor.u32 %v5795, %v5798
  %v5800 = vsel %vm5111, %v5750, %v5799
  %v5802 = vshrl.u32 %v4764, 16
  %v5804 = vrot.slane %v5802, 3
  %v5805 = vshll.u32 %v4764, 16
  %v5807 = vrot.slane %v5805, 4
  %v5808 = vor.u32 %v5804, %v5807
  %v5809 = vsel %vm5111, %v5759, %v5808
  %v5811 = vshrl.u32 %v4951, 16
  %v5813 = vrot.slane %v5811, 3
  %v5814 = vshll.u32 %v4951, 16
  %v5816 = vrot.slane %v5814, 4
  %v5817 = vor.u32 %v5813, %v5816
  %v5818 = vsel %vm5111, %v5768, %v5817
  %v5819 = vrot.slane %v4185, 3
  %v5820 = vrot.slane %v4181, 4
  %v5821 = vor.u32 %v5819, %v5820
  %v5822 = vsel %vm5111, %v5772, %v5821
  %v5824 = vshrl.u32 %v4192, 16
  %v5826 = vrot.slane %v5824, 3
  %v5827 = vshll.u32 %v4192, 16
  %v5829 = vrot.slane %v5827, 4
  %v5830 = vor.u32 %v5826, %v5829
  %v5831 = vsel %vm5111, %v5781, %v5830
  %v5833 = vshrl.u32 %v4542, 16
  %v5835 = vrot.slane %v5833, 3
  %v5836 = vshll.u32 %v4542, 16
  %v5838 = vrot.slane %v5836, 4
  %v5839 = vor.u32 %v5835, %v5838
  %v5840 = vsel %vm5111, %v5790, %v5839
  %v5842 = vshrl.u32 %v4643, 16
  %v5844 = vrot.slane %v5842, 3
  %v5845 = vshll.u32 %v4643, 16
  %v5847 = vrot.slane %v5845, 4
  %v5848 = vor.u32 %v5844, %v5847
  %v5849 = vsel %vm5111, %v5799, %v5848
  %v5851 = vshrl.u32 %v4768, 16
  %v5853 = vrot.slane %v5851, 3
  %v5854 = vshll.u32 %v4768, 16
  %v5856 = vrot.slane %v5854, 4
  %v5857 = vor.u32 %v5853, %v5856
  %v5858 = vsel %vm5111, %v5808, %v5857
  %v5860 = vshrl.u32 %v4953, 16
  %v5862 = vrot.slane %v5860, 3
  %v5863 = vshll.u32 %v4953, 16
  %v5865 = vrot.slane %v5863, 4
  %v5866 = vor.u32 %v5862, %v5865
  %v5867 = vsel %vm5111, %v5817, %v5866
  %v5868 = vrot.slane %v4193, 3
  %v5869 = vrot.slane %v4189, 4
  %v5870 = vor.u32 %v5868, %v5869
  %v5871 = vsel %vm5111, %v5821, %v5870
  %v5873 = vshrl.u32 %v4200, 16
  %v5875 = vrot.slane %v5873, 3
  %v5876 = vshll.u32 %v4200, 16
  %v5878 = vrot.slane %v5876, 4
  %v5879 = vor.u32 %v5875, %v5878
  %v5880 = vsel %vm5111, %v5830, %v5879
  %v5882 = vshrl.u32 %v4544, 16
  %v5884 = vrot.slane %v5882, 3
  %v5885 = vshll.u32 %v4544, 16
  %v5887 = vrot.slane %v5885, 4
  %v5888 = vor.u32 %v5884, %v5887
  %v5889 = vsel %vm5111, %v5839, %v5888
  %v5891 = vshrl.u32 %v4645, 16
  %v5893 = vrot.slane %v5891, 3
  %v5894 = vshll.u32 %v4645, 16
  %v5896 = vrot.slane %v5894, 4
  %v5897 = vor.u32 %v5893, %v5896
  %v5898 = vsel %vm5111, %v5848, %v5897
  %v5900 = vshrl.u32 %v4772, 16
  %v5902 = vrot.slane %v5900, 3
  %v5903 = vshll.u32 %v4772, 16
  %v5905 = vrot.slane %v5903, 4
  %v5906 = vor.u32 %v5902, %v5905
  %v5907 = vsel %vm5111, %v5857, %v5906
  %v5909 = vshrl.u32 %v4955, 16
  %v5911 = vrot.slane %v5909, 3
  %v5912 = vshll.u32 %v4955, 16
  %v5914 = vrot.slane %v5912, 4
  %v5915 = vor.u32 %v5911, %v5914
  %v5916 = vsel %vm5111, %v5866, %v5915
  %v5917 = vrot.slane %v4201, 3
  %v5918 = vrot.slane %v4197, 4
  %v5919 = vor.u32 %v5917, %v5918
  %v5920 = vsel %vm5111, %v5870, %v5919
  %v5922 = vshrl.u32 %v4208, 16
  %v5924 = vrot.slane %v5922, 3
  %v5925 = vshll.u32 %v4208, 16
  %v5927 = vrot.slane %v5925, 4
  %v5928 = vor.u32 %v5924, %v5927
  %v5929 = vsel %vm5111, %v5879, %v5928
  %v5931 = vshrl.u32 %v4546, 16
  %v5933 = vrot.slane %v5931, 3
  %v5934 = vshll.u32 %v4546, 16
  %v5936 = vrot.slane %v5934, 4
  %v5937 = vor.u32 %v5933, %v5936
  %v5938 = vsel %vm5111, %v5888, %v5937
  %v5940 = vshrl.u32 %v4647, 16
  %v5942 = vrot.slane %v5940, 3
  %v5943 = vshll.u32 %v4647, 16
  %v5945 = vrot.slane %v5943, 4
  %v5946 = vor.u32 %v5942, %v5945
  %v5947 = vsel %vm5111, %v5897, %v5946
  %v5949 = vshrl.u32 %v4776, 16
  %v5951 = vrot.slane %v5949, 3
  %v5952 = vshll.u32 %v4776, 16
  %v5954 = vrot.slane %v5952, 4
  %v5955 = vor.u32 %v5951, %v5954
  %v5956 = vsel %vm5111, %v5906, %v5955
  %v5958 = vshrl.u32 %v4957, 16
  %v5960 = vrot.slane %v5958, 3
  %v5961 = vshll.u32 %v4957, 16
  %v5963 = vrot.slane %v5961, 4
  %v5964 = vor.u32 %v5960, %v5963
  %v5965 = vsel %vm5111, %v5915, %v5964
  %v5966 = vrot.slane %v4209, 3
  %v5967 = vrot.slane %v4205, 4
  %v5968 = vor.u32 %v5966, %v5967
  %v5969 = vsel %vm5111, %v5919, %v5968
  %v5971 = vshrl.u32 %v4216, 16
  %v5973 = vrot.slane %v5971, 3
  %v5974 = vshll.u32 %v4216, 16
  %v5976 = vrot.slane %v5974, 4
  %v5977 = vor.u32 %v5973, %v5976
  %v5978 = vsel %vm5111, %v5928, %v5977
  %v5980 = vshrl.u32 %v4548, 16
  %v5982 = vrot.slane %v5980, 3
  %v5983 = vshll.u32 %v4548, 16
  %v5985 = vrot.slane %v5983, 4
  %v5986 = vor.u32 %v5982, %v5985
  %v5987 = vsel %vm5111, %v5937, %v5986
  %v5989 = vshrl.u32 %v4649, 16
  %v5991 = vrot.slane %v5989, 3
  %v5992 = vshll.u32 %v4649, 16
  %v5994 = vrot.slane %v5992, 4
  %v5995 = vor.u32 %v5991, %v5994
  %v5996 = vsel %vm5111, %v5946, %v5995
  %v5998 = vshrl.u32 %v4780, 16
  %v6000 = vrot.slane %v5998, 3
  %v6001 = vshll.u32 %v4780, 16
  %v6003 = vrot.slane %v6001, 4
  %v6004 = vor.u32 %v6000, %v6003
  %v6005 = vsel %vm5111, %v5955, %v6004
  %v6007 = vshrl.u32 %v4959, 16
  %v6009 = vrot.slane %v6007, 3
  %v6010 = vshll.u32 %v4959, 16
  %v6012 = vrot.slane %v6010, 4
  %v6013 = vor.u32 %v6009, %v6012
  %v6014 = vsel %vm5111, %v5964, %v6013
  %v6015 = vrot.slane %v4217, 3
  %v6016 = vrot.slane %v4213, 4
  %v6017 = vor.u32 %v6015, %v6016
  %v6018 = vsel %vm5111, %v5968, %v6017
  %v6020 = vshrl.u32 %v4224, 16
  %v6022 = vrot.slane %v6020, 3
  %v6023 = vshll.u32 %v4224, 16
  %v6025 = vrot.slane %v6023, 4
  %v6026 = vor.u32 %v6022, %v6025
  %v6027 = vsel %vm5111, %v5977, %v6026
  %v6029 = vshrl.u32 %v4550, 16
  %v6031 = vrot.slane %v6029, 3
  %v6032 = vshll.u32 %v4550, 16
  %v6034 = vrot.slane %v6032, 4
  %v6035 = vor.u32 %v6031, %v6034
  %v6036 = vsel %vm5111, %v5986, %v6035
  %v6038 = vshrl.u32 %v4651, 16
  %v6040 = vrot.slane %v6038, 3
  %v6041 = vshll.u32 %v4651, 16
  %v6043 = vrot.slane %v6041, 4
  %v6044 = vor.u32 %v6040, %v6043
  %v6045 = vsel %vm5111, %v5995, %v6044
  %v6047 = vshrl.u32 %v4784, 16
  %v6049 = vrot.slane %v6047, 3
  %v6050 = vshll.u32 %v4784, 16
  %v6052 = vrot.slane %v6050, 4
  %v6053 = vor.u32 %v6049, %v6052
  %v6054 = vsel %vm5111, %v6004, %v6053
  %v6056 = vshrl.u32 %v4961, 16
  %v6058 = vrot.slane %v6056, 3
  %v6059 = vshll.u32 %v4961, 16
  %v6061 = vrot.slane %v6059, 4
  %v6062 = vor.u32 %v6058, %v6061
  %v6063 = vsel %vm5111, %v6013, %v6062
  %v6064 = vrot.slane %v4225, 3
  %v6065 = vrot.slane %v4221, 4
  %v6066 = vor.u32 %v6064, %v6065
  %v6067 = vsel %vm5111, %v6017, %v6066
  %v6069 = vshrl.u32 %v4232, 16
  %v6071 = vrot.slane %v6069, 3
  %v6072 = vshll.u32 %v4232, 16
  %v6074 = vrot.slane %v6072, 4
  %v6075 = vor.u32 %v6071, %v6074
  %v6076 = vsel %vm5111, %v6026, %v6075
  %v6078 = vshrl.u32 %v4552, 16
  %v6080 = vrot.slane %v6078, 3
  %v6081 = vshll.u32 %v4552, 16
  %v6083 = vrot.slane %v6081, 4
  %v6084 = vor.u32 %v6080, %v6083
  %v6085 = vsel %vm5111, %v6035, %v6084
  %v6087 = vshrl.u32 %v4653, 16
  %v6089 = vrot.slane %v6087, 3
  %v6090 = vshll.u32 %v4653, 16
  %v6092 = vrot.slane %v6090, 4
  %v6093 = vor.u32 %v6089, %v6092
  %v6094 = vsel %vm5111, %v6044, %v6093
  %v6096 = vshrl.u32 %v4788, 16
  %v6098 = vrot.slane %v6096, 3
  %v6099 = vshll.u32 %v4788, 16
  %v6101 = vrot.slane %v6099, 4
  %v6102 = vor.u32 %v6098, %v6101
  %v6103 = vsel %vm5111, %v6053, %v6102
  %v6105 = vshrl.u32 %v4963, 16
  %v6107 = vrot.slane %v6105, 3
  %v6108 = vshll.u32 %v4963, 16
  %v6110 = vrot.slane %v6108, 4
  %v6111 = vor.u32 %v6107, %v6110
  %v6112 = vsel %vm5111, %v6062, %v6111
  %v6113 = vrot.slane %v4233, 3
  %v6114 = vrot.slane %v4229, 4
  %v6115 = vor.u32 %v6113, %v6114
  %v6116 = vsel %vm5111, %v6066, %v6115
  %v6118 = vshrl.u32 %v4240, 16
  %v6120 = vrot.slane %v6118, 3
  %v6121 = vshll.u32 %v4240, 16
  %v6123 = vrot.slane %v6121, 4
  %v6124 = vor.u32 %v6120, %v6123
  %v6125 = vsel %vm5111, %v6075, %v6124
  %v6127 = vshrl.u32 %v4554, 16
  %v6129 = vrot.slane %v6127, 3
  %v6130 = vshll.u32 %v4554, 16
  %v6132 = vrot.slane %v6130, 4
  %v6133 = vor.u32 %v6129, %v6132
  %v6134 = vsel %vm5111, %v6084, %v6133
  %v6136 = vshrl.u32 %v4655, 16
  %v6138 = vrot.slane %v6136, 3
  %v6139 = vshll.u32 %v4655, 16
  %v6141 = vrot.slane %v6139, 4
  %v6142 = vor.u32 %v6138, %v6141
  %v6143 = vsel %vm5111, %v6093, %v6142
  %v6145 = vshrl.u32 %v4792, 16
  %v6147 = vrot.slane %v6145, 3
  %v6148 = vshll.u32 %v4792, 16
  %v6150 = vrot.slane %v6148, 4
  %v6151 = vor.u32 %v6147, %v6150
  %v6152 = vsel %vm5111, %v6102, %v6151
  %v6154 = vshrl.u32 %v4965, 16
  %v6156 = vrot.slane %v6154, 3
  %v6157 = vshll.u32 %v4965, 16
  %v6159 = vrot.slane %v6157, 4
  %v6160 = vor.u32 %v6156, %v6159
  %v6161 = vsel %vm5111, %v6111, %v6160
  %v6162 = vrot.slane %v4241, 3
  %v6163 = vrot.slane %v4237, 4
  %v6164 = vor.u32 %v6162, %v6163
  %v6165 = vsel %vm5111, %v6115, %v6164
  %v6167 = vshrl.u32 %v4248, 16
  %v6169 = vrot.slane %v6167, 3
  %v6170 = vshll.u32 %v4248, 16
  %v6172 = vrot.slane %v6170, 4
  %v6173 = vor.u32 %v6169, %v6172
  %v6174 = vsel %vm5111, %v6124, %v6173
  %v6176 = vshrl.u32 %v4556, 16
  %v6178 = vrot.slane %v6176, 3
  %v6179 = vshll.u32 %v4556, 16
  %v6181 = vrot.slane %v6179, 4
  %v6182 = vor.u32 %v6178, %v6181
  %v6183 = vsel %vm5111, %v6133, %v6182
  %v6185 = vshrl.u32 %v4657, 16
  %v6187 = vrot.slane %v6185, 3
  %v6188 = vshll.u32 %v4657, 16
  %v6190 = vrot.slane %v6188, 4
  %v6191 = vor.u32 %v6187, %v6190
  %v6192 = vsel %vm5111, %v6142, %v6191
  %v6194 = vshrl.u32 %v4796, 16
  %v6196 = vrot.slane %v6194, 3
  %v6197 = vshll.u32 %v4796, 16
  %v6199 = vrot.slane %v6197, 4
  %v6200 = vor.u32 %v6196, %v6199
  %v6201 = vsel %vm5111, %v6151, %v6200
  %v6203 = vshrl.u32 %v4967, 16
  %v6205 = vrot.slane %v6203, 3
  %v6206 = vshll.u32 %v4967, 16
  %v6208 = vrot.slane %v6206, 4
  %v6209 = vor.u32 %v6205, %v6208
  %v6210 = vsel %vm5111, %v6160, %v6209
  %v6211 = vrot.slane %v4249, 3
  %v6212 = vrot.slane %v4245, 4
  %v6213 = vor.u32 %v6211, %v6212
  %v6214 = vsel %vm5111, %v6164, %v6213
  %v6216 = vshrl.u32 %v5034, 16
  %v6218 = vrot.slane %v6216, 3
  %v6219 = vshll.u32 %v5034, 16
  %v6221 = vrot.slane %v6219, 4
  %v6222 = vor.u32 %v6218, %v6221
  %v6223 = vsel %vm5111, %v6173, %v6222
  %v6225 = vshrl.u32 %v5094, 16
  %v6227 = vrot.slane %v6225, 3
  %v6228 = vshll.u32 %v5094, 16
  %v6230 = vrot.slane %v6228, 4
  %v6231 = vor.u32 %v6227, %v6230
  %v6232 = vsel %vm5111, %v6182, %v6231
  %v6234 = vshrl.u32 %v4659, 16
  %v6236 = vrot.slane %v6234, 3
  %v6237 = vshll.u32 %v4659, 16
  %v6239 = vrot.slane %v6237, 4
  %v6240 = vor.u32 %v6236, %v6239
  %v6241 = vsel %vm5111, %v6191, %v6240
  %v6243 = vshrl.u32 %v4800, 16
  %v6245 = vrot.slane %v6243, 3
  %v6246 = vshll.u32 %v4800, 16
  %v6248 = vrot.slane %v6246, 4
  %v6249 = vor.u32 %v6245, %v6248
  %v6250 = vsel %vm5111, %v6200, %v6249
  %v6252 = vshrl.u32 %v4969, 16
  %v6254 = vrot.slane %v6252, 3
  %v6255 = vshll.u32 %v4969, 16
  %v6257 = vrot.slane %v6255, 4
  %v6258 = vor.u32 %v6254, %v6257
  %v6259 = vsel %vm5111, %v6209, %v6258
  %v6260 = vrot.slane %v4802, 3
  %v6261 = vrot.slane %v4805, 4
  %v6262 = vor.u32 %v6260, %v6261
  %v6263 = vsel %vm5111, %v6213, %v6262
  %v6265 = vshrl.u32 %v5037, 16
  %v6267 = vrot.slane %v6265, 3
  %v6268 = vshll.u32 %v5037, 16
  %v6270 = vrot.slane %v6268, 4
  %v6271 = vor.u32 %v6267, %v6270
  %v6272 = vsel %vm5111, %v6222, %v6271
  %v6274 = vshrl.u32 %v5096, 16
  %v6276 = vrot.slane %v6274, 3
  %v6277 = vshll.u32 %v5096, 16
  %v6279 = vrot.slane %v6277, 4
  %v6280 = vor.u32 %v6276, %v6279
  %v6281 = vsel %vm5111, %v6231, %v6280
  %v6283 = vshrl.u32 %v4661, 16
  %v6285 = vrot.slane %v6283, 3
  %v6286 = vshll.u32 %v4661, 16
  %v6288 = vrot.slane %v6286, 4
  %v6289 = vor.u32 %v6285, %v6288
  %v6290 = vsel %vm5111, %v6240, %v6289
  %v6292 = vshrl.u32 %v4809, 16
  %v6294 = vrot.slane %v6292, 3
  %v6295 = vshll.u32 %v4809, 16
  %v6297 = vrot.slane %v6295, 4
  %v6298 = vor.u32 %v6294, %v6297
  %v6299 = vsel %vm5111, %v6249, %v6298
  %v6301 = vshrl.u32 %v4971, 16
  %v6303 = vrot.slane %v6301, 3
  %v6304 = vshll.u32 %v4971, 16
  %v6306 = vrot.slane %v6304, 4
  %v6307 = vor.u32 %v6303, %v6306
  %v6308 = vsel %vm5111, %v6258, %v6307
  %v6309 = vrot.slane %v4811, 3
  %v6310 = vrot.slane %v4814, 4
  %v6311 = vor.u32 %v6309, %v6310
  %v6312 = vsel %vm5111, %v6262, %v6311
  %v6314 = vshrl.u32 %v5043, 16
  %v6316 = vrot.slane %v6314, 3
  %v6317 = vshll.u32 %v5043, 16
  %v6319 = vrot.slane %v6317, 4
  %v6320 = vor.u32 %v6316, %v6319
  %v6321 = vsel %vm5111, %v6271, %v6320
  %v6323 = vshrl.u32 %v5098, 16
  %v6325 = vrot.slane %v6323, 3
  %v6326 = vshll.u32 %v5098, 16
  %v6328 = vrot.slane %v6326, 4
  %v6329 = vor.u32 %v6325, %v6328
  %v6330 = vsel %vm5111, %v6280, %v6329
  %v6332 = vshrl.u32 %v4256, 16
  %v6334 = vrot.slane %v6332, 3
  %v6335 = vshll.u32 %v4256, 16
  %v6337 = vrot.slane %v6335, 4
  %v6338 = vor.u32 %v6334, %v6337
  %v6339 = vsel %vm5111, %v6173, %v6338
  %v6341 = vshrl.u32 %v4558, 16
  %v6343 = vrot.slane %v6341, 3
  %v6344 = vshll.u32 %v4558, 16
  %v6346 = vrot.slane %v6344, 4
  %v6347 = vor.u32 %v6343, %v6346
  %v6348 = vsel %vm5111, %v6182, %v6347
  %v6350 = vshrl.u32 %v4663, 16
  %v6352 = vrot.slane %v6350, 3
  %v6353 = vshll.u32 %v4663, 16
  %v6355 = vrot.slane %v6353, 4
  %v6356 = vor.u32 %v6352, %v6355
  %v6357 = vsel %vm5111, %v6289, %v6356
  %v6359 = vshrl.u32 %v4818, 16
  %v6361 = vrot.slane %v6359, 3
  %v6362 = vshll.u32 %v4818, 16
  %v6364 = vrot.slane %v6362, 4
  %v6365 = vor.u32 %v6361, %v6364
  %v6366 = vsel %vm5111, %v6298, %v6365
  %v6368 = vshrl.u32 %v4973, 16
  %v6370 = vrot.slane %v6368, 3
  %v6371 = vshll.u32 %v4973, 16
  %v6373 = vrot.slane %v6371, 4
  %v6374 = vor.u32 %v6370, %v6373
  %v6375 = vsel %vm5111, %v6307, %v6374
  %v6376 = vrot.slane %v5044, 3
  %v6377 = vrot.slane %v5040, 4
  %v6378 = vor.u32 %v6376, %v6377
  %v6379 = vsel %vm5111, %v6311, %v6378
  %v6381 = vshrl.u32 %v5051, 16
  %v6383 = vrot.slane %v6381, 3
  %v6384 = vshll.u32 %v5051, 16
  %v6386 = vrot.slane %v6384, 4
  %v6387 = vor.u32 %v6383, %v6386
  %v6388 = vsel %vm5111, %v6320, %v6387
  %v6390 = vshrl.u32 %v5100, 16
  %v6392 = vrot.slane %v6390, 3
  %v6393 = vshll.u32 %v5100, 16
  %v6395 = vrot.slane %v6393, 4
  %v6396 = vor.u32 %v6392, %v6395
  %v6397 = vsel %vm5111, %v6329, %v6396
  %v6398 = vrot.slane %v4257, 3
  %v6399 = vrot.slane %v4253, 4
  %v6400 = vor.u32 %v6398, %v6399
  %v6401 = vsel %vm5111, %v6213, %v6400
  %v6403 = vshrl.u32 %v4259, 16
  %v6405 = vrot.slane %v6403, 3
  %v6406 = vshll.u32 %v4259, 16
  %v6408 = vrot.slane %v6406, 4
  %v6409 = vor.u32 %v6405, %v6408
  %v6410 = vsel %vm5111, %v6338, %v6409
  %v6412 = vshrl.u32 %v4557, 16
  %v6414 = vrot.slane %v6412, 3
  %v6415 = vshll.u32 %v4557, 16
  %v6417 = vrot.slane %v6415, 4
  %v6418 = vor.u32 %v6414, %v6417
  %v6419 = vsel %vm5111, %v6347, %v6418
  %v6421 = vshrl.u32 %v4662, 16
  %v6423 = vrot.slane %v6421, 3
  %v6424 = vshll.u32 %v4662, 16
  %v6426 = vrot.slane %v6424, 4
  %v6427 = vor.u32 %v6423, %v6426
  %v6428 = vsel %vm5111, %v6356, %v6427
  %v6430 = vshrl.u32 %v4817, 16
  %v6432 = vrot.slane %v6430, 3
  %v6433 = vshll.u32 %v4817, 16
  %v6435 = vrot.slane %v6433, 4
  %v6436 = vor.u32 %v6432, %v6435
  %v6437 = vsel %vm5111, %v6365, %v6436
  %v6439 = vshrl.u32 %v4975, 16
  %v6441 = vrot.slane %v6439, 3
  %v6442 = vshll.u32 %v4975, 16
  %v6444 = vrot.slane %v6442, 4
  %v6445 = vor.u32 %v6441, %v6444
  %v6446 = vsel %vm5111, %v6374, %v6445
  %v6447 = vrot.slane %v5052, 3
  %v6448 = vrot.slane %v5048, 4
  %v6449 = vor.u32 %v6447, %v6448
  %v6450 = vsel %vm5111, %v6378, %v6449
  %v6452 = vshrl.u32 %v5054, 16
  %v6454 = vrot.slane %v6452, 3
  %v6455 = vshll.u32 %v5054, 16
  %v6457 = vrot.slane %v6455, 4
  %v6458 = vor.u32 %v6454, %v6457
  %v6459 = vsel %vm5111, %v6387, %v6458
  %v6461 = vshrl.u32 %v5099, 16
  %v6463 = vrot.slane %v6461, 3
  %v6464 = vshll.u32 %v5099, 16
  %v6466 = vrot.slane %v6464, 4
  %v6467 = vor.u32 %v6463, %v6466
  %v6468 = vsel %vm5111, %v6396, %v6467
  %v6470 = vshrl.u32 %v4013, 16
  %v6472 = vrot.slane %v6470, 3
  %v6473 = vshll.u32 %v4013, 16
  %v6475 = vrot.slane %v6473, 4
  %v6476 = vor.u32 %v6472, %v6475
  %v6477 = vrot.slane %v4272, 3
  %v6478 = vrot.slane %v4268, 4
  %v6479 = vor.u32 %v6477, %v6478
  %v6480 = vsel %vm5111, %v6476, %v6479
  %v6482 = vshrl.u32 %v4271, 16
  %v6484 = vrot.slane %v6482, 3
  %v6485 = vshll.u32 %v4271, 16
  %v6487 = vrot.slane %v6485, 4
  %v6488 = vor.u32 %v6484, %v6487
  %v6490 = vshrl.u32 %v4279, 16
  %v6492 = vrot.slane %v6490, 3
  %v6493 = vshll.u32 %v4279, 16
  %v6495 = vrot.slane %v6493, 4
  %v6496 = vor.u32 %v6492, %v6495
  %v6497 = vsel %vm5111, %v6488, %v6496
  %v6499 = vshrl.u32 %v4561, 16
  %v6501 = vrot.slane %v6499, 3
  %v6502 = vshll.u32 %v4561, 16
  %v6504 = vrot.slane %v6502, 4
  %v6505 = vor.u32 %v6501, %v6504
  %v6507 = vshrl.u32 %v4563, 16
  %v6509 = vrot.slane %v6507, 3
  %v6510 = vshll.u32 %v4563, 16
  %v6512 = vrot.slane %v6510, 4
  %v6513 = vor.u32 %v6509, %v6512
  %v6514 = vsel %vm5111, %v6505, %v6513
  %v6516 = vshrl.u32 %v4666, 16
  %v6518 = vrot.slane %v6516, 3
  %v6519 = vshll.u32 %v4666, 16
  %v6521 = vrot.slane %v6519, 4
  %v6522 = vor.u32 %v6518, %v6521
  %v6524 = vshrl.u32 %v4668, 16
  %v6526 = vrot.slane %v6524, 3
  %v6527 = vshll.u32 %v4668, 16
  %v6529 = vrot.slane %v6527, 4
  %v6530 = vor.u32 %v6526, %v6529
  %v6531 = vsel %vm5111, %v6522, %v6530
  %v6533 = vshrl.u32 %v4821, 16
  %v6535 = vrot.slane %v6533, 3
  %v6536 = vshll.u32 %v4821, 16
  %v6538 = vrot.slane %v6536, 4
  %v6539 = vor.u32 %v6535, %v6538
  %v6541 = vshrl.u32 %v4825, 16
  %v6543 = vrot.slane %v6541, 3
  %v6544 = vshll.u32 %v4825, 16
  %v6546 = vrot.slane %v6544, 4
  %v6547 = vor.u32 %v6543, %v6546
  %v6548 = vsel %vm5111, %v6539, %v6547
  %v6550 = vshrl.u32 %v4976, 16
  %v6552 = vrot.slane %v6550, 3
  %v6553 = vshll.u32 %v4976, 16
  %v6555 = vrot.slane %v6553, 4
  %v6556 = vor.u32 %v6552, %v6555
  %v6558 = vshrl.u32 %v4978, 16
  %v6560 = vrot.slane %v6558, 3
  %v6561 = vshll.u32 %v4978, 16
  %v6563 = vrot.slane %v6561, 4
  %v6564 = vor.u32 %v6560, %v6563
  %v6565 = vsel %vm5111, %v6556, %v6564
  %v6567 = vshrl.u32 %v4053, 16
  %v6569 = vrot.slane %v6567, 3
  %v6570 = vshll.u32 %v4053, 16
  %v6572 = vrot.slane %v6570, 4
  %v6573 = vor.u32 %v6569, %v6572
  %v6574 = vrot.slane %v4296, 3
  %v6575 = vrot.slane %v4292, 4
  %v6576 = vor.u32 %v6574, %v6575
  %v6577 = vsel %vm5111, %v6573, %v6576
  %v6579 = vshrl.u32 %v5062, 16
  %v6581 = vrot.slane %v6579, 3
  %v6582 = vshll.u32 %v5062, 16
  %v6584 = vrot.slane %v6582, 4
  %v6585 = vor.u32 %v6581, %v6584
  %v6587 = vshrl.u32 %v4303, 16
  %v6589 = vrot.slane %v6587, 3
  %v6590 = vshll.u32 %v4303, 16
  %v6592 = vrot.slane %v6590, 4
  %v6593 = vor.u32 %v6589, %v6592
  %v6594 = vsel %vm5111, %v6585, %v6593
  %v6596 = vshrl.u32 %v5102, 16
  %v6598 = vrot.slane %v6596, 3
  %v6599 = vshll.u32 %v5102, 16
  %v6601 = vrot.slane %v6599, 4
  %v6602 = vor.u32 %v6598, %v6601
  %v6604 = vshrl.u32 %v4569, 16
  %v6606 = vrot.slane %v6604, 3
  %v6607 = vshll.u32 %v4569, 16
  %v6609 = vrot.slane %v6607, 4
  %v6610 = vor.u32 %v6606, %v6609
  %v6611 = vsel %vm5111, %v6602, %v6610
  %v6612 = vrot.slane %v4280, 3
  %v6613 = vrot.slane %v4276, 4
  %v6614 = vor.u32 %v6612, %v6613
  %v6615 = vsel %vm5111, %v6479, %v6614
  %v6617 = vshrl.u32 %v4287, 16
  %v6619 = vrot.slane %v6617, 3
  %v6620 = vshll.u32 %v4287, 16
  %v6622 = vrot.slane %v6620, 4
  %v6623 = vor.u32 %v6619, %v6622
  %v6624 = vsel %vm5111, %v6496, %v6623
  %v6626 = vshrl.u32 %v4565, 16
  %v6628 = vrot.slane %v6626, 3
  %v6629 = vshll.u32 %v4565, 16
  %v6631 = vrot.slane %v6629, 4
  %v6632 = vor.u32 %v6628, %v6631
  %v6633 = vsel %vm5111, %v6513, %v6632
  %v6635 = vshrl.u32 %v4670, 16
  %v6637 = vrot.slane %v6635, 3
  %v6638 = vshll.u32 %v4670, 16
  %v6640 = vrot.slane %v6638, 4
  %v6641 = vor.u32 %v6637, %v6640
  %v6642 = vsel %vm5111, %v6530, %v6641
  %v6644 = vshrl.u32 %v4829, 16
  %v6646 = vrot.slane %v6644, 3
  %v6647 = vshll.u32 %v4829, 16
  %v6649 = vrot.slane %v6647, 4
  %v6650 = vor.u32 %v6646, %v6649
  %v6651 = vsel %vm5111, %v6547, %v6650
  %v6653 = vshrl.u32 %v4980, 16
  %v6655 = vrot.slane %v6653, 3
  %v6656 = vshll.u32 %v4980, 16
  %v6658 = vrot.slane %v6656, 4
  %v6659 = vor.u32 %v6655, %v6658
  %v6660 = vsel %vm5111, %v6564, %v6659
  %v6661 = vrot.slane %v4304, 3
  %v6662 = vrot.slane %v4300, 4
  %v6663 = vor.u32 %v6661, %v6662
  %v6664 = vsel %vm5111, %v6576, %v6663
  %v6666 = vshrl.u32 %v4311, 16
  %v6668 = vrot.slane %v6666, 3
  %v6669 = vshll.u32 %v4311, 16
  %v6671 = vrot.slane %v6669, 4
  %v6672 = vor.u32 %v6668, %v6671
  %v6673 = vsel %vm5111, %v6593, %v6672
  %v6675 = vshrl.u32 %v4571, 16
  %v6677 = vrot.slane %v6675, 3
  %v6678 = vshll.u32 %v4571, 16
  %v6680 = vrot.slane %v6678, 4
  %v6681 = vor.u32 %v6677, %v6680
  %v6682 = vsel %vm5111, %v6610, %v6681
  %v6683 = vrot.slane %v4288, 3
  %v6684 = vrot.slane %v4284, 4
  %v6685 = vor.u32 %v6683, %v6684
  %v6686 = vsel %vm5111, %v6614, %v6685
  %v6688 = vshrl.u32 %v4295, 16
  %v6690 = vrot.slane %v6688, 3
  %v6691 = vshll.u32 %v4295, 16
  %v6693 = vrot.slane %v6691, 4
  %v6694 = vor.u32 %v6690, %v6693
  %v6695 = vsel %vm5111, %v6623, %v6694
  %v6697 = vshrl.u32 %v4567, 16
  %v6699 = vrot.slane %v6697, 3
  %v6700 = vshll.u32 %v4567, 16
  %v6702 = vrot.slane %v6700, 4
  %v6703 = vor.u32 %v6699, %v6702
  %v6704 = vsel %vm5111, %v6632, %v6703
  %v6706 = vshrl.u32 %v4672, 16
  %v6708 = vrot.slane %v6706, 3
  %v6709 = vshll.u32 %v4672, 16
  %v6711 = vrot.slane %v6709, 4
  %v6712 = vor.u32 %v6708, %v6711
  %v6713 = vsel %vm5111, %v6641, %v6712
  %v6715 = vshrl.u32 %v4833, 16
  %v6717 = vrot.slane %v6715, 3
  %v6718 = vshll.u32 %v4833, 16
  %v6720 = vrot.slane %v6718, 4
  %v6721 = vor.u32 %v6717, %v6720
  %v6722 = vsel %vm5111, %v6650, %v6721
  %v6724 = vshrl.u32 %v4982, 16
  %v6726 = vrot.slane %v6724, 3
  %v6727 = vshll.u32 %v4982, 16
  %v6729 = vrot.slane %v6727, 4
  %v6730 = vor.u32 %v6726, %v6729
  %v6731 = vsel %vm5111, %v6659, %v6730
  %v6732 = vrot.slane %v4312, 3
  %v6733 = vrot.slane %v4308, 4
  %v6734 = vor.u32 %v6732, %v6733
  %v6735 = vsel %vm5111, %v6663, %v6734
  %v6737 = vshrl.u32 %v4319, 16
  %v6739 = vrot.slane %v6737, 3
  %v6740 = vshll.u32 %v4319, 16
  %v6742 = vrot.slane %v6740, 4
  %v6743 = vor.u32 %v6739, %v6742
  %v6744 = vsel %vm5111, %v6672, %v6743
  %v6746 = vshrl.u32 %v4573, 16
  %v6748 = vrot.slane %v6746, 3
  %v6749 = vshll.u32 %v4573, 16
  %v6751 = vrot.slane %v6749, 4
  %v6752 = vor.u32 %v6748, %v6751
  %v6753 = vsel %vm5111, %v6681, %v6752
  %v6754 = vsel %vm5111, %v6685, %v6576
  %v6755 = vsel %vm5111, %v6694, %v6593
  %v6756 = vsel %vm5111, %v6703, %v6610
  %v6758 = vshrl.u32 %v4674, 16
  %v6760 = vrot.slane %v6758, 3
  %v6761 = vshll.u32 %v4674, 16
  %v6763 = vrot.slane %v6761, 4
  %v6764 = vor.u32 %v6760, %v6763
  %v6765 = vsel %vm5111, %v6712, %v6764
  %v6767 = vshrl.u32 %v4837, 16
  %v6769 = vrot.slane %v6767, 3
  %v6770 = vshll.u32 %v4837, 16
  %v6772 = vrot.slane %v6770, 4
  %v6773 = vor.u32 %v6769, %v6772
  %v6774 = vsel %vm5111, %v6721, %v6773
  %v6776 = vshrl.u32 %v4984, 16
  %v6778 = vrot.slane %v6776, 3
  %v6779 = vshll.u32 %v4984, 16
  %v6781 = vrot.slane %v6779, 4
  %v6782 = vor.u32 %v6778, %v6781
  %v6783 = vsel %vm5111, %v6730, %v6782
  %v6784 = vrot.slane %v4320, 3
  %v6785 = vrot.slane %v4316, 4
  %v6786 = vor.u32 %v6784, %v6785
  %v6787 = vsel %vm5111, %v6734, %v6786
  %v6789 = vshrl.u32 %v4327, 16
  %v6791 = vrot.slane %v6789, 3
  %v6792 = vshll.u32 %v4327, 16
  %v6794 = vrot.slane %v6792, 4
  %v6795 = vor.u32 %v6791, %v6794
  %v6796 = vsel %vm5111, %v6743, %v6795
  %v6798 = vshrl.u32 %v4575, 16
  %v6800 = vrot.slane %v6798, 3
  %v6801 = vshll.u32 %v4575, 16
  %v6803 = vrot.slane %v6801, 4
  %v6804 = vor.u32 %v6800, %v6803
  %v6805 = vsel %vm5111, %v6752, %v6804
  %v6807 = vshrl.u32 %v4676, 16
  %v6809 = vrot.slane %v6807, 3
  %v6810 = vshll.u32 %v4676, 16
  %v6812 = vrot.slane %v6810, 4
  %v6813 = vor.u32 %v6809, %v6812
  %v6814 = vsel %vm5111, %v6764, %v6813
  %v6816 = vshrl.u32 %v4841, 16
  %v6818 = vrot.slane %v6816, 3
  %v6819 = vshll.u32 %v4841, 16
  %v6821 = vrot.slane %v6819, 4
  %v6822 = vor.u32 %v6818, %v6821
  %v6823 = vsel %vm5111, %v6773, %v6822
  %v6825 = vshrl.u32 %v4986, 16
  %v6827 = vrot.slane %v6825, 3
  %v6828 = vshll.u32 %v4986, 16
  %v6830 = vrot.slane %v6828, 4
  %v6831 = vor.u32 %v6827, %v6830
  %v6832 = vsel %vm5111, %v6782, %v6831
  %v6833 = vrot.slane %v4328, 3
  %v6834 = vrot.slane %v4324, 4
  %v6835 = vor.u32 %v6833, %v6834
  %v6836 = vsel %vm5111, %v6786, %v6835
  %v6838 = vshrl.u32 %v4335, 16
  %v6840 = vrot.slane %v6838, 3
  %v6841 = vshll.u32 %v4335, 16
  %v6843 = vrot.slane %v6841, 4
  %v6844 = vor.u32 %v6840, %v6843
  %v6845 = vsel %vm5111, %v6795, %v6844
  %v6847 = vshrl.u32 %v4577, 16
  %v6849 = vrot.slane %v6847, 3
  %v6850 = vshll.u32 %v4577, 16
  %v6852 = vrot.slane %v6850, 4
  %v6853 = vor.u32 %v6849, %v6852
  %v6854 = vsel %vm5111, %v6804, %v6853
  %v6856 = vshrl.u32 %v4678, 16
  %v6858 = vrot.slane %v6856, 3
  %v6859 = vshll.u32 %v4678, 16
  %v6861 = vrot.slane %v6859, 4
  %v6862 = vor.u32 %v6858, %v6861
  %v6863 = vsel %vm5111, %v6813, %v6862
  %v6865 = vshrl.u32 %v4845, 16
  %v6867 = vrot.slane %v6865, 3
  %v6868 = vshll.u32 %v4845, 16
  %v6870 = vrot.slane %v6868, 4
  %v6871 = vor.u32 %v6867, %v6870
  %v6872 = vsel %vm5111, %v6822, %v6871
  %v6874 = vshrl.u32 %v4988, 16
  %v6876 = vrot.slane %v6874, 3
  %v6877 = vshll.u32 %v4988, 16
  %v6879 = vrot.slane %v6877, 4
  %v6880 = vor.u32 %v6876, %v6879
  %v6881 = vsel %vm5111, %v6831, %v6880
  %v6882 = vrot.slane %v4336, 3
  %v6883 = vrot.slane %v4332, 4
  %v6884 = vor.u32 %v6882, %v6883
  %v6885 = vsel %vm5111, %v6835, %v6884
  %v6887 = vshrl.u32 %v4343, 16
  %v6889 = vrot.slane %v6887, 3
  %v6890 = vshll.u32 %v4343, 16
  %v6892 = vrot.slane %v6890, 4
  %v6893 = vor.u32 %v6889, %v6892
  %v6894 = vsel %vm5111, %v6844, %v6893
  %v6896 = vshrl.u32 %v4579, 16
  %v6898 = vrot.slane %v6896, 3
  %v6899 = vshll.u32 %v4579, 16
  %v6901 = vrot.slane %v6899, 4
  %v6902 = vor.u32 %v6898, %v6901
  %v6903 = vsel %vm5111, %v6853, %v6902
  %v6905 = vshrl.u32 %v4680, 16
  %v6907 = vrot.slane %v6905, 3
  %v6908 = vshll.u32 %v4680, 16
  %v6910 = vrot.slane %v6908, 4
  %v6911 = vor.u32 %v6907, %v6910
  %v6912 = vsel %vm5111, %v6862, %v6911
  %v6914 = vshrl.u32 %v4849, 16
  %v6916 = vrot.slane %v6914, 3
  %v6917 = vshll.u32 %v4849, 16
  %v6919 = vrot.slane %v6917, 4
  %v6920 = vor.u32 %v6916, %v6919
  %v6921 = vsel %vm5111, %v6871, %v6920
  %v6923 = vshrl.u32 %v4990, 16
  %v6925 = vrot.slane %v6923, 3
  %v6926 = vshll.u32 %v4990, 16
  %v6928 = vrot.slane %v6926, 4
  %v6929 = vor.u32 %v6925, %v6928
  %v6930 = vsel %vm5111, %v6880, %v6929
  %v6931 = vrot.slane %v4344, 3
  %v6932 = vrot.slane %v4340, 4
  %v6933 = vor.u32 %v6931, %v6932
  %v6934 = vsel %vm5111, %v6884, %v6933
  %v6936 = vshrl.u32 %v4351, 16
  %v6938 = vrot.slane %v6936, 3
  %v6939 = vshll.u32 %v4351, 16
  %v6941 = vrot.slane %v6939, 4
  %v6942 = vor.u32 %v6938, %v6941
  %v6943 = vsel %vm5111, %v6893, %v6942
  %v6945 = vshrl.u32 %v4581, 16
  %v6947 = vrot.slane %v6945, 3
  %v6948 = vshll.u32 %v4581, 16
  %v6950 = vrot.slane %v6948, 4
  %v6951 = vor.u32 %v6947, %v6950
  %v6952 = vsel %vm5111, %v6902, %v6951
  %v6954 = vshrl.u32 %v4682, 16
  %v6956 = vrot.slane %v6954, 3
  %v6957 = vshll.u32 %v4682, 16
  %v6959 = vrot.slane %v6957, 4
  %v6960 = vor.u32 %v6956, %v6959
  %v6961 = vsel %vm5111, %v6911, %v6960
  %v6963 = vshrl.u32 %v4853, 16
  %v6965 = vrot.slane %v6963, 3
  %v6966 = vshll.u32 %v4853, 16
  %v6968 = vrot.slane %v6966, 4
  %v6969 = vor.u32 %v6965, %v6968
  %v6970 = vsel %vm5111, %v6920, %v6969
  %v6972 = vshrl.u32 %v4992, 16
  %v6974 = vrot.slane %v6972, 3
  %v6975 = vshll.u32 %v4992, 16
  %v6977 = vrot.slane %v6975, 4
  %v6978 = vor.u32 %v6974, %v6977
  %v6979 = vsel %vm5111, %v6929, %v6978
  %v6980 = vrot.slane %v4352, 3
  %v6981 = vrot.slane %v4348, 4
  %v6982 = vor.u32 %v6980, %v6981
  %v6983 = vsel %vm5111, %v6933, %v6982
  %v6985 = vshrl.u32 %v4359, 16
  %v6987 = vrot.slane %v6985, 3
  %v6988 = vshll.u32 %v4359, 16
  %v6990 = vrot.slane %v6988, 4
  %v6991 = vor.u32 %v6987, %v6990
  %v6992 = vsel %vm5111, %v6942, %v6991
  %v6994 = vshrl.u32 %v4583, 16
  %v6996 = vrot.slane %v6994, 3
  %v6997 = vshll.u32 %v4583, 16
  %v6999 = vrot.slane %v6997, 4
  %v7000 = vor.u32 %v6996, %v6999
  %v7001 = vsel %vm5111, %v6951, %v7000
  %v7003 = vshrl.u32 %v4684, 16
  %v7005 = vrot.slane %v7003, 3
  %v7006 = vshll.u32 %v4684, 16
  %v7008 = vrot.slane %v7006, 4
  %v7009 = vor.u32 %v7005, %v7008
  %v7010 = vsel %vm5111, %v6960, %v7009
  %v7012 = vshrl.u32 %v4857, 16
  %v7014 = vrot.slane %v7012, 3
  %v7015 = vshll.u32 %v4857, 16
  %v7017 = vrot.slane %v7015, 4
  %v7018 = vor.u32 %v7014, %v7017
  %v7019 = vsel %vm5111, %v6969, %v7018
  %v7021 = vshrl.u32 %v4994, 16
  %v7023 = vrot.slane %v7021, 3
  %v7024 = vshll.u32 %v4994, 16
  %v7026 = vrot.slane %v7024, 4
  %v7027 = vor.u32 %v7023, %v7026
  %v7028 = vsel %vm5111, %v6978, %v7027
  %v7029 = vrot.slane %v4360, 3
  %v7030 = vrot.slane %v4356, 4
  %v7031 = vor.u32 %v7029, %v7030
  %v7032 = vsel %vm5111, %v6982, %v7031
  %v7034 = vshrl.u32 %v4367, 16
  %v7036 = vrot.slane %v7034, 3
  %v7037 = vshll.u32 %v4367, 16
  %v7039 = vrot.slane %v7037, 4
  %v7040 = vor.u32 %v7036, %v7039
  %v7041 = vsel %vm5111, %v6991, %v7040
  %v7043 = vshrl.u32 %v4585, 16
  %v7045 = vrot.slane %v7043, 3
  %v7046 = vshll.u32 %v4585, 16
  %v7048 = vrot.slane %v7046, 4
  %v7049 = vor.u32 %v7045, %v7048
  %v7050 = vsel %vm5111, %v7000, %v7049
  %v7052 = vshrl.u32 %v4686, 16
  %v7054 = vrot.slane %v7052, 3
  %v7055 = vshll.u32 %v4686, 16
  %v7057 = vrot.slane %v7055, 4
  %v7058 = vor.u32 %v7054, %v7057
  %v7059 = vsel %vm5111, %v7009, %v7058
  %v7061 = vshrl.u32 %v4861, 16
  %v7063 = vrot.slane %v7061, 3
  %v7064 = vshll.u32 %v4861, 16
  %v7066 = vrot.slane %v7064, 4
  %v7067 = vor.u32 %v7063, %v7066
  %v7068 = vsel %vm5111, %v7018, %v7067
  %v7070 = vshrl.u32 %v4996, 16
  %v7072 = vrot.slane %v7070, 3
  %v7073 = vshll.u32 %v4996, 16
  %v7075 = vrot.slane %v7073, 4
  %v7076 = vor.u32 %v7072, %v7075
  %v7077 = vsel %vm5111, %v7027, %v7076
  %v7078 = vrot.slane %v4368, 3
  %v7079 = vrot.slane %v4364, 4
  %v7080 = vor.u32 %v7078, %v7079
  %v7081 = vsel %vm5111, %v7031, %v7080
  %v7083 = vshrl.u32 %v4375, 16
  %v7085 = vrot.slane %v7083, 3
  %v7086 = vshll.u32 %v4375, 16
  %v7088 = vrot.slane %v7086, 4
  %v7089 = vor.u32 %v7085, %v7088
  %v7090 = vsel %vm5111, %v7040, %v7089
  %v7092 = vshrl.u32 %v4587, 16
  %v7094 = vrot.slane %v7092, 3
  %v7095 = vshll.u32 %v4587, 16
  %v7097 = vrot.slane %v7095, 4
  %v7098 = vor.u32 %v7094, %v7097
  %v7099 = vsel %vm5111, %v7049, %v7098
  %v7101 = vshrl.u32 %v4688, 16
  %v7103 = vrot.slane %v7101, 3
  %v7104 = vshll.u32 %v4688, 16
  %v7106 = vrot.slane %v7104, 4
  %v7107 = vor.u32 %v7103, %v7106
  %v7108 = vsel %vm5111, %v7058, %v7107
  %v7110 = vshrl.u32 %v4865, 16
  %v7112 = vrot.slane %v7110, 3
  %v7113 = vshll.u32 %v4865, 16
  %v7115 = vrot.slane %v7113, 4
  %v7116 = vor.u32 %v7112, %v7115
  %v7117 = vsel %vm5111, %v7067, %v7116
  %v7119 = vshrl.u32 %v4998, 16
  %v7121 = vrot.slane %v7119, 3
  %v7122 = vshll.u32 %v4998, 16
  %v7124 = vrot.slane %v7122, 4
  %v7125 = vor.u32 %v7121, %v7124
  %v7126 = vsel %vm5111, %v7076, %v7125
  %v7127 = vrot.slane %v4376, 3
  %v7128 = vrot.slane %v4372, 4
  %v7129 = vor.u32 %v7127, %v7128
  %v7130 = vsel %vm5111, %v7080, %v7129
  %v7132 = vshrl.u32 %v4383, 16
  %v7134 = vrot.slane %v7132, 3
  %v7135 = vshll.u32 %v4383, 16
  %v7137 = vrot.slane %v7135, 4
  %v7138 = vor.u32 %v7134, %v7137
  %v7139 = vsel %vm5111, %v7089, %v7138
  %v7141 = vshrl.u32 %v4589, 16
  %v7143 = vrot.slane %v7141, 3
  %v7144 = vshll.u32 %v4589, 16
  %v7146 = vrot.slane %v7144, 4
  %v7147 = vor.u32 %v7143, %v7146
  %v7148 = vsel %vm5111, %v7098, %v7147
  %v7150 = vshrl.u32 %v4690, 16
  %v7152 = vrot.slane %v7150, 3
  %v7153 = vshll.u32 %v4690, 16
  %v7155 = vrot.slane %v7153, 4
  %v7156 = vor.u32 %v7152, %v7155
  %v7157 = vsel %vm5111, %v7107, %v7156
  %v7159 = vshrl.u32 %v4869, 16
  %v7161 = vrot.slane %v7159, 3
  %v7162 = vshll.u32 %v4869, 16
  %v7164 = vrot.slane %v7162, 4
  %v7165 = vor.u32 %v7161, %v7164
  %v7166 = vsel %vm5111, %v7116, %v7165
  %v7168 = vshrl.u32 %v5000, 16
  %v7170 = vrot.slane %v7168, 3
  %v7171 = vshll.u32 %v5000, 16
  %v7173 = vrot.slane %v7171, 4
  %v7174 = vor.u32 %v7170, %v7173
  %v7175 = vsel %vm5111, %v7125, %v7174
  %v7176 = vrot.slane %v4384, 3
  %v7177 = vrot.slane %v4380, 4
  %v7178 = vor.u32 %v7176, %v7177
  %v7179 = vsel %vm5111, %v7129, %v7178
  %v7181 = vshrl.u32 %v4391, 16
  %v7183 = vrot.slane %v7181, 3
  %v7184 = vshll.u32 %v4391, 16
  %v7186 = vrot.slane %v7184, 4
  %v7187 = vor.u32 %v7183, %v7186
  %v7188 = vsel %vm5111, %v7138, %v7187
  %v7190 = vshrl.u32 %v4591, 16
  %v7192 = vrot.slane %v7190, 3
  %v7193 = vshll.u32 %v4591, 16
  %v7195 = vrot.slane %v7193, 4
  %v7196 = vor.u32 %v7192, %v7195
  %v7197 = vsel %vm5111, %v7147, %v7196
  %v7199 = vshrl.u32 %v4692, 16
  %v7201 = vrot.slane %v7199, 3
  %v7202 = vshll.u32 %v4692, 16
  %v7204 = vrot.slane %v7202, 4
  %v7205 = vor.u32 %v7201, %v7204
  %v7206 = vsel %vm5111, %v7156, %v7205
  %v7208 = vshrl.u32 %v4873, 16
  %v7210 = vrot.slane %v7208, 3
  %v7211 = vshll.u32 %v4873, 16
  %v7213 = vrot.slane %v7211, 4
  %v7214 = vor.u32 %v7210, %v7213
  %v7215 = vsel %vm5111, %v7165, %v7214
  %v7217 = vshrl.u32 %v5002, 16
  %v7219 = vrot.slane %v7217, 3
  %v7220 = vshll.u32 %v5002, 16
  %v7222 = vrot.slane %v7220, 4
  %v7223 = vor.u32 %v7219, %v7222
  %v7224 = vsel %vm5111, %v7174, %v7223
  %v7225 = vrot.slane %v4392, 3
  %v7226 = vrot.slane %v4388, 4
  %v7227 = vor.u32 %v7225, %v7226
  %v7228 = vsel %vm5111, %v7178, %v7227
  %v7230 = vshrl.u32 %v4399, 16
  %v7232 = vrot.slane %v7230, 3
  %v7233 = vshll.u32 %v4399, 16
  %v7235 = vrot.slane %v7233, 4
  %v7236 = vor.u32 %v7232, %v7235
  %v7237 = vsel %vm5111, %v7187, %v7236
  %v7239 = vshrl.u32 %v4593, 16
  %v7241 = vrot.slane %v7239, 3
  %v7242 = vshll.u32 %v4593, 16
  %v7244 = vrot.slane %v7242, 4
  %v7245 = vor.u32 %v7241, %v7244
  %v7246 = vsel %vm5111, %v7196, %v7245
  %v7248 = vshrl.u32 %v4694, 16
  %v7250 = vrot.slane %v7248, 3
  %v7251 = vshll.u32 %v4694, 16
  %v7253 = vrot.slane %v7251, 4
  %v7254 = vor.u32 %v7250, %v7253
  %v7255 = vsel %vm5111, %v7205, %v7254
  %v7257 = vshrl.u32 %v4877, 16
  %v7259 = vrot.slane %v7257, 3
  %v7260 = vshll.u32 %v4877, 16
  %v7262 = vrot.slane %v7260, 4
  %v7263 = vor.u32 %v7259, %v7262
  %v7264 = vsel %vm5111, %v7214, %v7263
  %v7266 = vshrl.u32 %v5004, 16
  %v7268 = vrot.slane %v7266, 3
  %v7269 = vshll.u32 %v5004, 16
  %v7271 = vrot.slane %v7269, 4
  %v7272 = vor.u32 %v7268, %v7271
  %v7273 = vsel %vm5111, %v7223, %v7272
  %v7274 = vrot.slane %v4400, 3
  %v7275 = vrot.slane %v4396, 4
  %v7276 = vor.u32 %v7274, %v7275
  %v7277 = vsel %vm5111, %v7227, %v7276
  %v7279 = vshrl.u32 %v4407, 16
  %v7281 = vrot.slane %v7279, 3
  %v7282 = vshll.u32 %v4407, 16
  %v7284 = vrot.slane %v7282, 4
  %v7285 = vor.u32 %v7281, %v7284
  %v7286 = vsel %vm5111, %v7236, %v7285
  %v7288 = vshrl.u32 %v4595, 16
  %v7290 = vrot.slane %v7288, 3
  %v7291 = vshll.u32 %v4595, 16
  %v7293 = vrot.slane %v7291, 4
  %v7294 = vor.u32 %v7290, %v7293
  %v7295 = vsel %vm5111, %v7245, %v7294
  %v7297 = vshrl.u32 %v4696, 16
  %v7299 = vrot.slane %v7297, 3
  %v7300 = vshll.u32 %v4696, 16
  %v7302 = vrot.slane %v7300, 4
  %v7303 = vor.u32 %v7299, %v7302
  %v7304 = vsel %vm5111, %v7254, %v7303
  %v7306 = vshrl.u32 %v4881, 16
  %v7308 = vrot.slane %v7306, 3
  %v7309 = vshll.u32 %v4881, 16
  %v7311 = vrot.slane %v7309, 4
  %v7312 = vor.u32 %v7308, %v7311
  %v7313 = vsel %vm5111, %v7263, %v7312
  %v7315 = vshrl.u32 %v5006, 16
  %v7317 = vrot.slane %v7315, 3
  %v7318 = vshll.u32 %v5006, 16
  %v7320 = vrot.slane %v7318, 4
  %v7321 = vor.u32 %v7317, %v7320
  %v7322 = vsel %vm5111, %v7272, %v7321
  %v7323 = vrot.slane %v4408, 3
  %v7324 = vrot.slane %v4404, 4
  %v7325 = vor.u32 %v7323, %v7324
  %v7326 = vsel %vm5111, %v7276, %v7325
  %v7328 = vshrl.u32 %v4415, 16
  %v7330 = vrot.slane %v7328, 3
  %v7331 = vshll.u32 %v4415, 16
  %v7333 = vrot.slane %v7331, 4
  %v7334 = vor.u32 %v7330, %v7333
  %v7335 = vsel %vm5111, %v7285, %v7334
  %v7337 = vshrl.u32 %v4597, 16
  %v7339 = vrot.slane %v7337, 3
  %v7340 = vshll.u32 %v4597, 16
  %v7342 = vrot.slane %v7340, 4
  %v7343 = vor.u32 %v7339, %v7342
  %v7344 = vsel %vm5111, %v7294, %v7343
  %v7346 = vshrl.u32 %v4698, 16
  %v7348 = vrot.slane %v7346, 3
  %v7349 = vshll.u32 %v4698, 16
  %v7351 = vrot.slane %v7349, 4
  %v7352 = vor.u32 %v7348, %v7351
  %v7353 = vsel %vm5111, %v7303, %v7352
  %v7355 = vshrl.u32 %v4885, 16
  %v7357 = vrot.slane %v7355, 3
  %v7358 = vshll.u32 %v4885, 16
  %v7360 = vrot.slane %v7358, 4
  %v7361 = vor.u32 %v7357, %v7360
  %v7362 = vsel %vm5111, %v7312, %v7361
  %v7364 = vshrl.u32 %v5008, 16
  %v7366 = vrot.slane %v7364, 3
  %v7367 = vshll.u32 %v5008, 16
  %v7369 = vrot.slane %v7367, 4
  %v7370 = vor.u32 %v7366, %v7369
  %v7371 = vsel %vm5111, %v7321, %v7370
  %v7372 = vrot.slane %v4416, 3
  %v7373 = vrot.slane %v4412, 4
  %v7374 = vor.u32 %v7372, %v7373
  %v7375 = vsel %vm5111, %v7325, %v7374
  %v7377 = vshrl.u32 %v4423, 16
  %v7379 = vrot.slane %v7377, 3
  %v7380 = vshll.u32 %v4423, 16
  %v7382 = vrot.slane %v7380, 4
  %v7383 = vor.u32 %v7379, %v7382
  %v7384 = vsel %vm5111, %v7334, %v7383
  %v7386 = vshrl.u32 %v4599, 16
  %v7388 = vrot.slane %v7386, 3
  %v7389 = vshll.u32 %v4599, 16
  %v7391 = vrot.slane %v7389, 4
  %v7392 = vor.u32 %v7388, %v7391
  %v7393 = vsel %vm5111, %v7343, %v7392
  %v7395 = vshrl.u32 %v4700, 16
  %v7397 = vrot.slane %v7395, 3
  %v7398 = vshll.u32 %v4700, 16
  %v7400 = vrot.slane %v7398, 4
  %v7401 = vor.u32 %v7397, %v7400
  %v7402 = vsel %vm5111, %v7352, %v7401
  %v7404 = vshrl.u32 %v4889, 16
  %v7406 = vrot.slane %v7404, 3
  %v7407 = vshll.u32 %v4889, 16
  %v7409 = vrot.slane %v7407, 4
  %v7410 = vor.u32 %v7406, %v7409
  %v7411 = vsel %vm5111, %v7361, %v7410
  %v7413 = vshrl.u32 %v5010, 16
  %v7415 = vrot.slane %v7413, 3
  %v7416 = vshll.u32 %v5010, 16
  %v7418 = vrot.slane %v7416, 4
  %v7419 = vor.u32 %v7415, %v7418
  %v7420 = vsel %vm5111, %v7370, %v7419
  %v7421 = vrot.slane %v4424, 3
  %v7422 = vrot.slane %v4420, 4
  %v7423 = vor.u32 %v7421, %v7422
  %v7424 = vsel %vm5111, %v7374, %v7423
  %v7426 = vshrl.u32 %v4431, 16
  %v7428 = vrot.slane %v7426, 3
  %v7429 = vshll.u32 %v4431, 16
  %v7431 = vrot.slane %v7429, 4
  %v7432 = vor.u32 %v7428, %v7431
  %v7433 = vsel %vm5111, %v7383, %v7432
  %v7435 = vshrl.u32 %v4601, 16
  %v7437 = vrot.slane %v7435, 3
  %v7438 = vshll.u32 %v4601, 16
  %v7440 = vrot.slane %v7438, 4
  %v7441 = vor.u32 %v7437, %v7440
  %v7442 = vsel %vm5111, %v7392, %v7441
  %v7444 = vshrl.u32 %v4702, 16
  %v7446 = vrot.slane %v7444, 3
  %v7447 = vshll.u32 %v4702, 16
  %v7449 = vrot.slane %v7447, 4
  %v7450 = vor.u32 %v7446, %v7449
  %v7451 = vsel %vm5111, %v7401, %v7450
  %v7453 = vshrl.u32 %v4893, 16
  %v7455 = vrot.slane %v7453, 3
  %v7456 = vshll.u32 %v4893, 16
  %v7458 = vrot.slane %v7456, 4
  %v7459 = vor.u32 %v7455, %v7458
  %v7460 = vsel %vm5111, %v7410, %v7459
  %v7462 = vshrl.u32 %v5012, 16
  %v7464 = vrot.slane %v7462, 3
  %v7465 = vshll.u32 %v5012, 16
  %v7467 = vrot.slane %v7465, 4
  %v7468 = vor.u32 %v7464, %v7467
  %v7469 = vsel %vm5111, %v7419, %v7468
  %v7470 = vrot.slane %v4432, 3
  %v7471 = vrot.slane %v4428, 4
  %v7472 = vor.u32 %v7470, %v7471
  %v7473 = vsel %vm5111, %v7423, %v7472
  %v7475 = vshrl.u32 %v4439, 16
  %v7477 = vrot.slane %v7475, 3
  %v7478 = vshll.u32 %v4439, 16
  %v7480 = vrot.slane %v7478, 4
  %v7481 = vor.u32 %v7477, %v7480
  %v7482 = vsel %vm5111, %v7432, %v7481
  %v7484 = vshrl.u32 %v4603, 16
  %v7486 = vrot.slane %v7484, 3
  %v7487 = vshll.u32 %v4603, 16
  %v7489 = vrot.slane %v7487, 4
  %v7490 = vor.u32 %v7486, %v7489
  %v7491 = vsel %vm5111, %v7441, %v7490
  %v7493 = vshrl.u32 %v4704, 16
  %v7495 = vrot.slane %v7493, 3
  %v7496 = vshll.u32 %v4704, 16
  %v7498 = vrot.slane %v7496, 4
  %v7499 = vor.u32 %v7495, %v7498
  %v7500 = vsel %vm5111, %v7450, %v7499
  %v7502 = vshrl.u32 %v4897, 16
  %v7504 = vrot.slane %v7502, 3
  %v7505 = vshll.u32 %v4897, 16
  %v7507 = vrot.slane %v7505, 4
  %v7508 = vor.u32 %v7504, %v7507
  %v7509 = vsel %vm5111, %v7459, %v7508
  %v7511 = vshrl.u32 %v5014, 16
  %v7513 = vrot.slane %v7511, 3
  %v7514 = vshll.u32 %v5014, 16
  %v7516 = vrot.slane %v7514, 4
  %v7517 = vor.u32 %v7513, %v7516
  %v7518 = vsel %vm5111, %v7468, %v7517
  %v7519 = vrot.slane %v4440, 3
  %v7520 = vrot.slane %v4436, 4
  %v7521 = vor.u32 %v7519, %v7520
  %v7522 = vsel %vm5111, %v7472, %v7521
  %v7524 = vshrl.u32 %v4447, 16
  %v7526 = vrot.slane %v7524, 3
  %v7527 = vshll.u32 %v4447, 16
  %v7529 = vrot.slane %v7527, 4
  %v7530 = vor.u32 %v7526, %v7529
  %v7531 = vsel %vm5111, %v7481, %v7530
  %v7533 = vshrl.u32 %v4605, 16
  %v7535 = vrot.slane %v7533, 3
  %v7536 = vshll.u32 %v4605, 16
  %v7538 = vrot.slane %v7536, 4
  %v7539 = vor.u32 %v7535, %v7538
  %v7540 = vsel %vm5111, %v7490, %v7539
  %v7542 = vshrl.u32 %v4706, 16
  %v7544 = vrot.slane %v7542, 3
  %v7545 = vshll.u32 %v4706, 16
  %v7547 = vrot.slane %v7545, 4
  %v7548 = vor.u32 %v7544, %v7547
  %v7549 = vsel %vm5111, %v7499, %v7548
  %v7551 = vshrl.u32 %v4901, 16
  %v7553 = vrot.slane %v7551, 3
  %v7554 = vshll.u32 %v4901, 16
  %v7556 = vrot.slane %v7554, 4
  %v7557 = vor.u32 %v7553, %v7556
  %v7558 = vsel %vm5111, %v7508, %v7557
  %v7560 = vshrl.u32 %v5016, 16
  %v7562 = vrot.slane %v7560, 3
  %v7563 = vshll.u32 %v5016, 16
  %v7565 = vrot.slane %v7563, 4
  %v7566 = vor.u32 %v7562, %v7565
  %v7567 = vsel %vm5111, %v7517, %v7566
  %v7568 = vrot.slane %v4448, 3
  %v7569 = vrot.slane %v4444, 4
  %v7570 = vor.u32 %v7568, %v7569
  %v7571 = vsel %vm5111, %v7521, %v7570
  %v7573 = vshrl.u32 %v5064, 16
  %v7575 = vrot.slane %v7573, 3
  %v7576 = vshll.u32 %v5064, 16
  %v7578 = vrot.slane %v7576, 4
  %v7579 = vor.u32 %v7575, %v7578
  %v7580 = vsel %vm5111, %v7530, %v7579
  %v7582 = vshrl.u32 %v5104, 16
  %v7584 = vrot.slane %v7582, 3
  %v7585 = vshll.u32 %v5104, 16
  %v7587 = vrot.slane %v7585, 4
  %v7588 = vor.u32 %v7584, %v7587
  %v7589 = vsel %vm5111, %v7539, %v7588
  %v7591 = vshrl.u32 %v4708, 16
  %v7593 = vrot.slane %v7591, 3
  %v7594 = vshll.u32 %v4708, 16
  %v7596 = vrot.slane %v7594, 4
  %v7597 = vor.u32 %v7593, %v7596
  %v7598 = vsel %vm5111, %v7548, %v7597
  %v7600 = vshrl.u32 %v4905, 16
  %v7602 = vrot.slane %v7600, 3
  %v7603 = vshll.u32 %v4905, 16
  %v7605 = vrot.slane %v7603, 4
  %v7606 = vor.u32 %v7602, %v7605
  %v7607 = vsel %vm5111, %v7557, %v7606
  %v7609 = vshrl.u32 %v5018, 16
  %v7611 = vrot.slane %v7609, 3
  %v7612 = vshll.u32 %v5018, 16
  %v7614 = vrot.slane %v7612, 4
  %v7615 = vor.u32 %v7611, %v7614
  %v7616 = vsel %vm5111, %v7566, %v7615
  %v7617 = vrot.slane %v4907, 3
  %v7618 = vrot.slane %v4910, 4
  %v7619 = vor.u32 %v7617, %v7618
  %v7620 = vsel %vm5111, %v7570, %v7619
  %v7622 = vshrl.u32 %v5067, 16
  %v7624 = vrot.slane %v7622, 3
  %v7625 = vshll.u32 %v5067, 16
  %v7627 = vrot.slane %v7625, 4
  %v7628 = vor.u32 %v7624, %v7627
  %v7629 = vsel %vm5111, %v7579, %v7628
  %v7631 = vshrl.u32 %v5106, 16
  %v7633 = vrot.slane %v7631, 3
  %v7634 = vshll.u32 %v5106, 16
  %v7636 = vrot.slane %v7634, 4
  %v7637 = vor.u32 %v7633, %v7636
  %v7638 = vsel %vm5111, %v7588, %v7637
  %v7640 = vshrl.u32 %v4710, 16
  %v7642 = vrot.slane %v7640, 3
  %v7643 = vshll.u32 %v4710, 16
  %v7645 = vrot.slane %v7643, 4
  %v7646 = vor.u32 %v7642, %v7645
  %v7647 = vsel %vm5111, %v7597, %v7646
  %v7649 = vshrl.u32 %v4914, 16
  %v7651 = vrot.slane %v7649, 3
  %v7652 = vshll.u32 %v4914, 16
  %v7654 = vrot.slane %v7652, 4
  %v7655 = vor.u32 %v7651, %v7654
  %v7656 = vsel %vm5111, %v7606, %v7655
  %v7658 = vshrl.u32 %v5020, 16
  %v7660 = vrot.slane %v7658, 3
  %v7661 = vshll.u32 %v5020, 16
  %v7663 = vrot.slane %v7661, 4
  %v7664 = vor.u32 %v7660, %v7663
  %v7665 = vsel %vm5111, %v7615, %v7664
  %v7666 = vrot.slane %v4916, 3
  %v7667 = vrot.slane %v4919, 4
  %v7668 = vor.u32 %v7666, %v7667
  %v7669 = vsel %vm5111, %v7619, %v7668
  %v7671 = vshrl.u32 %v5073, 16
  %v7673 = vrot.slane %v7671, 3
  %v7674 = vshll.u32 %v5073, 16
  %v7676 = vrot.slane %v7674, 4
  %v7677 = vor.u32 %v7673, %v7676
  %v7678 = vsel %vm5111, %v7628, %v7677
  %v7680 = vshrl.u32 %v5108, 16
  %v7682 = vrot.slane %v7680, 3
  %v7683 = vshll.u32 %v5108, 16
  %v7685 = vrot.slane %v7683, 4
  %v7686 = vor.u32 %v7682, %v7685
  %v7687 = vsel %vm5111, %v7637, %v7686
  %v7689 = vshrl.u32 %v4455, 16
  %v7691 = vrot.slane %v7689, 3
  %v7692 = vshll.u32 %v4455, 16
  %v7694 = vrot.slane %v7692, 4
  %v7695 = vor.u32 %v7691, %v7694
  %v7696 = vsel %vm5111, %v7530, %v7695
  %v7698 = vshrl.u32 %v4607, 16
  %v7700 = vrot.slane %v7698, 3
  %v7701 = vshll.u32 %v4607, 16
  %v7703 = vrot.slane %v7701, 4
  %v7704 = vor.u32 %v7700, %v7703
  %v7705 = vsel %vm5111, %v7539, %v7704
  %v7707 = vshrl.u32 %v4712, 16
  %v7709 = vrot.slane %v7707, 3
  %v7710 = vshll.u32 %v4712, 16
  %v7712 = vrot.slane %v7710, 4
  %v7713 = vor.u32 %v7709, %v7712
  %v7714 = vsel %vm5111, %v7646, %v7713
  %v7716 = vshrl.u32 %v4923, 16
  %v7718 = vrot.slane %v7716, 3
  %v7719 = vshll.u32 %v4923, 16
  %v7721 = vrot.slane %v7719, 4
  %v7722 = vor.u32 %v7718, %v7721
  %v7723 = vsel %vm5111, %v7655, %v7722
  %v7725 = vshrl.u32 %v5022, 16
  %v7727 = vrot.slane %v7725, 3
  %v7728 = vshll.u32 %v5022, 16
  %v7730 = vrot.slane %v7728, 4
  %v7731 = vor.u32 %v7727, %v7730
  %v7732 = vsel %vm5111, %v7664, %v7731
  %v7733 = vrot.slane %v5074, 3
  %v7734 = vrot.slane %v5070, 4
  %v7735 = vor.u32 %v7733, %v7734
  %v7736 = vsel %vm5111, %v7668, %v7735
  %v7738 = vshrl.u32 %v5081, 16
  %v7740 = vrot.slane %v7738, 3
  %v7741 = vshll.u32 %v5081, 16
  %v7743 = vrot.slane %v7741, 4
  %v7744 = vor.u32 %v7740, %v7743
  %v7745 = vsel %vm5111, %v7677, %v7744
  %v7747 = vshrl.u32 %v5110, 16
  %v7749 = vrot.slane %v7747, 3
  %v7750 = vshll.u32 %v5110, 16
  %v7752 = vrot.slane %v7750, 4
  %v7753 = vor.u32 %v7749, %v7752
  %v7754 = vsel %vm5111, %v7686, %v7753
  %v7755 = vrot.slane %v4456, 3
  %v7756 = vrot.slane %v4452, 4
  %v7757 = vor.u32 %v7755, %v7756
  %v7758 = vsel %vm5111, %v7570, %v7757
  %v7760 = vshrl.u32 %v4458, 16
  %v7762 = vrot.slane %v7760, 3
  %v7763 = vshll.u32 %v4458, 16
  %v7765 = vrot.slane %v7763, 4
  %v7766 = vor.u32 %v7762, %v7765
  %v7767 = vsel %vm5111, %v7695, %v7766
  %v7769 = vshrl.u32 %v4606, 16
  %v7771 = vrot.slane %v7769, 3
  %v7772 = vshll.u32 %v4606, 16
  %v7774 = vrot.slane %v7772, 4
  %v7775 = vor.u32 %v7771, %v7774
  %v7776 = vsel %vm5111, %v7704, %v7775
  %v7778 = vshrl.u32 %v4711, 16
  %v7780 = vrot.slane %v7778, 3
  %v7781 = vshll.u32 %v4711, 16
  %v7783 = vrot.slane %v7781, 4
  %v7784 = vor.u32 %v7780, %v7783
  %v7785 = vsel %vm5111, %v7713, %v7784
  %v7787 = vshrl.u32 %v4922, 16
  %v7789 = vrot.slane %v7787, 3
  %v7790 = vshll.u32 %v4922, 16
  %v7792 = vrot.slane %v7790, 4
  %v7793 = vor.u32 %v7789, %v7792
  %v7794 = vsel %vm5111, %v7722, %v7793
  %v7796 = vshrl.u32 %v5024, 16
  %v7798 = vrot.slane %v7796, 3
  %v7799 = vshll.u32 %v5024, 16
  %v7801 = vrot.slane %v7799, 4
  %v7802 = vor.u32 %v7798, %v7801
  %v7803 = vsel %vm5111, %v7731, %v7802
  %v7804 = vrot.slane %v5082, 3
  %v7805 = vrot.slane %v5078, 4
  %v7806 = vor.u32 %v7804, %v7805
  %v7807 = vsel %vm5111, %v7735, %v7806
  %v7809 = vshrl.u32 %v5084, 16
  %v7811 = vrot.slane %v7809, 3
  %v7812 = vshll.u32 %v5084, 16
  %v7814 = vrot.slane %v7812, 4
  %v7815 = vor.u32 %v7811, %v7814
  %v7816 = vsel %vm5111, %v7744, %v7815
  %v7818 = vshrl.u32 %v5109, 16
  %v7820 = vrot.slane %v7818, 3
  %v7821 = vshll.u32 %v5109, 16
  %v7823 = vrot.slane %v7821, 4
  %v7824 = vor.u32 %v7820, %v7823
  %v7825 = vsel %vm5111, %v7753, %v7824
  %v8148 = vld [vmem:[%s4] sm:$0xf]
  %v8149 = vld [vmem:[%s4 + $0x4] sm:$0xf]
  %v8150 = vld [vmem:[%s4 + $0x8] sm:$0xf]
  %v8151 = vld [vmem:[%s4 + $0xc] sm:$0xf]
  %v8152 = vld [vmem:[%s4 + $0x10] sm:$0xf]
  %v8153 = vld [vmem:[%s4 + $0x14] sm:$0xf]
  %v8154 = vld [vmem:[%s4 + $0x18] sm:$0xf]
  %v8155 = vld [vmem:[%s4 + $0x1c] sm:$0xf]
  %v8156 = vld [vmem:[%s4 + $0x20] sm:$0xf]
  %v8157 = vld [vmem:[%s4 + $0x24] sm:$0xf]
  %v8158 = vld [vmem:[%s4 + $0x28] sm:$0xf]
  %v8159 = vld [vmem:[%s4 + $0x2c] sm:$0xf]
  %v8160 = vld [vmem:[%s4 + $0x30] sm:$0xf]
  %v8161 = vld [vmem:[%s4 + $0x34] sm:$0xf]
  %v8162 = vld [vmem:[%s4 + $0x38] sm:$0xf]
  %v8163 = vld [vmem:[%s4 + $0x3c] sm:$0xf]
  %v8164 = vld [vmem:[%s4 + $0x40] sm:$0xf]
  %v8165 = vld [vmem:[%s4 + $0x44] sm:$0xf]
  %v8166 = vld [vmem:[%s4 + $0x48] sm:$0xf]
  %v8167 = vld [vmem:[%s4 + $0x4c] sm:$0xf]
  %v8168 = vld [vmem:[%s4 + $0x50] sm:$0xf]
  %v8169 = vld [vmem:[%s4 + $0x54] sm:$0xf]
  %v8170 = vld [vmem:[%s4 + $0x58] sm:$0xf]
  %v8171 = vld [vmem:[%s4 + $0x5c] sm:$0xf]
  %v8172 = vld [vmem:[%s4 + $0x60] sm:$0xf]
  %v8173 = vld [vmem:[%s4 + $0x64] sm:$0xf]
  %v8174 = vld [vmem:[%s4 + $0x68] sm:$0xf]
  %v8175 = vld [vmem:[%s4 + $0x6c] sm:$0xf]
  %v8176 = vld [vmem:[%s4 + $0x70] sm:$0xf]
  %v8177 = vld [vmem:[%s4 + $0x74] sm:$0xf]
  %v8178 = vld [vmem:[%s4 + $0x78] sm:$0xf]
  %v8179 = vld [vmem:[%s4 + $0x7c] sm:$0xf]
  %v8180 = vld [vmem:[%s4 + $0x80] sm:$0xf]
  %v8181 = vld [vmem:[%s4 + $0x84] sm:$0xf]
  %v8182 = vld [vmem:[%s4 + $0x88] sm:$0xf]
  %v8183 = vld [vmem:[%s4 + $0x8c] sm:$0xf]
  %v8184 = vld [vmem:[%s4 + $0x90] sm:$0xf]
  %v8185 = vld [vmem:[%s4 + $0x94] sm:$0xf]
  %v8186 = vld [vmem:[%s4 + $0x98] sm:$0xf]
  %v8187 = vld [vmem:[%s4 + $0x9c] sm:$0xf]
  %v8188 = vld [vmem:[%s4 + $0xa0] sm:$0xf]
  %v8189 = vld [vmem:[%s4 + $0xa4] sm:$0xf]
  %v8190 = vld [vmem:[%s4 + $0xa8] sm:$0xf]
  %v8191 = vld [vmem:[%s4 + $0xac] sm:$0xf]
  %v8192 = vld [vmem:[%s4 + $0xb0] sm:$0xf]
  %v8193 = vld [vmem:[%s4 + $0xb4] sm:$0xf]
  %v8194 = vld [vmem:[%s4 + $0xb8] sm:$0xf]
  %v8195 = vld [vmem:[%s4 + $0xbc] sm:$0xf]
  %v8196 = vld [vmem:[%s4 + $0xc0] sm:$0xf]
  %v8197 = vld [vmem:[%s4 + $0xc4] sm:$0xf]
  %v8198 = vld [vmem:[%s4 + $0xc8] sm:$0xf]
  %v8199 = vld [vmem:[%s4 + $0xcc] sm:$0xf]
  %v8200 = vld [vmem:[%s4 + $0xd0] sm:$0xf]
  %v8201 = vld [vmem:[%s4 + $0xd4] sm:$0xf]
  %v8202 = vld [vmem:[%s4 + $0xd8] sm:$0xf]
  %v8203 = vld [vmem:[%s4 + $0xdc] sm:$0xf]
  %v8204 = vld [vmem:[%s4 + $0xe0] sm:$0xf]
  %v8205 = vld [vmem:[%s4 + $0xe4] sm:$0xf]
  %v8206 = vld [vmem:[%s4 + $0xe8] sm:$0xf]
  %v8207 = vld [vmem:[%s4 + $0xec] sm:$0xf]
  %v8208 = vld [vmem:[%s4 + $0xf0] sm:$0xf]
  %v8209 = vld [vmem:[%s4 + $0xf4] sm:$0xf]
  %v8210 = vld [vmem:[%s4 + $0xf8] sm:$0xf]
  %v8211 = vld [vmem:[%s4 + $0xfc] sm:$0xf]
  %v8212 = vld [vmem:[%s4 + $0x100] sm:$0xf]
  %v8213 = vld [vmem:[%s4 + $0x104] sm:$0xf]
  %v8214 = vld [vmem:[%s4 + $0x108] sm:$0xf]
  %v8215 = vld [vmem:[%s4 + $0x10c] sm:$0xf]
  %v8216 = vld [vmem:[%s4 + $0x110] sm:$0xf]
  %v8217 = vld [vmem:[%s4 + $0x114] sm:$0xf]
  %v8218 = vld [vmem:[%s4 + $0x118] sm:$0xf]
  %v8219 = vld [vmem:[%s4 + $0x11c] sm:$0xf]
  %v8220 = vld [vmem:[%s4 + $0x120] sm:$0xf]
  %v8221 = vld [vmem:[%s4 + $0x124] sm:$0xf]
  %v8222 = vld [vmem:[%s4 + $0x128] sm:$0xf]
  %v8223 = vld [vmem:[%s4 + $0x12c] sm:$0xf]
  %v8224 = vld [vmem:[%s4 + $0x130] sm:$0xf]
  %v8225 = vld [vmem:[%s4 + $0x134] sm:$0xf]
  %v8226 = vld [vmem:[%s4 + $0x138] sm:$0xf]
  %v8227 = vld [vmem:[%s4 + $0x13c] sm:$0xf]
  %v8228 = vld [vmem:[%s4 + $0x140] sm:$0xf]
  %v8229 = vld [vmem:[%s4 + $0x144] sm:$0xf]
  %v8230 = vld [vmem:[%s4 + $0x148] sm:$0xf]
  %v8231 = vld [vmem:[%s4 + $0x14c] sm:$0xf]
  %v8232 = vld [vmem:[%s4 + $0x150] sm:$0xf]
  %v8233 = vld [vmem:[%s4 + $0x154] sm:$0xf]
  %v8234 = vld [vmem:[%s4 + $0x158] sm:$0xf]
  %v8235 = vld [vmem:[%s4 + $0x15c] sm:$0xf]
  %v8236 = vld [vmem:[%s4 + $0x160] sm:$0xf]
  %v8237 = vld [vmem:[%s4 + $0x164] sm:$0xf]
  %v8238 = vld [vmem:[%s4 + $0x168] sm:$0xf]
  %v8239 = vld [vmem:[%s4 + $0x16c] sm:$0xf]
  %v8240 = vld [vmem:[%s4 + $0x170] sm:$0xf]
  %v8241 = vld [vmem:[%s4 + $0x174] sm:$0xf]
  %v8242 = vld [vmem:[%s4 + $0x178] sm:$0xf]
  %v8243 = vld [vmem:[%s4 + $0x17c] sm:$0xf]
  %v8244 = vld [vmem:[%s4 + $0x180] sm:$0xf]
  %v8245 = vld [vmem:[%s4 + $0x184] sm:$0xf]
  %v8246 = vld [vmem:[%s4 + $0x188] sm:$0xf]
  %v8247 = vld [vmem:[%s4 + $0x18c] sm:$0xf]
  %v8248 = vld [vmem:[%s4 + $0x190] sm:$0xf]
  %v8249 = vld [vmem:[%s4 + $0x194] sm:$0xf]
  %v8250 = vld [vmem:[%s4 + $0x198] sm:$0xf]
  %v8251 = vld [vmem:[%s4 + $0x19c] sm:$0xf]
  %v8252 = vld [vmem:[%s4 + $0x1a0] sm:$0xf]
  %v8253 = vld [vmem:[%s4 + $0x1a4] sm:$0xf]
  %v8254 = vld [vmem:[%s4 + $0x1a8] sm:$0xf]
  %v8255 = vld [vmem:[%s4 + $0x1ac] sm:$0xf]
  %v8256 = vld [vmem:[%s4 + $0x1b0] sm:$0xf]
  %v8257 = vld [vmem:[%s4 + $0x1b4] sm:$0xf]
  %v8258 = vld [vmem:[%s4 + $0x1b8] sm:$0xf]
  %v8259 = vld [vmem:[%s4 + $0x1bc] sm:$0xf]
  %v8260 = vld [vmem:[%s4 + $0x1c0] sm:$0xf]
  %v8261 = vld [vmem:[%s4 + $0x1c4] sm:$0xf]
  %v8262 = vld [vmem:[%s4 + $0x1c8] sm:$0xf]
  %v8263 = vld [vmem:[%s4 + $0x1cc] sm:$0xf]
  %v8264 = vld [vmem:[%s4 + $0x1d0] sm:$0xf]
  %v8265 = vld [vmem:[%s4 + $0x1d4] sm:$0xf]
  %v8266 = vld [vmem:[%s4 + $0x1d8] sm:$0xf]
  %v8267 = vld [vmem:[%s4 + $0x1dc] sm:$0xf]
  %v8268 = vld [vmem:[%s4 + $0x1e0] sm:$0xf]
  %v8269 = vld [vmem:[%s4 + $0x1e4] sm:$0xf]
  %v8270 = vld [vmem:[%s4 + $0x1e8] sm:$0xf]
  %v8271 = vld [vmem:[%s4 + $0x1ec] sm:$0xf]
  %v8272 = vld [vmem:[%s4 + $0x1f0] sm:$0xf]
  %v8273 = vld [vmem:[%s4 + $0x1f4] sm:$0xf]
  %v8274 = vld [vmem:[%s4 + $0x1f8] sm:$0xf]
  %v8275 = vld [vmem:[%s4 + $0x1fc] sm:$0xf]
  %v8276 = vld [vmem:[%s4 + $0x200] sm:$0xf]
  %v8277 = vld [vmem:[%s4 + $0x204] sm:$0xf]
  %v8278 = vld [vmem:[%s4 + $0x208] sm:$0xf]
  %v8279 = vld [vmem:[%s4 + $0x20c] sm:$0xf]
  %v8280 = vld [vmem:[%s4 + $0x210] sm:$0xf]
  %v8281 = vld [vmem:[%s4 + $0x214] sm:$0xf]
  %v8282 = vld [vmem:[%s4 + $0x218] sm:$0xf]
  %v8283 = vld [vmem:[%s4 + $0x21c] sm:$0xf]
  %v8284 = vld [vmem:[%s4 + $0x220] sm:$0xf]
  %v8285 = vld [vmem:[%s4 + $0x224] sm:$0xf]
  %v8286 = vld [vmem:[%s4 + $0x228] sm:$0xf]
  %v8287 = vld [vmem:[%s4 + $0x22c] sm:$0xf]
  %v8288 = vld [vmem:[%s4 + $0x230] sm:$0xf]
  %v8289 = vld [vmem:[%s4 + $0x234] sm:$0xf]
  %v8290 = vld [vmem:[%s4 + $0x238] sm:$0xf]
  %v8291 = vld [vmem:[%s4 + $0x23c] sm:$0xf]
  %v8436 = vunpack.c.l.b16 %v8148
  %v8437 = vunpack.c.l.b16 %v8149
  %v8438 = vunpack.c.l.b16 %v8150
  %v8439 = vunpack.c.l.b16 %v8151
  %v8440 = vunpack.c.l.b16 %v8152
  %v8441 = vunpack.c.l.b16 %v8153
  %v8442 = vunpack.c.l.b16 %v8154
  %v8443 = vunpack.c.l.b16 %v8155
  %v8444 = vunpack.c.l.b16 %v8156
  %v8445 = vunpack.c.l.b16 %v8157
  %v8446 = vunpack.c.l.b16 %v8158
  %v8447 = vunpack.c.l.b16 %v8159
  %v8448 = vunpack.c.l.b16 %v8160
  %v8449 = vunpack.c.l.b16 %v8161
  %v8450 = vunpack.c.l.b16 %v8162
  %v8451 = vunpack.c.l.b16 %v8163
  %v8452 = vunpack.c.l.b16 %v8164
  %v8453 = vunpack.c.l.b16 %v8165
  %v8454 = vunpack.c.l.b16 %v8166
  %v8455 = vunpack.c.l.b16 %v8167
  %v8456 = vunpack.c.l.b16 %v8168
  %v8457 = vunpack.c.l.b16 %v8169
  %v8458 = vunpack.c.l.b16 %v8170
  %v8459 = vunpack.c.l.b16 %v8171
  %v8460 = vunpack.c.l.b16 %v8172
  %v8461 = vunpack.c.l.b16 %v8173
  %v8462 = vunpack.c.l.b16 %v8174
  %v8463 = vunpack.c.l.b16 %v8175
  %v8464 = vunpack.c.l.b16 %v8176
  %v8465 = vunpack.c.l.b16 %v8177
  %v8466 = vunpack.c.l.b16 %v8178
  %v8467 = vunpack.c.l.b16 %v8179
  %v8468 = vunpack.c.l.b16 %v8180
  %v8469 = vunpack.c.l.b16 %v8181
  %v8470 = vunpack.c.l.b16 %v8182
  %v8471 = vunpack.c.l.b16 %v8183
  %v8472 = vunpack.c.l.b16 %v8184
  %v8473 = vunpack.c.l.b16 %v8185
  %v8474 = vunpack.c.l.b16 %v8186
  %v8475 = vunpack.c.l.b16 %v8187
  %v8476 = vunpack.c.l.b16 %v8188
  %v8477 = vunpack.c.l.b16 %v8189
  %v8478 = vunpack.c.l.b16 %v8190
  %v8479 = vunpack.c.l.b16 %v8191
  %v8480 = vunpack.c.l.b16 %v8192
  %v8481 = vunpack.c.l.b16 %v8193
  %v8482 = vunpack.c.l.b16 %v8194
  %v8483 = vunpack.c.l.b16 %v8195
  %v8484 = vunpack.c.l.b16 %v8196
  %v8485 = vunpack.c.l.b16 %v8197
  %v8486 = vunpack.c.l.b16 %v8198
  %v8487 = vunpack.c.l.b16 %v8199
  %v8488 = vunpack.c.l.b16 %v8200
  %v8489 = vunpack.c.l.b16 %v8201
  %v8490 = vunpack.c.l.b16 %v8202
  %v8491 = vunpack.c.l.b16 %v8203
  %v8492 = vunpack.c.l.b16 %v8204
  %v8493 = vunpack.c.l.b16 %v8205
  %v8494 = vunpack.c.l.b16 %v8206
  %v8495 = vunpack.c.l.b16 %v8207
  %v8496 = vunpack.c.l.b16 %v8208
  %v8497 = vunpack.c.l.b16 %v8209
  %v8498 = vunpack.c.l.b16 %v8210
  %v8499 = vunpack.c.l.b16 %v8211
  %v8500 = vunpack.c.l.b16 %v8212
  %v8501 = vunpack.c.l.b16 %v8213
  %v8502 = vunpack.c.l.b16 %v8214
  %v8503 = vunpack.c.l.b16 %v8215
  %v8504 = vunpack.c.l.b16 %v8216
  %v8505 = vunpack.c.l.b16 %v8217
  %v8506 = vunpack.c.l.b16 %v8218
  %v8507 = vunpack.c.l.b16 %v8219
  %v8508 = vunpack.c.l.b16 %v8220
  %v8509 = vunpack.c.l.b16 %v8221
  %v8510 = vunpack.c.l.b16 %v8222
  %v8511 = vunpack.c.l.b16 %v8223
  %v8512 = vunpack.c.l.b16 %v8224
  %v8513 = vunpack.c.l.b16 %v8225
  %v8514 = vunpack.c.l.b16 %v8226
  %v8515 = vunpack.c.l.b16 %v8227
  %v8516 = vunpack.c.l.b16 %v8228
  %v8517 = vunpack.c.l.b16 %v8229
  %v8518 = vunpack.c.l.b16 %v8230
  %v8519 = vunpack.c.l.b16 %v8231
  %v8520 = vunpack.c.l.b16 %v8232
  %v8521 = vunpack.c.l.b16 %v8233
  %v8522 = vunpack.c.l.b16 %v8234
  %v8523 = vunpack.c.l.b16 %v8235
  %v8524 = vunpack.c.l.b16 %v8236
  %v8525 = vunpack.c.l.b16 %v8237
  %v8526 = vunpack.c.l.b16 %v8238
  %v8527 = vunpack.c.l.b16 %v8239
  %v8528 = vunpack.c.l.b16 %v8240
  %v8529 = vunpack.c.l.b16 %v8241
  %v8530 = vunpack.c.l.b16 %v8242
  %v8531 = vunpack.c.l.b16 %v8243
  %v8532 = vunpack.c.l.b16 %v8244
  %v8533 = vunpack.c.l.b16 %v8245
  %v8534 = vunpack.c.l.b16 %v8246
  %v8535 = vunpack.c.l.b16 %v8247
  %v8536 = vunpack.c.l.b16 %v8248
  %v8537 = vunpack.c.l.b16 %v8249
  %v8538 = vunpack.c.l.b16 %v8250
  %v8539 = vunpack.c.l.b16 %v8251
  %v8540 = vunpack.c.l.b16 %v8252
  %v8541 = vunpack.c.l.b16 %v8253
  %v8542 = vunpack.c.l.b16 %v8254
  %v8543 = vunpack.c.l.b16 %v8255
  %v8544 = vunpack.c.l.b16 %v8256
  %v8545 = vunpack.c.l.b16 %v8257
  %v8546 = vunpack.c.l.b16 %v8258
  %v8547 = vunpack.c.l.b16 %v8259
  %v8548 = vunpack.c.l.b16 %v8260
  %v8549 = vunpack.c.l.b16 %v8261
  %v8550 = vunpack.c.l.b16 %v8262
  %v8551 = vunpack.c.l.b16 %v8263
  %v8552 = vunpack.c.l.b16 %v8264
  %v8553 = vunpack.c.l.b16 %v8265
  %v8554 = vunpack.c.l.b16 %v8266
  %v8555 = vunpack.c.l.b16 %v8267
  %v8556 = vunpack.c.l.b16 %v8268
  %v8557 = vunpack.c.l.b16 %v8269
  %v8558 = vunpack.c.l.b16 %v8270
  %v8559 = vunpack.c.l.b16 %v8271
  %v8560 = vunpack.c.l.b16 %v8272
  %v8561 = vunpack.c.l.b16 %v8273
  %v8562 = vunpack.c.l.b16 %v8274
  %v8563 = vunpack.c.l.b16 %v8275
  %v8564 = vunpack.c.l.b16 %v8276
  %v8565 = vunpack.c.l.b16 %v8277
  %v8566 = vunpack.c.l.b16 %v8278
  %v8567 = vunpack.c.l.b16 %v8279
  %v8568 = vunpack.c.l.b16 %v8280
  %v8569 = vunpack.c.l.b16 %v8281
  %v8570 = vunpack.c.l.b16 %v8282
  %v8571 = vunpack.c.l.b16 %v8283
  %v8572 = vunpack.c.l.b16 %v8284
  %v8573 = vunpack.c.l.b16 %v8285
  %v8574 = vunpack.c.l.b16 %v8286
  %v8575 = vunpack.c.l.b16 %v8287
  %v8576 = vunpack.c.l.b16 %v8288
  %v8577 = vunpack.c.l.b16 %v8289
  %v8578 = vunpack.c.l.b16 %v8290
  %v8579 = vunpack.c.l.b16 %v8291
  %v8580 = vpack.c.b16 %v8437, %v8436
  %v8581 = vpack.c.b16 %v8439, %v8438
  %v8582 = vpack.c.b16 %v8441, %v8440
  %v8583 = vpack.c.b16 %v8443, %v8442
  %v8584 = vpack.c.b16 %v8445, %v8444
  %v8585 = vpack.c.b16 %v8447, %v8446
  %v8586 = vpack.c.b16 %v8449, %v8448
  %v8587 = vpack.c.b16 %v8451, %v8450
  %v8588 = vpack.c.b16 %v8453, %v8452
  %v8589 = vpack.c.b16 %v8455, %v8454
  %v8590 = vpack.c.b16 %v8457, %v8456
  %v8591 = vpack.c.b16 %v8459, %v8458
  %v8592 = vpack.c.b16 %v8461, %v8460
  %v8593 = vpack.c.b16 %v8463, %v8462
  %v8594 = vpack.c.b16 %v8465, %v8464
  %v8595 = vpack.c.b16 %v8467, %v8466
  %v8596 = vpack.c.b16 %v8469, %v8468
  %v8597 = vpack.c.b16 %v8471, %v8470
  %v8598 = vpack.c.b16 %v8473, %v8472
  %v8599 = vpack.c.b16 %v8475, %v8474
  %v8600 = vpack.c.b16 %v8477, %v8476
  %v8601 = vpack.c.b16 %v8479, %v8478
  %v8602 = vpack.c.b16 %v8481, %v8480
  %v8603 = vpack.c.b16 %v8483, %v8482
  %v8604 = vpack.c.b16 %v8485, %v8484
  %v8605 = vpack.c.b16 %v8487, %v8486
  %v8606 = vpack.c.b16 %v8489, %v8488
  %v8607 = vpack.c.b16 %v8491, %v8490
  %v8608 = vpack.c.b16 %v8493, %v8492
  %v8609 = vpack.c.b16 %v8495, %v8494
  %v8610 = vpack.c.b16 %v8497, %v8496
  %v8611 = vpack.c.b16 %v8499, %v8498
  %v8612 = vpack.c.b16 %v8501, %v8500
  %v8613 = vpack.c.b16 %v8503, %v8502
  %v8614 = vpack.c.b16 %v8505, %v8504
  %v8615 = vpack.c.b16 %v8507, %v8506
  %v8616 = vpack.c.b16 %v8509, %v8508
  %v8617 = vpack.c.b16 %v8511, %v8510
  %v8618 = vpack.c.b16 %v8513, %v8512
  %v8619 = vpack.c.b16 %v8515, %v8514
  %v8620 = vpack.c.b16 %v8517, %v8516
  %v8621 = vpack.c.b16 %v8519, %v8518
  %v8622 = vpack.c.b16 %v8521, %v8520
  %v8623 = vpack.c.b16 %v8523, %v8522
  %v8624 = vpack.c.b16 %v8525, %v8524
  %v8625 = vpack.c.b16 %v8527, %v8526
  %v8626 = vpack.c.b16 %v8529, %v8528
  %v8627 = vpack.c.b16 %v8531, %v8530
  %v8628 = vpack.c.b16 %v8533, %v8532
  %v8629 = vpack.c.b16 %v8535, %v8534
  %v8630 = vpack.c.b16 %v8537, %v8536
  %v8631 = vpack.c.b16 %v8539, %v8538
  %v8632 = vpack.c.b16 %v8541, %v8540
  %v8633 = vpack.c.b16 %v8543, %v8542
  %v8634 = vpack.c.b16 %v8545, %v8544
  %v8635 = vpack.c.b16 %v8547, %v8546
  %v8636 = vpack.c.b16 %v8549, %v8548
  %v8637 = vpack.c.b16 %v8551, %v8550
  %v8638 = vpack.c.b16 %v8553, %v8552
  %v8639 = vpack.c.b16 %v8555, %v8554
  %v8640 = vpack.c.b16 %v8557, %v8556
  %v8641 = vpack.c.b16 %v8559, %v8558
  %v8642 = vpack.c.b16 %v8561, %v8560
  %v8643 = vpack.c.b16 %v8563, %v8562
  %v8644 = vpack.c.b16 %v8565, %v8564
  %v8645 = vpack.c.b16 %v8567, %v8566
  %v8646 = vpack.c.b16 %v8569, %v8568
  %v8647 = vpack.c.b16 %v8571, %v8570
  %v8648 = vpack.c.b16 %v8573, %v8572
  %v8649 = vpack.c.b16 %v8575, %v8574
  %v8650 = vpack.c.b16 %v8577, %v8576
  %v8651 = vpack.c.b16 %v8579, %v8578
  %8724 = vmatprep.subr.bf16.mxu0 0
  %8725 = vmatpush1.bf16.msra.mxu0 %v8580
  %8726 = vmatprep.subr.bf16.mxu0 0
  %8727 = vmatpush1.bf16.msra.mxu0 %v8581
  %8728 = vmatprep.subr.bf16.mxu0 0
  %8729 = vmatpush1.bf16.msra.mxu0 %v8582
  %8730 = vmatprep.subr.bf16.mxu0 0
  %8731 = vmatpush1.bf16.msra.mxu0 %v8583
  %8732 = vmatprep.subr.bf16.mxu0 0
  %8733 = vmatpush1.bf16.msra.mxu0 %v8584
  %8734 = vmatprep.subr.bf16.mxu0 0
  %8735 = vmatpush1.bf16.msra.mxu0 %v8585
  %8736 = vmatprep.subr.bf16.mxu0 0
  %8737 = vmatpush1.bf16.msra.mxu0 %v8586
  %8738 = vmatprep.subr.bf16.mxu0 0
  %8739 = vmatpush1.bf16.msra.mxu0 %v8587
  %8740 = vmatprep.subr.bf16.mxu0 0
  %8741 = vmatpush1.bf16.msra.mxu0 %v8588
  %8742 = vmatprep.subr.bf16.mxu0 0
  %8743 = vmatpush1.bf16.msra.mxu0 %v8589
  %8744 = vmatprep.subr.bf16.mxu0 0
  %8745 = vmatpush1.bf16.msra.mxu0 %v8590
  %8746 = vmatprep.subr.bf16.mxu0 0
  %8747 = vmatpush1.bf16.msra.mxu0 %v8591
  %8748 = vmatprep.subr.bf16.mxu0 0
  %8749 = vmatpush1.bf16.msra.mxu0 %v8592
  %8750 = vmatprep.subr.bf16.mxu0 0
  %8751 = vmatpush1.bf16.msra.mxu0 %v8593
  %8752 = vmatprep.subr.bf16.mxu0 0
  %8753 = vmatpush1.bf16.msra.mxu0 %v8594
  %8754 = vmatprep.subr.bf16.mxu0 0
  %8755 = vmatpush1.bf16.msra.mxu0 %v8595
  %8756 = vmatprep.mubr.bf16.mxu0 %v5140
  %8757 = vmatmul.mubr.bf16.gmra.mrb[0].mxu0 %v5123
  %v8758 = vpop.f32.mrb[0].mxu0
  %v8759 = vadd.f32 0.0, %v8758
  %v8760 = vpop.f32.mrb[0].mxu0
  %v8761 = vpop.f32.mrb[0].mxu0
  %v8762 = vadd.f32 0.0, %v8761
  %v8763 = vpop.f32.mrb[0].mxu0
  %8764 = vmatprep.mubr.bf16.mxu0 %v5267
  %8765 = vmatmul.mubr.bf16.gmra.mrb[0].mxu0 %v5258
  %v8766 = vpop.f32.mrb[0].mxu0
  %v8767 = vadd.f32 0.0, %v8766
  %v8768 = vpop.f32.mrb[0].mxu0
  %v8769 = vpop.f32.mrb[0].mxu0
  %v8770 = vadd.f32 0.0, %v8769
  %v8771 = vpop.f32.mrb[0].mxu0
  %8772 = vmatprep.mubr.bf16.mxu0 %v5338
  %8773 = vmatmul.mubr.bf16.gmra.mrb[0].mxu0 %v5329
  %v8774 = vpop.f32.mrb[0].mxu0
  %v8775 = vadd.f32 0.0, %v8774
  %v8776 = vpop.f32.mrb[0].mxu0
  %v8777 = vpop.f32.mrb[0].mxu0
  %v8778 = vadd.f32 0.0, %v8777
  %v8779 = vpop.f32.mrb[0].mxu0
  %8780 = vmatprep.mubr.bf16.mxu0 %v5398
  %8781 = vmatmul.mubr.bf16.gmra.mrb[0].mxu0 %v5397
  %v8782 = vpop.f32.mrb[0].mxu0
  %v8783 = vadd.f32 0.0, %v8782
  %v8784 = vpop.f32.mrb[0].mxu0
  %v8785 = vpop.f32.mrb[0].mxu0
  %v8786 = vadd.f32 0.0, %v8785
  %v8787 = vpop.f32.mrb[0].mxu0
  %8788 = vmatprep.mubr.bf16.mxu0 %v5316
  %8789 = vmatmul.mubr.bf16.gmra.mrb[0].mxu0 %v5307
  %v8790 = vpop.f32.mrb[0].mxu0
  %v8791 = vadd.f32 0.0, %v8790
  %v8792 = vpop.f32.mrb[0].mxu0
  %v8793 = vpop.f32.mrb[0].mxu0
  %v8794 = vadd.f32 0.0, %v8793
  %v8795 = vpop.f32.mrb[0].mxu0
  %8796 = vmatprep.mubr.bf16.mxu0 %v5387
  %8797 = vmatmul.mubr.bf16.gmra.mrb[0].mxu0 %v5378
  %v8798 = vpop.f32.mrb[0].mxu0
  %v8799 = vadd.f32 0.0, %v8798
  %v8800 = vpop.f32.mrb[0].mxu0
  %v8801 = vpop.f32.mrb[0].mxu0
  %v8802 = vadd.f32 0.0, %v8801
  %v8803 = vpop.f32.mrb[0].mxu0
  %8804 = vmatprep.mubr.bf16.mxu0 %v5439
  %8805 = vmatmul.mubr.bf16.gmra.mrb[0].mxu0 %v5430
  %v8806 = vpop.f32.mrb[0].mxu0
  %v8807 = vadd.f32 0.0, %v8806
  %v8808 = vpop.f32.mrb[0].mxu0
  %v8809 = vpop.f32.mrb[0].mxu0
  %v8810 = vadd.f32 0.0, %v8809
  %v8811 = vpop.f32.mrb[0].mxu0
  %8812 = vmatprep.mubr.bf16.mxu0 %v5488
  %8813 = vmatmul.mubr.bf16.gmra.mrb[0].mxu0 %v5479
  %v8814 = vpop.f32.mrb[0].mxu0
  %v8815 = vadd.f32 0.0, %v8814
  %v8816 = vpop.f32.mrb[0].mxu0
  %v8817 = vpop.f32.mrb[0].mxu0
  %v8818 = vadd.f32 0.0, %v8817
  %v8819 = vpop.f32.mrb[0].mxu0
  %8820 = vmatprep.mubr.bf16.mxu0 %v5537
  %8821 = vmatmul.mubr.bf16.gmra.mrb[0].mxu0 %v5528
  %v8822 = vpop.f32.mrb[0].mxu0
  %v8823 = vadd.f32 0.0, %v8822
  %v8824 = vpop.f32.mrb[0].mxu0
  %v8825 = vpop.f32.mrb[0].mxu0
  %v8826 = vadd.f32 0.0, %v8825
  %v8827 = vpop.f32.mrb[0].mxu0
  %8828 = vmatprep.mubr.bf16.mxu0 %v5586
  %8829 = vmatmul.mubr.bf16.gmra.mrb[0].mxu0 %v5577
  %v8830 = vpop.f32.mrb[0].mxu0
  %v8831 = vadd.f32 0.0, %v8830
  %v8832 = vpop.f32.mrb[0].mxu0
  %v8833 = vpop.f32.mrb[0].mxu0
  %v8834 = vadd.f32 0.0, %v8833
  %v8835 = vpop.f32.mrb[0].mxu0
  %8836 = vmatprep.mubr.bf16.mxu0 %v5635
  %8837 = vmatmul.mubr.bf16.gmra.mrb[0].mxu0 %v5626
  %v8838 = vpop.f32.mrb[0].mxu0
  %v8839 = vadd.f32 0.0, %v8838
  %v8840 = vpop.f32.mrb[0].mxu0
  %v8841 = vpop.f32.mrb[0].mxu0
  %v8842 = vadd.f32 0.0, %v8841
  %v8843 = vpop.f32.mrb[0].mxu0
  %8844 = vmatprep.mubr.bf16.mxu0 %v5684
  %8845 = vmatmul.mubr.bf16.gmra.mrb[0].mxu0 %v5675
  %v8846 = vpop.f32.mrb[0].mxu0
  %v8847 = vadd.f32 0.0, %v8846
  %v8848 = vpop.f32.mrb[0].mxu0
  %v8849 = vpop.f32.mrb[0].mxu0
  %v8850 = vadd.f32 0.0, %v8849
  %v8851 = vpop.f32.mrb[0].mxu0
  %8852 = vmatprep.mubr.bf16.mxu0 %v5733
  %8853 = vmatmul.mubr.bf16.gmra.mrb[0].mxu0 %v5724
  %v8854 = vpop.f32.mrb[0].mxu0
  %v8855 = vadd.f32 0.0, %v8854
  %v8856 = vpop.f32.mrb[0].mxu0
  %v8857 = vpop.f32.mrb[0].mxu0
  %v8858 = vadd.f32 0.0, %v8857
  %v8859 = vpop.f32.mrb[0].mxu0
  %8860 = vmatprep.mubr.bf16.mxu0 %v5782
  %8861 = vmatmul.mubr.bf16.gmra.mrb[0].mxu0 %v5773
  %v8862 = vpop.f32.mrb[0].mxu0
  %v8863 = vadd.f32 0.0, %v8862
  %v8864 = vpop.f32.mrb[0].mxu0
  %v8865 = vpop.f32.mrb[0].mxu0
  %v8866 = vadd.f32 0.0, %v8865
  %v8867 = vpop.f32.mrb[0].mxu0
  %8868 = vmatprep.mubr.bf16.mxu0 %v5831
  %8869 = vmatmul.mubr.bf16.gmra.mrb[0].mxu0 %v5822
  %v8870 = vpop.f32.mrb[0].mxu0
  %v8871 = vadd.f32 0.0, %v8870
  %v8872 = vpop.f32.mrb[0].mxu0
  %v8873 = vpop.f32.mrb[0].mxu0
  %v8874 = vadd.f32 0.0, %v8873
  %v8875 = vpop.f32.mrb[0].mxu0
  %8876 = vmatprep.mubr.bf16.mxu0 %v5880
  %8877 = vmatmul.mubr.bf16.gmra.mrb[0].mxu0 %v5871
  %v8878 = vpop.f32.mrb[0].mxu0
  %v8879 = vadd.f32 0.0, %v8878
  %v8880 = vpop.f32.mrb[0].mxu0
  %v8881 = vpop.f32.mrb[0].mxu0
  %v8882 = vadd.f32 0.0, %v8881
  %v8883 = vpop.f32.mrb[0].mxu0
  %8884 = vmatprep.mubr.bf16.mxu0 %v5929
  %8885 = vmatmul.mubr.bf16.gmra.mrb[0].mxu0 %v5920
  %v8886 = vpop.f32.mrb[0].mxu0
  %v8887 = vadd.f32 0.0, %v8886
  %v8888 = vpop.f32.mrb[0].mxu0
  %v8889 = vpop.f32.mrb[0].mxu0
  %v8890 = vadd.f32 0.0, %v8889
  %v8891 = vpop.f32.mrb[0].mxu0
  %8892 = vmatprep.mubr.bf16.mxu0 %v5978
  %8893 = vmatmul.mubr.bf16.gmra.mrb[0].mxu0 %v5969
  %v8894 = vpop.f32.mrb[0].mxu0
  %v8895 = vadd.f32 0.0, %v8894
  %v8896 = vpop.f32.mrb[0].mxu0
  %v8897 = vpop.f32.mrb[0].mxu0
  %v8898 = vadd.f32 0.0, %v8897
  %v8899 = vpop.f32.mrb[0].mxu0
  %8900 = vmatprep.mubr.bf16.mxu0 %v6027
  %8901 = vmatmul.mubr.bf16.gmra.mrb[0].mxu0 %v6018
  %v8902 = vpop.f32.mrb[0].mxu0
  %v8903 = vadd.f32 0.0, %v8902
  %v8904 = vpop.f32.mrb[0].mxu0
  %v8905 = vpop.f32.mrb[0].mxu0
  %v8906 = vadd.f32 0.0, %v8905
  %v8907 = vpop.f32.mrb[0].mxu0
  %8908 = vmatprep.mubr.bf16.mxu0 %v6076
  %8909 = vmatmul.mubr.bf16.gmra.mrb[0].mxu0 %v6067
  %v8910 = vpop.f32.mrb[0].mxu0
  %v8911 = vadd.f32 0.0, %v8910
  %v8912 = vpop.f32.mrb[0].mxu0
  %v8913 = vpop.f32.mrb[0].mxu0
  %v8914 = vadd.f32 0.0, %v8913
  %v8915 = vpop.f32.mrb[0].mxu0
  %8916 = vmatprep.mubr.bf16.mxu0 %v6125
  %8917 = vmatmul.mubr.bf16.gmra.mrb[0].mxu0 %v6116
  %v8918 = vpop.f32.mrb[0].mxu0
  %v8919 = vadd.f32 0.0, %v8918
  %v8920 = vpop.f32.mrb[0].mxu0
  %v8921 = vpop.f32.mrb[0].mxu0
  %v8922 = vadd.f32 0.0, %v8921
  %v8923 = vpop.f32.mrb[0].mxu0
  %8924 = vmatprep.mubr.bf16.mxu0 %v6174
  %8925 = vmatmul.mubr.bf16.gmra.mrb[0].mxu0 %v6165
  %v8926 = vpop.f32.mrb[0].mxu0
  %v8927 = vadd.f32 0.0, %v8926
  %v8928 = vpop.f32.mrb[0].mxu0
  %v8929 = vpop.f32.mrb[0].mxu0
  %v8930 = vadd.f32 0.0, %v8929
  %v8931 = vpop.f32.mrb[0].mxu0
  %8932 = vmatprep.mubr.bf16.mxu0 %v6339
  %8933 = vmatmul.mubr.bf16.gmra.mrb[0].mxu0 %v6214
  %v8934 = vpop.f32.mrb[0].mxu0
  %v8935 = vadd.f32 0.0, %v8934
  %v8936 = vpop.f32.mrb[0].mxu0
  %v8937 = vpop.f32.mrb[0].mxu0
  %v8938 = vadd.f32 0.0, %v8937
  %v8939 = vpop.f32.mrb[0].mxu0
  %8940 = vmatprep.mubr.bf16.mxu0 %v6410
  %8941 = vmatmul.mubr.bf16.gmra.mrb[0].mxu0 %v6401
  %v8942 = vpop.f32.mrb[0].mxu0
  %v8943 = vadd.f32 0.0, %v8942
  %v8944 = vpop.f32.mrb[0].mxu0
  %v8945 = vpop.f32.mrb[0].mxu0
  %v8946 = vadd.f32 0.0, %v8945
  %v8947 = vpop.f32.mrb[0].mxu0
  %8948 = vmatprep.mubr.bf16.mxu0 %v6497
  %8949 = vmatmul.mubr.bf16.gmra.mrb[0].mxu0 %v6480
  %v8950 = vpop.f32.mrb[0].mxu0
  %v8951 = vadd.f32 0.0, %v8950
  %v8952 = vpop.f32.mrb[0].mxu0
  %v8953 = vpop.f32.mrb[0].mxu0
  %v8954 = vadd.f32 0.0, %v8953
  %v8955 = vpop.f32.mrb[0].mxu0
  %8956 = vmatprep.mubr.bf16.mxu0 %v6624
  %8957 = vmatmul.mubr.bf16.gmra.mrb[0].mxu0 %v6615
  %v8958 = vpop.f32.mrb[0].mxu0
  %v8959 = vadd.f32 0.0, %v8958
  %v8960 = vpop.f32.mrb[0].mxu0
  %v8961 = vpop.f32.mrb[0].mxu0
  %v8962 = vadd.f32 0.0, %v8961
  %v8963 = vpop.f32.mrb[0].mxu0
  %8964 = vmatprep.mubr.bf16.mxu0 %v6695
  %8965 = vmatmul.mubr.bf16.gmra.mrb[0].mxu0 %v6686
  %v8966 = vpop.f32.mrb[0].mxu0
  %v8967 = vadd.f32 0.0, %v8966
  %v8968 = vpop.f32.mrb[0].mxu0
  %v8969 = vpop.f32.mrb[0].mxu0
  %v8970 = vadd.f32 0.0, %v8969
  %v8971 = vpop.f32.mrb[0].mxu0
  %8972 = vmatprep.mubr.bf16.mxu0 %v6755
  %8973 = vmatmul.mubr.bf16.gmra.mrb[0].mxu0 %v6754
  %v8974 = vpop.f32.mrb[0].mxu0
  %v8975 = vadd.f32 0.0, %v8974
  %v8976 = vpop.f32.mrb[0].mxu0
  %v8977 = vpop.f32.mrb[0].mxu0
  %v8978 = vadd.f32 0.0, %v8977
  %v8979 = vpop.f32.mrb[0].mxu0
  %8980 = vmatprep.mubr.bf16.mxu0 %v6673
  %8981 = vmatmul.mubr.bf16.gmra.mrb[0].mxu0 %v6664
  %v8982 = vpop.f32.mrb[0].mxu0
  %v8983 = vadd.f32 0.0, %v8982
  %v8984 = vpop.f32.mrb[0].mxu0
  %v8985 = vpop.f32.mrb[0].mxu0
  %v8986 = vadd.f32 0.0, %v8985
  %v8987 = vpop.f32.mrb[0].mxu0
  %8988 = vmatprep.mubr.bf16.mxu0 %v6744
  %8989 = vmatmul.mubr.bf16.gmra.mrb[0].mxu0 %v6735
  %v8990 = vpop.f32.mrb[0].mxu0
  %v8991 = vadd.f32 0.0, %v8990
  %v8992 = vpop.f32.mrb[0].mxu0
  %v8993 = vpop.f32.mrb[0].mxu0
  %v8994 = vadd.f32 0.0, %v8993
  %v8995 = vpop.f32.mrb[0].mxu0
  %8996 = vmatprep.mubr.bf16.mxu0 %v6796
  %8997 = vmatmul.mubr.bf16.gmra.mrb[0].mxu0 %v6787
  %v8998 = vpop.f32.mrb[0].mxu0
  %v8999 = vadd.f32 0.0, %v8998
  %v9000 = vpop.f32.mrb[0].mxu0
  %v9001 = vpop.f32.mrb[0].mxu0
  %v9002 = vadd.f32 0.0, %v9001
  %v9003 = vpop.f32.mrb[0].mxu0
  %9004 = vmatprep.mubr.bf16.mxu0 %v6845
  %9005 = vmatmul.mubr.bf16.gmra.mrb[0].mxu0 %v6836
  %v9006 = vpop.f32.mrb[0].mxu0
  %v9007 = vadd.f32 0.0, %v9006
  %v9008 = vpop.f32.mrb[0].mxu0
  %v9009 = vpop.f32.mrb[0].mxu0
  %v9010 = vadd.f32 0.0, %v9009
  %v9011 = vpop.f32.mrb[0].mxu0
  %9012 = vmatprep.mubr.bf16.mxu0 %v6894
  %9013 = vmatmul.mubr.bf16.gmra.mrb[0].mxu0 %v6885
  %v9014 = vpop.f32.mrb[0].mxu0
  %v9015 = vadd.f32 0.0, %v9014
  %v9016 = vpop.f32.mrb[0].mxu0
  %v9017 = vpop.f32.mrb[0].mxu0
  %v9018 = vadd.f32 0.0, %v9017
  %v9019 = vpop.f32.mrb[0].mxu0
  %9020 = vmatprep.mubr.bf16.mxu0 %v6943
  %9021 = vmatmul.mubr.bf16.gmra.mrb[0].mxu0 %v6934
  %v9022 = vpop.f32.mrb[0].mxu0
  %v9023 = vadd.f32 0.0, %v9022
  %v9024 = vpop.f32.mrb[0].mxu0
  %v9025 = vpop.f32.mrb[0].mxu0
  %v9026 = vadd.f32 0.0, %v9025
  %v9027 = vpop.f32.mrb[0].mxu0
  %9028 = vmatprep.mubr.bf16.mxu0 %v6992
  %9029 = vmatmul.mubr.bf16.gmra.mrb[0].mxu0 %v6983
  %v9030 = vpop.f32.mrb[0].mxu0
  %v9031 = vadd.f32 0.0, %v9030
  %v9032 = vpop.f32.mrb[0].mxu0
  %v9033 = vpop.f32.mrb[0].mxu0
  %v9034 = vadd.f32 0.0, %v9033
  %v9035 = vpop.f32.mrb[0].mxu0
  %9036 = vmatprep.mubr.bf16.mxu0 %v7041
  %9037 = vmatmul.mubr.bf16.gmra.mrb[0].mxu0 %v7032
  %v9038 = vpop.f32.mrb[0].mxu0
  %v9039 = vadd.f32 0.0, %v9038
  %v9040 = vpop.f32.mrb[0].mxu0
  %v9041 = vpop.f32.mrb[0].mxu0
  %v9042 = vadd.f32 0.0, %v9041
  %v9043 = vpop.f32.mrb[0].mxu0
  %9044 = vmatprep.mubr.bf16.mxu0 %v7090
  %9045 = vmatmul.mubr.bf16.gmra.mrb[0].mxu0 %v7081
  %v9046 = vpop.f32.mrb[0].mxu0
  %v9047 = vadd.f32 0.0, %v9046
  %v9048 = vpop.f32.mrb[0].mxu0
  %v9049 = vpop.f32.mrb[0].mxu0
  %v9050 = vadd.f32 0.0, %v9049
  %v9051 = vpop.f32.mrb[0].mxu0
  %9052 = vmatprep.mubr.bf16.mxu0 %v7139
  %9053 = vmatmul.mubr.bf16.gmra.mrb[0].mxu0 %v7130
  %v9054 = vpop.f32.mrb[0].mxu0
  %v9055 = vadd.f32 0.0, %v9054
  %v9056 = vpop.f32.mrb[0].mxu0
  %v9057 = vpop.f32.mrb[0].mxu0
  %v9058 = vadd.f32 0.0, %v9057
  %v9059 = vpop.f32.mrb[0].mxu0
  %9060 = vmatprep.mubr.bf16.mxu0 %v7188
  %9061 = vmatmul.mubr.bf16.gmra.mrb[0].mxu0 %v7179
  %v9062 = vpop.f32.mrb[0].mxu0
  %v9063 = vadd.f32 0.0, %v9062
  %v9064 = vpop.f32.mrb[0].mxu0
  %v9065 = vpop.f32.mrb[0].mxu0
  %v9066 = vadd.f32 0.0, %v9065
  %v9067 = vpop.f32.mrb[0].mxu0
  %9068 = vmatprep.mubr.bf16.mxu0 %v7237
  %9069 = vmatmul.mubr.bf16.gmra.mrb[0].mxu0 %v7228
  %v9070 = vpop.f32.mrb[0].mxu0
  %v9071 = vadd.f32 0.0, %v9070
  %v9072 = vpop.f32.mrb[0].mxu0
  %v9073 = vpop.f32.mrb[0].mxu0
  %v9074 = vadd.f32 0.0, %v9073
  %v9075 = vpop.f32.mrb[0].mxu0
  %9076 = vmatprep.mubr.bf16.mxu0 %v7286
  %9077 = vmatmul.mubr.bf16.gmra.mrb[0].mxu0 %v7277
  %v9078 = vpop.f32.mrb[0].mxu0
  %v9079 = vadd.f32 0.0, %v9078
  %v9080 = vpop.f32.mrb[0].mxu0
  %v9081 = vpop.f32.mrb[0].mxu0
  %v9082 = vadd.f32 0.0, %v9081
  %v9083 = vpop.f32.mrb[0].mxu0
  %9084 = vmatprep.mubr.bf16.mxu0 %v7335
  %9085 = vmatmul.mubr.bf16.gmra.mrb[0].mxu0 %v7326
  %v9086 = vpop.f32.mrb[0].mxu0
  %v9087 = vadd.f32 0.0, %v9086
  %v9088 = vpop.f32.mrb[0].mxu0
  %v9089 = vpop.f32.mrb[0].mxu0
  %v9090 = vadd.f32 0.0, %v9089
  %v9091 = vpop.f32.mrb[0].mxu0
  %9092 = vmatprep.mubr.bf16.mxu0 %v7384
  %9093 = vmatmul.mubr.bf16.gmra.mrb[0].mxu0 %v7375
  %v9094 = vpop.f32.mrb[0].mxu0
  %v9095 = vadd.f32 0.0, %v9094
  %v9096 = vpop.f32.mrb[0].mxu0
  %v9097 = vpop.f32.mrb[0].mxu0
  %v9098 = vadd.f32 0.0, %v9097
  %v9099 = vpop.f32.mrb[0].mxu0
  %9100 = vmatprep.mubr.bf16.mxu0 %v7433
  %9101 = vmatmul.mubr.bf16.gmra.mrb[0].mxu0 %v7424
  %v9102 = vpop.f32.mrb[0].mxu0
  %v9103 = vadd.f32 0.0, %v9102
  %v9104 = vpop.f32.mrb[0].mxu0
  %v9105 = vpop.f32.mrb[0].mxu0
  %v9106 = vadd.f32 0.0, %v9105
  %v9107 = vpop.f32.mrb[0].mxu0
  %9108 = vmatprep.mubr.bf16.mxu0 %v7482
  %9109 = vmatmul.mubr.bf16.gmra.mrb[0].mxu0 %v7473
  %v9110 = vpop.f32.mrb[0].mxu0
  %v9111 = vadd.f32 0.0, %v9110
  %v9112 = vpop.f32.mrb[0].mxu0
  %v9113 = vpop.f32.mrb[0].mxu0
  %v9114 = vadd.f32 0.0, %v9113
  %v9115 = vpop.f32.mrb[0].mxu0
  %9116 = vmatprep.mubr.bf16.mxu0 %v7531
  %9117 = vmatmul.mubr.bf16.gmra.mrb[0].mxu0 %v7522
  %v9118 = vpop.f32.mrb[0].mxu0
  %v9119 = vadd.f32 0.0, %v9118
  %v9120 = vpop.f32.mrb[0].mxu0
  %v9121 = vpop.f32.mrb[0].mxu0
  %v9122 = vadd.f32 0.0, %v9121
  %v9123 = vpop.f32.mrb[0].mxu0
  %9124 = vmatprep.mubr.bf16.mxu0 %v7696
  %9125 = vmatmul.mubr.bf16.gmra.mrb[0].mxu0 %v7571
  %v9126 = vpop.f32.mrb[0].mxu0
  %v9127 = vadd.f32 0.0, %v9126
  %v9128 = vpop.f32.mrb[0].mxu0
  %v9129 = vpop.f32.mrb[0].mxu0
  %v9130 = vadd.f32 0.0, %v9129
  %v9131 = vpop.f32.mrb[0].mxu0
  %9132 = vmatprep.mubr.bf16.mxu0 %v7767
  %9133 = vmatmul.mubr.bf16.gmra.mrb[0].mxu0 %v7758
  %v9134 = vpop.f32.mrb[0].mxu0
  %v9135 = vadd.f32 0.0, %v9134
  %v9136 = vpop.f32.mrb[0].mxu0
  %v9137 = vpop.f32.mrb[0].mxu0
  %v9138 = vadd.f32 0.0, %v9137
  %v9139 = vpop.f32.mrb[0].mxu0
  %9140 = vdwg.mxu0
  %9141 = vmatprep.subr.bf16.mxu0 0
  %9142 = vmatpush1.bf16.msra.mxu0 %v8596
  %9143 = vmatprep.subr.bf16.mxu0 0
  %9144 = vmatpush1.bf16.msra.mxu0 %v8597
  %9145 = vmatprep.subr.bf16.mxu0 0
  %9146 = vmatpush1.bf16.msra.mxu0 %v8598
  %9147 = vmatprep.subr.bf16.mxu0 0
  %9148 = vmatpush1.bf16.msra.mxu0 %v8599
  %9149 = vmatprep.subr.bf16.mxu0 0
  %9150 = vmatpush1.bf16.msra.mxu0 %v8600
  %9151 = vmatprep.subr.bf16.mxu0 0
  %9152 = vmatpush1.bf16.msra.mxu0 %v8601
  %9153 = vmatprep.subr.bf16.mxu0 0
  %9154 = vmatpush1.bf16.msra.mxu0 %v8602
  %9155 = vmatprep.subr.bf16.mxu0 0
  %9156 = vmatpush1.bf16.msra.mxu0 %v8603
  %9157 = vmatprep.subr.bf16.mxu0 0
  %9158 = vmatpush1.bf16.msra.mxu0 %v8604
  %9159 = vmatprep.subr.bf16.mxu0 0
  %9160 = vmatpush1.bf16.msra.mxu0 %v8605
  %9161 = vmatprep.subr.bf16.mxu0 0
  %9162 = vmatpush1.bf16.msra.mxu0 %v8606
  %9163 = vmatprep.subr.bf16.mxu0 0
  %9164 = vmatpush1.bf16.msra.mxu0 %v8607
  %9165 = vmatprep.subr.bf16.mxu0 0
  %9166 = vmatpush1.bf16.msra.mxu0 %v8608
  %9167 = vmatprep.subr.bf16.mxu0 0
  %9168 = vmatpush1.bf16.msra.mxu0 %v8609
  %9169 = vmatprep.subr.bf16.mxu0 0
  %9170 = vmatpush1.bf16.msra.mxu0 %v8610
  %9171 = vmatprep.subr.bf16.mxu0 0
  %9172 = vmatpush1.bf16.msra.mxu0 %v8611
  %9173 = vmatprep.mubr.bf16.mxu0 %v5174
  %9174 = vmatmul.mubr.bf16.gmra.mrb[0].mxu0 %v5157
  %v9175 = vpop.f32.mrb[0].mxu0
  %v9176 = vadd.f32 %v8759, %v9175
  %v9177 = vpop.f32.mrb[0].mxu0
  %v9178 = vpop.f32.mrb[0].mxu0
  %v9179 = vadd.f32 %v8762, %v9178
  %v9180 = vpop.f32.mrb[0].mxu0
  %9181 = vmatprep.mubr.bf16.mxu0 %v5285
  %9182 = vmatmul.mubr.bf16.gmra.mrb[0].mxu0 %v5276
  %v9183 = vpop.f32.mrb[0].mxu0
  %v9184 = vadd.f32 %v8767, %v9183
  %v9185 = vpop.f32.mrb[0].mxu0
  %v9186 = vpop.f32.mrb[0].mxu0
  %v9187 = vadd.f32 %v8770, %v9186
  %v9188 = vpop.f32.mrb[0].mxu0
  %9189 = vmatprep.mubr.bf16.mxu0 %v5356
  %9190 = vmatmul.mubr.bf16.gmra.mrb[0].mxu0 %v5347
  %v9191 = vpop.f32.mrb[0].mxu0
  %v9192 = vadd.f32 %v8775, %v9191
  %v9193 = vpop.f32.mrb[0].mxu0
  %v9194 = vpop.f32.mrb[0].mxu0
  %v9195 = vadd.f32 %v8778, %v9194
  %v9196 = vpop.f32.mrb[0].mxu0
  %9197 = vmatprep.mubr.bf16.mxu0 %v5408
  %9198 = vmatmul.mubr.bf16.gmra.mrb[0].mxu0 %v5399
  %v9199 = vpop.f32.mrb[0].mxu0
  %v9200 = vadd.f32 %v8783, %v9199
  %v9201 = vpop.f32.mrb[0].mxu0
  %v9202 = vpop.f32.mrb[0].mxu0
  %v9203 = vadd.f32 %v8786, %v9202
  %v9204 = vpop.f32.mrb[0].mxu0
  %9205 = vmatprep.mubr.bf16.mxu0 %v5457
  %9206 = vmatmul.mubr.bf16.gmra.mrb[0].mxu0 %v5325
  %v9207 = vpop.f32.mrb[0].mxu0
  %v9208 = vadd.f32 %v8791, %v9207
  %v9209 = vpop.f32.mrb[0].mxu0
  %v9210 = vpop.f32.mrb[0].mxu0
  %v9211 = vadd.f32 %v8794, %v9210
  %v9212 = vpop.f32.mrb[0].mxu0
  %9213 = vmatprep.mubr.bf16.mxu0 %v5506
  %9214 = vmatmul.mubr.bf16.gmra.mrb[0].mxu0 %v5396
  %v9215 = vpop.f32.mrb[0].mxu0
  %v9216 = vadd.f32 %v8799, %v9215
  %v9217 = vpop.f32.mrb[0].mxu0
  %v9218 = vpop.f32.mrb[0].mxu0
  %v9219 = vadd.f32 %v8802, %v9218
  %v9220 = vpop.f32.mrb[0].mxu0
  %9221 = vmatprep.mubr.bf16.mxu0 %v5555
  %9222 = vmatmul.mubr.bf16.gmra.mrb[0].mxu0 %v5448
  %v9223 = vpop.f32.mrb[0].mxu0
  %v9224 = vadd.f32 %v8807, %v9223
  %v9225 = vpop.f32.mrb[0].mxu0
  %v9226 = vpop.f32.mrb[0].mxu0
  %v9227 = vadd.f32 %v8810, %v9226
  %v9228 = vpop.f32.mrb[0].mxu0
  %9229 = vmatprep.mubr.bf16.mxu0 %v5604
  %9230 = vmatmul.mubr.bf16.gmra.mrb[0].mxu0 %v5497
  %v9231 = vpop.f32.mrb[0].mxu0
  %v9232 = vadd.f32 %v8815, %v9231
  %v9233 = vpop.f32.mrb[0].mxu0
  %v9234 = vpop.f32.mrb[0].mxu0
  %v9235 = vadd.f32 %v8818, %v9234
  %v9236 = vpop.f32.mrb[0].mxu0
  %9237 = vmatprep.mubr.bf16.mxu0 %v5653
  %9238 = vmatmul.mubr.bf16.gmra.mrb[0].mxu0 %v5546
  %v9239 = vpop.f32.mrb[0].mxu0
  %v9240 = vadd.f32 %v8823, %v9239
  %v9241 = vpop.f32.mrb[0].mxu0
  %v9242 = vpop.f32.mrb[0].mxu0
  %v9243 = vadd.f32 %v8826, %v9242
  %v9244 = vpop.f32.mrb[0].mxu0
  %9245 = vmatprep.mubr.bf16.mxu0 %v5702
  %9246 = vmatmul.mubr.bf16.gmra.mrb[0].mxu0 %v5595
  %v9247 = vpop.f32.mrb[0].mxu0
  %v9248 = vadd.f32 %v8831, %v9247
  %v9249 = vpop.f32.mrb[0].mxu0
  %v9250 = vpop.f32.mrb[0].mxu0
  %v9251 = vadd.f32 %v8834, %v9250
  %v9252 = vpop.f32.mrb[0].mxu0
  %9253 = vmatprep.mubr.bf16.mxu0 %v5751
  %9254 = vmatmul.mubr.bf16.gmra.mrb[0].mxu0 %v5644
  %v9255 = vpop.f32.mrb[0].mxu0
  %v9256 = vadd.f32 %v8839, %v9255
  %v9257 = vpop.f32.mrb[0].mxu0
  %v9258 = vpop.f32.mrb[0].mxu0
  %v9259 = vadd.f32 %v8842, %v9258
  %v9260 = vpop.f32.mrb[0].mxu0
  %9261 = vmatprep.mubr.bf16.mxu0 %v5800
  %9262 = vmatmul.mubr.bf16.gmra.mrb[0].mxu0 %v5693
  %v9263 = vpop.f32.mrb[0].mxu0
  %v9264 = vadd.f32 %v8847, %v9263
  %v9265 = vpop.f32.mrb[0].mxu0
  %v9266 = vpop.f32.mrb[0].mxu0
  %v9267 = vadd.f32 %v8850, %v9266
  %v9268 = vpop.f32.mrb[0].mxu0
  %9269 = vmatprep.mubr.bf16.mxu0 %v5849
  %9270 = vmatmul.mubr.bf16.gmra.mrb[0].mxu0 %v5742
  %v9271 = vpop.f32.mrb[0].mxu0
  %v9272 = vadd.f32 %v8855, %v9271
  %v9273 = vpop.f32.mrb[0].mxu0
  %v9274 = vpop.f32.mrb[0].mxu0
  %v9275 = vadd.f32 %v8858, %v9274
  %v9276 = vpop.f32.mrb[0].mxu0
  %9277 = vmatprep.mubr.bf16.mxu0 %v5898
  %9278 = vmatmul.mubr.bf16.gmra.mrb[0].mxu0 %v5791
  %v9279 = vpop.f32.mrb[0].mxu0
  %v9280 = vadd.f32 %v8863, %v9279
  %v9281 = vpop.f32.mrb[0].mxu0
  %v9282 = vpop.f32.mrb[0].mxu0
  %v9283 = vadd.f32 %v8866, %v9282
  %v9284 = vpop.f32.mrb[0].mxu0
  %9285 = vmatprep.mubr.bf16.mxu0 %v5947
  %9286 = vmatmul.mubr.bf16.gmra.mrb[0].mxu0 %v5840
  %v9287 = vpop.f32.mrb[0].mxu0
  %v9288 = vadd.f32 %v8871, %v9287
  %v9289 = vpop.f32.mrb[0].mxu0
  %v9290 = vpop.f32.mrb[0].mxu0
  %v9291 = vadd.f32 %v8874, %v9290
  %v9292 = vpop.f32.mrb[0].mxu0
  %9293 = vmatprep.mubr.bf16.mxu0 %v5996
  %9294 = vmatmul.mubr.bf16.gmra.mrb[0].mxu0 %v5889
  %v9295 = vpop.f32.mrb[0].mxu0
  %v9296 = vadd.f32 %v8879, %v9295
  %v9297 = vpop.f32.mrb[0].mxu0
  %v9298 = vpop.f32.mrb[0].mxu0
  %v9299 = vadd.f32 %v8882, %v9298
  %v9300 = vpop.f32.mrb[0].mxu0
  %9301 = vmatprep.mubr.bf16.mxu0 %v6045
  %9302 = vmatmul.mubr.bf16.gmra.mrb[0].mxu0 %v5938
  %v9303 = vpop.f32.mrb[0].mxu0
  %v9304 = vadd.f32 %v8887, %v9303
  %v9305 = vpop.f32.mrb[0].mxu0
  %v9306 = vpop.f32.mrb[0].mxu0
  %v9307 = vadd.f32 %v8890, %v9306
  %v9308 = vpop.f32.mrb[0].mxu0
  %9309 = vmatprep.mubr.bf16.mxu0 %v6094
  %9310 = vmatmul.mubr.bf16.gmra.mrb[0].mxu0 %v5987
  %v9311 = vpop.f32.mrb[0].mxu0
  %v9312 = vadd.f32 %v8895, %v9311
  %v9313 = vpop.f32.mrb[0].mxu0
  %v9314 = vpop.f32.mrb[0].mxu0
  %v9315 = vadd.f32 %v8898, %v9314
  %v9316 = vpop.f32.mrb[0].mxu0
  %9317 = vmatprep.mubr.bf16.mxu0 %v6143
  %9318 = vmatmul.mubr.bf16.gmra.mrb[0].mxu0 %v6036
  %v9319 = vpop.f32.mrb[0].mxu0
  %v9320 = vadd.f32 %v8903, %v9319
  %v9321 = vpop.f32.mrb[0].mxu0
  %v9322 = vpop.f32.mrb[0].mxu0
  %v9323 = vadd.f32 %v8906, %v9322
  %v9324 = vpop.f32.mrb[0].mxu0
  %9325 = vmatprep.mubr.bf16.mxu0 %v6192
  %9326 = vmatmul.mubr.bf16.gmra.mrb[0].mxu0 %v6085
  %v9327 = vpop.f32.mrb[0].mxu0
  %v9328 = vadd.f32 %v8911, %v9327
  %v9329 = vpop.f32.mrb[0].mxu0
  %v9330 = vpop.f32.mrb[0].mxu0
  %v9331 = vadd.f32 %v8914, %v9330
  %v9332 = vpop.f32.mrb[0].mxu0
  %9333 = vmatprep.mubr.bf16.mxu0 %v6241
  %9334 = vmatmul.mubr.bf16.gmra.mrb[0].mxu0 %v6134
  %v9335 = vpop.f32.mrb[0].mxu0
  %v9336 = vadd.f32 %v8919, %v9335
  %v9337 = vpop.f32.mrb[0].mxu0
  %v9338 = vpop.f32.mrb[0].mxu0
  %v9339 = vadd.f32 %v8922, %v9338
  %v9340 = vpop.f32.mrb[0].mxu0
  %9341 = vmatprep.mubr.bf16.mxu0 %v6290
  %9342 = vmatmul.mubr.bf16.gmra.mrb[0].mxu0 %v6183
  %v9343 = vpop.f32.mrb[0].mxu0
  %v9344 = vadd.f32 %v8927, %v9343
  %v9345 = vpop.f32.mrb[0].mxu0
  %v9346 = vpop.f32.mrb[0].mxu0
  %v9347 = vadd.f32 %v8930, %v9346
  %v9348 = vpop.f32.mrb[0].mxu0
  %9349 = vmatprep.mubr.bf16.mxu0 %v6357
  %9350 = vmatmul.mubr.bf16.gmra.mrb[0].mxu0 %v6348
  %v9351 = vpop.f32.mrb[0].mxu0
  %v9352 = vadd.f32 %v8935, %v9351
  %v9353 = vpop.f32.mrb[0].mxu0
  %v9354 = vpop.f32.mrb[0].mxu0
  %v9355 = vadd.f32 %v8938, %v9354
  %v9356 = vpop.f32.mrb[0].mxu0
  %9357 = vmatprep.mubr.bf16.mxu0 %v6428
  %9358 = vmatmul.mubr.bf16.gmra.mrb[0].mxu0 %v6419
  %v9359 = vpop.f32.mrb[0].mxu0
  %v9360 = vadd.f32 %v8943, %v9359
  %v9361 = vpop.f32.mrb[0].mxu0
  %v9362 = vpop.f32.mrb[0].mxu0
  %v9363 = vadd.f32 %v8946, %v9362
  %v9364 = vpop.f32.mrb[0].mxu0
  %9365 = vmatprep.mubr.bf16.mxu0 %v6531
  %9366 = vmatmul.mubr.bf16.gmra.mrb[0].mxu0 %v6514
  %v9367 = vpop.f32.mrb[0].mxu0
  %v9368 = vadd.f32 %v8951, %v9367
  %v9369 = vpop.f32.mrb[0].mxu0
  %v9370 = vpop.f32.mrb[0].mxu0
  %v9371 = vadd.f32 %v8954, %v9370
  %v9372 = vpop.f32.mrb[0].mxu0
  %9373 = vmatprep.mubr.bf16.mxu0 %v6642
  %9374 = vmatmul.mubr.bf16.gmra.mrb[0].mxu0 %v6633
  %v9375 = vpop.f32.mrb[0].mxu0
  %v9376 = vadd.f32 %v8959, %v9375
  %v9377 = vpop.f32.mrb[0].mxu0
  %v9378 = vpop.f32.mrb[0].mxu0
  %v9379 = vadd.f32 %v8962, %v9378
  %v9380 = vpop.f32.mrb[0].mxu0
  %9381 = vmatprep.mubr.bf16.mxu0 %v6713
  %9382 = vmatmul.mubr.bf16.gmra.mrb[0].mxu0 %v6704
  %v9383 = vpop.f32.mrb[0].mxu0
  %v9384 = vadd.f32 %v8967, %v9383
  %v9385 = vpop.f32.mrb[0].mxu0
  %v9386 = vpop.f32.mrb[0].mxu0
  %v9387 = vadd.f32 %v8970, %v9386
  %v9388 = vpop.f32.mrb[0].mxu0
  %9389 = vmatprep.mubr.bf16.mxu0 %v6765
  %9390 = vmatmul.mubr.bf16.gmra.mrb[0].mxu0 %v6756
  %v9391 = vpop.f32.mrb[0].mxu0
  %v9392 = vadd.f32 %v8975, %v9391
  %v9393 = vpop.f32.mrb[0].mxu0
  %v9394 = vpop.f32.mrb[0].mxu0
  %v9395 = vadd.f32 %v8978, %v9394
  %v9396 = vpop.f32.mrb[0].mxu0
  %9397 = vmatprep.mubr.bf16.mxu0 %v6814
  %9398 = vmatmul.mubr.bf16.gmra.mrb[0].mxu0 %v6682
  %v9399 = vpop.f32.mrb[0].mxu0
  %v9400 = vadd.f32 %v8983, %v9399
  %v9401 = vpop.f32.mrb[0].mxu0
  %v9402 = vpop.f32.mrb[0].mxu0
  %v9403 = vadd.f32 %v8986, %v9402
  %v9404 = vpop.f32.mrb[0].mxu0
  %9405 = vmatprep.mubr.bf16.mxu0 %v6863
  %9406 = vmatmul.mubr.bf16.gmra.mrb[0].mxu0 %v6753
  %v9407 = vpop.f32.mrb[0].mxu0
  %v9408 = vadd.f32 %v8991, %v9407
  %v9409 = vpop.f32.mrb[0].mxu0
  %v9410 = vpop.f32.mrb[0].mxu0
  %v9411 = vadd.f32 %v8994, %v9410
  %v9412 = vpop.f32.mrb[0].mxu0
  %9413 = vmatprep.mubr.bf16.mxu0 %v6912
  %9414 = vmatmul.mubr.bf16.gmra.mrb[0].mxu0 %v6805
  %v9415 = vpop.f32.mrb[0].mxu0
  %v9416 = vadd.f32 %v8999, %v9415
  %v9417 = vpop.f32.mrb[0].mxu0
  %v9418 = vpop.f32.mrb[0].mxu0
  %v9419 = vadd.f32 %v9002, %v9418
  %v9420 = vpop.f32.mrb[0].mxu0
  %9421 = vmatprep.mubr.bf16.mxu0 %v6961
  %9422 = vmatmul.mubr.bf16.gmra.mrb[0].mxu0 %v6854
  %v9423 = vpop.f32.mrb[0].mxu0
  %v9424 = vadd.f32 %v9007, %v9423
  %v9425 = vpop.f32.mrb[0].mxu0
  %v9426 = vpop.f32.mrb[0].mxu0
  %v9427 = vadd.f32 %v9010, %v9426
  %v9428 = vpop.f32.mrb[0].mxu0
  %9429 = vmatprep.mubr.bf16.mxu0 %v7010
  %9430 = vmatmul.mubr.bf16.gmra.mrb[0].mxu0 %v6903
  %v9431 = vpop.f32.mrb[0].mxu0
  %v9432 = vadd.f32 %v9015, %v9431
  %v9433 = vpop.f32.mrb[0].mxu0
  %v9434 = vpop.f32.mrb[0].mxu0
  %v9435 = vadd.f32 %v9018, %v9434
  %v9436 = vpop.f32.mrb[0].mxu0
  %9437 = vmatprep.mubr.bf16.mxu0 %v7059
  %9438 = vmatmul.mubr.bf16.gmra.mrb[0].mxu0 %v6952
  %v9439 = vpop.f32.mrb[0].mxu0
  %v9440 = vadd.f32 %v9023, %v9439
  %v9441 = vpop.f32.mrb[0].mxu0
  %v9442 = vpop.f32.mrb[0].mxu0
  %v9443 = vadd.f32 %v9026, %v9442
  %v9444 = vpop.f32.mrb[0].mxu0
  %9445 = vmatprep.mubr.bf16.mxu0 %v7108
  %9446 = vmatmul.mubr.bf16.gmra.mrb[0].mxu0 %v7001
  %v9447 = vpop.f32.mrb[0].mxu0
  %v9448 = vadd.f32 %v9031, %v9447
  %v9449 = vpop.f32.mrb[0].mxu0
  %v9450 = vpop.f32.mrb[0].mxu0
  %v9451 = vadd.f32 %v9034, %v9450
  %v9452 = vpop.f32.mrb[0].mxu0
  %9453 = vmatprep.mubr.bf16.mxu0 %v7157
  %9454 = vmatmul.mubr.bf16.gmra.mrb[0].mxu0 %v7050
  %v9455 = vpop.f32.mrb[0].mxu0
  %v9456 = vadd.f32 %v9039, %v9455
  %v9457 = vpop.f32.mrb[0].mxu0
  %v9458 = vpop.f32.mrb[0].mxu0
  %v9459 = vadd.f32 %v9042, %v9458
  %v9460 = vpop.f32.mrb[0].mxu0
  %9461 = vmatprep.mubr.bf16.mxu0 %v7206
  %9462 = vmatmul.mubr.bf16.gmra.mrb[0].mxu0 %v7099
  %v9463 = vpop.f32.mrb[0].mxu0
  %v9464 = vadd.f32 %v9047, %v9463
  %v9465 = vpop.f32.mrb[0].mxu0
  %v9466 = vpop.f32.mrb[0].mxu0
  %v9467 = vadd.f32 %v9050, %v9466
  %v9468 = vpop.f32.mrb[0].mxu0
  %9469 = vmatprep.mubr.bf16.mxu0 %v7255
  %9470 = vmatmul.mubr.bf16.gmra.mrb[0].mxu0 %v7148
  %v9471 = vpop.f32.mrb[0].mxu0
  %v9472 = vadd.f32 %v9055, %v9471
  %v9473 = vpop.f32.mrb[0].mxu0
  %v9474 = vpop.f32.mrb[0].mxu0
  %v9475 = vadd.f32 %v9058, %v9474
  %v9476 = vpop.f32.mrb[0].mxu0
  %9477 = vmatprep.mubr.bf16.mxu0 %v7304
  %9478 = vmatmul.mubr.bf16.gmra.mrb[0].mxu0 %v7197
  %v9479 = vpop.f32.mrb[0].mxu0
  %v9480 = vadd.f32 %v9063, %v9479
  %v9481 = vpop.f32.mrb[0].mxu0
  %v9482 = vpop.f32.mrb[0].mxu0
  %v9483 = vadd.f32 %v9066, %v9482
  %v9484 = vpop.f32.mrb[0].mxu0
  %9485 = vmatprep.mubr.bf16.mxu0 %v7353
  %9486 = vmatmul.mubr.bf16.gmra.mrb[0].mxu0 %v7246
  %v9487 = vpop.f32.mrb[0].mxu0
  %v9488 = vadd.f32 %v9071, %v9487
  %v9489 = vpop.f32.mrb[0].mxu0
  %v9490 = vpop.f32.mrb[0].mxu0
  %v9491 = vadd.f32 %v9074, %v9490
  %v9492 = vpop.f32.mrb[0].mxu0
  %9493 = vmatprep.mubr.bf16.mxu0 %v7402
  %9494 = vmatmul.mubr.bf16.gmra.mrb[0].mxu0 %v7295
  %v9495 = vpop.f32.mrb[0].mxu0
  %v9496 = vadd.f32 %v9079, %v9495
  %v9497 = vpop.f32.mrb[0].mxu0
  %v9498 = vpop.f32.mrb[0].mxu0
  %v9499 = vadd.f32 %v9082, %v9498
  %v9500 = vpop.f32.mrb[0].mxu0
  %9501 = vmatprep.mubr.bf16.mxu0 %v7451
  %9502 = vmatmul.mubr.bf16.gmra.mrb[0].mxu0 %v7344
  %v9503 = vpop.f32.mrb[0].mxu0
  %v9504 = vadd.f32 %v9087, %v9503
  %v9505 = vpop.f32.mrb[0].mxu0
  %v9506 = vpop.f32.mrb[0].mxu0
  %v9507 = vadd.f32 %v9090, %v9506
  %v9508 = vpop.f32.mrb[0].mxu0
  %9509 = vmatprep.mubr.bf16.mxu0 %v7500
  %9510 = vmatmul.mubr.bf16.gmra.mrb[0].mxu0 %v7393
  %v9511 = vpop.f32.mrb[0].mxu0
  %v9512 = vadd.f32 %v9095, %v9511
  %v9513 = vpop.f32.mrb[0].mxu0
  %v9514 = vpop.f32.mrb[0].mxu0
  %v9515 = vadd.f32 %v9098, %v9514
  %v9516 = vpop.f32.mrb[0].mxu0
  %9517 = vmatprep.mubr.bf16.mxu0 %v7549
  %9518 = vmatmul.mubr.bf16.gmra.mrb[0].mxu0 %v7442
  %v9519 = vpop.f32.mrb[0].mxu0
  %v9520 = vadd.f32 %v9103, %v9519
  %v9521 = vpop.f32.mrb[0].mxu0
  %v9522 = vpop.f32.mrb[0].mxu0
  %v9523 = vadd.f32 %v9106, %v9522
  %v9524 = vpop.f32.mrb[0].mxu0
  %9525 = vmatprep.mubr.bf16.mxu0 %v7598
  %9526 = vmatmul.mubr.bf16.gmra.mrb[0].mxu0 %v7491
  %v9527 = vpop.f32.mrb[0].mxu0
  %v9528 = vadd.f32 %v9111, %v9527
  %v9529 = vpop.f32.mrb[0].mxu0
  %v9530 = vpop.f32.mrb[0].mxu0
  %v9531 = vadd.f32 %v9114, %v9530
  %v9532 = vpop.f32.mrb[0].mxu0
  %9533 = vmatprep.mubr.bf16.mxu0 %v7647
  %9534 = vmatmul.mubr.bf16.gmra.mrb[0].mxu0 %v7540
  %v9535 = vpop.f32.mrb[0].mxu0
  %v9536 = vadd.f32 %v9119, %v9535
  %v9537 = vpop.f32.mrb[0].mxu0
  %v9538 = vpop.f32.mrb[0].mxu0
  %v9539 = vadd.f32 %v9122, %v9538
  %v9540 = vpop.f32.mrb[0].mxu0
  %9541 = vmatprep.mubr.bf16.mxu0 %v7714
  %9542 = vmatmul.mubr.bf16.gmra.mrb[0].mxu0 %v7705
  %v9543 = vpop.f32.mrb[0].mxu0
  %v9544 = vadd.f32 %v9127, %v9543
  %v9545 = vpop.f32.mrb[0].mxu0
  %v9546 = vpop.f32.mrb[0].mxu0
  %v9547 = vadd.f32 %v9130, %v9546
  %v9548 = vpop.f32.mrb[0].mxu0
  %9549 = vmatprep.mubr.bf16.mxu0 %v7785
  %9550 = vmatmul.mubr.bf16.gmra.mrb[0].mxu0 %v7776
  %v9551 = vpop.f32.mrb[0].mxu0
  %v9552 = vadd.f32 %v9135, %v9551
  %v9553 = vpop.f32.mrb[0].mxu0
  %v9554 = vpop.f32.mrb[0].mxu0
  %v9555 = vadd.f32 %v9138, %v9554
  %v9556 = vpop.f32.mrb[0].mxu0
  %9557 = vdwg.mxu0
  %9558 = vmatprep.subr.bf16.mxu0 0
  %9559 = vmatpush1.bf16.msra.mxu0 %v8612
  %9560 = vmatprep.subr.bf16.mxu0 0
  %9561 = vmatpush1.bf16.msra.mxu0 %v8613
  %9562 = vmatprep.subr.bf16.mxu0 0
  %9563 = vmatpush1.bf16.msra.mxu0 %v8614
  %9564 = vmatprep.subr.bf16.mxu0 0
  %9565 = vmatpush1.bf16.msra.mxu0 %v8615
  %9566 = vmatprep.subr.bf16.mxu0 0
  %9567 = vmatpush1.bf16.msra.mxu0 %v8616
  %9568 = vmatprep.subr.bf16.mxu0 0
  %9569 = vmatpush1.bf16.msra.mxu0 %v8617
  %9570 = vmatprep.subr.bf16.mxu0 0
  %9571 = vmatpush1.bf16.msra.mxu0 %v8618
  %9572 = vmatprep.subr.bf16.mxu0 0
  %9573 = vmatpush1.bf16.msra.mxu0 %v8619
  %9574 = vmatprep.subr.bf16.mxu0 0
  %9575 = vmatpush1.bf16.msra.mxu0 %v8620
  %9576 = vmatprep.subr.bf16.mxu0 0
  %9577 = vmatpush1.bf16.msra.mxu0 %v8621
  %9578 = vmatprep.subr.bf16.mxu0 0
  %9579 = vmatpush1.bf16.msra.mxu0 %v8622
  %9580 = vmatprep.subr.bf16.mxu0 0
  %9581 = vmatpush1.bf16.msra.mxu0 %v8623
  %9582 = vmatprep.subr.bf16.mxu0 0
  %9583 = vmatpush1.bf16.msra.mxu0 %v8624
  %9584 = vmatprep.subr.bf16.mxu0 0
  %9585 = vmatpush1.bf16.msra.mxu0 %v8625
  %9586 = vmatprep.subr.bf16.mxu0 0
  %9587 = vmatpush1.bf16.msra.mxu0 %v8626
  %9588 = vmatprep.subr.bf16.mxu0 0
  %9589 = vmatpush1.bf16.msra.mxu0 %v8627
  %9590 = vmatprep.mubr.bf16.mxu0 %v5208
  %9591 = vmatmul.mubr.bf16.gmra.mrb[0].mxu0 %v5191
  %v9592 = vpop.f32.mrb[0].mxu0
  %v9593 = vadd.f32 %v9176, %v9592
  %v9594 = vpop.f32.mrb[0].mxu0
  %v9595 = vpop.f32.mrb[0].mxu0
  %v9596 = vadd.f32 %v9179, %v9595
  %v9597 = vpop.f32.mrb[0].mxu0
  %9598 = vmatprep.mubr.bf16.mxu0 %v5303
  %9599 = vmatmul.mubr.bf16.gmra.mrb[0].mxu0 %v5294
  %v9600 = vpop.f32.mrb[0].mxu0
  %v9601 = vadd.f32 %v9184, %v9600
  %v9602 = vpop.f32.mrb[0].mxu0
  %v9603 = vpop.f32.mrb[0].mxu0
  %v9604 = vadd.f32 %v9187, %v9603
  %v9605 = vpop.f32.mrb[0].mxu0
  %9606 = vmatprep.mubr.bf16.mxu0 %v5374
  %9607 = vmatmul.mubr.bf16.gmra.mrb[0].mxu0 %v5365
  %v9608 = vpop.f32.mrb[0].mxu0
  %v9609 = vadd.f32 %v9192, %v9608
  %v9610 = vpop.f32.mrb[0].mxu0
  %v9611 = vpop.f32.mrb[0].mxu0
  %v9612 = vadd.f32 %v9195, %v9611
  %v9613 = vpop.f32.mrb[0].mxu0
  %9614 = vmatprep.mubr.bf16.mxu0 %v5426
  %9615 = vmatmul.mubr.bf16.gmra.mrb[0].mxu0 %v5417
  %v9616 = vpop.f32.mrb[0].mxu0
  %v9617 = vadd.f32 %v9200, %v9616
  %v9618 = vpop.f32.mrb[0].mxu0
  %v9619 = vpop.f32.mrb[0].mxu0
  %v9620 = vadd.f32 %v9203, %v9619
  %v9621 = vpop.f32.mrb[0].mxu0
  %9622 = vmatprep.mubr.bf16.mxu0 %v5475
  %9623 = vmatmul.mubr.bf16.gmra.mrb[0].mxu0 %v5466
  %v9624 = vpop.f32.mrb[0].mxu0
  %v9625 = vadd.f32 %v9208, %v9624
  %v9626 = vpop.f32.mrb[0].mxu0
  %v9627 = vpop.f32.mrb[0].mxu0
  %v9628 = vadd.f32 %v9211, %v9627
  %v9629 = vpop.f32.mrb[0].mxu0
  %9630 = vmatprep.mubr.bf16.mxu0 %v5524
  %9631 = vmatmul.mubr.bf16.gmra.mrb[0].mxu0 %v5515
  %v9632 = vpop.f32.mrb[0].mxu0
  %v9633 = vadd.f32 %v9216, %v9632
  %v9634 = vpop.f32.mrb[0].mxu0
  %v9635 = vpop.f32.mrb[0].mxu0
  %v9636 = vadd.f32 %v9219, %v9635
  %v9637 = vpop.f32.mrb[0].mxu0
  %9638 = vmatprep.mubr.bf16.mxu0 %v5573
  %9639 = vmatmul.mubr.bf16.gmra.mrb[0].mxu0 %v5564
  %v9640 = vpop.f32.mrb[0].mxu0
  %v9641 = vadd.f32 %v9224, %v9640
  %v9642 = vpop.f32.mrb[0].mxu0
  %v9643 = vpop.f32.mrb[0].mxu0
  %v9644 = vadd.f32 %v9227, %v9643
  %v9645 = vpop.f32.mrb[0].mxu0
  %9646 = vmatprep.mubr.bf16.mxu0 %v5622
  %9647 = vmatmul.mubr.bf16.gmra.mrb[0].mxu0 %v5613
  %v9648 = vpop.f32.mrb[0].mxu0
  %v9649 = vadd.f32 %v9232, %v9648
  %v9650 = vpop.f32.mrb[0].mxu0
  %v9651 = vpop.f32.mrb[0].mxu0
  %v9652 = vadd.f32 %v9235, %v9651
  %v9653 = vpop.f32.mrb[0].mxu0
  %9654 = vmatprep.mubr.bf16.mxu0 %v5671
  %9655 = vmatmul.mubr.bf16.gmra.mrb[0].mxu0 %v5662
  %v9656 = vpop.f32.mrb[0].mxu0
  %v9657 = vadd.f32 %v9240, %v9656
  %v9658 = vpop.f32.mrb[0].mxu0
  %v9659 = vpop.f32.mrb[0].mxu0
  %v9660 = vadd.f32 %v9243, %v9659
  %v9661 = vpop.f32.mrb[0].mxu0
  %9662 = vmatprep.mubr.bf16.mxu0 %v5720
  %9663 = vmatmul.mubr.bf16.gmra.mrb[0].mxu0 %v5711
  %v9664 = vpop.f32.mrb[0].mxu0
  %v9665 = vadd.f32 %v9248, %v9664
  %v9666 = vpop.f32.mrb[0].mxu0
  %v9667 = vpop.f32.mrb[0].mxu0
  %v9668 = vadd.f32 %v9251, %v9667
  %v9669 = vpop.f32.mrb[0].mxu0
  %9670 = vmatprep.mubr.bf16.mxu0 %v5769
  %9671 = vmatmul.mubr.bf16.gmra.mrb[0].mxu0 %v5760
  %v9672 = vpop.f32.mrb[0].mxu0
  %v9673 = vadd.f32 %v9256, %v9672
  %v9674 = vpop.f32.mrb[0].mxu0
  %v9675 = vpop.f32.mrb[0].mxu0
  %v9676 = vadd.f32 %v9259, %v9675
  %v9677 = vpop.f32.mrb[0].mxu0
  %9678 = vmatprep.mubr.bf16.mxu0 %v5818
  %9679 = vmatmul.mubr.bf16.gmra.mrb[0].mxu0 %v5809
  %v9680 = vpop.f32.mrb[0].mxu0
  %v9681 = vadd.f32 %v9264, %v9680
  %v9682 = vpop.f32.mrb[0].mxu0
  %v9683 = vpop.f32.mrb[0].mxu0
  %v9684 = vadd.f32 %v9267, %v9683
  %v9685 = vpop.f32.mrb[0].mxu0
  %9686 = vmatprep.mubr.bf16.mxu0 %v5867
  %9687 = vmatmul.mubr.bf16.gmra.mrb[0].mxu0 %v5858
  %v9688 = vpop.f32.mrb[0].mxu0
  %v9689 = vadd.f32 %v9272, %v9688
  %v9690 = vpop.f32.mrb[0].mxu0
  %v9691 = vpop.f32.mrb[0].mxu0
  %v9692 = vadd.f32 %v9275, %v9691
  %v9693 = vpop.f32.mrb[0].mxu0
  %9694 = vmatprep.mubr.bf16.mxu0 %v5916
  %9695 = vmatmul.mubr.bf16.gmra.mrb[0].mxu0 %v5907
  %v9696 = vpop.f32.mrb[0].mxu0
  %v9697 = vadd.f32 %v9280, %v9696
  %v9698 = vpop.f32.mrb[0].mxu0
  %v9699 = vpop.f32.mrb[0].mxu0
  %v9700 = vadd.f32 %v9283, %v9699
  %v9701 = vpop.f32.mrb[0].mxu0
  %9702 = vmatprep.mubr.bf16.mxu0 %v5965
  %9703 = vmatmul.mubr.bf16.gmra.mrb[0].mxu0 %v5956
  %v9704 = vpop.f32.mrb[0].mxu0
  %v9705 = vadd.f32 %v9288, %v9704
  %v9706 = vpop.f32.mrb[0].mxu0
  %v9707 = vpop.f32.mrb[0].mxu0
  %v9708 = vadd.f32 %v9291, %v9707
  %v9709 = vpop.f32.mrb[0].mxu0
  %9710 = vmatprep.mubr.bf16.mxu0 %v6014
  %9711 = vmatmul.mubr.bf16.gmra.mrb[0].mxu0 %v6005
  %v9712 = vpop.f32.mrb[0].mxu0
  %v9713 = vadd.f32 %v9296, %v9712
  %v9714 = vpop.f32.mrb[0].mxu0
  %v9715 = vpop.f32.mrb[0].mxu0
  %v9716 = vadd.f32 %v9299, %v9715
  %v9717 = vpop.f32.mrb[0].mxu0
  %9718 = vmatprep.mubr.bf16.mxu0 %v6063
  %9719 = vmatmul.mubr.bf16.gmra.mrb[0].mxu0 %v6054
  %v9720 = vpop.f32.mrb[0].mxu0
  %v9721 = vadd.f32 %v9304, %v9720
  %v9722 = vpop.f32.mrb[0].mxu0
  %v9723 = vpop.f32.mrb[0].mxu0
  %v9724 = vadd.f32 %v9307, %v9723
  %v9725 = vpop.f32.mrb[0].mxu0
  %9726 = vmatprep.mubr.bf16.mxu0 %v6112
  %9727 = vmatmul.mubr.bf16.gmra.mrb[0].mxu0 %v6103
  %v9728 = vpop.f32.mrb[0].mxu0
  %v9729 = vadd.f32 %v9312, %v9728
  %v9730 = vpop.f32.mrb[0].mxu0
  %v9731 = vpop.f32.mrb[0].mxu0
  %v9732 = vadd.f32 %v9315, %v9731
  %v9733 = vpop.f32.mrb[0].mxu0
  %9734 = vmatprep.mubr.bf16.mxu0 %v6161
  %9735 = vmatmul.mubr.bf16.gmra.mrb[0].mxu0 %v6152
  %v9736 = vpop.f32.mrb[0].mxu0
  %v9737 = vadd.f32 %v9320, %v9736
  %v9738 = vpop.f32.mrb[0].mxu0
  %v9739 = vpop.f32.mrb[0].mxu0
  %v9740 = vadd.f32 %v9323, %v9739
  %v9741 = vpop.f32.mrb[0].mxu0
  %9742 = vmatprep.mubr.bf16.mxu0 %v6210
  %9743 = vmatmul.mubr.bf16.gmra.mrb[0].mxu0 %v6201
  %v9744 = vpop.f32.mrb[0].mxu0
  %v9745 = vadd.f32 %v9328, %v9744
  %v9746 = vpop.f32.mrb[0].mxu0
  %v9747 = vpop.f32.mrb[0].mxu0
  %v9748 = vadd.f32 %v9331, %v9747
  %v9749 = vpop.f32.mrb[0].mxu0
  %9750 = vmatprep.mubr.bf16.mxu0 %v6259
  %9751 = vmatmul.mubr.bf16.gmra.mrb[0].mxu0 %v6250
  %v9752 = vpop.f32.mrb[0].mxu0
  %v9753 = vadd.f32 %v9336, %v9752
  %v9754 = vpop.f32.mrb[0].mxu0
  %v9755 = vpop.f32.mrb[0].mxu0
  %v9756 = vadd.f32 %v9339, %v9755
  %v9757 = vpop.f32.mrb[0].mxu0
  %9758 = vmatprep.mubr.bf16.mxu0 %v6308
  %9759 = vmatmul.mubr.bf16.gmra.mrb[0].mxu0 %v6299
  %v9760 = vpop.f32.mrb[0].mxu0
  %v9761 = vadd.f32 %v9344, %v9760
  %v9762 = vpop.f32.mrb[0].mxu0
  %v9763 = vpop.f32.mrb[0].mxu0
  %v9764 = vadd.f32 %v9347, %v9763
  %v9765 = vpop.f32.mrb[0].mxu0
  %9766 = vmatprep.mubr.bf16.mxu0 %v6375
  %9767 = vmatmul.mubr.bf16.gmra.mrb[0].mxu0 %v6366
  %v9768 = vpop.f32.mrb[0].mxu0
  %v9769 = vadd.f32 %v9352, %v9768
  %v9770 = vpop.f32.mrb[0].mxu0
  %v9771 = vpop.f32.mrb[0].mxu0
  %v9772 = vadd.f32 %v9355, %v9771
  %v9773 = vpop.f32.mrb[0].mxu0
  %9774 = vmatprep.mubr.bf16.mxu0 %v6446
  %9775 = vmatmul.mubr.bf16.gmra.mrb[0].mxu0 %v6437
  %v9776 = vpop.f32.mrb[0].mxu0
  %v9777 = vadd.f32 %v9360, %v9776
  %v9778 = vpop.f32.mrb[0].mxu0
  %v9779 = vpop.f32.mrb[0].mxu0
  %v9780 = vadd.f32 %v9363, %v9779
  %v9781 = vpop.f32.mrb[0].mxu0
  %9782 = vmatprep.mubr.bf16.mxu0 %v6565
  %9783 = vmatmul.mubr.bf16.gmra.mrb[0].mxu0 %v6548
  %v9784 = vpop.f32.mrb[0].mxu0
  %v9785 = vadd.f32 %v9368, %v9784
  %v9786 = vpop.f32.mrb[0].mxu0
  %v9787 = vpop.f32.mrb[0].mxu0
  %v9788 = vadd.f32 %v9371, %v9787
  %v9789 = vpop.f32.mrb[0].mxu0
  %9790 = vmatprep.mubr.bf16.mxu0 %v6660
  %9791 = vmatmul.mubr.bf16.gmra.mrb[0].mxu0 %v6651
  %v9792 = vpop.f32.mrb[0].mxu0
  %v9793 = vadd.f32 %v9376, %v9792
  %v9794 = vpop.f32.mrb[0].mxu0
  %v9795 = vpop.f32.mrb[0].mxu0
  %v9796 = vadd.f32 %v9379, %v9795
  %v9797 = vpop.f32.mrb[0].mxu0
  %9798 = vmatprep.mubr.bf16.mxu0 %v6731
  %9799 = vmatmul.mubr.bf16.gmra.mrb[0].mxu0 %v6722
  %v9800 = vpop.f32.mrb[0].mxu0
  %v9801 = vadd.f32 %v9384, %v9800
  %v9802 = vpop.f32.mrb[0].mxu0
  %v9803 = vpop.f32.mrb[0].mxu0
  %v9804 = vadd.f32 %v9387, %v9803
  %v9805 = vpop.f32.mrb[0].mxu0
  %9806 = vmatprep.mubr.bf16.mxu0 %v6783
  %9807 = vmatmul.mubr.bf16.gmra.mrb[0].mxu0 %v6774
  %v9808 = vpop.f32.mrb[0].mxu0
  %v9809 = vadd.f32 %v9392, %v9808
  %v9810 = vpop.f32.mrb[0].mxu0
  %v9811 = vpop.f32.mrb[0].mxu0
  %v9812 = vadd.f32 %v9395, %v9811
  %v9813 = vpop.f32.mrb[0].mxu0
  %9814 = vmatprep.mubr.bf16.mxu0 %v6832
  %9815 = vmatmul.mubr.bf16.gmra.mrb[0].mxu0 %v6823
  %v9816 = vpop.f32.mrb[0].mxu0
  %v9817 = vadd.f32 %v9400, %v9816
  %v9818 = vpop.f32.mrb[0].mxu0
  %v9819 = vpop.f32.mrb[0].mxu0
  %v9820 = vadd.f32 %v9403, %v9819
  %v9821 = vpop.f32.mrb[0].mxu0
  %9822 = vmatprep.mubr.bf16.mxu0 %v6881
  %9823 = vmatmul.mubr.bf16.gmra.mrb[0].mxu0 %v6872
  %v9824 = vpop.f32.mrb[0].mxu0
  %v9825 = vadd.f32 %v9408, %v9824
  %v9826 = vpop.f32.mrb[0].mxu0
  %v9827 = vpop.f32.mrb[0].mxu0
  %v9828 = vadd.f32 %v9411, %v9827
  %v9829 = vpop.f32.mrb[0].mxu0
  %9830 = vmatprep.mubr.bf16.mxu0 %v6930
  %9831 = vmatmul.mubr.bf16.gmra.mrb[0].mxu0 %v6921
  %v9832 = vpop.f32.mrb[0].mxu0
  %v9833 = vadd.f32 %v9416, %v9832
  %v9834 = vpop.f32.mrb[0].mxu0
  %v9835 = vpop.f32.mrb[0].mxu0
  %v9836 = vadd.f32 %v9419, %v9835
  %v9837 = vpop.f32.mrb[0].mxu0
  %9838 = vmatprep.mubr.bf16.mxu0 %v6979
  %9839 = vmatmul.mubr.bf16.gmra.mrb[0].mxu0 %v6970
  %v9840 = vpop.f32.mrb[0].mxu0
  %v9841 = vadd.f32 %v9424, %v9840
  %v9842 = vpop.f32.mrb[0].mxu0
  %v9843 = vpop.f32.mrb[0].mxu0
  %v9844 = vadd.f32 %v9427, %v9843
  %v9845 = vpop.f32.mrb[0].mxu0
  %9846 = vmatprep.mubr.bf16.mxu0 %v7028
  %9847 = vmatmul.mubr.bf16.gmra.mrb[0].mxu0 %v7019
  %v9848 = vpop.f32.mrb[0].mxu0
  %v9849 = vadd.f32 %v9432, %v9848
  %v9850 = vpop.f32.mrb[0].mxu0
  %v9851 = vpop.f32.mrb[0].mxu0
  %v9852 = vadd.f32 %v9435, %v9851
  %v9853 = vpop.f32.mrb[0].mxu0
  %9854 = vmatprep.mubr.bf16.mxu0 %v7077
  %9855 = vmatmul.mubr.bf16.gmra.mrb[0].mxu0 %v7068
  %v9856 = vpop.f32.mrb[0].mxu0
  %v9857 = vadd.f32 %v9440, %v9856
  %v9858 = vpop.f32.mrb[0].mxu0
  %v9859 = vpop.f32.mrb[0].mxu0
  %v9860 = vadd.f32 %v9443, %v9859
  %v9861 = vpop.f32.mrb[0].mxu0
  %9862 = vmatprep.mubr.bf16.mxu0 %v7126
  %9863 = vmatmul.mubr.bf16.gmra.mrb[0].mxu0 %v7117
  %v9864 = vpop.f32.mrb[0].mxu0
  %v9865 = vadd.f32 %v9448, %v9864
  %v9866 = vpop.f32.mrb[0].mxu0
  %v9867 = vpop.f32.mrb[0].mxu0
  %v9868 = vadd.f32 %v9451, %v9867
  %v9869 = vpop.f32.mrb[0].mxu0
  %9870 = vmatprep.mubr.bf16.mxu0 %v7175
  %9871 = vmatmul.mubr.bf16.gmra.mrb[0].mxu0 %v7166
  %v9872 = vpop.f32.mrb[0].mxu0
  %v9873 = vadd.f32 %v9456, %v9872
  %v9874 = vpop.f32.mrb[0].mxu0
  %v9875 = vpop.f32.mrb[0].mxu0
  %v9876 = vadd.f32 %v9459, %v9875
  %v9877 = vpop.f32.mrb[0].mxu0
  %9878 = vmatprep.mubr.bf16.mxu0 %v7224
  %9879 = vmatmul.mubr.bf16.gmra.mrb[0].mxu0 %v7215
  %v9880 = vpop.f32.mrb[0].mxu0
  %v9881 = vadd.f32 %v9464, %v9880
  %v9882 = vpop.f32.mrb[0].mxu0
  %v9883 = vpop.f32.mrb[0].mxu0
  %v9884 = vadd.f32 %v9467, %v9883
  %v9885 = vpop.f32.mrb[0].mxu0
  %9886 = vmatprep.mubr.bf16.mxu0 %v7273
  %9887 = vmatmul.mubr.bf16.gmra.mrb[0].mxu0 %v7264
  %v9888 = vpop.f32.mrb[0].mxu0
  %v9889 = vadd.f32 %v9472, %v9888
  %v9890 = vpop.f32.mrb[0].mxu0
  %v9891 = vpop.f32.mrb[0].mxu0
  %v9892 = vadd.f32 %v9475, %v9891
  %v9893 = vpop.f32.mrb[0].mxu0
  %9894 = vmatprep.mubr.bf16.mxu0 %v7322
  %9895 = vmatmul.mubr.bf16.gmra.mrb[0].mxu0 %v7313
  %v9896 = vpop.f32.mrb[0].mxu0
  %v9897 = vadd.f32 %v9480, %v9896
  %v9898 = vpop.f32.mrb[0].mxu0
  %v9899 = vpop.f32.mrb[0].mxu0
  %v9900 = vadd.f32 %v9483, %v9899
  %v9901 = vpop.f32.mrb[0].mxu0
  %9902 = vmatprep.mubr.bf16.mxu0 %v7371
  %9903 = vmatmul.mubr.bf16.gmra.mrb[0].mxu0 %v7362
  %v9904 = vpop.f32.mrb[0].mxu0
  %v9905 = vadd.f32 %v9488, %v9904
  %v9906 = vpop.f32.mrb[0].mxu0
  %v9907 = vpop.f32.mrb[0].mxu0
  %v9908 = vadd.f32 %v9491, %v9907
  %v9909 = vpop.f32.mrb[0].mxu0
  %9910 = vmatprep.mubr.bf16.mxu0 %v7420
  %9911 = vmatmul.mubr.bf16.gmra.mrb[0].mxu0 %v7411
  %v9912 = vpop.f32.mrb[0].mxu0
  %v9913 = vadd.f32 %v9496, %v9912
  %v9914 = vpop.f32.mrb[0].mxu0
  %v9915 = vpop.f32.mrb[0].mxu0
  %v9916 = vadd.f32 %v9499, %v9915
  %v9917 = vpop.f32.mrb[0].mxu0
  %9918 = vmatprep.mubr.bf16.mxu0 %v7469
  %9919 = vmatmul.mubr.bf16.gmra.mrb[0].mxu0 %v7460
  %v9920 = vpop.f32.mrb[0].mxu0
  %v9921 = vadd.f32 %v9504, %v9920
  %v9922 = vpop.f32.mrb[0].mxu0
  %v9923 = vpop.f32.mrb[0].mxu0
  %v9924 = vadd.f32 %v9507, %v9923
  %v9925 = vpop.f32.mrb[0].mxu0
  %9926 = vmatprep.mubr.bf16.mxu0 %v7518
  %9927 = vmatmul.mubr.bf16.gmra.mrb[0].mxu0 %v7509
  %v9928 = vpop.f32.mrb[0].mxu0
  %v9929 = vadd.f32 %v9512, %v9928
  %v9930 = vpop.f32.mrb[0].mxu0
  %v9931 = vpop.f32.mrb[0].mxu0
  %v9932 = vadd.f32 %v9515, %v9931
  %v9933 = vpop.f32.mrb[0].mxu0
  %9934 = vmatprep.mubr.bf16.mxu0 %v7567
  %9935 = vmatmul.mubr.bf16.gmra.mrb[0].mxu0 %v7558
  %v9936 = vpop.f32.mrb[0].mxu0
  %v9937 = vadd.f32 %v9520, %v9936
  %v9938 = vpop.f32.mrb[0].mxu0
  %v9939 = vpop.f32.mrb[0].mxu0
  %v9940 = vadd.f32 %v9523, %v9939
  %v9941 = vpop.f32.mrb[0].mxu0
  %9942 = vmatprep.mubr.bf16.mxu0 %v7616
  %9943 = vmatmul.mubr.bf16.gmra.mrb[0].mxu0 %v7607
  %v9944 = vpop.f32.mrb[0].mxu0
  %v9945 = vadd.f32 %v9528, %v9944
  %v9946 = vpop.f32.mrb[0].mxu0
  %v9947 = vpop.f32.mrb[0].mxu0
  %v9948 = vadd.f32 %v9531, %v9947
  %v9949 = vpop.f32.mrb[0].mxu0
  %9950 = vmatprep.mubr.bf16.mxu0 %v7665
  %9951 = vmatmul.mubr.bf16.gmra.mrb[0].mxu0 %v7656
  %v9952 = vpop.f32.mrb[0].mxu0
  %v9953 = vadd.f32 %v9536, %v9952
  %v9954 = vpop.f32.mrb[0].mxu0
  %v9955 = vpop.f32.mrb[0].mxu0
  %v9956 = vadd.f32 %v9539, %v9955
  %v9957 = vpop.f32.mrb[0].mxu0
  %9958 = vmatprep.mubr.bf16.mxu0 %v7732
  %9959 = vmatmul.mubr.bf16.gmra.mrb[0].mxu0 %v7723
  %v9960 = vpop.f32.mrb[0].mxu0
  %v9961 = vadd.f32 %v9544, %v9960
  %v9962 = vpop.f32.mrb[0].mxu0
  %v9963 = vpop.f32.mrb[0].mxu0
  %v9964 = vadd.f32 %v9547, %v9963
  %v9965 = vpop.f32.mrb[0].mxu0
  %9966 = vmatprep.mubr.bf16.mxu0 %v7803
  %9967 = vmatmul.mubr.bf16.gmra.mrb[0].mxu0 %v7794
  %v9968 = vpop.f32.mrb[0].mxu0
  %v9969 = vadd.f32 %v9552, %v9968
  %v9970 = vpop.f32.mrb[0].mxu0
  %v9971 = vpop.f32.mrb[0].mxu0
  %v9972 = vadd.f32 %v9555, %v9971
  %v9973 = vpop.f32.mrb[0].mxu0
  %9974 = vdwg.mxu0
  %9975 = vmatprep.subr.bf16.mxu0 0
  %9976 = vmatpush1.bf16.msra.mxu0 %v8628
  %9977 = vmatprep.subr.bf16.mxu0 0
  %9978 = vmatpush1.bf16.msra.mxu0 %v8629
  %9979 = vmatprep.subr.bf16.mxu0 0
  %9980 = vmatpush1.bf16.msra.mxu0 %v8630
  %9981 = vmatprep.subr.bf16.mxu0 0
  %9982 = vmatpush1.bf16.msra.mxu0 %v8631
  %9983 = vmatprep.subr.bf16.mxu0 0
  %9984 = vmatpush1.bf16.msra.mxu0 %v8632
  %9985 = vmatprep.subr.bf16.mxu0 0
  %9986 = vmatpush1.bf16.msra.mxu0 %v8633
  %9987 = vmatprep.subr.bf16.mxu0 0
  %9988 = vmatpush1.bf16.msra.mxu0 %v8634
  %9989 = vmatprep.subr.bf16.mxu0 0
  %9990 = vmatpush1.bf16.msra.mxu0 %v8635
  %9991 = vmatprep.subr.bf16.mxu0 0
  %9992 = vmatpush1.bf16.msra.mxu0 %v8636
  %9993 = vmatprep.subr.bf16.mxu0 0
  %9994 = vmatpush1.bf16.msra.mxu0 %v8637
  %9995 = vmatprep.subr.bf16.mxu0 0
  %9996 = vmatpush1.bf16.msra.mxu0 %v8638
  %9997 = vmatprep.subr.bf16.mxu0 0
  %9998 = vmatpush1.bf16.msra.mxu0 %v8639
  %9999 = vmatprep.subr.bf16.mxu0 0
  %10000 = vmatpush1.bf16.msra.mxu0 %v8640
  %10001 = vmatprep.subr.bf16.mxu0 0
  %10002 = vmatpush1.bf16.msra.mxu0 %v8641
  %10003 = vmatprep.subr.bf16.mxu0 0
  %10004 = vmatpush1.bf16.msra.mxu0 %v8642
  %10005 = vmatprep.subr.bf16.mxu0 0
  %10006 = vmatpush1.bf16.msra.mxu0 %v8643
  %10007 = vmatprep.mubr.bf16.mxu0 %v5237
  %10008 = vmatmul.mubr.bf16.gmra.mrb[0].mxu0 %v5220
  %v10009 = vpop.f32.mrb[0].mxu0
  %v10010 = vadd.f32 %v9593, %v10009
  %v10011 = vpop.f32.mrb[0].mxu0
  %v10012 = vpop.f32.mrb[0].mxu0
  %v10013 = vadd.f32 %v9596, %v10012
  %v10014 = vpop.f32.mrb[0].mxu0
  %10015 = vmatprep.mubr.bf16.mxu0 %v5316
  %10016 = vmatmul.mubr.bf16.gmra.mrb[0].mxu0 %v5307
  %v10017 = vpop.f32.mrb[0].mxu0
  %v10018 = vadd.f32 %v9601, %v10017
  %v10019 = vpop.f32.mrb[0].mxu0
  %v10020 = vpop.f32.mrb[0].mxu0
  %v10021 = vadd.f32 %v9604, %v10020
  %v10022 = vpop.f32.mrb[0].mxu0
  %10023 = vmatprep.mubr.bf16.mxu0 %v5387
  %10024 = vmatmul.mubr.bf16.gmra.mrb[0].mxu0 %v5378
  %v10025 = vpop.f32.mrb[0].mxu0
  %v10026 = vadd.f32 %v9609, %v10025
  %v10027 = vpop.f32.mrb[0].mxu0
  %v10028 = vpop.f32.mrb[0].mxu0
  %v10029 = vadd.f32 %v9612, %v10028
  %v10030 = vpop.f32.mrb[0].mxu0
  %10031 = vmatprep.mubr.bf16.mxu0 %v5439
  %10032 = vmatmul.mubr.bf16.gmra.mrb[0].mxu0 %v5430
  %v10033 = vpop.f32.mrb[0].mxu0
  %v10034 = vadd.f32 %v9617, %v10033
  %v10035 = vpop.f32.mrb[0].mxu0
  %v10036 = vpop.f32.mrb[0].mxu0
  %v10037 = vadd.f32 %v9620, %v10036
  %v10038 = vpop.f32.mrb[0].mxu0
  %10039 = vmatprep.mubr.bf16.mxu0 %v5488
  %10040 = vmatmul.mubr.bf16.gmra.mrb[0].mxu0 %v5479
  %v10041 = vpop.f32.mrb[0].mxu0
  %v10042 = vadd.f32 %v9625, %v10041
  %v10043 = vpop.f32.mrb[0].mxu0
  %v10044 = vpop.f32.mrb[0].mxu0
  %v10045 = vadd.f32 %v9628, %v10044
  %v10046 = vpop.f32.mrb[0].mxu0
  %10047 = vmatprep.mubr.bf16.mxu0 %v5537
  %10048 = vmatmul.mubr.bf16.gmra.mrb[0].mxu0 %v5528
  %v10049 = vpop.f32.mrb[0].mxu0
  %v10050 = vadd.f32 %v9633, %v10049
  %v10051 = vpop.f32.mrb[0].mxu0
  %v10052 = vpop.f32.mrb[0].mxu0
  %v10053 = vadd.f32 %v9636, %v10052
  %v10054 = vpop.f32.mrb[0].mxu0
  %10055 = vmatprep.mubr.bf16.mxu0 %v5586
  %10056 = vmatmul.mubr.bf16.gmra.mrb[0].mxu0 %v5577
  %v10057 = vpop.f32.mrb[0].mxu0
  %v10058 = vadd.f32 %v9641, %v10057
  %v10059 = vpop.f32.mrb[0].mxu0
  %v10060 = vpop.f32.mrb[0].mxu0
  %v10061 = vadd.f32 %v9644, %v10060
  %v10062 = vpop.f32.mrb[0].mxu0
  %10063 = vmatprep.mubr.bf16.mxu0 %v5635
  %10064 = vmatmul.mubr.bf16.gmra.mrb[0].mxu0 %v5626
  %v10065 = vpop.f32.mrb[0].mxu0
  %v10066 = vadd.f32 %v9649, %v10065
  %v10067 = vpop.f32.mrb[0].mxu0
  %v10068 = vpop.f32.mrb[0].mxu0
  %v10069 = vadd.f32 %v9652, %v10068
  %v10070 = vpop.f32.mrb[0].mxu0
  %10071 = vmatprep.mubr.bf16.mxu0 %v5684
  %10072 = vmatmul.mubr.bf16.gmra.mrb[0].mxu0 %v5675
  %v10073 = vpop.f32.mrb[0].mxu0
  %v10074 = vadd.f32 %v9657, %v10073
  %v10075 = vpop.f32.mrb[0].mxu0
  %v10076 = vpop.f32.mrb[0].mxu0
  %v10077 = vadd.f32 %v9660, %v10076
  %v10078 = vpop.f32.mrb[0].mxu0
  %10079 = vmatprep.mubr.bf16.mxu0 %v5733
  %10080 = vmatmul.mubr.bf16.gmra.mrb[0].mxu0 %v5724
  %v10081 = vpop.f32.mrb[0].mxu0
  %v10082 = vadd.f32 %v9665, %v10081
  %v10083 = vpop.f32.mrb[0].mxu0
  %v10084 = vpop.f32.mrb[0].mxu0
  %v10085 = vadd.f32 %v9668, %v10084
  %v10086 = vpop.f32.mrb[0].mxu0
  %10087 = vmatprep.mubr.bf16.mxu0 %v5782
  %10088 = vmatmul.mubr.bf16.gmra.mrb[0].mxu0 %v5773
  %v10089 = vpop.f32.mrb[0].mxu0
  %v10090 = vadd.f32 %v9673, %v10089
  %v10091 = vpop.f32.mrb[0].mxu0
  %v10092 = vpop.f32.mrb[0].mxu0
  %v10093 = vadd.f32 %v9676, %v10092
  %v10094 = vpop.f32.mrb[0].mxu0
  %10095 = vmatprep.mubr.bf16.mxu0 %v5831
  %10096 = vmatmul.mubr.bf16.gmra.mrb[0].mxu0 %v5822
  %v10097 = vpop.f32.mrb[0].mxu0
  %v10098 = vadd.f32 %v9681, %v10097
  %v10099 = vpop.f32.mrb[0].mxu0
  %v10100 = vpop.f32.mrb[0].mxu0
  %v10101 = vadd.f32 %v9684, %v10100
  %v10102 = vpop.f32.mrb[0].mxu0
  %10103 = vmatprep.mubr.bf16.mxu0 %v5880
  %10104 = vmatmul.mubr.bf16.gmra.mrb[0].mxu0 %v5871
  %v10105 = vpop.f32.mrb[0].mxu0
  %v10106 = vadd.f32 %v9689, %v10105
  %v10107 = vpop.f32.mrb[0].mxu0
  %v10108 = vpop.f32.mrb[0].mxu0
  %v10109 = vadd.f32 %v9692, %v10108
  %v10110 = vpop.f32.mrb[0].mxu0
  %10111 = vmatprep.mubr.bf16.mxu0 %v5929
  %10112 = vmatmul.mubr.bf16.gmra.mrb[0].mxu0 %v5920
  %v10113 = vpop.f32.mrb[0].mxu0
  %v10114 = vadd.f32 %v9697, %v10113
  %v10115 = vpop.f32.mrb[0].mxu0
  %v10116 = vpop.f32.mrb[0].mxu0
  %v10117 = vadd.f32 %v9700, %v10116
  %v10118 = vpop.f32.mrb[0].mxu0
  %10119 = vmatprep.mubr.bf16.mxu0 %v5978
  %10120 = vmatmul.mubr.bf16.gmra.mrb[0].mxu0 %v5969
  %v10121 = vpop.f32.mrb[0].mxu0
  %v10122 = vadd.f32 %v9705, %v10121
  %v10123 = vpop.f32.mrb[0].mxu0
  %v10124 = vpop.f32.mrb[0].mxu0
  %v10125 = vadd.f32 %v9708, %v10124
  %v10126 = vpop.f32.mrb[0].mxu0
  %10127 = vmatprep.mubr.bf16.mxu0 %v6027
  %10128 = vmatmul.mubr.bf16.gmra.mrb[0].mxu0 %v6018
  %v10129 = vpop.f32.mrb[0].mxu0
  %v10130 = vadd.f32 %v9713, %v10129
  %v10131 = vpop.f32.mrb[0].mxu0
  %v10132 = vpop.f32.mrb[0].mxu0
  %v10133 = vadd.f32 %v9716, %v10132
  %v10134 = vpop.f32.mrb[0].mxu0
  %10135 = vmatprep.mubr.bf16.mxu0 %v6076
  %10136 = vmatmul.mubr.bf16.gmra.mrb[0].mxu0 %v6067
  %v10137 = vpop.f32.mrb[0].mxu0
  %v10138 = vadd.f32 %v9721, %v10137
  %v10139 = vpop.f32.mrb[0].mxu0
  %v10140 = vpop.f32.mrb[0].mxu0
  %v10141 = vadd.f32 %v9724, %v10140
  %v10142 = vpop.f32.mrb[0].mxu0
  %10143 = vmatprep.mubr.bf16.mxu0 %v6125
  %10144 = vmatmul.mubr.bf16.gmra.mrb[0].mxu0 %v6116
  %v10145 = vpop.f32.mrb[0].mxu0
  %v10146 = vadd.f32 %v9729, %v10145
  %v10147 = vpop.f32.mrb[0].mxu0
  %v10148 = vpop.f32.mrb[0].mxu0
  %v10149 = vadd.f32 %v9732, %v10148
  %v10150 = vpop.f32.mrb[0].mxu0
  %10151 = vmatprep.mubr.bf16.mxu0 %v6174
  %10152 = vmatmul.mubr.bf16.gmra.mrb[0].mxu0 %v6165
  %v10153 = vpop.f32.mrb[0].mxu0
  %v10154 = vadd.f32 %v9737, %v10153
  %v10155 = vpop.f32.mrb[0].mxu0
  %v10156 = vpop.f32.mrb[0].mxu0
  %v10157 = vadd.f32 %v9740, %v10156
  %v10158 = vpop.f32.mrb[0].mxu0
  %10159 = vmatprep.mubr.bf16.mxu0 %v6223
  %10160 = vmatmul.mubr.bf16.gmra.mrb[0].mxu0 %v6214
  %v10161 = vpop.f32.mrb[0].mxu0
  %v10162 = vadd.f32 %v9745, %v10161
  %v10163 = vpop.f32.mrb[0].mxu0
  %v10164 = vpop.f32.mrb[0].mxu0
  %v10165 = vadd.f32 %v9748, %v10164
  %v10166 = vpop.f32.mrb[0].mxu0
  %10167 = vmatprep.mubr.bf16.mxu0 %v6272
  %10168 = vmatmul.mubr.bf16.gmra.mrb[0].mxu0 %v6263
  %v10169 = vpop.f32.mrb[0].mxu0
  %v10170 = vadd.f32 %v9753, %v10169
  %v10171 = vpop.f32.mrb[0].mxu0
  %v10172 = vpop.f32.mrb[0].mxu0
  %v10173 = vadd.f32 %v9756, %v10172
  %v10174 = vpop.f32.mrb[0].mxu0
  %10175 = vmatprep.mubr.bf16.mxu0 %v6321
  %10176 = vmatmul.mubr.bf16.gmra.mrb[0].mxu0 %v6312
  %v10177 = vpop.f32.mrb[0].mxu0
  %v10178 = vadd.f32 %v9761, %v10177
  %v10179 = vpop.f32.mrb[0].mxu0
  %v10180 = vpop.f32.mrb[0].mxu0
  %v10181 = vadd.f32 %v9764, %v10180
  %v10182 = vpop.f32.mrb[0].mxu0
  %10183 = vmatprep.mubr.bf16.mxu0 %v6388
  %10184 = vmatmul.mubr.bf16.gmra.mrb[0].mxu0 %v6379
  %v10185 = vpop.f32.mrb[0].mxu0
  %v10186 = vadd.f32 %v9769, %v10185
  %v10187 = vpop.f32.mrb[0].mxu0
  %v10188 = vpop.f32.mrb[0].mxu0
  %v10189 = vadd.f32 %v9772, %v10188
  %v10190 = vpop.f32.mrb[0].mxu0
  %10191 = vmatprep.mubr.bf16.mxu0 %v6459
  %10192 = vmatmul.mubr.bf16.gmra.mrb[0].mxu0 %v6450
  %v10193 = vpop.f32.mrb[0].mxu0
  %v10194 = vadd.f32 %v9777, %v10193
  %v10195 = vpop.f32.mrb[0].mxu0
  %v10196 = vpop.f32.mrb[0].mxu0
  %v10197 = vadd.f32 %v9780, %v10196
  %v10198 = vpop.f32.mrb[0].mxu0
  %10199 = vmatprep.mubr.bf16.mxu0 %v6594
  %10200 = vmatmul.mubr.bf16.gmra.mrb[0].mxu0 %v6577
  %v10201 = vpop.f32.mrb[0].mxu0
  %v10202 = vadd.f32 %v9785, %v10201
  %v10203 = vpop.f32.mrb[0].mxu0
  %v10204 = vpop.f32.mrb[0].mxu0
  %v10205 = vadd.f32 %v9788, %v10204
  %v10206 = vpop.f32.mrb[0].mxu0
  %10207 = vmatprep.mubr.bf16.mxu0 %v6673
  %10208 = vmatmul.mubr.bf16.gmra.mrb[0].mxu0 %v6664
  %v10209 = vpop.f32.mrb[0].mxu0
  %v10210 = vadd.f32 %v9793, %v10209
  %v10211 = vpop.f32.mrb[0].mxu0
  %v10212 = vpop.f32.mrb[0].mxu0
  %v10213 = vadd.f32 %v9796, %v10212
  %v10214 = vpop.f32.mrb[0].mxu0
  %10215 = vmatprep.mubr.bf16.mxu0 %v6744
  %10216 = vmatmul.mubr.bf16.gmra.mrb[0].mxu0 %v6735
  %v10217 = vpop.f32.mrb[0].mxu0
  %v10218 = vadd.f32 %v9801, %v10217
  %v10219 = vpop.f32.mrb[0].mxu0
  %v10220 = vpop.f32.mrb[0].mxu0
  %v10221 = vadd.f32 %v9804, %v10220
  %v10222 = vpop.f32.mrb[0].mxu0
  %10223 = vmatprep.mubr.bf16.mxu0 %v6796
  %10224 = vmatmul.mubr.bf16.gmra.mrb[0].mxu0 %v6787
  %v10225 = vpop.f32.mrb[0].mxu0
  %v10226 = vadd.f32 %v9809, %v10225
  %v10227 = vpop.f32.mrb[0].mxu0
  %v10228 = vpop.f32.mrb[0].mxu0
  %v10229 = vadd.f32 %v9812, %v10228
  %v10230 = vpop.f32.mrb[0].mxu0
  %10231 = vmatprep.mubr.bf16.mxu0 %v6845
  %10232 = vmatmul.mubr.bf16.gmra.mrb[0].mxu0 %v6836
  %v10233 = vpop.f32.mrb[0].mxu0
  %v10234 = vadd.f32 %v9817, %v10233
  %v10235 = vpop.f32.mrb[0].mxu0
  %v10236 = vpop.f32.mrb[0].mxu0
  %v10237 = vadd.f32 %v9820, %v10236
  %v10238 = vpop.f32.mrb[0].mxu0
  %10239 = vmatprep.mubr.bf16.mxu0 %v6894
  %10240 = vmatmul.mubr.bf16.gmra.mrb[0].mxu0 %v6885
  %v10241 = vpop.f32.mrb[0].mxu0
  %v10242 = vadd.f32 %v9825, %v10241
  %v10243 = vpop.f32.mrb[0].mxu0
  %v10244 = vpop.f32.mrb[0].mxu0
  %v10245 = vadd.f32 %v9828, %v10244
  %v10246 = vpop.f32.mrb[0].mxu0
  %10247 = vmatprep.mubr.bf16.mxu0 %v6943
  %10248 = vmatmul.mubr.bf16.gmra.mrb[0].mxu0 %v6934
  %v10249 = vpop.f32.mrb[0].mxu0
  %v10250 = vadd.f32 %v9833, %v10249
  %v10251 = vpop.f32.mrb[0].mxu0
  %v10252 = vpop.f32.mrb[0].mxu0
  %v10253 = vadd.f32 %v9836, %v10252
  %v10254 = vpop.f32.mrb[0].mxu0
  %10255 = vmatprep.mubr.bf16.mxu0 %v6992
  %10256 = vmatmul.mubr.bf16.gmra.mrb[0].mxu0 %v6983
  %v10257 = vpop.f32.mrb[0].mxu0
  %v10258 = vadd.f32 %v9841, %v10257
  %v10259 = vpop.f32.mrb[0].mxu0
  %v10260 = vpop.f32.mrb[0].mxu0
  %v10261 = vadd.f32 %v9844, %v10260
  %v10262 = vpop.f32.mrb[0].mxu0
  %10263 = vmatprep.mubr.bf16.mxu0 %v7041
  %10264 = vmatmul.mubr.bf16.gmra.mrb[0].mxu0 %v7032
  %v10265 = vpop.f32.mrb[0].mxu0
  %v10266 = vadd.f32 %v9849, %v10265
  %v10267 = vpop.f32.mrb[0].mxu0
  %v10268 = vpop.f32.mrb[0].mxu0
  %v10269 = vadd.f32 %v9852, %v10268
  %v10270 = vpop.f32.mrb[0].mxu0
  %10271 = vmatprep.mubr.bf16.mxu0 %v7090
  %10272 = vmatmul.mubr.bf16.gmra.mrb[0].mxu0 %v7081
  %v10273 = vpop.f32.mrb[0].mxu0
  %v10274 = vadd.f32 %v9857, %v10273
  %v10275 = vpop.f32.mrb[0].mxu0
  %v10276 = vpop.f32.mrb[0].mxu0
  %v10277 = vadd.f32 %v9860, %v10276
  %v10278 = vpop.f32.mrb[0].mxu0
  %10279 = vmatprep.mubr.bf16.mxu0 %v7139
  %10280 = vmatmul.mubr.bf16.gmra.mrb[0].mxu0 %v7130
  %v10281 = vpop.f32.mrb[0].mxu0
  %v10282 = vadd.f32 %v9865, %v10281
  %v10283 = vpop.f32.mrb[0].mxu0
  %v10284 = vpop.f32.mrb[0].mxu0
  %v10285 = vadd.f32 %v9868, %v10284
  %v10286 = vpop.f32.mrb[0].mxu0
  %10287 = vmatprep.mubr.bf16.mxu0 %v7188
  %10288 = vmatmul.mubr.bf16.gmra.mrb[0].mxu0 %v7179
  %v10289 = vpop.f32.mrb[0].mxu0
  %v10290 = vadd.f32 %v9873, %v10289
  %v10291 = vpop.f32.mrb[0].mxu0
  %v10292 = vpop.f32.mrb[0].mxu0
  %v10293 = vadd.f32 %v9876, %v10292
  %v10294 = vpop.f32.mrb[0].mxu0
  %10295 = vmatprep.mubr.bf16.mxu0 %v7237
  %10296 = vmatmul.mubr.bf16.gmra.mrb[0].mxu0 %v7228
  %v10297 = vpop.f32.mrb[0].mxu0
  %v10298 = vadd.f32 %v9881, %v10297
  %v10299 = vpop.f32.mrb[0].mxu0
  %v10300 = vpop.f32.mrb[0].mxu0
  %v10301 = vadd.f32 %v9884, %v10300
  %v10302 = vpop.f32.mrb[0].mxu0
  %10303 = vmatprep.mubr.bf16.mxu0 %v7286
  %10304 = vmatmul.mubr.bf16.gmra.mrb[0].mxu0 %v7277
  %v10305 = vpop.f32.mrb[0].mxu0
  %v10306 = vadd.f32 %v9889, %v10305
  %v10307 = vpop.f32.mrb[0].mxu0
  %v10308 = vpop.f32.mrb[0].mxu0
  %v10309 = vadd.f32 %v9892, %v10308
  %v10310 = vpop.f32.mrb[0].mxu0
  %10311 = vmatprep.mubr.bf16.mxu0 %v7335
  %10312 = vmatmul.mubr.bf16.gmra.mrb[0].mxu0 %v7326
  %v10313 = vpop.f32.mrb[0].mxu0
  %v10314 = vadd.f32 %v9897, %v10313
  %v10315 = vpop.f32.mrb[0].mxu0
  %v10316 = vpop.f32.mrb[0].mxu0
  %v10317 = vadd.f32 %v9900, %v10316
  %v10318 = vpop.f32.mrb[0].mxu0
  %10319 = vmatprep.mubr.bf16.mxu0 %v7384
  %10320 = vmatmul.mubr.bf16.gmra.mrb[0].mxu0 %v7375
  %v10321 = vpop.f32.mrb[0].mxu0
  %v10322 = vadd.f32 %v9905, %v10321
  %v10323 = vpop.f32.mrb[0].mxu0
  %v10324 = vpop.f32.mrb[0].mxu0
  %v10325 = vadd.f32 %v9908, %v10324
  %v10326 = vpop.f32.mrb[0].mxu0
  %10327 = vmatprep.mubr.bf16.mxu0 %v7433
  %10328 = vmatmul.mubr.bf16.gmra.mrb[0].mxu0 %v7424
  %v10329 = vpop.f32.mrb[0].mxu0
  %v10330 = vadd.f32 %v9913, %v10329
  %v10331 = vpop.f32.mrb[0].mxu0
  %v10332 = vpop.f32.mrb[0].mxu0
  %v10333 = vadd.f32 %v9916, %v10332
  %v10334 = vpop.f32.mrb[0].mxu0
  %10335 = vmatprep.mubr.bf16.mxu0 %v7482
  %10336 = vmatmul.mubr.bf16.gmra.mrb[0].mxu0 %v7473
  %v10337 = vpop.f32.mrb[0].mxu0
  %v10338 = vadd.f32 %v9921, %v10337
  %v10339 = vpop.f32.mrb[0].mxu0
  %v10340 = vpop.f32.mrb[0].mxu0
  %v10341 = vadd.f32 %v9924, %v10340
  %v10342 = vpop.f32.mrb[0].mxu0
  %10343 = vmatprep.mubr.bf16.mxu0 %v7531
  %10344 = vmatmul.mubr.bf16.gmra.mrb[0].mxu0 %v7522
  %v10345 = vpop.f32.mrb[0].mxu0
  %v10346 = vadd.f32 %v9929, %v10345
  %v10347 = vpop.f32.mrb[0].mxu0
  %v10348 = vpop.f32.mrb[0].mxu0
  %v10349 = vadd.f32 %v9932, %v10348
  %v10350 = vpop.f32.mrb[0].mxu0
  %10351 = vmatprep.mubr.bf16.mxu0 %v7580
  %10352 = vmatmul.mubr.bf16.gmra.mrb[0].mxu0 %v7571
  %v10353 = vpop.f32.mrb[0].mxu0
  %v10354 = vadd.f32 %v9937, %v10353
  %v10355 = vpop.f32.mrb[0].mxu0
  %v10356 = vpop.f32.mrb[0].mxu0
  %v10357 = vadd.f32 %v9940, %v10356
  %v10358 = vpop.f32.mrb[0].mxu0
  %10359 = vmatprep.mubr.bf16.mxu0 %v7629
  %10360 = vmatmul.mubr.bf16.gmra.mrb[0].mxu0 %v7620
  %v10361 = vpop.f32.mrb[0].mxu0
  %v10362 = vadd.f32 %v9945, %v10361
  %v10363 = vpop.f32.mrb[0].mxu0
  %v10364 = vpop.f32.mrb[0].mxu0
  %v10365 = vadd.f32 %v9948, %v10364
  %v10366 = vpop.f32.mrb[0].mxu0
  %10367 = vmatprep.mubr.bf16.mxu0 %v7678
  %10368 = vmatmul.mubr.bf16.gmra.mrb[0].mxu0 %v7669
  %v10369 = vpop.f32.mrb[0].mxu0
  %v10370 = vadd.f32 %v9953, %v10369
  %v10371 = vpop.f32.mrb[0].mxu0
  %v10372 = vpop.f32.mrb[0].mxu0
  %v10373 = vadd.f32 %v9956, %v10372
  %v10374 = vpop.f32.mrb[0].mxu0
  %10375 = vmatprep.mubr.bf16.mxu0 %v7745
  %10376 = vmatmul.mubr.bf16.gmra.mrb[0].mxu0 %v7736
  %v10377 = vpop.f32.mrb[0].mxu0
  %v10378 = vadd.f32 %v9961, %v10377
  %v10379 = vpop.f32.mrb[0].mxu0
  %v10380 = vpop.f32.mrb[0].mxu0
  %v10381 = vadd.f32 %v9964, %v10380
  %v10382 = vpop.f32.mrb[0].mxu0
  %10383 = vmatprep.mubr.bf16.mxu0 %v7816
  %10384 = vmatmul.mubr.bf16.gmra.mrb[0].mxu0 %v7807
  %v10385 = vpop.f32.mrb[0].mxu0
  %v10386 = vadd.f32 %v9969, %v10385
  %v10387 = vpop.f32.mrb[0].mxu0
  %v10388 = vpop.f32.mrb[0].mxu0
  %v10389 = vadd.f32 %v9972, %v10388
  %v10390 = vpop.f32.mrb[0].mxu0
  %10391 = vdwg.mxu0
  %10392 = vmatprep.subr.bf16.mxu0 0
  %10393 = vmatpush1.bf16.msra.mxu0 %v8644
  %10394 = vmatprep.subr.bf16.mxu0 0
  %10395 = vmatpush1.bf16.msra.mxu0 %v8645
  %10396 = vmatprep.subr.bf16.mxu0 0
  %10397 = vmatpush1.bf16.msra.mxu0 %v8646
  %10398 = vmatprep.subr.bf16.mxu0 0
  %10399 = vmatpush1.bf16.msra.mxu0 %v8647
  %10400 = vmatprep.subr.bf16.mxu0 0
  %10401 = vmatpush1.bf16.msra.mxu0 %v8648
  %10402 = vmatprep.subr.bf16.mxu0 0
  %10403 = vmatpush1.bf16.msra.mxu0 %v8649
  %10404 = vmatprep.subr.bf16.mxu0 0
  %10405 = vmatpush1.bf16.msra.mxu0 %v8650
  %10406 = vmatprep.subr.bf16.mxu0 0
  %10407 = vmatpush1.bf16.msra.mxu0 %v8651
  %10408 = vmatprep.subr.bf16.mxu0 0
  %10409 = vmatpush1.bf16.msra.mxu0 0
  %10410 = vmatprep.subr.bf16.mxu0 0
  %10411 = vmatpush1.bf16.msra.mxu0 0
  %10412 = vmatprep.subr.bf16.mxu0 0
  %10413 = vmatpush1.bf16.msra.mxu0 0
  %10414 = vmatprep.subr.bf16.mxu0 0
  %10415 = vmatpush1.bf16.msra.mxu0 0
  %10416 = vmatprep.subr.bf16.mxu0 0
  %10417 = vmatpush1.bf16.msra.mxu0 0
  %10418 = vmatprep.subr.bf16.mxu0 0
  %10419 = vmatpush1.bf16.msra.mxu0 0
  %10420 = vmatprep.subr.bf16.mxu0 0
  %10421 = vmatpush1.bf16.msra.mxu0 0
  %10422 = vmatprep.subr.bf16.mxu0 0
  %10423 = vmatpush1.bf16.msra.mxu0 0
  %10424 = vmatprep.mubr.bf16.mxu0 0
  %10425 = vmatmul.mubr.bf16.gmra.mrb[0].mxu0 %v5254
  %v10426 = vpop.f32.mrb[0].mxu0
  %v10427 = vadd.f32 %v10010, %v10426
  %v10428 = vpop.f32.mrb[0].mxu0
  %v10429 = vpop.f32.mrb[0].mxu0
  %v10430 = vadd.f32 %v10013, %v10429
  %v10431 = vpop.f32.mrb[0].mxu0
  %10432 = vmatprep.mubr.bf16.mxu0 0
  %10433 = vmatmul.mubr.bf16.gmra.mrb[0].mxu0 %v5325
  %v10434 = vpop.f32.mrb[0].mxu0
  %v10435 = vadd.f32 %v10018, %v10434
  %v10436 = vpop.f32.mrb[0].mxu0
  %v10437 = vpop.f32.mrb[0].mxu0
  %v10438 = vadd.f32 %v10021, %v10437
  %v10439 = vpop.f32.mrb[0].mxu0
  %10440 = vmatprep.mubr.bf16.mxu0 0
  %10441 = vmatmul.mubr.bf16.gmra.mrb[0].mxu0 %v5396
  %v10442 = vpop.f32.mrb[0].mxu0
  %v10443 = vadd.f32 %v10026, %v10442
  %v10444 = vpop.f32.mrb[0].mxu0
  %v10445 = vpop.f32.mrb[0].mxu0
  %v10446 = vadd.f32 %v10029, %v10445
  %v10447 = vpop.f32.mrb[0].mxu0
  %10448 = vmatprep.mubr.bf16.mxu0 0
  %10449 = vmatmul.mubr.bf16.gmra.mrb[0].mxu0 %v5448
  %v10450 = vpop.f32.mrb[0].mxu0
  %v10451 = vadd.f32 %v10034, %v10450
  %v10452 = vpop.f32.mrb[0].mxu0
  %v10453 = vpop.f32.mrb[0].mxu0
  %v10454 = vadd.f32 %v10037, %v10453
  %v10455 = vpop.f32.mrb[0].mxu0
  %10456 = vmatprep.mubr.bf16.mxu0 0
  %10457 = vmatmul.mubr.bf16.gmra.mrb[0].mxu0 %v5497
  %v10458 = vpop.f32.mrb[0].mxu0
  %v10459 = vadd.f32 %v10042, %v10458
  %v10460 = vpop.f32.mrb[0].mxu0
  %v10461 = vpop.f32.mrb[0].mxu0
  %v10462 = vadd.f32 %v10045, %v10461
  %v10463 = vpop.f32.mrb[0].mxu0
  %10464 = vmatprep.mubr.bf16.mxu0 0
  %10465 = vmatmul.mubr.bf16.gmra.mrb[0].mxu0 %v5546
  %v10466 = vpop.f32.mrb[0].mxu0
  %v10467 = vadd.f32 %v10050, %v10466
  %v10468 = vpop.f32.mrb[0].mxu0
  %v10469 = vpop.f32.mrb[0].mxu0
  %v10470 = vadd.f32 %v10053, %v10469
  %v10471 = vpop.f32.mrb[0].mxu0
  %10472 = vmatprep.mubr.bf16.mxu0 0
  %10473 = vmatmul.mubr.bf16.gmra.mrb[0].mxu0 %v5595
  %v10474 = vpop.f32.mrb[0].mxu0
  %v10475 = vadd.f32 %v10058, %v10474
  %v10476 = vpop.f32.mrb[0].mxu0
  %v10477 = vpop.f32.mrb[0].mxu0
  %v10478 = vadd.f32 %v10061, %v10477
  %v10479 = vpop.f32.mrb[0].mxu0
  %10480 = vmatprep.mubr.bf16.mxu0 0
  %10481 = vmatmul.mubr.bf16.gmra.mrb[0].mxu0 %v5644
  %v10482 = vpop.f32.mrb[0].mxu0
  %v10483 = vadd.f32 %v10066, %v10482
  %v10484 = vpop.f32.mrb[0].mxu0
  %v10485 = vpop.f32.mrb[0].mxu0
  %v10486 = vadd.f32 %v10069, %v10485
  %v10487 = vpop.f32.mrb[0].mxu0
  %10488 = vmatprep.mubr.bf16.mxu0 0
  %10489 = vmatmul.mubr.bf16.gmra.mrb[0].mxu0 %v5693
  %v10490 = vpop.f32.mrb[0].mxu0
  %v10491 = vadd.f32 %v10074, %v10490
  %v10492 = vpop.f32.mrb[0].mxu0
  %v10493 = vpop.f32.mrb[0].mxu0
  %v10494 = vadd.f32 %v10077, %v10493
  %v10495 = vpop.f32.mrb[0].mxu0
  %10496 = vmatprep.mubr.bf16.mxu0 0
  %10497 = vmatmul.mubr.bf16.gmra.mrb[0].mxu0 %v5742
  %v10498 = vpop.f32.mrb[0].mxu0
  %v10499 = vadd.f32 %v10082, %v10498
  %v10500 = vpop.f32.mrb[0].mxu0
  %v10501 = vpop.f32.mrb[0].mxu0
  %v10502 = vadd.f32 %v10085, %v10501
  %v10503 = vpop.f32.mrb[0].mxu0
  %10504 = vmatprep.mubr.bf16.mxu0 0
  %10505 = vmatmul.mubr.bf16.gmra.mrb[0].mxu0 %v5791
  %v10506 = vpop.f32.mrb[0].mxu0
  %v10507 = vadd.f32 %v10090, %v10506
  %v10508 = vpop.f32.mrb[0].mxu0
  %v10509 = vpop.f32.mrb[0].mxu0
  %v10510 = vadd.f32 %v10093, %v10509
  %v10511 = vpop.f32.mrb[0].mxu0
  %10512 = vmatprep.mubr.bf16.mxu0 0
  %10513 = vmatmul.mubr.bf16.gmra.mrb[0].mxu0 %v5840
  %v10514 = vpop.f32.mrb[0].mxu0
  %v10515 = vadd.f32 %v10098, %v10514
  %v10516 = vpop.f32.mrb[0].mxu0
  %v10517 = vpop.f32.mrb[0].mxu0
  %v10518 = vadd.f32 %v10101, %v10517
  %v10519 = vpop.f32.mrb[0].mxu0
  %10520 = vmatprep.mubr.bf16.mxu0 0
  %10521 = vmatmul.mubr.bf16.gmra.mrb[0].mxu0 %v5889
  %v10522 = vpop.f32.mrb[0].mxu0
  %v10523 = vadd.f32 %v10106, %v10522
  %v10524 = vpop.f32.mrb[0].mxu0
  %v10525 = vpop.f32.mrb[0].mxu0
  %v10526 = vadd.f32 %v10109, %v10525
  %v10527 = vpop.f32.mrb[0].mxu0
  %10528 = vmatprep.mubr.bf16.mxu0 0
  %10529 = vmatmul.mubr.bf16.gmra.mrb[0].mxu0 %v5938
  %v10530 = vpop.f32.mrb[0].mxu0
  %v10531 = vadd.f32 %v10114, %v10530
  %v10532 = vpop.f32.mrb[0].mxu0
  %v10533 = vpop.f32.mrb[0].mxu0
  %v10534 = vadd.f32 %v10117, %v10533
  %v10535 = vpop.f32.mrb[0].mxu0
  %10536 = vmatprep.mubr.bf16.mxu0 0
  %10537 = vmatmul.mubr.bf16.gmra.mrb[0].mxu0 %v5987
  %v10538 = vpop.f32.mrb[0].mxu0
  %v10539 = vadd.f32 %v10122, %v10538
  %v10540 = vpop.f32.mrb[0].mxu0
  %v10541 = vpop.f32.mrb[0].mxu0
  %v10542 = vadd.f32 %v10125, %v10541
  %v10543 = vpop.f32.mrb[0].mxu0
  %10544 = vmatprep.mubr.bf16.mxu0 0
  %10545 = vmatmul.mubr.bf16.gmra.mrb[0].mxu0 %v6036
  %v10546 = vpop.f32.mrb[0].mxu0
  %v10547 = vadd.f32 %v10130, %v10546
  %v10548 = vpop.f32.mrb[0].mxu0
  %v10549 = vpop.f32.mrb[0].mxu0
  %v10550 = vadd.f32 %v10133, %v10549
  %v10551 = vpop.f32.mrb[0].mxu0
  %10552 = vmatprep.mubr.bf16.mxu0 0
  %10553 = vmatmul.mubr.bf16.gmra.mrb[0].mxu0 %v6085
  %v10554 = vpop.f32.mrb[0].mxu0
  %v10555 = vadd.f32 %v10138, %v10554
  %v10556 = vpop.f32.mrb[0].mxu0
  %v10557 = vpop.f32.mrb[0].mxu0
  %v10558 = vadd.f32 %v10141, %v10557
  %v10559 = vpop.f32.mrb[0].mxu0
  %10560 = vmatprep.mubr.bf16.mxu0 0
  %10561 = vmatmul.mubr.bf16.gmra.mrb[0].mxu0 %v6134
  %v10562 = vpop.f32.mrb[0].mxu0
  %v10563 = vadd.f32 %v10146, %v10562
  %v10564 = vpop.f32.mrb[0].mxu0
  %v10565 = vpop.f32.mrb[0].mxu0
  %v10566 = vadd.f32 %v10149, %v10565
  %v10567 = vpop.f32.mrb[0].mxu0
  %10568 = vmatprep.mubr.bf16.mxu0 0
  %10569 = vmatmul.mubr.bf16.gmra.mrb[0].mxu0 %v6183
  %v10570 = vpop.f32.mrb[0].mxu0
  %v10571 = vadd.f32 %v10154, %v10570
  %v10572 = vpop.f32.mrb[0].mxu0
  %v10573 = vpop.f32.mrb[0].mxu0
  %v10574 = vadd.f32 %v10157, %v10573
  %v10575 = vpop.f32.mrb[0].mxu0
  %10576 = vmatprep.mubr.bf16.mxu0 0
  %10577 = vmatmul.mubr.bf16.gmra.mrb[0].mxu0 %v6232
  %v10578 = vpop.f32.mrb[0].mxu0
  %v10579 = vadd.f32 %v10162, %v10578
  %v10580 = vpop.f32.mrb[0].mxu0
  %v10581 = vpop.f32.mrb[0].mxu0
  %v10582 = vadd.f32 %v10165, %v10581
  %v10583 = vpop.f32.mrb[0].mxu0
  %10584 = vmatprep.mubr.bf16.mxu0 0
  %10585 = vmatmul.mubr.bf16.gmra.mrb[0].mxu0 %v6281
  %v10586 = vpop.f32.mrb[0].mxu0
  %v10587 = vadd.f32 %v10170, %v10586
  %v10588 = vpop.f32.mrb[0].mxu0
  %v10589 = vpop.f32.mrb[0].mxu0
  %v10590 = vadd.f32 %v10173, %v10589
  %v10591 = vpop.f32.mrb[0].mxu0
  %10592 = vmatprep.mubr.bf16.mxu0 0
  %10593 = vmatmul.mubr.bf16.gmra.mrb[0].mxu0 %v6330
  %v10594 = vpop.f32.mrb[0].mxu0
  %v10595 = vadd.f32 %v10178, %v10594
  %v10596 = vpop.f32.mrb[0].mxu0
  %v10597 = vpop.f32.mrb[0].mxu0
  %v10598 = vadd.f32 %v10181, %v10597
  %v10599 = vpop.f32.mrb[0].mxu0
  %10600 = vmatprep.mubr.bf16.mxu0 0
  %10601 = vmatmul.mubr.bf16.gmra.mrb[0].mxu0 %v6397
  %v10602 = vpop.f32.mrb[0].mxu0
  %v10603 = vadd.f32 %v10186, %v10602
  %v10604 = vpop.f32.mrb[0].mxu0
  %v10605 = vpop.f32.mrb[0].mxu0
  %v10606 = vadd.f32 %v10189, %v10605
  %v10607 = vpop.f32.mrb[0].mxu0
  %10608 = vmatprep.mubr.bf16.mxu0 0
  %10609 = vmatmul.mubr.bf16.gmra.mrb[0].mxu0 %v6468
  %v10610 = vpop.f32.mrb[0].mxu0
  %v10611 = vadd.f32 %v10194, %v10610
  %v10612 = vpop.f32.mrb[0].mxu0
  %v10613 = vpop.f32.mrb[0].mxu0
  %v10614 = vadd.f32 %v10197, %v10613
  %v10615 = vpop.f32.mrb[0].mxu0
  %10616 = vmatprep.mubr.bf16.mxu0 0
  %10617 = vmatmul.mubr.bf16.gmra.mrb[0].mxu0 %v6611
  %v10618 = vpop.f32.mrb[0].mxu0
  %v10619 = vadd.f32 %v10202, %v10618
  %v10620 = vpop.f32.mrb[0].mxu0
  %v10621 = vpop.f32.mrb[0].mxu0
  %v10622 = vadd.f32 %v10205, %v10621
  %v10623 = vpop.f32.mrb[0].mxu0
  %10624 = vmatprep.mubr.bf16.mxu0 0
  %10625 = vmatmul.mubr.bf16.gmra.mrb[0].mxu0 %v6682
  %v10626 = vpop.f32.mrb[0].mxu0
  %v10627 = vadd.f32 %v10210, %v10626
  %v10628 = vpop.f32.mrb[0].mxu0
  %v10629 = vpop.f32.mrb[0].mxu0
  %v10630 = vadd.f32 %v10213, %v10629
  %v10631 = vpop.f32.mrb[0].mxu0
  %10632 = vmatprep.mubr.bf16.mxu0 0
  %10633 = vmatmul.mubr.bf16.gmra.mrb[0].mxu0 %v6753
  %v10634 = vpop.f32.mrb[0].mxu0
  %v10635 = vadd.f32 %v10218, %v10634
  %v10636 = vpop.f32.mrb[0].mxu0
  %v10637 = vpop.f32.mrb[0].mxu0
  %v10638 = vadd.f32 %v10221, %v10637
  %v10639 = vpop.f32.mrb[0].mxu0
  %10640 = vmatprep.mubr.bf16.mxu0 0
  %10641 = vmatmul.mubr.bf16.gmra.mrb[0].mxu0 %v6805
  %v10642 = vpop.f32.mrb[0].mxu0
  %v10643 = vadd.f32 %v10226, %v10642
  %v10644 = vpop.f32.mrb[0].mxu0
  %v10645 = vpop.f32.mrb[0].mxu0
  %v10646 = vadd.f32 %v10229, %v10645
  %v10647 = vpop.f32.mrb[0].mxu0
  %10648 = vmatprep.mubr.bf16.mxu0 0
  %10649 = vmatmul.mubr.bf16.gmra.mrb[0].mxu0 %v6854
  %v10650 = vpop.f32.mrb[0].mxu0
  %v10651 = vadd.f32 %v10234, %v10650
  %v10652 = vpop.f32.mrb[0].mxu0
  %v10653 = vpop.f32.mrb[0].mxu0
  %v10654 = vadd.f32 %v10237, %v10653
  %v10655 = vpop.f32.mrb[0].mxu0
  %10656 = vmatprep.mubr.bf16.mxu0 0
  %10657 = vmatmul.mubr.bf16.gmra.mrb[0].mxu0 %v6903
  %v10658 = vpop.f32.mrb[0].mxu0
  %v10659 = vadd.f32 %v10242, %v10658
  %v10660 = vpop.f32.mrb[0].mxu0
  %v10661 = vpop.f32.mrb[0].mxu0
  %v10662 = vadd.f32 %v10245, %v10661
  %v10663 = vpop.f32.mrb[0].mxu0
  %10664 = vmatprep.mubr.bf16.mxu0 0
  %10665 = vmatmul.mubr.bf16.gmra.mrb[0].mxu0 %v6952
  %v10666 = vpop.f32.mrb[0].mxu0
  %v10667 = vadd.f32 %v10250, %v10666
  %v10668 = vpop.f32.mrb[0].mxu0
  %v10669 = vpop.f32.mrb[0].mxu0
  %v10670 = vadd.f32 %v10253, %v10669
  %v10671 = vpop.f32.mrb[0].mxu0
  %10672 = vmatprep.mubr.bf16.mxu0 0
  %10673 = vmatmul.mubr.bf16.gmra.mrb[0].mxu0 %v7001
  %v10674 = vpop.f32.mrb[0].mxu0
  %v10675 = vadd.f32 %v10258, %v10674
  %v10676 = vpop.f32.mrb[0].mxu0
  %v10677 = vpop.f32.mrb[0].mxu0
  %v10678 = vadd.f32 %v10261, %v10677
  %v10679 = vpop.f32.mrb[0].mxu0
  %10680 = vmatprep.mubr.bf16.mxu0 0
  %10681 = vmatmul.mubr.bf16.gmra.mrb[0].mxu0 %v7050
  %v10682 = vpop.f32.mrb[0].mxu0
  %v10683 = vadd.f32 %v10266, %v10682
  %v10684 = vpop.f32.mrb[0].mxu0
  %v10685 = vpop.f32.mrb[0].mxu0
  %v10686 = vadd.f32 %v10269, %v10685
  %v10687 = vpop.f32.mrb[0].mxu0
  %10688 = vmatprep.mubr.bf16.mxu0 0
  %10689 = vmatmul.mubr.bf16.gmra.mrb[0].mxu0 %v7099
  %v10690 = vpop.f32.mrb[0].mxu0
  %v10691 = vadd.f32 %v10274, %v10690
  %v10692 = vpop.f32.mrb[0].mxu0
  %v10693 = vpop.f32.mrb[0].mxu0
  %v10694 = vadd.f32 %v10277, %v10693
  %v10695 = vpop.f32.mrb[0].mxu0
  %10696 = vmatprep.mubr.bf16.mxu0 0
  %10697 = vmatmul.mubr.bf16.gmra.mrb[0].mxu0 %v7148
  %v10698 = vpop.f32.mrb[0].mxu0
  %v10699 = vadd.f32 %v10282, %v10698
  %v10700 = vpop.f32.mrb[0].mxu0
  %v10701 = vpop.f32.mrb[0].mxu0
  %v10702 = vadd.f32 %v10285, %v10701
  %v10703 = vpop.f32.mrb[0].mxu0
  %10704 = vmatprep.mubr.bf16.mxu0 0
  %10705 = vmatmul.mubr.bf16.gmra.mrb[0].mxu0 %v7197
  %v10706 = vpop.f32.mrb[0].mxu0
  %v10707 = vadd.f32 %v10290, %v10706
  %v10708 = vpop.f32.mrb[0].mxu0
  %v10709 = vpop.f32.mrb[0].mxu0
  %v10710 = vadd.f32 %v10293, %v10709
  %v10711 = vpop.f32.mrb[0].mxu0
  %10712 = vmatprep.mubr.bf16.mxu0 0
  %10713 = vmatmul.mubr.bf16.gmra.mrb[0].mxu0 %v7246
  %v10714 = vpop.f32.mrb[0].mxu0
  %v10715 = vadd.f32 %v10298, %v10714
  %v10716 = vpop.f32.mrb[0].mxu0
  %v10717 = vpop.f32.mrb[0].mxu0
  %v10718 = vadd.f32 %v10301, %v10717
  %v10719 = vpop.f32.mrb[0].mxu0
  %10720 = vmatprep.mubr.bf16.mxu0 0
  %10721 = vmatmul.mubr.bf16.gmra.mrb[0].mxu0 %v7295
  %v10722 = vpop.f32.mrb[0].mxu0
  %v10723 = vadd.f32 %v10306, %v10722
  %v10724 = vpop.f32.mrb[0].mxu0
  %v10725 = vpop.f32.mrb[0].mxu0
  %v10726 = vadd.f32 %v10309, %v10725
  %v10727 = vpop.f32.mrb[0].mxu0
  %10728 = vmatprep.mubr.bf16.mxu0 0
  %10729 = vmatmul.mubr.bf16.gmra.mrb[0].mxu0 %v7344
  %v10730 = vpop.f32.mrb[0].mxu0
  %v10731 = vadd.f32 %v10314, %v10730
  %v10732 = vpop.f32.mrb[0].mxu0
  %v10733 = vpop.f32.mrb[0].mxu0
  %v10734 = vadd.f32 %v10317, %v10733
  %v10735 = vpop.f32.mrb[0].mxu0
  %10736 = vmatprep.mubr.bf16.mxu0 0
  %10737 = vmatmul.mubr.bf16.gmra.mrb[0].mxu0 %v7393
  %v10738 = vpop.f32.mrb[0].mxu0
  %v10739 = vadd.f32 %v10322, %v10738
  %v10740 = vpop.f32.mrb[0].mxu0
  %v10741 = vpop.f32.mrb[0].mxu0
  %v10742 = vadd.f32 %v10325, %v10741
  %v10743 = vpop.f32.mrb[0].mxu0
  %10744 = vmatprep.mubr.bf16.mxu0 0
  %10745 = vmatmul.mubr.bf16.gmra.mrb[0].mxu0 %v7442
  %v10746 = vpop.f32.mrb[0].mxu0
  %v10747 = vadd.f32 %v10330, %v10746
  %v10748 = vpop.f32.mrb[0].mxu0
  %v10749 = vpop.f32.mrb[0].mxu0
  %v10750 = vadd.f32 %v10333, %v10749
  %v10751 = vpop.f32.mrb[0].mxu0
  %10752 = vmatprep.mubr.bf16.mxu0 0
  %10753 = vmatmul.mubr.bf16.gmra.mrb[0].mxu0 %v7491
  %v10754 = vpop.f32.mrb[0].mxu0
  %v10755 = vadd.f32 %v10338, %v10754
  %v10756 = vpop.f32.mrb[0].mxu0
  %v10757 = vpop.f32.mrb[0].mxu0
  %v10758 = vadd.f32 %v10341, %v10757
  %v10759 = vpop.f32.mrb[0].mxu0
  %10760 = vmatprep.mubr.bf16.mxu0 0
  %10761 = vmatmul.mubr.bf16.gmra.mrb[0].mxu0 %v7540
  %v10762 = vpop.f32.mrb[0].mxu0
  %v10763 = vadd.f32 %v10346, %v10762
  %v10764 = vpop.f32.mrb[0].mxu0
  %v10765 = vpop.f32.mrb[0].mxu0
  %v10766 = vadd.f32 %v10349, %v10765
  %v10767 = vpop.f32.mrb[0].mxu0
  %10768 = vmatprep.mubr.bf16.mxu0 0
  %10769 = vmatmul.mubr.bf16.gmra.mrb[0].mxu0 %v7589
  %v10770 = vpop.f32.mrb[0].mxu0
  %v10771 = vadd.f32 %v10354, %v10770
  %v10772 = vpop.f32.mrb[0].mxu0
  %v10773 = vpop.f32.mrb[0].mxu0
  %v10774 = vadd.f32 %v10357, %v10773
  %v10775 = vpop.f32.mrb[0].mxu0
  %10776 = vmatprep.mubr.bf16.mxu0 0
  %10777 = vmatmul.mubr.bf16.gmra.mrb[0].mxu0 %v7638
  %v10778 = vpop.f32.mrb[0].mxu0
  %v10779 = vadd.f32 %v10362, %v10778
  %v10780 = vpop.f32.mrb[0].mxu0
  %v10781 = vpop.f32.mrb[0].mxu0
  %v10782 = vadd.f32 %v10365, %v10781
  %v10783 = vpop.f32.mrb[0].mxu0
  %10784 = vmatprep.mubr.bf16.mxu0 0
  %10785 = vmatmul.mubr.bf16.gmra.mrb[0].mxu0 %v7687
  %v10786 = vpop.f32.mrb[0].mxu0
  %v10787 = vadd.f32 %v10370, %v10786
  %v10788 = vpop.f32.mrb[0].mxu0
  %v10789 = vpop.f32.mrb[0].mxu0
  %v10790 = vadd.f32 %v10373, %v10789
  %v10791 = vpop.f32.mrb[0].mxu0
  %10792 = vmatprep.mubr.bf16.mxu0 0
  %10793 = vmatmul.mubr.bf16.gmra.mrb[0].mxu0 %v7754
  %v10794 = vpop.f32.mrb[0].mxu0
  %v10795 = vadd.f32 %v10378, %v10794
  %v10796 = vpop.f32.mrb[0].mxu0
  %v10797 = vpop.f32.mrb[0].mxu0
  %v10798 = vadd.f32 %v10381, %v10797
  %v10799 = vpop.f32.mrb[0].mxu0
  %10800 = vmatprep.mubr.bf16.mxu0 0
  %10801 = vmatmul.mubr.bf16.gmra.mrb[0].mxu0 %v7825
  %v10802 = vpop.f32.mrb[0].mxu0
  %v10803 = vadd.f32 %v10386, %v10802
  %v10804 = vpop.f32.mrb[0].mxu0
  %v10805 = vpop.f32.mrb[0].mxu0
  %v10806 = vadd.f32 %v10389, %v10805
  %v10807 = vpop.f32.mrb[0].mxu0
  %10808 = vdwg.mxu0
  %v10809 = vmul.f32 %v10427, %v2044
  %v10810 = vmul.f32 %v10430, %v2045
  %v10811 = vmul.f32 %v10435, %v2046
  %v10812 = vmul.f32 %v10438, %v2047
  %v10813 = vmul.f32 %v10443, %v2048
  %v10814 = vmul.f32 %v10446, %v2049
  %v10815 = vmul.f32 %v10451, %v2050
  %v10816 = vmul.f32 %v10454, %v2051
  %v10817 = vmul.f32 %v10459, %v2052
  %v10818 = vmul.f32 %v10462, %v2053
  %v10819 = vmul.f32 %v10467, %v2054
  %v10820 = vmul.f32 %v10470, %v2055
  %v10821 = vmul.f32 %v10475, %v2056
  %v10822 = vmul.f32 %v10478, %v2057
  %v10823 = vmul.f32 %v10483, %v2058
  %v10824 = vmul.f32 %v10486, %v2059
  %v10825 = vmul.f32 %v10491, %v2060
  %v10826 = vmul.f32 %v10494, %v2061
  %v10827 = vmul.f32 %v10499, %v2062
  %v10828 = vmul.f32 %v10502, %v2063
  %v10829 = vmul.f32 %v10507, %v2064
  %v10830 = vmul.f32 %v10510, %v2065
  %v10831 = vmul.f32 %v10515, %v2066
  %v10832 = vmul.f32 %v10518, %v2067
  %v10833 = vmul.f32 %v10523, %v2068
  %v10834 = vmul.f32 %v10526, %v2069
  %v10835 = vmul.f32 %v10531, %v2070
  %v10836 = vmul.f32 %v10534, %v2071
  %v10837 = vmul.f32 %v10539, %v2072
  %v10838 = vmul.f32 %v10542, %v2073
  %v10839 = vmul.f32 %v10547, %v2074
  %v10840 = vmul.f32 %v10550, %v2075
  %v10841 = vmul.f32 %v10555, %v2076
  %v10842 = vmul.f32 %v10558, %v2077
  %v10843 = vmul.f32 %v10563, %v2078
  %v10844 = vmul.f32 %v10566, %v2079
  %v10845 = vmul.f32 %v10571, %v2080
  %v10846 = vmul.f32 %v10574, %v2081
  %v10847 = vmul.f32 %v10579, %v2082
  %v10848 = vmul.f32 %v10582, %v2083
  %v10849 = vmul.f32 %v10587, %v2084
  %v10850 = vmul.f32 %v10590, %v2085
  %v10851 = vmul.f32 %v10595, %v2086
  %v10852 = vmul.f32 %v10598, %v2087
  %v10853 = vmul.f32 %v10603, %v2088
  %v10854 = vmul.f32 %v10606, %v2089
  %v10855 = vmul.f32 %v10611, %v2090
  %v10856 = vmul.f32 %v10614, %v2091
  %v10857 = vmul.f32 %v10619, %v2092
  %v10858 = vmul.f32 %v10622, %v2093
  %v10859 = vmul.f32 %v10627, %v2094
  %v10860 = vmul.f32 %v10630, %v2095
  %v10861 = vmul.f32 %v10635, %v2096
  %v10862 = vmul.f32 %v10638, %v2097
  %v10863 = vmul.f32 %v10643, %v2098
  %v10864 = vmul.f32 %v10646, %v2099
  %v10865 = vmul.f32 %v10651, %v2100
  %v10866 = vmul.f32 %v10654, %v2101
  %v10867 = vmul.f32 %v10659, %v2102
  %v10868 = vmul.f32 %v10662, %v2103
  %v10869 = vmul.f32 %v10667, %v2104
  %v10870 = vmul.f32 %v10670, %v2105
  %v10871 = vmul.f32 %v10675, %v2106
  %v10872 = vmul.f32 %v10678, %v2107
  %v10873 = vmul.f32 %v10683, %v2108
  %v10874 = vmul.f32 %v10686, %v2109
  %v10875 = vmul.f32 %v10691, %v2110
  %v10876 = vmul.f32 %v10694, %v2111
  %v10877 = vmul.f32 %v10699, %v2112
  %v10878 = vmul.f32 %v10702, %v2113
  %v10879 = vmul.f32 %v10707, %v2114
  %v10880 = vmul.f32 %v10710, %v2115
  %v10881 = vmul.f32 %v10715, %v2116
  %v10882 = vmul.f32 %v10718, %v2117
  %v10883 = vmul.f32 %v10723, %v2118
  %v10884 = vmul.f32 %v10726, %v2119
  %v10885 = vmul.f32 %v10731, %v2120
  %v10886 = vmul.f32 %v10734, %v2121
  %v10887 = vmul.f32 %v10739, %v2122
  %v10888 = vmul.f32 %v10742, %v2123
  %v10889 = vmul.f32 %v10747, %v2124
  %v10890 = vmul.f32 %v10750, %v2125
  %v10891 = vmul.f32 %v10755, %v2126
  %v10892 = vmul.f32 %v10758, %v2127
  %v10893 = vmul.f32 %v10763, %v2128
  %v10894 = vmul.f32 %v10766, %v2129
  %v10895 = vmul.f32 %v10771, %v2130
  %v10896 = vmul.f32 %v10774, %v2131
  %v10897 = vmul.f32 %v10779, %v2132
  %v10898 = vmul.f32 %v10782, %v2133
  %v10899 = vmul.f32 %v10787, %v2134
  %v10900 = vmul.f32 %v10790, %v2135
  %v10901 = vmul.f32 %v10795, %v2136
  %v10902 = vmul.f32 %v10798, %v2137
  %v10903 = vmul.f32 %v10803, %v2138
  %v10904 = vmul.f32 %v10806, %v2139
  %v10905 = vadd.f32 %v10809, %v10810
  %v10906 = vadd.f32 %v10905, %v10811
  %v10907 = vadd.f32 %v10906, %v10812
  %v10908 = vadd.f32 %v10907, %v10813
  %v10909 = vadd.f32 %v10908, %v10814
  %v10910 = vadd.f32 %v10909, %v10815
  %v10911 = vadd.f32 %v10910, %v10816
  %v10912 = vadd.f32 %v10911, %v10817
  %v10913 = vadd.f32 %v10912, %v10818
  %v10914 = vadd.f32 %v10913, %v10819
  %v10915 = vadd.f32 %v10914, %v10820
  %v10916 = vadd.f32 %v10915, %v10821
  %v10917 = vadd.f32 %v10916, %v10822
  %v10918 = vadd.f32 %v10917, %v10823
  %v10919 = vadd.f32 %v10918, %v10824
  %v10920 = vadd.f32 %v10919, %v10825
  %v10921 = vadd.f32 %v10920, %v10826
  %v10922 = vadd.f32 %v10921, %v10827
  %v10923 = vadd.f32 %v10922, %v10828
  %v10924 = vadd.f32 %v10923, %v10829
  %v10925 = vadd.f32 %v10924, %v10830
  %v10926 = vadd.f32 %v10925, %v10831
  %v10927 = vadd.f32 %v10926, %v10832
  %v10928 = vadd.f32 %v10927, %v10833
  %v10929 = vadd.f32 %v10928, %v10834
  %v10930 = vadd.f32 %v10929, %v10835
  %v10931 = vadd.f32 %v10930, %v10836
  %v10932 = vadd.f32 %v10931, %v10837
  %v10933 = vadd.f32 %v10932, %v10838
  %v10934 = vadd.f32 %v10933, %v10839
  %v10935 = vadd.f32 %v10934, %v10840
  %v10936 = vadd.f32 %v10935, %v10841
  %v10937 = vadd.f32 %v10936, %v10842
  %v10938 = vadd.f32 %v10937, %v10843
  %v10939 = vadd.f32 %v10938, %v10844
  %v10940 = vadd.f32 %v10939, %v10845
  %v10941 = vadd.f32 %v10940, %v10846
  %v10942 = vadd.f32 %v10941, %v10847
  %v10943 = vadd.f32 %v10942, %v10848
  %v10944 = vadd.f32 %v10943, %v10849
  %v10945 = vadd.f32 %v10944, %v10850
  %v10946 = vadd.f32 %v10945, %v10851
  %v10947 = vadd.f32 %v10946, %v10852
  %v10948 = vadd.f32 %v10947, %v10853
  %v10949 = vadd.f32 %v10948, %v10854
  %v10950 = vadd.f32 %v10949, %v10855
  %v10951 = vadd.f32 %v10950, %v10856
  %v10952 = vadd.f32 %v10951, %v10857
  %v10953 = vadd.f32 %v10952, %v10858
  %v10954 = vadd.f32 %v10953, %v10859
  %v10955 = vadd.f32 %v10954, %v10860
  %v10956 = vadd.f32 %v10955, %v10861
  %v10957 = vadd.f32 %v10956, %v10862
  %v10958 = vadd.f32 %v10957, %v10863
  %v10959 = vadd.f32 %v10958, %v10864
  %v10960 = vadd.f32 %v10959, %v10865
  %v10961 = vadd.f32 %v10960, %v10866
  %v10962 = vadd.f32 %v10961, %v10867
  %v10963 = vadd.f32 %v10962, %v10868
  %v10964 = vadd.f32 %v10963, %v10869
  %v10965 = vadd.f32 %v10964, %v10870
  %v10966 = vadd.f32 %v10965, %v10871
  %v10967 = vadd.f32 %v10966, %v10872
  %v10968 = vadd.f32 %v10967, %v10873
  %v10969 = vadd.f32 %v10968, %v10874
  %v10970 = vadd.f32 %v10969, %v10875
  %v10971 = vadd.f32 %v10970, %v10876
  %v10972 = vadd.f32 %v10971, %v10877
  %v10973 = vadd.f32 %v10972, %v10878
  %v10974 = vadd.f32 %v10973, %v10879
  %v10975 = vadd.f32 %v10974, %v10880
  %v10976 = vadd.f32 %v10975, %v10881
  %v10977 = vadd.f32 %v10976, %v10882
  %v10978 = vadd.f32 %v10977, %v10883
  %v10979 = vadd.f32 %v10978, %v10884
  %v10980 = vadd.f32 %v10979, %v10885
  %v10981 = vadd.f32 %v10980, %v10886
  %v10982 = vadd.f32 %v10981, %v10887
  %v10983 = vadd.f32 %v10982, %v10888
  %v10984 = vadd.f32 %v10983, %v10889
  %v10985 = vadd.f32 %v10984, %v10890
  %v10986 = vadd.f32 %v10985, %v10891
  %v10987 = vadd.f32 %v10986, %v10892
  %v10988 = vadd.f32 %v10987, %v10893
  %v10989 = vadd.f32 %v10988, %v10894
  %v10990 = vadd.f32 %v10989, %v10895
  %v10991 = vadd.f32 %v10990, %v10896
  %v10992 = vadd.f32 %v10991, %v10897
  %v10993 = vadd.f32 %v10992, %v10898
  %v10994 = vadd.f32 %v10993, %v10899
  %v10995 = vadd.f32 %v10994, %v10900
  %v10996 = vadd.f32 %v10995, %v10901
  %v10997 = vadd.f32 %v10996, %v10902
  %v10998 = vadd.f32 %v10997, %v10903
  %v10999 = vadd.f32 %v10998, %v10904
  %v11000 = vrot.slane %v10999, 4
  %v11001 = vadd.f32 %v10999, %v11000
  %v11002 = vrot.slane %v11001, 2
  %v11003 = vadd.f32 %v11001, %v11002
  %v11004 = vrot.slane %v11003, 1
  %v11005 = vadd.f32 %v11003, %v11004
  %v11006 = vmul.f32 %v10809, %v10809
  %v11007 = vmul.f32 %v10810, %v10810
  %v11008 = vmul.f32 %v10811, %v10811
  %v11009 = vmul.f32 %v10812, %v10812
  %v11010 = vmul.f32 %v10813, %v10813
  %v11011 = vmul.f32 %v10814, %v10814
  %v11012 = vmul.f32 %v10815, %v10815
  %v11013 = vmul.f32 %v10816, %v10816
  %v11014 = vmul.f32 %v10817, %v10817
  %v11015 = vmul.f32 %v10818, %v10818
  %v11016 = vmul.f32 %v10819, %v10819
  %v11017 = vmul.f32 %v10820, %v10820
  %v11018 = vmul.f32 %v10821, %v10821
  %v11019 = vmul.f32 %v10822, %v10822
  %v11020 = vmul.f32 %v10823, %v10823
  %v11021 = vmul.f32 %v10824, %v10824
  %v11022 = vmul.f32 %v10825, %v10825
  %v11023 = vmul.f32 %v10826, %v10826
  %v11024 = vmul.f32 %v10827, %v10827
  %v11025 = vmul.f32 %v10828, %v10828
  %v11026 = vmul.f32 %v10829, %v10829
  %v11027 = vmul.f32 %v10830, %v10830
  %v11028 = vmul.f32 %v10831, %v10831
  %v11029 = vmul.f32 %v10832, %v10832
  %v11030 = vmul.f32 %v10833, %v10833
  %v11031 = vmul.f32 %v10834, %v10834
  %v11032 = vmul.f32 %v10835, %v10835
  %v11033 = vmul.f32 %v10836, %v10836
  %v11034 = vmul.f32 %v10837, %v10837
  %v11035 = vmul.f32 %v10838, %v10838
  %v11036 = vmul.f32 %v10839, %v10839
  %v11037 = vmul.f32 %v10840, %v10840
  %v11038 = vmul.f32 %v10841, %v10841
  %v11039 = vmul.f32 %v10842, %v10842
  %v11040 = vmul.f32 %v10843, %v10843
  %v11041 = vmul.f32 %v10844, %v10844
  %v11042 = vmul.f32 %v10845, %v10845
  %v11043 = vmul.f32 %v10846, %v10846
  %v11044 = vmul.f32 %v10847, %v10847
  %v11045 = vmul.f32 %v10848, %v10848
  %v11046 = vmul.f32 %v10849, %v10849
  %v11047 = vmul.f32 %v10850, %v10850
  %v11048 = vmul.f32 %v10851, %v10851
  %v11049 = vmul.f32 %v10852, %v10852
  %v11050 = vmul.f32 %v10853, %v10853
  %v11051 = vmul.f32 %v10854, %v10854
  %v11052 = vmul.f32 %v10855, %v10855
  %v11053 = vmul.f32 %v10856, %v10856
  %v11054 = vmul.f32 %v10857, %v10857
  %v11055 = vmul.f32 %v10858, %v10858
  %v11056 = vmul.f32 %v10859, %v10859
  %v11057 = vmul.f32 %v10860, %v10860
  %v11058 = vmul.f32 %v10861, %v10861
  %v11059 = vmul.f32 %v10862, %v10862
  %v11060 = vmul.f32 %v10863, %v10863
  %v11061 = vmul.f32 %v10864, %v10864
  %v11062 = vmul.f32 %v10865, %v10865
  %v11063 = vmul.f32 %v10866, %v10866
  %v11064 = vmul.f32 %v10867, %v10867
  %v11065 = vmul.f32 %v10868, %v10868
  %v11066 = vmul.f32 %v10869, %v10869
  %v11067 = vmul.f32 %v10870, %v10870
  %v11068 = vmul.f32 %v10871, %v10871
  %v11069 = vmul.f32 %v10872, %v10872
  %v11070 = vmul.f32 %v10873, %v10873
  %v11071 = vmul.f32 %v10874, %v10874
  %v11072 = vmul.f32 %v10875, %v10875
  %v11073 = vmul.f32 %v10876, %v10876
  %v11074 = vmul.f32 %v10877, %v10877
  %v11075 = vmul.f32 %v10878, %v10878
  %v11076 = vmul.f32 %v10879, %v10879
  %v11077 = vmul.f32 %v10880, %v10880
  %v11078 = vmul.f32 %v10881, %v10881
  %v11079 = vmul.f32 %v10882, %v10882
  %v11080 = vmul.f32 %v10883, %v10883
  %v11081 = vmul.f32 %v10884, %v10884
  %v11082 = vmul.f32 %v10885, %v10885
  %v11083 = vmul.f32 %v10886, %v10886
  %v11084 = vmul.f32 %v10887, %v10887
  %v11085 = vmul.f32 %v10888, %v10888
  %v11086 = vmul.f32 %v10889, %v10889
  %v11087 = vmul.f32 %v10890, %v10890
  %v11088 = vmul.f32 %v10891, %v10891
  %v11089 = vmul.f32 %v10892, %v10892
  %v11090 = vmul.f32 %v10893, %v10893
  %v11091 = vmul.f32 %v10894, %v10894
  %v11092 = vmul.f32 %v10895, %v10895
  %v11093 = vmul.f32 %v10896, %v10896
  %v11094 = vmul.f32 %v10897, %v10897
  %v11095 = vmul.f32 %v10898, %v10898
  %v11096 = vmul.f32 %v10899, %v10899
  %v11097 = vmul.f32 %v10900, %v10900
  %v11098 = vmul.f32 %v10901, %v10901
  %v11099 = vmul.f32 %v10902, %v10902
  %v11100 = vmul.f32 %v10903, %v10903
  %v11101 = vmul.f32 %v10904, %v10904
  %v11102 = vadd.f32 %v11006, %v11007
  %v11103 = vadd.f32 %v11102, %v11008
  %v11104 = vadd.f32 %v11103, %v11009
  %v11105 = vadd.f32 %v11104, %v11010
  %v11106 = vadd.f32 %v11105, %v11011
  %v11107 = vadd.f32 %v11106, %v11012
  %v11108 = vadd.f32 %v11107, %v11013
  %v11109 = vadd.f32 %v11108, %v11014
  %v11110 = vadd.f32 %v11109, %v11015
  %v11111 = vadd.f32 %v11110, %v11016
  %v11112 = vadd.f32 %v11111, %v11017
  %v11113 = vadd.f32 %v11112, %v11018
  %v11114 = vadd.f32 %v11113, %v11019
  %v11115 = vadd.f32 %v11114, %v11020
  %v11116 = vadd.f32 %v11115, %v11021
  %v11117 = vadd.f32 %v11116, %v11022
  %v11118 = vadd.f32 %v11117, %v11023
  %v11119 = vadd.f32 %v11118, %v11024
  %v11120 = vadd.f32 %v11119, %v11025
  %v11121 = vadd.f32 %v11120, %v11026
  %v11122 = vadd.f32 %v11121, %v11027
  %v11123 = vadd.f32 %v11122, %v11028
  %v11124 = vadd.f32 %v11123, %v11029
  %v11125 = vadd.f32 %v11124, %v11030
  %v11126 = vadd.f32 %v11125, %v11031
  %v11127 = vadd.f32 %v11126, %v11032
  %v11128 = vadd.f32 %v11127, %v11033
  %v11129 = vadd.f32 %v11128, %v11034
  %v11130 = vadd.f32 %v11129, %v11035
  %v11131 = vadd.f32 %v11130, %v11036
  %v11132 = vadd.f32 %v11131, %v11037
  %v11133 = vadd.f32 %v11132, %v11038
  %v11134 = vadd.f32 %v11133, %v11039
  %v11135 = vadd.f32 %v11134, %v11040
  %v11136 = vadd.f32 %v11135, %v11041
  %v11137 = vadd.f32 %v11136, %v11042
  %v11138 = vadd.f32 %v11137, %v11043
  %v11139 = vadd.f32 %v11138, %v11044
  %v11140 = vadd.f32 %v11139, %v11045
  %v11141 = vadd.f32 %v11140, %v11046
  %v11142 = vadd.f32 %v11141, %v11047
  %v11143 = vadd.f32 %v11142, %v11048
  %v11144 = vadd.f32 %v11143, %v11049
  %v11145 = vadd.f32 %v11144, %v11050
  %v11146 = vadd.f32 %v11145, %v11051
  %v11147 = vadd.f32 %v11146, %v11052
  %v11148 = vadd.f32 %v11147, %v11053
  %v11149 = vadd.f32 %v11148, %v11054
  %v11150 = vadd.f32 %v11149, %v11055
  %v11151 = vadd.f32 %v11150, %v11056
  %v11152 = vadd.f32 %v11151, %v11057
  %v11153 = vadd.f32 %v11152, %v11058
  %v11154 = vadd.f32 %v11153, %v11059
  %v11155 = vadd.f32 %v11154, %v11060
  %v11156 = vadd.f32 %v11155, %v11061
  %v11157 = vadd.f32 %v11156, %v11062
  %v11158 = vadd.f32 %v11157, %v11063
  %v11159 = vadd.f32 %v11158, %v11064
  %v11160 = vadd.f32 %v11159, %v11065
  %v11161 = vadd.f32 %v11160, %v11066
  %v11162 = vadd.f32 %v11161, %v11067
  %v11163 = vadd.f32 %v11162, %v11068
  %v11164 = vadd.f32 %v11163, %v11069
  %v11165 = vadd.f32 %v11164, %v11070
  %v11166 = vadd.f32 %v11165, %v11071
  %v11167 = vadd.f32 %v11166, %v11072
  %v11168 = vadd.f32 %v11167, %v11073
  %v11169 = vadd.f32 %v11168, %v11074
  %v11170 = vadd.f32 %v11169, %v11075
  %v11171 = vadd.f32 %v11170, %v11076
  %v11172 = vadd.f32 %v11171, %v11077
  %v11173 = vadd.f32 %v11172, %v11078
  %v11174 = vadd.f32 %v11173, %v11079
  %v11175 = vadd.f32 %v11174, %v11080
  %v11176 = vadd.f32 %v11175, %v11081
  %v11177 = vadd.f32 %v11176, %v11082
  %v11178 = vadd.f32 %v11177, %v11083
  %v11179 = vadd.f32 %v11178, %v11084
  %v11180 = vadd.f32 %v11179, %v11085
  %v11181 = vadd.f32 %v11180, %v11086
  %v11182 = vadd.f32 %v11181, %v11087
  %v11183 = vadd.f32 %v11182, %v11088
  %v11184 = vadd.f32 %v11183, %v11089
  %v11185 = vadd.f32 %v11184, %v11090
  %v11186 = vadd.f32 %v11185, %v11091
  %v11187 = vadd.f32 %v11186, %v11092
  %v11188 = vadd.f32 %v11187, %v11093
  %v11189 = vadd.f32 %v11188, %v11094
  %v11190 = vadd.f32 %v11189, %v11095
  %v11191 = vadd.f32 %v11190, %v11096
  %v11192 = vadd.f32 %v11191, %v11097
  %v11193 = vadd.f32 %v11192, %v11098
  %v11194 = vadd.f32 %v11193, %v11099
  %v11195 = vadd.f32 %v11194, %v11100
  %v11196 = vadd.f32 %v11195, %v11101
  %v11197 = vrot.slane %v11196, 4
  %v11198 = vadd.f32 %v11196, %v11197
  %v11199 = vrot.slane %v11198, 2
  %v11200 = vadd.f32 %v11198, %v11199
  %v11201 = vrot.slane %v11200, 1
  %v11202 = vadd.f32 %v11200, %v11201
  %v11203 = vmul.f32 %v11005, 0.001953125
  %v11204 = vmul.f32 %v11202, 0.001953125
  %v11205 = vmul.f32 %v11203, %v11203
  %v11206 = vsub.f32 %v11204, %v11205
  %v11207 = vmax.f32 %v11206, 0.0
  %v11208 = vld [vmem:[%s5] sm:$0x1]
  %v11209 = vadd.f32 %v11207, 1e-05
  %v11210 = vrsqrt.pop %v11209
  %v11211 = vmul.f32 %v11208, %v11210
  %v11212 = vld [vmem:[%s6] sm:$0x1]
  %v11213 = vmul.f32 %v11203, %v11211
  %v11214 = vsub.f32 %v11212, %v11213
  %v11216 = vlaneseq
  %v11217 = vshrl.u32 %v11216, 7
  %v11218 = vsub.s32 0, %v11217
  %v11219 = vrot.slane %v11211, %v11218
  %v11221 = vmul.f32 %v10427, %v11219
  %v11222 = vmul.f32 %v10430, %v11219
  %v11223 = vmul.f32 %v10435, %v11219
  %v11224 = vmul.f32 %v10438, %v11219
  %v11225 = vmul.f32 %v10443, %v11219
  %v11226 = vmul.f32 %v10446, %v11219
  %v11227 = vmul.f32 %v10451, %v11219
  %v11228 = vmul.f32 %v10454, %v11219
  %v11229 = vmul.f32 %v10459, %v11219
  %v11230 = vmul.f32 %v10462, %v11219
  %v11231 = vmul.f32 %v10467, %v11219
  %v11232 = vmul.f32 %v10470, %v11219
  %v11233 = vmul.f32 %v10475, %v11219
  %v11234 = vmul.f32 %v10478, %v11219
  %v11235 = vmul.f32 %v10483, %v11219
  %v11236 = vmul.f32 %v10486, %v11219
  %v11237 = vmul.f32 %v10491, %v11219
  %v11238 = vmul.f32 %v10494, %v11219
  %v11239 = vmul.f32 %v10499, %v11219
  %v11240 = vmul.f32 %v10502, %v11219
  %v11241 = vmul.f32 %v10507, %v11219
  %v11242 = vmul.f32 %v10510, %v11219
  %v11243 = vmul.f32 %v10515, %v11219
  %v11244 = vmul.f32 %v10518, %v11219
  %v11245 = vmul.f32 %v10523, %v11219
  %v11246 = vmul.f32 %v10526, %v11219
  %v11247 = vmul.f32 %v10531, %v11219
  %v11248 = vmul.f32 %v10534, %v11219
  %v11249 = vmul.f32 %v10539, %v11219
  %v11250 = vmul.f32 %v10542, %v11219
  %v11251 = vmul.f32 %v10547, %v11219
  %v11252 = vmul.f32 %v10550, %v11219
  %v11253 = vmul.f32 %v10555, %v11219
  %v11254 = vmul.f32 %v10558, %v11219
  %v11255 = vmul.f32 %v10563, %v11219
  %v11256 = vmul.f32 %v10566, %v11219
  %v11257 = vmul.f32 %v10571, %v11219
  %v11258 = vmul.f32 %v10574, %v11219
  %v11259 = vmul.f32 %v10579, %v11219
  %v11260 = vmul.f32 %v10582, %v11219
  %v11261 = vmul.f32 %v10587, %v11219
  %v11262 = vmul.f32 %v10590, %v11219
  %v11263 = vmul.f32 %v10595, %v11219
  %v11264 = vmul.f32 %v10598, %v11219
  %v11265 = vmul.f32 %v10603, %v11219
  %v11266 = vmul.f32 %v10606, %v11219
  %v11267 = vmul.f32 %v10611, %v11219
  %v11268 = vmul.f32 %v10614, %v11219
  %v11269 = vmul.f32 %v10619, %v11219
  %v11270 = vmul.f32 %v10622, %v11219
  %v11271 = vmul.f32 %v10627, %v11219
  %v11272 = vmul.f32 %v10630, %v11219
  %v11273 = vmul.f32 %v10635, %v11219
  %v11274 = vmul.f32 %v10638, %v11219
  %v11275 = vmul.f32 %v10643, %v11219
  %v11276 = vmul.f32 %v10646, %v11219
  %v11277 = vmul.f32 %v10651, %v11219
  %v11278 = vmul.f32 %v10654, %v11219
  %v11279 = vmul.f32 %v10659, %v11219
  %v11280 = vmul.f32 %v10662, %v11219
  %v11281 = vmul.f32 %v10667, %v11219
  %v11282 = vmul.f32 %v10670, %v11219
  %v11283 = vmul.f32 %v10675, %v11219
  %v11284 = vmul.f32 %v10678, %v11219
  %v11285 = vmul.f32 %v10683, %v11219
  %v11286 = vmul.f32 %v10686, %v11219
  %v11287 = vmul.f32 %v10691, %v11219
  %v11288 = vmul.f32 %v10694, %v11219
  %v11289 = vmul.f32 %v10699, %v11219
  %v11290 = vmul.f32 %v10702, %v11219
  %v11291 = vmul.f32 %v10707, %v11219
  %v11292 = vmul.f32 %v10710, %v11219
  %v11293 = vmul.f32 %v10715, %v11219
  %v11294 = vmul.f32 %v10718, %v11219
  %v11295 = vmul.f32 %v10723, %v11219
  %v11296 = vmul.f32 %v10726, %v11219
  %v11297 = vmul.f32 %v10731, %v11219
  %v11298 = vmul.f32 %v10734, %v11219
  %v11299 = vmul.f32 %v10739, %v11219
  %v11300 = vmul.f32 %v10742, %v11219
  %v11301 = vmul.f32 %v10747, %v11219
  %v11302 = vmul.f32 %v10750, %v11219
  %v11303 = vmul.f32 %v10755, %v11219
  %v11304 = vmul.f32 %v10758, %v11219
  %v11305 = vmul.f32 %v10763, %v11219
  %v11306 = vmul.f32 %v10766, %v11219
  %v11307 = vmul.f32 %v10771, %v11219
  %v11308 = vmul.f32 %v10774, %v11219
  %v11309 = vmul.f32 %v10779, %v11219
  %v11310 = vmul.f32 %v10782, %v11219
  %v11311 = vmul.f32 %v10787, %v11219
  %v11312 = vmul.f32 %v10790, %v11219
  %v11313 = vmul.f32 %v10795, %v11219
  %v11314 = vmul.f32 %v10798, %v11219
  %v11315 = vmul.f32 %v10803, %v11219
  %v11316 = vmul.f32 %v10806, %v11219
  %v11318 = vlaneseq
  %v11319 = vshrl.u32 %v11318, 7
  %v11320 = vsub.s32 0, %v11319
  %v11321 = vrot.slane %v11214, %v11320
  %v11323 = vadd.f32 %v11221, %v11321
  %v11324 = vadd.f32 %v11222, %v11321
  %v11325 = vadd.f32 %v11223, %v11321
  %v11326 = vadd.f32 %v11224, %v11321
  %v11327 = vadd.f32 %v11225, %v11321
  %v11328 = vadd.f32 %v11226, %v11321
  %v11329 = vadd.f32 %v11227, %v11321
  %v11330 = vadd.f32 %v11228, %v11321
  %v11331 = vadd.f32 %v11229, %v11321
  %v11332 = vadd.f32 %v11230, %v11321
  %v11333 = vadd.f32 %v11231, %v11321
  %v11334 = vadd.f32 %v11232, %v11321
  %v11335 = vadd.f32 %v11233, %v11321
  %v11336 = vadd.f32 %v11234, %v11321
  %v11337 = vadd.f32 %v11235, %v11321
  %v11338 = vadd.f32 %v11236, %v11321
  %v11339 = vadd.f32 %v11237, %v11321
  %v11340 = vadd.f32 %v11238, %v11321
  %v11341 = vadd.f32 %v11239, %v11321
  %v11342 = vadd.f32 %v11240, %v11321
  %v11343 = vadd.f32 %v11241, %v11321
  %v11344 = vadd.f32 %v11242, %v11321
  %v11345 = vadd.f32 %v11243, %v11321
  %v11346 = vadd.f32 %v11244, %v11321
  %v11347 = vadd.f32 %v11245, %v11321
  %v11348 = vadd.f32 %v11246, %v11321
  %v11349 = vadd.f32 %v11247, %v11321
  %v11350 = vadd.f32 %v11248, %v11321
  %v11351 = vadd.f32 %v11249, %v11321
  %v11352 = vadd.f32 %v11250, %v11321
  %v11353 = vadd.f32 %v11251, %v11321
  %v11354 = vadd.f32 %v11252, %v11321
  %v11355 = vadd.f32 %v11253, %v11321
  %v11356 = vadd.f32 %v11254, %v11321
  %v11357 = vadd.f32 %v11255, %v11321
  %v11358 = vadd.f32 %v11256, %v11321
  %v11359 = vadd.f32 %v11257, %v11321
  %v11360 = vadd.f32 %v11258, %v11321
  %v11361 = vadd.f32 %v11259, %v11321
  %v11362 = vadd.f32 %v11260, %v11321
  %v11363 = vadd.f32 %v11261, %v11321
  %v11364 = vadd.f32 %v11262, %v11321
  %v11365 = vadd.f32 %v11263, %v11321
  %v11366 = vadd.f32 %v11264, %v11321
  %v11367 = vadd.f32 %v11265, %v11321
  %v11368 = vadd.f32 %v11266, %v11321
  %v11369 = vadd.f32 %v11267, %v11321
  %v11370 = vadd.f32 %v11268, %v11321
  %v11371 = vadd.f32 %v11269, %v11321
  %v11372 = vadd.f32 %v11270, %v11321
  %v11373 = vadd.f32 %v11271, %v11321
  %v11374 = vadd.f32 %v11272, %v11321
  %v11375 = vadd.f32 %v11273, %v11321
  %v11376 = vadd.f32 %v11274, %v11321
  %v11377 = vadd.f32 %v11275, %v11321
  %v11378 = vadd.f32 %v11276, %v11321
  %v11379 = vadd.f32 %v11277, %v11321
  %v11380 = vadd.f32 %v11278, %v11321
  %v11381 = vadd.f32 %v11279, %v11321
  %v11382 = vadd.f32 %v11280, %v11321
  %v11383 = vadd.f32 %v11281, %v11321
  %v11384 = vadd.f32 %v11282, %v11321
  %v11385 = vadd.f32 %v11283, %v11321
  %v11386 = vadd.f32 %v11284, %v11321
  %v11387 = vadd.f32 %v11285, %v11321
  %v11388 = vadd.f32 %v11286, %v11321
  %v11389 = vadd.f32 %v11287, %v11321
  %v11390 = vadd.f32 %v11288, %v11321
  %v11391 = vadd.f32 %v11289, %v11321
  %v11392 = vadd.f32 %v11290, %v11321
  %v11393 = vadd.f32 %v11291, %v11321
  %v11394 = vadd.f32 %v11292, %v11321
  %v11395 = vadd.f32 %v11293, %v11321
  %v11396 = vadd.f32 %v11294, %v11321
  %v11397 = vadd.f32 %v11295, %v11321
  %v11398 = vadd.f32 %v11296, %v11321
  %v11399 = vadd.f32 %v11297, %v11321
  %v11400 = vadd.f32 %v11298, %v11321
  %v11401 = vadd.f32 %v11299, %v11321
  %v11402 = vadd.f32 %v11300, %v11321
  %v11403 = vadd.f32 %v11301, %v11321
  %v11404 = vadd.f32 %v11302, %v11321
  %v11405 = vadd.f32 %v11303, %v11321
  %v11406 = vadd.f32 %v11304, %v11321
  %v11407 = vadd.f32 %v11305, %v11321
  %v11408 = vadd.f32 %v11306, %v11321
  %v11409 = vadd.f32 %v11307, %v11321
  %v11410 = vadd.f32 %v11308, %v11321
  %v11411 = vadd.f32 %v11309, %v11321
  %v11412 = vadd.f32 %v11310, %v11321
  %v11413 = vadd.f32 %v11311, %v11321
  %v11414 = vadd.f32 %v11312, %v11321
  %v11415 = vadd.f32 %v11313, %v11321
  %v11416 = vadd.f32 %v11314, %v11321
  %v11417 = vadd.f32 %v11315, %v11321
  %v11418 = vadd.f32 %v11316, %v11321
  %v11419 = vmax.f32 %v11323, 0.0
  %v11420 = vmax.f32 %v11324, 0.0
  %v11421 = vmax.f32 %v11325, 0.0
  %v11422 = vmax.f32 %v11326, 0.0
  %v11423 = vmax.f32 %v11327, 0.0
  %v11424 = vmax.f32 %v11328, 0.0
  %v11425 = vmax.f32 %v11329, 0.0
  %v11426 = vmax.f32 %v11330, 0.0
  %v11427 = vmax.f32 %v11331, 0.0
  %v11428 = vmax.f32 %v11332, 0.0
  %v11429 = vmax.f32 %v11333, 0.0
  %v11430 = vmax.f32 %v11334, 0.0
  %v11431 = vmax.f32 %v11335, 0.0
  %v11432 = vmax.f32 %v11336, 0.0
  %v11433 = vmax.f32 %v11337, 0.0
  %v11434 = vmax.f32 %v11338, 0.0
  %v11435 = vmax.f32 %v11339, 0.0
  %v11436 = vmax.f32 %v11340, 0.0
  %v11437 = vmax.f32 %v11341, 0.0
  %v11438 = vmax.f32 %v11342, 0.0
  %v11439 = vmax.f32 %v11343, 0.0
  %v11440 = vmax.f32 %v11344, 0.0
  %v11441 = vmax.f32 %v11345, 0.0
  %v11442 = vmax.f32 %v11346, 0.0
  %v11443 = vmax.f32 %v11347, 0.0
  %v11444 = vmax.f32 %v11348, 0.0
  %v11445 = vmax.f32 %v11349, 0.0
  %v11446 = vmax.f32 %v11350, 0.0
  %v11447 = vmax.f32 %v11351, 0.0
  %v11448 = vmax.f32 %v11352, 0.0
  %v11449 = vmax.f32 %v11353, 0.0
  %v11450 = vmax.f32 %v11354, 0.0
  %v11451 = vmax.f32 %v11355, 0.0
  %v11452 = vmax.f32 %v11356, 0.0
  %v11453 = vmax.f32 %v11357, 0.0
  %v11454 = vmax.f32 %v11358, 0.0
  %v11455 = vmax.f32 %v11359, 0.0
  %v11456 = vmax.f32 %v11360, 0.0
  %v11457 = vmax.f32 %v11361, 0.0
  %v11458 = vmax.f32 %v11362, 0.0
  %v11459 = vmax.f32 %v11363, 0.0
  %v11460 = vmax.f32 %v11364, 0.0
  %v11461 = vmax.f32 %v11365, 0.0
  %v11462 = vmax.f32 %v11366, 0.0
  %v11463 = vmax.f32 %v11367, 0.0
  %v11464 = vmax.f32 %v11368, 0.0
  %v11465 = vmax.f32 %v11369, 0.0
  %v11466 = vmax.f32 %v11370, 0.0
  %v11467 = vmax.f32 %v11371, 0.0
  %v11468 = vmax.f32 %v11372, 0.0
  %v11469 = vmax.f32 %v11373, 0.0
  %v11470 = vmax.f32 %v11374, 0.0
  %v11471 = vmax.f32 %v11375, 0.0
  %v11472 = vmax.f32 %v11376, 0.0
  %v11473 = vmax.f32 %v11377, 0.0
  %v11474 = vmax.f32 %v11378, 0.0
  %v11475 = vmax.f32 %v11379, 0.0
  %v11476 = vmax.f32 %v11380, 0.0
  %v11477 = vmax.f32 %v11381, 0.0
  %v11478 = vmax.f32 %v11382, 0.0
  %v11479 = vmax.f32 %v11383, 0.0
  %v11480 = vmax.f32 %v11384, 0.0
  %v11481 = vmax.f32 %v11385, 0.0
  %v11482 = vmax.f32 %v11386, 0.0
  %v11483 = vmax.f32 %v11387, 0.0
  %v11484 = vmax.f32 %v11388, 0.0
  %v11485 = vmax.f32 %v11389, 0.0
  %v11486 = vmax.f32 %v11390, 0.0
  %v11487 = vmax.f32 %v11391, 0.0
  %v11488 = vmax.f32 %v11392, 0.0
  %v11489 = vmax.f32 %v11393, 0.0
  %v11490 = vmax.f32 %v11394, 0.0
  %v11491 = vmax.f32 %v11395, 0.0
  %v11492 = vmax.f32 %v11396, 0.0
  %v11493 = vmax.f32 %v11397, 0.0
  %v11494 = vmax.f32 %v11398, 0.0
  %v11495 = vmax.f32 %v11399, 0.0
  %v11496 = vmax.f32 %v11400, 0.0
  %v11497 = vmax.f32 %v11401, 0.0
  %v11498 = vmax.f32 %v11402, 0.0
  %v11499 = vmax.f32 %v11403, 0.0
  %v11500 = vmax.f32 %v11404, 0.0
  %v11501 = vmax.f32 %v11405, 0.0
  %v11502 = vmax.f32 %v11406, 0.0
  %v11503 = vmax.f32 %v11407, 0.0
  %v11504 = vmax.f32 %v11408, 0.0
  %v11505 = vmax.f32 %v11409, 0.0
  %v11506 = vmax.f32 %v11410, 0.0
  %v11507 = vmax.f32 %v11411, 0.0
  %v11508 = vmax.f32 %v11412, 0.0
  %v11509 = vmax.f32 %v11413, 0.0
  %v11510 = vmax.f32 %v11414, 0.0
  %v11511 = vmax.f32 %v11415, 0.0
  %v11512 = vmax.f32 %v11416, 0.0
  %v11513 = vmax.f32 %v11417, 0.0
  %v11514 = vmax.f32 %v11418, 0.0
  %v11515 = vmul.f32 %v11419, %v2044
  %v11516 = vmul.f32 %v11420, %v2045
  %v11517 = vmul.f32 %v11421, %v2046
  %v11518 = vmul.f32 %v11422, %v2047
  %v11519 = vmul.f32 %v11423, %v2048
  %v11520 = vmul.f32 %v11424, %v2049
  %v11521 = vmul.f32 %v11425, %v2050
  %v11522 = vmul.f32 %v11426, %v2051
  %v11523 = vmul.f32 %v11427, %v2052
  %v11524 = vmul.f32 %v11428, %v2053
  %v11525 = vmul.f32 %v11429, %v2054
  %v11526 = vmul.f32 %v11430, %v2055
  %v11527 = vmul.f32 %v11431, %v2056
  %v11528 = vmul.f32 %v11432, %v2057
  %v11529 = vmul.f32 %v11433, %v2058
  %v11530 = vmul.f32 %v11434, %v2059
  %v11531 = vmul.f32 %v11435, %v2060
  %v11532 = vmul.f32 %v11436, %v2061
  %v11533 = vmul.f32 %v11437, %v2062
  %v11534 = vmul.f32 %v11438, %v2063
  %v11535 = vmul.f32 %v11439, %v2064
  %v11536 = vmul.f32 %v11440, %v2065
  %v11537 = vmul.f32 %v11441, %v2066
  %v11538 = vmul.f32 %v11442, %v2067
  %v11539 = vmul.f32 %v11443, %v2068
  %v11540 = vmul.f32 %v11444, %v2069
  %v11541 = vmul.f32 %v11445, %v2070
  %v11542 = vmul.f32 %v11446, %v2071
  %v11543 = vmul.f32 %v11447, %v2072
  %v11544 = vmul.f32 %v11448, %v2073
  %v11545 = vmul.f32 %v11449, %v2074
  %v11546 = vmul.f32 %v11450, %v2075
  %v11547 = vmul.f32 %v11451, %v2076
  %v11548 = vmul.f32 %v11452, %v2077
  %v11549 = vmul.f32 %v11453, %v2078
  %v11550 = vmul.f32 %v11454, %v2079
  %v11551 = vmul.f32 %v11455, %v2080
  %v11552 = vmul.f32 %v11456, %v2081
  %v11553 = vmul.f32 %v11457, %v2082
  %v11554 = vmul.f32 %v11458, %v2083
  %v11555 = vmul.f32 %v11459, %v2084
  %v11556 = vmul.f32 %v11460, %v2085
  %v11557 = vmul.f32 %v11461, %v2086
  %v11558 = vmul.f32 %v11462, %v2087
  %v11559 = vmul.f32 %v11463, %v2088
  %v11560 = vmul.f32 %v11464, %v2089
  %v11561 = vmul.f32 %v11465, %v2090
  %v11562 = vmul.f32 %v11466, %v2091
  %v11563 = vmul.f32 %v11467, %v2092
  %v11564 = vmul.f32 %v11468, %v2093
  %v11565 = vmul.f32 %v11469, %v2094
  %v11566 = vmul.f32 %v11470, %v2095
  %v11567 = vmul.f32 %v11471, %v2096
  %v11568 = vmul.f32 %v11472, %v2097
  %v11569 = vmul.f32 %v11473, %v2098
  %v11570 = vmul.f32 %v11474, %v2099
  %v11571 = vmul.f32 %v11475, %v2100
  %v11572 = vmul.f32 %v11476, %v2101
  %v11573 = vmul.f32 %v11477, %v2102
  %v11574 = vmul.f32 %v11478, %v2103
  %v11575 = vmul.f32 %v11479, %v2104
  %v11576 = vmul.f32 %v11480, %v2105
  %v11577 = vmul.f32 %v11481, %v2106
  %v11578 = vmul.f32 %v11482, %v2107
  %v11579 = vmul.f32 %v11483, %v2108
  %v11580 = vmul.f32 %v11484, %v2109
  %v11581 = vmul.f32 %v11485, %v2110
  %v11582 = vmul.f32 %v11486, %v2111
  %v11583 = vmul.f32 %v11487, %v2112
  %v11584 = vmul.f32 %v11488, %v2113
  %v11585 = vmul.f32 %v11489, %v2114
  %v11586 = vmul.f32 %v11490, %v2115
  %v11587 = vmul.f32 %v11491, %v2116
  %v11588 = vmul.f32 %v11492, %v2117
  %v11589 = vmul.f32 %v11493, %v2118
  %v11590 = vmul.f32 %v11494, %v2119
  %v11591 = vmul.f32 %v11495, %v2120
  %v11592 = vmul.f32 %v11496, %v2121
  %v11593 = vmul.f32 %v11497, %v2122
  %v11594 = vmul.f32 %v11498, %v2123
  %v11595 = vmul.f32 %v11499, %v2124
  %v11596 = vmul.f32 %v11500, %v2125
  %v11597 = vmul.f32 %v11501, %v2126
  %v11598 = vmul.f32 %v11502, %v2127
  %v11599 = vmul.f32 %v11503, %v2128
  %v11600 = vmul.f32 %v11504, %v2129
  %v11601 = vmul.f32 %v11505, %v2130
  %v11602 = vmul.f32 %v11506, %v2131
  %v11603 = vmul.f32 %v11507, %v2132
  %v11604 = vmul.f32 %v11508, %v2133
  %v11605 = vmul.f32 %v11509, %v2134
  %v11606 = vmul.f32 %v11510, %v2135
  %v11607 = vmul.f32 %v11511, %v2136
  %v11608 = vmul.f32 %v11512, %v2137
  %v11609 = vmul.f32 %v11513, %v2138
  %v11610 = vmul.f32 %v11514, %v2139
  %11611 = vst [vmem:[%s7] sm:$0xff] %v11515
  %11612 = vst [vmem:[%s7 + $0x8] sm:$0xff] %v11516
  %11613 = vst [vmem:[%s7 + $0x10] sm:$0xff] %v11517
  %11614 = vst [vmem:[%s7 + $0x18] sm:$0xff] %v11518
  %11615 = vst [vmem:[%s7 + $0x20] sm:$0xff] %v11519
  %11616 = vst [vmem:[%s7 + $0x28] sm:$0xff] %v11520
  %11617 = vst [vmem:[%s7 + $0x30] sm:$0xff] %v11521
  %11618 = vst [vmem:[%s7 + $0x38] sm:$0xff] %v11522
  %11619 = vst [vmem:[%s7 + $0x40] sm:$0xff] %v11523
  %11620 = vst [vmem:[%s7 + $0x48] sm:$0xff] %v11524
  %11621 = vst [vmem:[%s7 + $0x50] sm:$0xff] %v11525
  %11622 = vst [vmem:[%s7 + $0x58] sm:$0xff] %v11526
  %11623 = vst [vmem:[%s7 + $0x60] sm:$0xff] %v11527
  %11624 = vst [vmem:[%s7 + $0x68] sm:$0xff] %v11528
  %11625 = vst [vmem:[%s7 + $0x70] sm:$0xff] %v11529
  %11626 = vst [vmem:[%s7 + $0x78] sm:$0xff] %v11530
  %11627 = vst [vmem:[%s7 + $0x80] sm:$0xff] %v11531
  %11628 = vst [vmem:[%s7 + $0x88] sm:$0xff] %v11532
  %11629 = vst [vmem:[%s7 + $0x90] sm:$0xff] %v11533
  %11630 = vst [vmem:[%s7 + $0x98] sm:$0xff] %v11534
  %11631 = vst [vmem:[%s7 + $0xa0] sm:$0xff] %v11535
  %11632 = vst [vmem:[%s7 + $0xa8] sm:$0xff] %v11536
  %11633 = vst [vmem:[%s7 + $0xb0] sm:$0xff] %v11537
  %11634 = vst [vmem:[%s7 + $0xb8] sm:$0xff] %v11538
  %11635 = vst [vmem:[%s7 + $0xc0] sm:$0xff] %v11539
  %11636 = vst [vmem:[%s7 + $0xc8] sm:$0xff] %v11540
  %11637 = vst [vmem:[%s7 + $0xd0] sm:$0xff] %v11541
  %11638 = vst [vmem:[%s7 + $0xd8] sm:$0xff] %v11542
  %11639 = vst [vmem:[%s7 + $0xe0] sm:$0xff] %v11543
  %11640 = vst [vmem:[%s7 + $0xe8] sm:$0xff] %v11544
  %11641 = vst [vmem:[%s7 + $0xf0] sm:$0xff] %v11545
  %11642 = vst [vmem:[%s7 + $0xf8] sm:$0xff] %v11546
  %11643 = vst [vmem:[%s7 + $0x100] sm:$0xff] %v11547
  %11644 = vst [vmem:[%s7 + $0x108] sm:$0xff] %v11548
  %11645 = vst [vmem:[%s7 + $0x110] sm:$0xff] %v11549
  %11646 = vst [vmem:[%s7 + $0x118] sm:$0xff] %v11550
  %11647 = vst [vmem:[%s7 + $0x120] sm:$0xff] %v11551
  %11648 = vst [vmem:[%s7 + $0x128] sm:$0xff] %v11552
  %11649 = vst [vmem:[%s7 + $0x130] sm:$0xff] %v11553
  %11650 = vst [vmem:[%s7 + $0x138] sm:$0xff] %v11554
  %11651 = vst [vmem:[%s7 + $0x140] sm:$0xff] %v11555
  %11652 = vst [vmem:[%s7 + $0x148] sm:$0xff] %v11556
  %11653 = vst [vmem:[%s7 + $0x150] sm:$0xff] %v11557
  %11654 = vst [vmem:[%s7 + $0x158] sm:$0xff] %v11558
  %11655 = vst [vmem:[%s7 + $0x160] sm:$0xff] %v11559
  %11656 = vst [vmem:[%s7 + $0x168] sm:$0xff] %v11560
  %11657 = vst [vmem:[%s7 + $0x170] sm:$0xff] %v11561
  %11658 = vst [vmem:[%s7 + $0x178] sm:$0xff] %v11562
  %11659 = vst [vmem:[%s7 + $0x180] sm:$0xff] %v11563
  %11660 = vst [vmem:[%s7 + $0x188] sm:$0xff] %v11564
  %11661 = vst [vmem:[%s7 + $0x190] sm:$0xff] %v11565
  %11662 = vst [vmem:[%s7 + $0x198] sm:$0xff] %v11566
  %11663 = vst [vmem:[%s7 + $0x1a0] sm:$0xff] %v11567
  %11664 = vst [vmem:[%s7 + $0x1a8] sm:$0xff] %v11568
  %11665 = vst [vmem:[%s7 + $0x1b0] sm:$0xff] %v11569
  %11666 = vst [vmem:[%s7 + $0x1b8] sm:$0xff] %v11570
  %11667 = vst [vmem:[%s7 + $0x1c0] sm:$0xff] %v11571
  %11668 = vst [vmem:[%s7 + $0x1c8] sm:$0xff] %v11572
  %11669 = vst [vmem:[%s7 + $0x1d0] sm:$0xff] %v11573
  %11670 = vst [vmem:[%s7 + $0x1d8] sm:$0xff] %v11574
  %11671 = vst [vmem:[%s7 + $0x1e0] sm:$0xff] %v11575
  %11672 = vst [vmem:[%s7 + $0x1e8] sm:$0xff] %v11576
  %11673 = vst [vmem:[%s7 + $0x1f0] sm:$0xff] %v11577
  %11674 = vst [vmem:[%s7 + $0x1f8] sm:$0xff] %v11578
  %11675 = vst [vmem:[%s7 + $0x200] sm:$0xff] %v11579
  %11676 = vst [vmem:[%s7 + $0x208] sm:$0xff] %v11580
  %11677 = vst [vmem:[%s7 + $0x210] sm:$0xff] %v11581
  %11678 = vst [vmem:[%s7 + $0x218] sm:$0xff] %v11582
  %11679 = vst [vmem:[%s7 + $0x220] sm:$0xff] %v11583
  %11680 = vst [vmem:[%s7 + $0x228] sm:$0xff] %v11584
  %11681 = vst [vmem:[%s7 + $0x230] sm:$0xff] %v11585
  %11682 = vst [vmem:[%s7 + $0x238] sm:$0xff] %v11586
  %11683 = vst [vmem:[%s7 + $0x240] sm:$0xff] %v11587
  %11684 = vst [vmem:[%s7 + $0x248] sm:$0xff] %v11588
  %11685 = vst [vmem:[%s7 + $0x250] sm:$0xff] %v11589
  %11686 = vst [vmem:[%s7 + $0x258] sm:$0xff] %v11590
  %11687 = vst [vmem:[%s7 + $0x260] sm:$0xff] %v11591
  %11688 = vst [vmem:[%s7 + $0x268] sm:$0xff] %v11592
  %11689 = vst [vmem:[%s7 + $0x270] sm:$0xff] %v11593
  %11690 = vst [vmem:[%s7 + $0x278] sm:$0xff] %v11594
  %11691 = vst [vmem:[%s7 + $0x280] sm:$0xff] %v11595
  %11692 = vst [vmem:[%s7 + $0x288] sm:$0xff] %v11596
  %11693 = vst [vmem:[%s7 + $0x290] sm:$0xff] %v11597
  %11694 = vst [vmem:[%s7 + $0x298] sm:$0xff] %v11598
  %11695 = vst [vmem:[%s7 + $0x2a0] sm:$0xff] %v11599
  %11696 = vst [vmem:[%s7 + $0x2a8] sm:$0xff] %v11600
  %11697 = vst [vmem:[%s7 + $0x2b0] sm:$0xff] %v11601
  %11698 = vst [vmem:[%s7 + $0x2b8] sm:$0xff] %v11602
  %11699 = vst [vmem:[%s7 + $0x2c0] sm:$0xff] %v11603
  %11700 = vst [vmem:[%s7 + $0x2c8] sm:$0xff] %v11604
  %11701 = vst [vmem:[%s7 + $0x2d0] sm:$0xff] %v11605
  %11702 = vst [vmem:[%s7 + $0x2d8] sm:$0xff] %v11606
  %11703 = vst [vmem:[%s7 + $0x2e0] sm:$0xff] %v11607
  %11704 = vst [vmem:[%s7 + $0x2e8] sm:$0xff] %v11608
  %11705 = vst [vmem:[%s7 + $0x2f0] sm:$0xff] %v11609
  %11706 = vst [vmem:[%s7 + $0x2f8] sm:$0xff] %v11610
  // Predicated region
  $region30: #{double_conv.1} parent=0 // pred_check
    _
  $region31: #{double_conv.1} parent=0 // pred_check_branch
    %11708 = sbr.rel (0) target = $region33
  $region32: #{double_conv.1} parent=0 // pred_region
    _
  $region33: #{double_conv.1} parent=0 // pred_fallthru
    _
  // Predicated region
  $region34: #{double_conv.1} parent=0 // pred_check
    _
  $region35: #{double_conv.1} parent=0 // pred_check_branch
    %11710 = sbr.rel (0) target = $region37
  $region36: #{double_conv.1} parent=0 // pred_region
    _
  $region37: #{double_conv.1} parent=0 // pred_fallthru
    _

</llo_original>
